<compile_context>
chip_gen: v5e
topology: v5e:2x2
jax: 0.10.0
libtpu: 0.0.40
codegen_flags: <defaults>
</compile_context>

<pallas_src>
import jax
import jax.numpy as jnp
from jax import lax
from jax.experimental import pallas as pl
from jax.experimental.pallas import tpu as pltpu

D = 768          # VIT_BASE_HIDDEN_SIZE
H = 12           # VIT_BASE_HEADS
HD = D // H      # 64
FF = 3072        # VIT_BASE_MLP_SIZE
FF_CHUNK = 1536  # FF tile for the MLP kernel (2 chunks)
EPS = 1e-5       # torch.nn.LayerNorm default eps
_INV_SQRT2 = 0.7071067811865476

# TODO(synk): Dropout (p=0.1 on attention and MLP) has no inference-time effect; it is
# implemented as identity (eval mode), not as stochastic masking.


# ----------------------------- MSA block kernel -----------------------------
def _msa_kernel(x_ref, g_ref, b_ref, wqkv_ref, bqkv_ref, wo_ref, bo_ref,
                o_ref, ctx_scr):
    x = x_ref[0]                                                  # (S, D) f32
    mu = jnp.mean(x, axis=-1, keepdims=True)
    var = jnp.mean(jnp.square(x - mu), axis=-1, keepdims=True)
    ln = (x - mu) * lax.rsqrt(var + EPS) * g_ref[...] + b_ref[...]

    # Fused full-width QKV projection (scale 1/sqrt(HD) pre-folded into the Q part,
    # biases added once outside the head loop).
    qkv = jnp.dot(ln.astype(jnp.bfloat16), wqkv_ref[...],
                  preferred_element_type=jnp.float32) + bqkv_ref[...]   # (S, 3D) f32
    qkv_bf = qkv.astype(jnp.bfloat16)

    for h in range(H):                                            # static unrolled loop
        qh = qkv_bf[:, h * HD:(h + 1) * HD]                       # (S, HD)
        kh = qkv_bf[:, D + h * HD: D + (h + 1) * HD]
        vh = qkv_bf[:, 2 * D + h * HD: 2 * D + (h + 1) * HD]
        s = lax.dot_general(qh, kh, (((1,), (1,)), ((), ())),
                            preferred_element_type=jnp.float32)   # (S, S) f32
        s = s - jnp.max(s, axis=-1, keepdims=True)
        p = jnp.exp(s)
        p = p / jnp.sum(p, axis=-1, keepdims=True)
        ctx_scr[:, h * HD:(h + 1) * HD] = jnp.dot(
            p.astype(jnp.bfloat16), vh, preferred_element_type=jnp.float32)

    # Single full-width output projection (K = 768) + residual.
    attn = jnp.dot(ctx_scr[...].astype(jnp.bfloat16), wo_ref[...],
                   preferred_element_type=jnp.float32) + bo_ref[...]
    o_ref[0] = (attn + x).astype(o_ref.dtype)


def msa_residual(x, params):
    B, S, _ = x.shape

    def const(shape):
        return pl.BlockSpec(shape, lambda b, _s=len(shape): (0,) * _s)

    return pl.pallas_call(
        _msa_kernel,
        out_shape=jax.ShapeDtypeStruct((B, S, D), x.dtype),
        grid_spec=pltpu.PrefetchScalarGridSpec(
            num_scalar_prefetch=0,
            grid=(B,),
            in_specs=[
                pl.BlockSpec((1, S, D), lambda b: (b, 0, 0)),   # x
                const((1, D)), const((1, D)),                   # ln gamma / beta
                const((D, 3 * D)),                              # fused Wqkv (bf16)
                const((1, 3 * D)),                              # fused bqkv (f32)
                const((D, D)),                                  # Wo (bf16)
                const((1, D)),                                  # bo
            ],
            out_specs=pl.BlockSpec((1, S, D), lambda b: (b, 0, 0)),
            scratch_shapes=[pltpu.VMEM((S, D), jnp.float32)],   # per-head ctx slab
        ),
        compiler_params=pltpu.CompilerParams(
            dimension_semantics=("parallel",),
            vmem_limit_bytes=40 * 1024 * 1024),
    )(x, params["g1"], params["b1"],
      params["wqkv"], params["bqkv"], params["wo_bf"], params["bo2d"])


# ----------------------------- MLP block kernel -----------------------------
def _mlp_kernel(y_ref, g_ref, b_ref, w1_ref, b1_ref, w2_ref, b2_ref,
                o_ref, ln_scr, acc_scr):
    c = pl.program_id(1)

    @pl.when(c == 0)
    def _():
        y = y_ref[...]
        mu = jnp.mean(y, axis=-1, keepdims=True)
        var = jnp.mean(jnp.square(y - mu), axis=-1, keepdims=True)
        ln_scr[...] = (y - mu) * lax.rsqrt(var + EPS) * g_ref[...] + b_ref[...]
        acc_scr[...] = jnp.zeros_like(acc_scr)

    hpre = jnp.dot(ln_scr[...].astype(jnp.bfloat16), w1_ref[...],
                   preferred_element_type=jnp.float32) + b1_ref[...]
    hact = 0.5 * hpre * (1.0 + lax.erf(hpre * _INV_SQRT2))        # exact GELU (f32)
    acc_scr[...] += jnp.dot(hact.astype(jnp.bfloat16), w2_ref[...],
                            preferred_element_type=jnp.float32)

    @pl.when(c == pl.num_programs(1) - 1)
    def _():
        o_ref[...] = (acc_scr[...] + b2_ref[...] + y_ref[...]).astype(o_ref.dtype)


def _pick_row_tile(n):
    for t in (512, 256, 128, 64, 32, 16, 8):
        if n % t == 0:
            return t
    return n


def mlp_residual(y, params):
    B, S, _ = y.shape
    N = B * S
    y2 = y.reshape(N, D)
    tm = _pick_row_tile(N)
    n_rows = N // tm if N % tm == 0 else 1
    n_chunks = FF // FF_CHUNK
    out = pl.pallas_call(
        _mlp_kernel,
        out_shape=jax.ShapeDtypeStruct((N, D), y.dtype),
        grid_spec=pltpu.PrefetchScalarGridSpec(
            num_scalar_prefetch=0,
            grid=(n_rows, n_chunks),
            in_specs=[
                pl.BlockSpec((tm, D), lambda r, c: (r, 0)),          # y (residual input)
                pl.BlockSpec((1, D), lambda r, c: (0, 0)),           # ln gamma
                pl.BlockSpec((1, D), lambda r, c: (0, 0)),           # ln beta
                pl.BlockSpec((D, FF_CHUNK), lambda r, c: (0, c)),    # W1 chunk (bf16)
                pl.BlockSpec((1, FF_CHUNK), lambda r, c: (0, c)),    # b1 chunk
                pl.BlockSpec((FF_CHUNK, D), lambda r, c: (c, 0)),    # W2 chunk (bf16)
                pl.BlockSpec((1, D), lambda r, c: (0, 0)),           # b2
            ],
            out_specs=pl.BlockSpec((tm, D), lambda r, c: (r, 0)),
            scratch_shapes=[pltpu.VMEM((tm, D), jnp.float32),        # ln(y) row tile
                            pltpu.VMEM((tm, D), jnp.float32)],       # accumulator
        ),
        compiler_params=pltpu.CompilerParams(
            dimension_semantics=("parallel", "arbitrary"),
            vmem_limit_bytes=40 * 1024 * 1024),
    )(y2, params["g2"], params["b2"], params["w1"], params["b1m"],
      params["w2"], params["b2m"])
    return out.reshape(B, S, D)


def transformer_encoder(x, params):
    y = msa_residual(x, params)        # x = msa(x) + x
    return mlp_residual(y, params)     # x = mlp_head(x) + x


# ----------------------------- params & reference ----------------------------
def init_params(key):
    ks = jax.random.split(key, 16)
    std = 0.02
    n = lambda k, shape: std * jax.random.normal(k, shape, jnp.float32)

    wq, wk, wv = n(ks[0], (D, D)), n(ks[1], (D, D)), n(ks[2], (D, D))
    bq, bk, bv = n(ks[3], (D,)), n(ks[4], (D,)), n(ks[5], (D,))
    wo, bo = n(ks[6], (D, D)), n(ks[7], (D,))
    g1 = 1.0 + n(ks[8], (D,))
    b1 = n(ks[9], (D,))
    g2 = 1.0 + n(ks[10], (D,))
    b2 = n(ks[11], (D,))
    w1, b1m = n(ks[12], (D, FF)), n(ks[13], (FF,))
    w2, b2m = n(ks[14], (FF, D)), n(ks[15], (D,))

    # Kernel form: fused QKV weight/bias with 1/sqrt(HD) folded into the Q part.
    scale = 1.0 / jnp.sqrt(jnp.float32(HD))
    wqkv = jnp.concatenate([wq * scale, wk, wv], axis=1)            # (D, 3D)
    bqkv = jnp.concatenate([bq * scale, bk, bv]).reshape(1, 3 * D)  # (1, 3D)

    return dict(
        # flat f32 form (used by the pure-JAX reference; matches torch semantics)
        wq=wq, wk=wk, wv=wv, bq=bq, bk=bk, bv=bv, wo=wo, bo=bo,
        g1_flat=g1, b1_flat=b1, g2_flat=g2, b2_flat=b2,
        w1_f32=w1, b1m_flat=b1m, w2_f32=w2, b2m_flat=b2m,
        # kernel form (matmul weights in bf16, everything else f32)
        g1=g1.reshape(1, D), b1=b1.reshape(1, D),
        g2=g2.reshape(1, D), b2=b2.reshape(1, D),
        wqkv=wqkv.astype(jnp.bfloat16), bqkv=bqkv,
        wo_bf=wo.astype(jnp.bfloat16), bo2d=bo.reshape(1, D),
        w1=w1.astype(jnp.bfloat16), b1m=b1m.reshape(1, FF),
        w2=w2.astype(jnp.bfloat16), b2m=b2m.reshape(1, D),
    )


def ref_forward(x, p):
    def ln(z, g, b):
        mu = z.mean(-1, keepdims=True)
        var = ((z - mu) ** 2).mean(-1, keepdims=True)
        return (z - mu) / jnp.sqrt(var + EPS) * g + b

    B, S, _ = x.shape
    h1 = ln(x, p["g1_flat"], p["b1_flat"])
    q = h1 @ p["wq"] + p["bq"]
    k = h1 @ p["wk"] + p["bk"]
    v = h1 @ p["wv"] + p["bv"]
    qh = q.reshape(B, S, H, HD).transpose(0, 2, 1, 3)
    kh = k.reshape(B, S, H, HD).transpose(0, 2, 1, 3)
    vh = v.reshape(B, S, H, HD).transpose(0, 2, 1, 3)
    s = (qh @ kh.transpose(0, 1, 3, 2)) / jnp.sqrt(jnp.float32(HD))
    a = jax.nn.softmax(s, axis=-1)
    ctx = (a @ vh).transpose(0, 2, 1, 3).reshape(B, S, D)
    y1 = ctx @ p["wo"] + p["bo"] + x
    h2 = ln(y1, p["g2_flat"], p["b2_flat"])
    m = jax.nn.gelu(h2 @ p["w1_f32"] + p["b1m_flat"], approximate=False)
    return m @ p["w2_f32"] + p["b2m_flat"] + y1


if __name__ == "__main__":
    key = jax.random.PRNGKey(0)
    kx, kp = jax.random.split(key)
    B, S = 2, 8
    x = jax.random.normal(kx, (B, S, D), jnp.float32)
    params = init_params(kp)

    out = jax.block_until_ready(transformer_encoder(x, params))
    ref = ref_forward(x, params)

    assert out.shape == (B, S, D)
    err = float(jnp.max(jnp.abs(out - ref)))
    # bf16 matmul weights vs f32 reference -> allow ~1e-2-level absolute error.
    assert err < 3e-2, f"max abs err {err}"
    print("KERNEL_OK")
</pallas_src>

<mosaic_0001>
module attributes {stable_mosaic.version = 11 : i64} {
  func.func @_msa_kernel(%arg0: i32, %arg1: memref<1x8x768xf32, #tpu.memory_space<vmem>>, %arg2: memref<1x768xf32, #tpu.memory_space<vmem>>, %arg3: memref<1x768xf32, #tpu.memory_space<vmem>>, %arg4: memref<768x2304xbf16, #tpu.memory_space<vmem>>, %arg5: memref<1x2304xf32, #tpu.memory_space<vmem>>, %arg6: memref<768x768xbf16, #tpu.memory_space<vmem>>, %arg7: memref<1x768xf32, #tpu.memory_space<vmem>>, %arg8: memref<1x8x768xf32, #tpu.memory_space<vmem>>, %arg9: memref<8x768xf32, #tpu.memory_space<vmem>>) attributes {dimension_semantics = [#tpu.dimension_semantics<parallel>], iteration_bounds = array<i64: 2>, scalar_prefetch = 0 : i64, scratch_operands = 1 : i64, tpu.core_type = #tpu.core_type<tc>, window_params = [{transform_indices = @transform_0, window_bounds = array<i64: 1, 8, 768>}, {pipeline_mode = #tpu.pipeline_mode<synchronous>, transform_indices = @transform_1, window_bounds = array<i64: 1, 768>}, {pipeline_mode = #tpu.pipeline_mode<synchronous>, transform_indices = @transform_2, window_bounds = array<i64: 1, 768>}, {pipeline_mode = #tpu.pipeline_mode<synchronous>, transform_indices = @transform_3, window_bounds = array<i64: 768, 2304>}, {pipeline_mode = #tpu.pipeline_mode<synchronous>, transform_indices = @transform_4, window_bounds = array<i64: 1, 2304>}, {pipeline_mode = #tpu.pipeline_mode<synchronous>, transform_indices = @transform_5, window_bounds = array<i64: 768, 768>}, {pipeline_mode = #tpu.pipeline_mode<synchronous>, transform_indices = @transform_6, window_bounds = array<i64: 1, 768>}, {transform_indices = @transform_7, window_bounds = array<i64: 1, 8, 768>}]} {
    %c0 = arith.constant 0 : index
    %c0_0 = arith.constant 0 : index
    %c0_1 = arith.constant 0 : index
    %0 = vector.load %arg1[%c0, %c0_0, %c0_1] : memref<1x8x768xf32, #tpu.memory_space<vmem>>, vector<1x8x768xf32>
    %1 = vector.shape_cast %0 : vector<1x8x768xf32> to vector<8x768xf32>
    %cst = arith.constant dense<0.000000e+00> : vector<8xf32>
    %2 = vector.multi_reduction <add>, %1, %cst [1] : vector<8x768xf32> to vector<8xf32>
    %3 = vector.shape_cast %2 : vector<8xf32> to vector<8x1xf32>
    %cst_2 = arith.constant 7.680000e+02 : f32
    %4 = vector.broadcast %cst_2 : f32 to vector<8x1xf32>
    %5 = arith.divf %3, %4 : vector<8x1xf32>
    %6 = vector.broadcast %5 : vector<8x1xf32> to vector<8x768xf32>
    %7 = arith.subf %1, %6 : vector<8x768xf32>
    %8 = arith.mulf %7, %7 : vector<8x768xf32>
    %cst_3 = arith.constant dense<0.000000e+00> : vector<8xf32>
    %9 = vector.multi_reduction <add>, %8, %cst_3 [1] : vector<8x768xf32> to vector<8xf32>
    %10 = vector.shape_cast %9 : vector<8xf32> to vector<8x1xf32>
    %cst_4 = arith.constant 7.680000e+02 : f32
    %11 = vector.broadcast %cst_4 : f32 to vector<8x1xf32>
    %12 = arith.divf %10, %11 : vector<8x1xf32>
    %13 = vector.broadcast %5 : vector<8x1xf32> to vector<8x768xf32>
    %14 = arith.subf %1, %13 : vector<8x768xf32>
    %cst_5 = arith.constant 9.99999974E-6 : f32
    %15 = vector.broadcast %cst_5 : f32 to vector<8x1xf32>
    %16 = arith.addf %12, %15 : vector<8x1xf32>
    %17 = math.rsqrt %16 : vector<8x1xf32>
    %18 = vector.broadcast %17 : vector<8x1xf32> to vector<8x768xf32>
    %19 = arith.mulf %14, %18 : vector<8x768xf32>
    %c0_6 = arith.constant 0 : index
    %c0_7 = arith.constant 0 : index
    %20 = vector.load %arg2[%c0_6, %c0_7] : memref<1x768xf32, #tpu.memory_space<vmem>>, vector<1x768xf32>
    %21 = vector.broadcast %20 : vector<1x768xf32> to vector<8x768xf32>
    %22 = arith.mulf %19, %21 : vector<8x768xf32>
    %c0_8 = arith.constant 0 : index
    %c0_9 = arith.constant 0 : index
    %23 = vector.load %arg3[%c0_8, %c0_9] : memref<1x768xf32, #tpu.memory_space<vmem>>, vector<1x768xf32>
    %24 = vector.broadcast %23 : vector<1x768xf32> to vector<8x768xf32>
    %25 = arith.addf %22, %24 : vector<8x768xf32>
    %26 = arith.truncf %25 : vector<8x768xf32> to vector<8x768xbf16>
    %c0_10 = arith.constant 0 : index
    %c0_11 = arith.constant 0 : index
    %27 = vector.load %arg4[%c0_10, %c0_11] : memref<768x2304xbf16, #tpu.memory_space<vmem>>, vector<768x2304xbf16>
    %cst_12 = arith.constant dense<0.000000e+00> : vector<8x2304xf32>
    %28 = tpu.matmul %26, %27, %cst_12 {dimension_numbers = #tpu.dot_dimension_numbers<[1], [0], [0], [1], [0, 0, 1, 1], [], []>} : vector<8x768xbf16>, vector<768x2304xbf16>, vector<8x2304xf32> -> vector<8x2304xf32>
    %c0_13 = arith.constant 0 : index
    %c0_14 = arith.constant 0 : index
    %29 = vector.load %arg5[%c0_13, %c0_14] : memref<1x2304xf32, #tpu.memory_space<vmem>>, vector<1x2304xf32>
    %30 = vector.broadcast %29 : vector<1x2304xf32> to vector<8x2304xf32>
    %31 = arith.addf %28, %30 : vector<8x2304xf32>
    %32 = arith.truncf %31 : vector<8x2304xf32> to vector<8x2304xbf16>
    %33 = vector.extract_strided_slice %32 {offsets = [0, 0], sizes = [8, 64], strides = [1, 1]} : vector<8x2304xbf16> to vector<8x64xbf16>
    %34 = vector.extract_strided_slice %32 {offsets = [0, 768], sizes = [8, 64], strides = [1, 1]} : vector<8x2304xbf16> to vector<8x64xbf16>
    %35 = vector.extract_strided_slice %32 {offsets = [0, 1536], sizes = [8, 64], strides = [1, 1]} : vector<8x2304xbf16> to vector<8x64xbf16>
    %cst_15 = arith.constant dense<0.000000e+00> : vector<8x8xf32>
    %36 = tpu.matmul %33, %34, %cst_15 {dimension_numbers = #tpu.dot_dimension_numbers<[1], [1], [0], [0], [0, 0, 1, 0], [], []>} : vector<8x64xbf16>, vector<8x64xbf16>, vector<8x8xf32> -> vector<8x8xf32>
    %cst_16 = arith.constant dense<0xFF800000> : vector<8xf32>
    %37 = vector.multi_reduction <maximumf>, %36, %cst_16 [1] : vector<8x8xf32> to vector<8xf32>
    %38 = vector.shape_cast %37 : vector<8xf32> to vector<8x1xf32>
    %39 = vector.broadcast %38 : vector<8x1xf32> to vector<8x8xf32>
    %40 = arith.subf %36, %39 : vector<8x8xf32>
    %41 = math.exp %40 : vector<8x8xf32>
    %cst_17 = arith.constant dense<0.000000e+00> : vector<8xf32>
    %42 = vector.multi_reduction <add>, %41, %cst_17 [1] : vector<8x8xf32> to vector<8xf32>
    %43 = vector.shape_cast %42 : vector<8xf32> to vector<8x1xf32>
    %44 = vector.broadcast %43 : vector<8x1xf32> to vector<8x8xf32>
    %45 = arith.divf %41, %44 : vector<8x8xf32>
    %46 = arith.truncf %45 : vector<8x8xf32> to vector<8x8xbf16>
    %cst_18 = arith.constant dense<0.000000e+00> : vector<8x64xf32>
    %47 = tpu.matmul %46, %35, %cst_18 {dimension_numbers = #tpu.dot_dimension_numbers<[1], [0], [0], [1], [0, 0, 1, 1], [], []>} : vector<8x8xbf16>, vector<8x64xbf16>, vector<8x64xf32> -> vector<8x64xf32>
    %c0_19 = arith.constant 0 : index
    %c0_20 = arith.constant 0 : index
    %48 = vector.load %arg9[%c0_19, %c0_20] : memref<8x768xf32, #tpu.memory_space<vmem>>, vector<8x64xf32>
    tpu.vector_store %arg9[%c0_19, %c0_20], %47 {strides = array<i32>} : memref<8x768xf32, #tpu.memory_space<vmem>>, vector<8x64xf32>,
    %49 = vector.extract_strided_slice %32 {offsets = [0, 64], sizes = [8, 64], strides = [1, 1]} : vector<8x2304xbf16> to vector<8x64xbf16>
    %50 = vector.extract_strided_slice %32 {offsets = [0, 832], sizes = [8, 64], strides = [1, 1]} : vector<8x2304xbf16> to vector<8x64xbf16>
    %51 = vector.extract_strided_slice %32 {offsets = [0, 1600], sizes = [8, 64], strides = [1, 1]} : vector<8x2304xbf16> to vector<8x64xbf16>
    %cst_21 = arith.constant dense<0.000000e+00> : vector<8x8xf32>
    %52 = tpu.matmul %49, %50, %cst_21 {dimension_numbers = #tpu.dot_dimension_numbers<[1], [1], [0], [0], [0, 0, 1, 0], [], []>} : vector<8x64xbf16>, vector<8x64xbf16>, vector<8x8xf32> -> vector<8x8xf32>
    %cst_22 = arith.constant dense<0xFF800000> : vector<8xf32>
    %53 = vector.multi_reduction <maximumf>, %52, %cst_22 [1] : vector<8x8xf32> to vector<8xf32>
    %54 = vector.shape_cast %53 : vector<8xf32> to vector<8x1xf32>
    %55 = vector.broadcast %54 : vector<8x1xf32> to vector<8x8xf32>
    %56 = arith.subf %52, %55 : vector<8x8xf32>
    %57 = math.exp %56 : vector<8x8xf32>
    %cst_23 = arith.constant dense<0.000000e+00> : vector<8xf32>
    %58 = vector.multi_reduction <add>, %57, %cst_23 [1] : vector<8x8xf32> to vector<8xf32>
    %59 = vector.shape_cast %58 : vector<8xf32> to vector<8x1xf32>
    %60 = vector.broadcast %59 : vector<8x1xf32> to vector<8x8xf32>
    %61 = arith.divf %57, %60 : vector<8x8xf32>
    %62 = arith.truncf %61 : vector<8x8xf32> to vector<8x8xbf16>
    %cst_24 = arith.constant dense<0.000000e+00> : vector<8x64xf32>
    %63 = tpu.matmul %62, %51, %cst_24 {dimension_numbers = #tpu.dot_dimension_numbers<[1], [0], [0], [1], [0, 0, 1, 1], [], []>} : vector<8x8xbf16>, vector<8x64xbf16>, vector<8x64xf32> -> vector<8x64xf32>
    %c0_25 = arith.constant 0 : index
    %c64 = arith.constant 64 : index
    %64 = vector.load %arg9[%c0_25, %c64] : memref<8x768xf32, #tpu.memory_space<vmem>>, vector<8x64xf32>
    tpu.vector_store %arg9[%c0_25, %c64], %63 {strides = array<i32>} : memref<8x768xf32, #tpu.memory_space<vmem>>, vector<8x64xf32>,
    %65 = vector.extract_strided_slice %32 {offsets = [0, 128], sizes = [8, 64], strides = [1, 1]} : vector<8x2304xbf16> to vector<8x64xbf16>
    %66 = vector.extract_strided_slice %32 {offsets = [0, 896], sizes = [8, 64], strides = [1, 1]} : vector<8x2304xbf16> to vector<8x64xbf16>
    %67 = vector.extract_strided_slice %32 {offsets = [0, 1664], sizes = [8, 64], strides = [1, 1]} : vector<8x2304xbf16> to vector<8x64xbf16>
    %cst_26 = arith.constant dense<0.000000e+00> : vector<8x8xf32>
    %68 = tpu.matmul %65, %66, %cst_26 {dimension_numbers = #tpu.dot_dimension_numbers<[1], [1], [0], [0], [0, 0, 1, 0], [], []>} : vector<8x64xbf16>, vector<8x64xbf16>, vector<8x8xf32> -> vector<8x8xf32>
    %cst_27 = arith.constant dense<0xFF800000> : vector<8xf32>
    %69 = vector.multi_reduction <maximumf>, %68, %cst_27 [1] : vector<8x8xf32> to vector<8xf32>
    %70 = vector.shape_cast %69 : vector<8xf32> to vector<8x1xf32>
    %71 = vector.broadcast %70 : vector<8x1xf32> to vector<8x8xf32>
    %72 = arith.subf %68, %71 : vector<8x8xf32>
    %73 = math.exp %72 : vector<8x8xf32>
    %cst_28 = arith.constant dense<0.000000e+00> : vector<8xf32>
    %74 = vector.multi_reduction <add>, %73, %cst_28 [1] : vector<8x8xf32> to vector<8xf32>
    %75 = vector.shape_cast %74 : vector<8xf32> to vector<8x1xf32>
    %76 = vector.broadcast %75 : vector<8x1xf32> to vector<8x8xf32>
    %77 = arith.divf %73, %76 : vector<8x8xf32>
    %78 = arith.truncf %77 : vector<8x8xf32> to vector<8x8xbf16>
    %cst_29 = arith.constant dense<0.000000e+00> : vector<8x64xf32>
    %79 = tpu.matmul %78, %67, %cst_29 {dimension_numbers = #tpu.dot_dimension_numbers<[1], [0], [0], [1], [0, 0, 1, 1], [], []>} : vector<8x8xbf16>, vector<8x64xbf16>, vector<8x64xf32> -> vector<8x64xf32>
    %c0_30 = arith.constant 0 : index
    %c128 = arith.constant 128 : index
    %80 = vector.load %arg9[%c0_30, %c128] : memref<8x768xf32, #tpu.memory_space<vmem>>, vector<8x64xf32>
    tpu.vector_store %arg9[%c0_30, %c128], %79 {strides = array<i32>} : memref<8x768xf32, #tpu.memory_space<vmem>>, vector<8x64xf32>,
    %81 = vector.extract_strided_slice %32 {offsets = [0, 192], sizes = [8, 64], strides = [1, 1]} : vector<8x2304xbf16> to vector<8x64xbf16>
    %82 = vector.extract_strided_slice %32 {offsets = [0, 960], sizes = [8, 64], strides = [1, 1]} : vector<8x2304xbf16> to vector<8x64xbf16>
    %83 = vector.extract_strided_slice %32 {offsets = [0, 1728], sizes = [8, 64], strides = [1, 1]} : vector<8x2304xbf16> to vector<8x64xbf16>
    %cst_31 = arith.constant dense<0.000000e+00> : vector<8x8xf32>
    %84 = tpu.matmul %81, %82, %cst_31 {dimension_numbers = #tpu.dot_dimension_numbers<[1], [1], [0], [0], [0, 0, 1, 0], [], []>} : vector<8x64xbf16>, vector<8x64xbf16>, vector<8x8xf32> -> vector<8x8xf32>
    %cst_32 = arith.constant dense<0xFF800000> : vector<8xf32>
    %85 = vector.multi_reduction <maximumf>, %84, %cst_32 [1] : vector<8x8xf32> to vector<8xf32>
    %86 = vector.shape_cast %85 : vector<8xf32> to vector<8x1xf32>
    %87 = vector.broadcast %86 : vector<8x1xf32> to vector<8x8xf32>
    %88 = arith.subf %84, %87 : vector<8x8xf32>
    %89 = math.exp %88 : vector<8x8xf32>
    %cst_33 = arith.constant dense<0.000000e+00> : vector<8xf32>
    %90 = vector.multi_reduction <add>, %89, %cst_33 [1] : vector<8x8xf32> to vector<8xf32>
    %91 = vector.shape_cast %90 : vector<8xf32> to vector<8x1xf32>
    %92 = vector.broadcast %91 : vector<8x1xf32> to vector<8x8xf32>
    %93 = arith.divf %89, %92 : vector<8x8xf32>
    %94 = arith.truncf %93 : vector<8x8xf32> to vector<8x8xbf16>
    %cst_34 = arith.constant dense<0.000000e+00> : vector<8x64xf32>
    %95 = tpu.matmul %94, %83, %cst_34 {dimension_numbers = #tpu.dot_dimension_numbers<[1], [0], [0], [1], [0, 0, 1, 1], [], []>} : vector<8x8xbf16>, vector<8x64xbf16>, vector<8x64xf32> -> vector<8x64xf32>
    %c0_35 = arith.constant 0 : index
    %c192 = arith.constant 192 : index
    %96 = vector.load %arg9[%c0_35, %c192] : memref<8x768xf32, #tpu.memory_space<vmem>>, vector<8x64xf32>
    tpu.vector_store %arg9[%c0_35, %c192], %95 {strides = array<i32>} : memref<8x768xf32, #tpu.memory_space<vmem>>, vector<8x64xf32>,
    %97 = vector.extract_strided_slice %32 {offsets = [0, 256], sizes = [8, 64], strides = [1, 1]} : vector<8x2304xbf16> to vector<8x64xbf16>
    %98 = vector.extract_strided_slice %32 {offsets = [0, 1024], sizes = [8, 64], strides = [1, 1]} : vector<8x2304xbf16> to vector<8x64xbf16>
    %99 = vector.extract_strided_slice %32 {offsets = [0, 1792], sizes = [8, 64], strides = [1, 1]} : vector<8x2304xbf16> to vector<8x64xbf16>
    %cst_36 = arith.constant dense<0.000000e+00> : vector<8x8xf32>
    %100 = tpu.matmul %97, %98, %cst_36 {dimension_numbers = #tpu.dot_dimension_numbers<[1], [1], [0], [0], [0, 0, 1, 0], [], []>} : vector<8x64xbf16>, vector<8x64xbf16>, vector<8x8xf32> -> vector<8x8xf32>
    %cst_37 = arith.constant dense<0xFF800000> : vector<8xf32>
    %101 = vector.multi_reduction <maximumf>, %100, %cst_37 [1] : vector<8x8xf32> to vector<8xf32>
    %102 = vector.shape_cast %101 : vector<8xf32> to vector<8x1xf32>
    %103 = vector.broadcast %102 : vector<8x1xf32> to vector<8x8xf32>
    %104 = arith.subf %100, %103 : vector<8x8xf32>
    %105 = math.exp %104 : vector<8x8xf32>
    %cst_38 = arith.constant dense<0.000000e+00> : vector<8xf32>
    %106 = vector.multi_reduction <add>, %105, %cst_38 [1] : vector<8x8xf32> to vector<8xf32>
    %107 = vector.shape_cast %106 : vector<8xf32> to vector<8x1xf32>
    %108 = vector.broadcast %107 : vector<8x1xf32> to vector<8x8xf32>
    %109 = arith.divf %105, %108 : vector<8x8xf32>
    %110 = arith.truncf %109 : vector<8x8xf32> to vector<8x8xbf16>
    %cst_39 = arith.constant dense<0.000000e+00> : vector<8x64xf32>
    %111 = tpu.matmul %110, %99, %cst_39 {dimension_numbers = #tpu.dot_dimension_numbers<[1], [0], [0], [1], [0, 0, 1, 1], [], []>} : vector<8x8xbf16>, vector<8x64xbf16>, vector<8x64xf32> -> vector<8x64xf32>
    %c0_40 = arith.constant 0 : index
    %c256 = arith.constant 256 : index
    %112 = vector.load %arg9[%c0_40, %c256] : memref<8x768xf32, #tpu.memory_space<vmem>>, vector<8x64xf32>
    tpu.vector_store %arg9[%c0_40, %c256], %111 {strides = array<i32>} : memref<8x768xf32, #tpu.memory_space<vmem>>, vector<8x64xf32>,
    %113 = vector.extract_strided_slice %32 {offsets = [0, 320], sizes = [8, 64], strides = [1, 1]} : vector<8x2304xbf16> to vector<8x64xbf16>
    %114 = vector.extract_strided_slice %32 {offsets = [0, 1088], sizes = [8, 64], strides = [1, 1]} : vector<8x2304xbf16> to vector<8x64xbf16>
    %115 = vector.extract_strided_slice %32 {offsets = [0, 1856], sizes = [8, 64], strides = [1, 1]} : vector<8x2304xbf16> to vector<8x64xbf16>
    %cst_41 = arith.constant dense<0.000000e+00> : vector<8x8xf32>
    %116 = tpu.matmul %113, %114, %cst_41 {dimension_numbers = #tpu.dot_dimension_numbers<[1], [1], [0], [0], [0, 0, 1, 0], [], []>} : vector<8x64xbf16>, vector<8x64xbf16>, vector<8x8xf32> -> vector<8x8xf32>
    %cst_42 = arith.constant dense<0xFF800000> : vector<8xf32>
    %117 = vector.multi_reduction <maximumf>, %116, %cst_42 [1] : vector<8x8xf32> to vector<8xf32>
    %118 = vector.shape_cast %117 : vector<8xf32> to vector<8x1xf32>
    %119 = vector.broadcast %118 : vector<8x1xf32> to vector<8x8xf32>
    %120 = arith.subf %116, %119 : vector<8x8xf32>
    %121 = math.exp %120 : vector<8x8xf32>
    %cst_43 = arith.constant dense<0.000000e+00> : vector<8xf32>
    %122 = vector.multi_reduction <add>, %121, %cst_43 [1] : vector<8x8xf32> to vector<8xf32>
    %123 = vector.shape_cast %122 : vector<8xf32> to vector<8x1xf32>
    %124 = vector.broadcast %123 : vector<8x1xf32> to vector<8x8xf32>
    %125 = arith.divf %121, %124 : vector<8x8xf32>
    %126 = arith.truncf %125 : vector<8x8xf32> to vector<8x8xbf16>
    %cst_44 = arith.constant dense<0.000000e+00> : vector<8x64xf32>
    %127 = tpu.matmul %126, %115, %cst_44 {dimension_numbers = #tpu.dot_dimension_numbers<[1], [0], [0], [1], [0, 0, 1, 1], [], []>} : vector<8x8xbf16>, vector<8x64xbf16>, vector<8x64xf32> -> vector<8x64xf32>
    %c0_45 = arith.constant 0 : index
    %c320 = arith.constant 320 : index
    %128 = vector.load %arg9[%c0_45, %c320] : memref<8x768xf32, #tpu.memory_space<vmem>>, vector<8x64xf32>
    tpu.vector_store %arg9[%c0_45, %c320], %127 {strides = array<i32>} : memref<8x768xf32, #tpu.memory_space<vmem>>, vector<8x64xf32>,
    %129 = vector.extract_strided_slice %32 {offsets = [0, 384], sizes = [8, 64], strides = [1, 1]} : vector<8x2304xbf16> to vector<8x64xbf16>
    %130 = vector.extract_strided_slice %32 {offsets = [0, 1152], sizes = [8, 64], strides = [1, 1]} : vector<8x2304xbf16> to vector<8x64xbf16>
    %131 = vector.extract_strided_slice %32 {offsets = [0, 1920], sizes = [8, 64], strides = [1, 1]} : vector<8x2304xbf16> to vector<8x64xbf16>
    %cst_46 = arith.constant dense<0.000000e+00> : vector<8x8xf32>
    %132 = tpu.matmul %129, %130, %cst_46 {dimension_numbers = #tpu.dot_dimension_numbers<[1], [1], [0], [0], [0, 0, 1, 0], [], []>} : vector<8x64xbf16>, vector<8x64xbf16>, vector<8x8xf32> -> vector<8x8xf32>
    %cst_47 = arith.constant dense<0xFF800000> : vector<8xf32>
    %133 = vector.multi_reduction <maximumf>, %132, %cst_47 [1] : vector<8x8xf32> to vector<8xf32>
    %134 = vector.shape_cast %133 : vector<8xf32> to vector<8x1xf32>
    %135 = vector.broadcast %134 : vector<8x1xf32> to vector<8x8xf32>
    %136 = arith.subf %132, %135 : vector<8x8xf32>
    %137 = math.exp %136 : vector<8x8xf32>
    %cst_48 = arith.constant dense<0.000000e+00> : vector<8xf32>
    %138 = vector.multi_reduction <add>, %137, %cst_48 [1] : vector<8x8xf32> to vector<8xf32>
    %139 = vector.shape_cast %138 : vector<8xf32> to vector<8x1xf32>
    %140 = vector.broadcast %139 : vector<8x1xf32> to vector<8x8xf32>
    %141 = arith.divf %137, %140 : vector<8x8xf32>
    %142 = arith.truncf %141 : vector<8x8xf32> to vector<8x8xbf16>
    %cst_49 = arith.constant dense<0.000000e+00> : vector<8x64xf32>
    %143 = tpu.matmul %142, %131, %cst_49 {dimension_numbers = #tpu.dot_dimension_numbers<[1], [0], [0], [1], [0, 0, 1, 1], [], []>} : vector<8x8xbf16>, vector<8x64xbf16>, vector<8x64xf32> -> vector<8x64xf32>
    %c0_50 = arith.constant 0 : index
    %c384 = arith.constant 384 : index
    %144 = vector.load %arg9[%c0_50, %c384] : memref<8x768xf32, #tpu.memory_space<vmem>>, vector<8x64xf32>
    tpu.vector_store %arg9[%c0_50, %c384], %143 {strides = array<i32>} : memref<8x768xf32, #tpu.memory_space<vmem>>, vector<8x64xf32>,
    %145 = vector.extract_strided_slice %32 {offsets = [0, 448], sizes = [8, 64], strides = [1, 1]} : vector<8x2304xbf16> to vector<8x64xbf16>
    %146 = vector.extract_strided_slice %32 {offsets = [0, 1216], sizes = [8, 64], strides = [1, 1]} : vector<8x2304xbf16> to vector<8x64xbf16>
    %147 = vector.extract_strided_slice %32 {offsets = [0, 1984], sizes = [8, 64], strides = [1, 1]} : vector<8x2304xbf16> to vector<8x64xbf16>
    %cst_51 = arith.constant dense<0.000000e+00> : vector<8x8xf32>
    %148 = tpu.matmul %145, %146, %cst_51 {dimension_numbers = #tpu.dot_dimension_numbers<[1], [1], [0], [0], [0, 0, 1, 0], [], []>} : vector<8x64xbf16>, vector<8x64xbf16>, vector<8x8xf32> -> vector<8x8xf32>
    %cst_52 = arith.constant dense<0xFF800000> : vector<8xf32>
    %149 = vector.multi_reduction <maximumf>, %148, %cst_52 [1] : vector<8x8xf32> to vector<8xf32>
    %150 = vector.shape_cast %149 : vector<8xf32> to vector<8x1xf32>
    %151 = vector.broadcast %150 : vector<8x1xf32> to vector<8x8xf32>
    %152 = arith.subf %148, %151 : vector<8x8xf32>
    %153 = math.exp %152 : vector<8x8xf32>
    %cst_53 = arith.constant dense<0.000000e+00> : vector<8xf32>
    %154 = vector.multi_reduction <add>, %153, %cst_53 [1] : vector<8x8xf32> to vector<8xf32>
    %155 = vector.shape_cast %154 : vector<8xf32> to vector<8x1xf32>
    %156 = vector.broadcast %155 : vector<8x1xf32> to vector<8x8xf32>
    %157 = arith.divf %153, %156 : vector<8x8xf32>
    %158 = arith.truncf %157 : vector<8x8xf32> to vector<8x8xbf16>
    %cst_54 = arith.constant dense<0.000000e+00> : vector<8x64xf32>
    %159 = tpu.matmul %158, %147, %cst_54 {dimension_numbers = #tpu.dot_dimension_numbers<[1], [0], [0], [1], [0, 0, 1, 1], [], []>} : vector<8x8xbf16>, vector<8x64xbf16>, vector<8x64xf32> -> vector<8x64xf32>
    %c0_55 = arith.constant 0 : index
    %c448 = arith.constant 448 : index
    %160 = vector.load %arg9[%c0_55, %c448] : memref<8x768xf32, #tpu.memory_space<vmem>>, vector<8x64xf32>
    tpu.vector_store %arg9[%c0_55, %c448], %159 {strides = array<i32>} : memref<8x768xf32, #tpu.memory_space<vmem>>, vector<8x64xf32>,
    %161 = vector.extract_strided_slice %32 {offsets = [0, 512], sizes = [8, 64], strides = [1, 1]} : vector<8x2304xbf16> to vector<8x64xbf16>
    %162 = vector.extract_strided_slice %32 {offsets = [0, 1280], sizes = [8, 64], strides = [1, 1]} : vector<8x2304xbf16> to vector<8x64xbf16>
    %163 = vector.extract_strided_slice %32 {offsets = [0, 2048], sizes = [8, 64], strides = [1, 1]} : vector<8x2304xbf16> to vector<8x64xbf16>
    %cst_56 = arith.constant dense<0.000000e+00> : vector<8x8xf32>
    %164 = tpu.matmul %161, %162, %cst_56 {dimension_numbers = #tpu.dot_dimension_numbers<[1], [1], [0], [0], [0, 0, 1, 0], [], []>} : vector<8x64xbf16>, vector<8x64xbf16>, vector<8x8xf32> -> vector<8x8xf32>
    %cst_57 = arith.constant dense<0xFF800000> : vector<8xf32>
    %165 = vector.multi_reduction <maximumf>, %164, %cst_57 [1] : vector<8x8xf32> to vector<8xf32>
    %166 = vector.shape_cast %165 : vector<8xf32> to vector<8x1xf32>
    %167 = vector.broadcast %166 : vector<8x1xf32> to vector<8x8xf32>
    %168 = arith.subf %164, %167 : vector<8x8xf32>
    %169 = math.exp %168 : vector<8x8xf32>
    %cst_58 = arith.constant dense<0.000000e+00> : vector<8xf32>
    %170 = vector.multi_reduction <add>, %169, %cst_58 [1] : vector<8x8xf32> to vector<8xf32>
    %171 = vector.shape_cast %170 : vector<8xf32> to vector<8x1xf32>
    %172 = vector.broadcast %171 : vector<8x1xf32> to vector<8x8xf32>
    %173 = arith.divf %169, %172 : vector<8x8xf32>
    %174 = arith.truncf %173 : vector<8x8xf32> to vector<8x8xbf16>
    %cst_59 = arith.constant dense<0.000000e+00> : vector<8x64xf32>
    %175 = tpu.matmul %174, %163, %cst_59 {dimension_numbers = #tpu.dot_dimension_numbers<[1], [0], [0], [1], [0, 0, 1, 1], [], []>} : vector<8x8xbf16>, vector<8x64xbf16>, vector<8x64xf32> -> vector<8x64xf32>
    %c0_60 = arith.constant 0 : index
    %c512 = arith.constant 512 : index
    %176 = vector.load %arg9[%c0_60, %c512] : memref<8x768xf32, #tpu.memory_space<vmem>>, vector<8x64xf32>
    tpu.vector_store %arg9[%c0_60, %c512], %175 {strides = array<i32>} : memref<8x768xf32, #tpu.memory_space<vmem>>, vector<8x64xf32>,
    %177 = vector.extract_strided_slice %32 {offsets = [0, 576], sizes = [8, 64], strides = [1, 1]} : vector<8x2304xbf16> to vector<8x64xbf16>
    %178 = vector.extract_strided_slice %32 {offsets = [0, 1344], sizes = [8, 64], strides = [1, 1]} : vector<8x2304xbf16> to vector<8x64xbf16>
    %179 = vector.extract_strided_slice %32 {offsets = [0, 2112], sizes = [8, 64], strides = [1, 1]} : vector<8x2304xbf16> to vector<8x64xbf16>
    %cst_61 = arith.constant dense<0.000000e+00> : vector<8x8xf32>
    %180 = tpu.matmul %177, %178, %cst_61 {dimension_numbers = #tpu.dot_dimension_numbers<[1], [1], [0], [0], [0, 0, 1, 0], [], []>} : vector<8x64xbf16>, vector<8x64xbf16>, vector<8x8xf32> -> vector<8x8xf32>
    %cst_62 = arith.constant dense<0xFF800000> : vector<8xf32>
    %181 = vector.multi_reduction <maximumf>, %180, %cst_62 [1] : vector<8x8xf32> to vector<8xf32>
    %182 = vector.shape_cast %181 : vector<8xf32> to vector<8x1xf32>
    %183 = vector.broadcast %182 : vector<8x1xf32> to vector<8x8xf32>
    %184 = arith.subf %180, %183 : vector<8x8xf32>
    %185 = math.exp %184 : vector<8x8xf32>
    %cst_63 = arith.constant dense<0.000000e+00> : vector<8xf32>
    %186 = vector.multi_reduction <add>, %185, %cst_63 [1] : vector<8x8xf32> to vector<8xf32>
    %187 = vector.shape_cast %186 : vector<8xf32> to vector<8x1xf32>
    %188 = vector.broadcast %187 : vector<8x1xf32> to vector<8x8xf32>
    %189 = arith.divf %185, %188 : vector<8x8xf32>
    %190 = arith.truncf %189 : vector<8x8xf32> to vector<8x8xbf16>
    %cst_64 = arith.constant dense<0.000000e+00> : vector<8x64xf32>
    %191 = tpu.matmul %190, %179, %cst_64 {dimension_numbers = #tpu.dot_dimension_numbers<[1], [0], [0], [1], [0, 0, 1, 1], [], []>} : vector<8x8xbf16>, vector<8x64xbf16>, vector<8x64xf32> -> vector<8x64xf32>
    %c0_65 = arith.constant 0 : index
    %c576 = arith.constant 576 : index
    %192 = vector.load %arg9[%c0_65, %c576] : memref<8x768xf32, #tpu.memory_space<vmem>>, vector<8x64xf32>
    tpu.vector_store %arg9[%c0_65, %c576], %191 {strides = array<i32>} : memref<8x768xf32, #tpu.memory_space<vmem>>, vector<8x64xf32>,
    %193 = vector.extract_strided_slice %32 {offsets = [0, 640], sizes = [8, 64], strides = [1, 1]} : vector<8x2304xbf16> to vector<8x64xbf16>
    %194 = vector.extract_strided_slice %32 {offsets = [0, 1408], sizes = [8, 64], strides = [1, 1]} : vector<8x2304xbf16> to vector<8x64xbf16>
    %195 = vector.extract_strided_slice %32 {offsets = [0, 2176], sizes = [8, 64], strides = [1, 1]} : vector<8x2304xbf16> to vector<8x64xbf16>
    %cst_66 = arith.constant dense<0.000000e+00> : vector<8x8xf32>
    %196 = tpu.matmul %193, %194, %cst_66 {dimension_numbers = #tpu.dot_dimension_numbers<[1], [1], [0], [0], [0, 0, 1, 0], [], []>} : vector<8x64xbf16>, vector<8x64xbf16>, vector<8x8xf32> -> vector<8x8xf32>
    %cst_67 = arith.constant dense<0xFF800000> : vector<8xf32>
    %197 = vector.multi_reduction <maximumf>, %196, %cst_67 [1] : vector<8x8xf32> to vector<8xf32>
    %198 = vector.shape_cast %197 : vector<8xf32> to vector<8x1xf32>
    %199 = vector.broadcast %198 : vector<8x1xf32> to vector<8x8xf32>
    %200 = arith.subf %196, %199 : vector<8x8xf32>
    %201 = math.exp %200 : vector<8x8xf32>
    %cst_68 = arith.constant dense<0.000000e+00> : vector<8xf32>
    %202 = vector.multi_reduction <add>, %201, %cst_68 [1] : vector<8x8xf32> to vector<8xf32>
    %203 = vector.shape_cast %202 : vector<8xf32> to vector<8x1xf32>
    %204 = vector.broadcast %203 : vector<8x1xf32> to vector<8x8xf32>
    %205 = arith.divf %201, %204 : vector<8x8xf32>
    %206 = arith.truncf %205 : vector<8x8xf32> to vector<8x8xbf16>
    %cst_69 = arith.constant dense<0.000000e+00> : vector<8x64xf32>
    %207 = tpu.matmul %206, %195, %cst_69 {dimension_numbers = #tpu.dot_dimension_numbers<[1], [0], [0], [1], [0, 0, 1, 1], [], []>} : vector<8x8xbf16>, vector<8x64xbf16>, vector<8x64xf32> -> vector<8x64xf32>
    %c0_70 = arith.constant 0 : index
    %c640 = arith.constant 640 : index
    %208 = vector.load %arg9[%c0_70, %c640] : memref<8x768xf32, #tpu.memory_space<vmem>>, vector<8x64xf32>
    tpu.vector_store %arg9[%c0_70, %c640], %207 {strides = array<i32>} : memref<8x768xf32, #tpu.memory_space<vmem>>, vector<8x64xf32>,
    %209 = vector.extract_strided_slice %32 {offsets = [0, 704], sizes = [8, 64], strides = [1, 1]} : vector<8x2304xbf16> to vector<8x64xbf16>
    %210 = vector.extract_strided_slice %32 {offsets = [0, 1472], sizes = [8, 64], strides = [1, 1]} : vector<8x2304xbf16> to vector<8x64xbf16>
    %211 = vector.extract_strided_slice %32 {offsets = [0, 2240], sizes = [8, 64], strides = [1, 1]} : vector<8x2304xbf16> to vector<8x64xbf16>
    %cst_71 = arith.constant dense<0.000000e+00> : vector<8x8xf32>
    %212 = tpu.matmul %209, %210, %cst_71 {dimension_numbers = #tpu.dot_dimension_numbers<[1], [1], [0], [0], [0, 0, 1, 0], [], []>} : vector<8x64xbf16>, vector<8x64xbf16>, vector<8x8xf32> -> vector<8x8xf32>
    %cst_72 = arith.constant dense<0xFF800000> : vector<8xf32>
    %213 = vector.multi_reduction <maximumf>, %212, %cst_72 [1] : vector<8x8xf32> to vector<8xf32>
    %214 = vector.shape_cast %213 : vector<8xf32> to vector<8x1xf32>
    %215 = vector.broadcast %214 : vector<8x1xf32> to vector<8x8xf32>
    %216 = arith.subf %212, %215 : vector<8x8xf32>
    %217 = math.exp %216 : vector<8x8xf32>
    %cst_73 = arith.constant dense<0.000000e+00> : vector<8xf32>
    %218 = vector.multi_reduction <add>, %217, %cst_73 [1] : vector<8x8xf32> to vector<8xf32>
    %219 = vector.shape_cast %218 : vector<8xf32> to vector<8x1xf32>
    %220 = vector.broadcast %219 : vector<8x1xf32> to vector<8x8xf32>
    %221 = arith.divf %217, %220 : vector<8x8xf32>
    %222 = arith.truncf %221 : vector<8x8xf32> to vector<8x8xbf16>
    %cst_74 = arith.constant dense<0.000000e+00> : vector<8x64xf32>
    %223 = tpu.matmul %222, %211, %cst_74 {dimension_numbers = #tpu.dot_dimension_numbers<[1], [0], [0], [1], [0, 0, 1, 1], [], []>} : vector<8x8xbf16>, vector<8x64xbf16>, vector<8x64xf32> -> vector<8x64xf32>
    %c0_75 = arith.constant 0 : index
    %c704 = arith.constant 704 : index
    %224 = vector.load %arg9[%c0_75, %c704] : memref<8x768xf32, #tpu.memory_space<vmem>>, vector<8x64xf32>
    tpu.vector_store %arg9[%c0_75, %c704], %223 {strides = array<i32>} : memref<8x768xf32, #tpu.memory_space<vmem>>, vector<8x64xf32>,
    %c0_76 = arith.constant 0 : index
    %c0_77 = arith.constant 0 : index
    %225 = vector.load %arg9[%c0_76, %c0_77] : memref<8x768xf32, #tpu.memory_space<vmem>>, vector<8x768xf32>
    %226 = arith.truncf %225 : vector<8x768xf32> to vector<8x768xbf16>
    %c0_78 = arith.constant 0 : index
    %c0_79 = arith.constant 0 : index
    %227 = vector.load %arg6[%c0_78, %c0_79] : memref<768x768xbf16, #tpu.memory_space<vmem>>, vector<768x768xbf16>
    %cst_80 = arith.constant dense<0.000000e+00> : vector<8x768xf32>
    %228 = tpu.matmul %226, %227, %cst_80 {dimension_numbers = #tpu.dot_dimension_numbers<[1], [0], [0], [1], [0, 0, 1, 1], [], []>} : vector<8x768xbf16>, vector<768x768xbf16>, vector<8x768xf32> -> vector<8x768xf32>
    %c0_81 = arith.constant 0 : index
    %c0_82 = arith.constant 0 : index
    %229 = vector.load %arg7[%c0_81, %c0_82] : memref<1x768xf32, #tpu.memory_space<vmem>>, vector<1x768xf32>
    %230 = vector.broadcast %229 : vector<1x768xf32> to vector<8x768xf32>
    %231 = arith.addf %228, %230 : vector<8x768xf32>
    %232 = arith.addf %231, %1 : vector<8x768xf32>
    %c0_83 = arith.constant 0 : index
    %c0_84 = arith.constant 0 : index
    %c0_85 = arith.constant 0 : index
    %233 = vector.load %arg8[%c0_83, %c0_84, %c0_85] : memref<1x8x768xf32, #tpu.memory_space<vmem>>, vector<1x8x768xf32>
    %234 = vector.shape_cast %233 : vector<1x8x768xf32> to vector<8x768xf32>
    %235 = vector.shape_cast %232 : vector<8x768xf32> to vector<1x8x768xf32>
    tpu.vector_store %arg8[%c0_83, %c0_84, %c0_85], %235 {strides = array<i32>} : memref<1x8x768xf32, #tpu.memory_space<vmem>>, vector<1x8x768xf32>,
    return
  }
  func.func @transform_0(%arg0: i32) -> (i32, i32, i32) {
    %c0_i32 = arith.constant 0 : i32
    %c0_i32_0 = arith.constant 0 : i32
    %c0_i32_1 = arith.constant 0 : i32
    return %arg0, %c0_i32, %c0_i32_0 : i32, i32, i32
  }
  func.func @transform_1(%arg0: i32) -> (i32, i32) {
    %c0_i32 = arith.constant 0 : i32
    %c0_i32_0 = arith.constant 0 : i32
    %c0_i32_1 = arith.constant 0 : i32
    return %c0_i32, %c0_i32_0 : i32, i32
  }
  func.func @transform_2(%arg0: i32) -> (i32, i32) {
    %c0_i32 = arith.constant 0 : i32
    %c0_i32_0 = arith.constant 0 : i32
    %c0_i32_1 = arith.constant 0 : i32
    return %c0_i32, %c0_i32_0 : i32, i32
  }
  func.func @transform_3(%arg0: i32) -> (i32, i32) {
    %c0_i32 = arith.constant 0 : i32
    %c0_i32_0 = arith.constant 0 : i32
    %c0_i32_1 = arith.constant 0 : i32
    return %c0_i32, %c0_i32_0 : i32, i32
  }
  func.func @transform_4(%arg0: i32) -> (i32, i32) {
    %c0_i32 = arith.constant 0 : i32
    %c0_i32_0 = arith.constant 0 : i32
    %c0_i32_1 = arith.constant 0 : i32
    return %c0_i32, %c0_i32_0 : i32, i32
  }
  func.func @transform_5(%arg0: i32) -> (i32, i32) {
    %c0_i32 = arith.constant 0 : i32
    %c0_i32_0 = arith.constant 0 : i32
    %c0_i32_1 = arith.constant 0 : i32
    return %c0_i32, %c0_i32_0 : i32, i32
  }
  func.func @transform_6(%arg0: i32) -> (i32, i32) {
    %c0_i32 = arith.constant 0 : i32
    %c0_i32_0 = arith.constant 0 : i32
    %c0_i32_1 = arith.constant 0 : i32
    return %c0_i32, %c0_i32_0 : i32, i32
  }
  func.func @transform_7(%arg0: i32) -> (i32, i32, i32) {
    %c0_i32 = arith.constant 0 : i32
    %c0_i32_0 = arith.constant 0 : i32
    %c0_i32_1 = arith.constant 0 : i32
    return %arg0, %c0_i32, %c0_i32_0 : i32, i32, i32
  }
}

</mosaic_0001>

<llo_original>
// kernel: tpu_custom_call.1
$region0: #{tpu_custom_call.1}
  #allocation0 [shape = 'u32[]', space=smem, size = 0x4, offset = 0x4, fixed_abs, tag = 'smem constant byte address 0x4 - core index']
  #allocation1 [shape = 'u32[72,128]{1,0:T(1,128)}', space=vmem, size = 0x9000, scoped, tag = 'internal scratch']
  #allocation2 [shape = 'f32[8,768]{1,0:T(8,128)}', space=vmem, size = 0x6000, scoped, tag = 'scratch operand']
  %s0 = inlined_call_operand.hbm [shape: f32[2,8,768], index: 0, kind: input, shape index: {}]
  %s1 = inlined_call_operand.hbm [shape: f32[1,768], index: 1, kind: input, shape index: {}]
  %s2 = inlined_call_operand.hbm [shape: f32[1,768], index: 2, kind: input, shape index: {}]
  %s3 = inlined_call_operand.hbm [shape: bf16[768,2304], index: 3, kind: input, shape index: {}]
  %s4 = inlined_call_operand.hbm [shape: f32[1,2304], index: 4, kind: input, shape index: {}]
  %s5 = inlined_call_operand.hbm [shape: bf16[768,768], index: 5, kind: input, shape index: {}]
  %s6 = inlined_call_operand.hbm [shape: f32[1,768], index: 6, kind: input, shape index: {}]
  %s7 = inlined_call_operand.hbm [shape: f32[2,8,768], index: 7, kind: output, shape index: {}]
  %s8 = sld [smem:[#allocation0]]
  $region89: #{tpu_custom_call.1} parent=0
    _
  %s10 = ssub.s32 1, %s8
  %s11 = scalar_select 0, %s10, %s8
  $region1: #{tpu_custom_call.1} parent=0
    #allocation3 [shape = 'u8[49152]{0}', space=vmem, size = 0xc000, scoped, tag = 'input window, operand 0']
    #allocation4 [shape = 's32[2]{0}', space=sflag, size = 0x8, scoped, tag = 'scoped memory for tpu_custom_call.1']
    #allocation5 [shape = 's32[2]{0}', space=sflag, size = 0x8, scoped, tag = 'scoped memory for tpu_custom_call.1']
    #allocation6 [shape = 'u8[3072]{0}', space=vmem, size = 0xc00, scoped, tag = 'input window, operand 1, single buffered']
    #allocation7 [shape = 's32[1]{0}', space=sflag, size = 0x4, scoped, tag = 'scoped memory for tpu_custom_call.1']
    #allocation8 [shape = 'u8[3072]{0}', space=vmem, size = 0xc00, scoped, tag = 'input window, operand 2, single buffered']
    #allocation9 [shape = 'u8[3538944]{0}', space=vmem, size = 0x360000, scoped, tag = 'input window, operand 3, single buffered']
    #allocation10 [shape = 's32[1]{0}', space=sflag, size = 0x4, scoped, tag = 'scoped memory for tpu_custom_call.1']
    #allocation11 [shape = 'u8[9216]{0}', space=vmem, size = 0x2400, scoped, tag = 'input window, operand 4, single buffered']
    #allocation12 [shape = 'u8[1179648]{0}', space=vmem, size = 0x120000, scoped, tag = 'input window, operand 5, single buffered']
    #allocation13 [shape = 's32[1]{0}', space=sflag, size = 0x4, scoped, tag = 'scoped memory for tpu_custom_call.1']
    #allocation14 [shape = 'u8[3072]{0}', space=vmem, size = 0xc00, scoped, tag = 'input window, operand 6, single buffered']
    #allocation15 [shape = 'u8[49152]{0}', space=vmem, size = 0xc000, scoped, tag = 'output window, operand 0']
    %12 = vsyncpa [#allocation4], 0
    %s13 = scalar_lea.sflag [#allocation4], 1
    %14 = vsyncpa %s13, 0
    %15 = vsyncpa [#allocation7], 0
    %16 = vsyncpa [#allocation10], 0
    %17 = vsyncpa [#allocation13], 0
    %18 = vsyncpa [#allocation5], 0
    %s19 = scalar_lea.sflag [#allocation5], 1
    %20 = vsyncpa %s19, 0
    loop: start=0, step=1, limit=4
    $region2: #{tpu_custom_call.1} parent=1 // loop_pre_header
      _
    $region3: #{tpu_custom_call.1} parent=1 // loop_header
      %s22 = sphi 0, %s26
      %p23 = scmp.ge.s32.totalorder %s22, 4
      %s32 = sphi 0, %s34
      %s35 = sphi 0, %s32
      %s36 = sphi 0, %s35
      %s52 = sphi 0, %s36
      %s56 = sphi 0, %s56
      %s58 = sphi 0, %s56
      %s59 = sphi 0, %s58
      %s73 = sphi 0, %s59
      %s77 = sphi 0, %s77
      %s79 = sphi 0, %s77
      %s80 = sphi 0, %s79
      %s94 = sphi 0, %s80
      %s98 = sphi 0, %s98
      %s100 = sphi 0, %s98
      %s101 = sphi 0, %s100
      %s115 = sphi 0, %s101
      %s119 = sphi 0, %s119
      %s121 = sphi 0, %s119
      %s122 = sphi 0, %s121
      %s136 = sphi 0, %s122
      %s140 = sphi 0, %s140
      %s142 = sphi 0, %s140
      %s143 = sphi 0, %s142
      %s157 = sphi 0, %s143
      %s161 = sphi 0, %s161
      %s163 = sphi 0, %s161
      %s164 = sphi 0, %s163
      %s178 = sphi 0, %s164
      %s184 = sphi 0, %s186
      %s187 = sphi 0, %s184
      %s188 = sphi 0, %s187
      %s204 = sphi 0, %s188
    $region4: #{tpu_custom_call.1} parent=1 // loop_header_branch
      %25 = sbr.rel (%p23) target = $region8
    $region5: #{tpu_custom_call.1} parent=1 // loop_body
      %s27 = ssub.s32 %s22, 1
      %s28 = ssub.s32 %s22, 2
      %s29 = sadd.s32 %s22, 1
      %s30 = ssub.s32 %s22, %s29
      %p31 = scmp.eq.s32.totalorder %s30, 0
      %s33 = sadd.s32 %s32, 1
      %s34 = scalar_select %p31, %s32, %s33
      %p37 = pneg %p31
      %p38 = scmp.eq.s32.totalorder %s22, 1
      %p39 = por %p37, %p38
      %p40 = scmp.ne.s32.totalorder %s32, %s35
      %p41 = scmp.eq.s32.totalorder %s22, 0
      %p42 = por %p40, %p41
      %p43 = scmp.ne.s32.totalorder %s32, %s35
      %p44 = scmp.eq.s32.totalorder %s27, 1
      %p45 = por %p43, %p44
      %p46 = scmp.ne.s32.totalorder %s35, %s36
      %p47 = scmp.eq.s32.totalorder %s27, 0
      %p48 = por %p46, %p47
      %p49 = scmp.ne.s32.totalorder %s35, %s36
      %p50 = scmp.eq.s32.totalorder %s28, 1
      %p51 = por %p49, %p50
      %p53 = scmp.ne.s32.totalorder %s36, %s52
      %p54 = scmp.eq.s32.totalorder %s28, 0
      %p55 = por %p53, %p54
      %s57 = sadd.s32 %s56, 1
      %p60 = scmp.eq.s32.totalorder %s22, 1
      %p61 = scmp.ne.s32.totalorder %s56, %s58
      %p62 = scmp.eq.s32.totalorder %s22, 0
      %p63 = por %p61, %p62
      %p64 = scmp.ne.s32.totalorder %s56, %s58
      %p65 = scmp.eq.s32.totalorder %s27, 1
      %p66 = por %p64, %p65
      %p67 = scmp.ne.s32.totalorder %s58, %s59
      %p68 = scmp.eq.s32.totalorder %s27, 0
      %p69 = por %p67, %p68
      %p70 = scmp.ne.s32.totalorder %s58, %s59
      %p71 = scmp.eq.s32.totalorder %s28, 1
      %p72 = por %p70, %p71
      %p74 = scmp.ne.s32.totalorder %s59, %s73
      %p75 = scmp.eq.s32.totalorder %s28, 0
      %p76 = por %p74, %p75
      %s78 = sadd.s32 %s77, 1
      %p81 = scmp.eq.s32.totalorder %s22, 1
      %p82 = scmp.ne.s32.totalorder %s77, %s79
      %p83 = scmp.eq.s32.totalorder %s22, 0
      %p84 = por %p82, %p83
      %p85 = scmp.ne.s32.totalorder %s77, %s79
      %p86 = scmp.eq.s32.totalorder %s27, 1
      %p87 = por %p85, %p86
      %p88 = scmp.ne.s32.totalorder %s79, %s80
      %p89 = scmp.eq.s32.totalorder %s27, 0
      %p90 = por %p88, %p89
      %p91 = scmp.ne.s32.totalorder %s79, %s80
      %p92 = scmp.eq.s32.totalorder %s28, 1
      %p93 = por %p91, %p92
      %p95 = scmp.ne.s32.totalorder %s80, %s94
      %p96 = scmp.eq.s32.totalorder %s28, 0
      %p97 = por %p95, %p96
      %s99 = sadd.s32 %s98, 1
      %p102 = scmp.eq.s32.totalorder %s22, 1
      %p103 = scmp.ne.s32.totalorder %s98, %s100
      %p104 = scmp.eq.s32.totalorder %s22, 0
      %p105 = por %p103, %p104
      %p106 = scmp.ne.s32.totalorder %s98, %s100
      %p107 = scmp.eq.s32.totalorder %s27, 1
      %p108 = por %p106, %p107
      %p109 = scmp.ne.s32.totalorder %s100, %s101
      %p110 = scmp.eq.s32.totalorder %s27, 0
      %p111 = por %p109, %p110
      %p112 = scmp.ne.s32.totalorder %s100, %s101
      %p113 = scmp.eq.s32.totalorder %s28, 1
      %p114 = por %p112, %p113
      %p116 = scmp.ne.s32.totalorder %s101, %s115
      %p117 = scmp.eq.s32.totalorder %s28, 0
      %p118 = por %p116, %p117
      %s120 = sadd.s32 %s119, 1
      %p123 = scmp.eq.s32.totalorder %s22, 1
      %p124 = scmp.ne.s32.totalorder %s119, %s121
      %p125 = scmp.eq.s32.totalorder %s22, 0
      %p126 = por %p124, %p125
      %p127 = scmp.ne.s32.totalorder %s119, %s121
      %p128 = scmp.eq.s32.totalorder %s27, 1
      %p129 = por %p127, %p128
      %p130 = scmp.ne.s32.totalorder %s121, %s122
      %p131 = scmp.eq.s32.totalorder %s27, 0
      %p132 = por %p130, %p131
      %p133 = scmp.ne.s32.totalorder %s121, %s122
      %p134 = scmp.eq.s32.totalorder %s28, 1
      %p135 = por %p133, %p134
      %p137 = scmp.ne.s32.totalorder %s122, %s136
      %p138 = scmp.eq.s32.totalorder %s28, 0
      %p139 = por %p137, %p138
      %s141 = sadd.s32 %s140, 1
      %p144 = scmp.eq.s32.totalorder %s22, 1
      %p145 = scmp.ne.s32.totalorder %s140, %s142
      %p146 = scmp.eq.s32.totalorder %s22, 0
      %p147 = por %p145, %p146
      %p148 = scmp.ne.s32.totalorder %s140, %s142
      %p149 = scmp.eq.s32.totalorder %s27, 1
      %p150 = por %p148, %p149
      %p151 = scmp.ne.s32.totalorder %s142, %s143
      %p152 = scmp.eq.s32.totalorder %s27, 0
      %p153 = por %p151, %p152
      %p154 = scmp.ne.s32.totalorder %s142, %s143
      %p155 = scmp.eq.s32.totalorder %s28, 1
      %p156 = por %p154, %p155
      %p158 = scmp.ne.s32.totalorder %s143, %s157
      %p159 = scmp.eq.s32.totalorder %s28, 0
      %p160 = por %p158, %p159
      %s162 = sadd.s32 %s161, 1
      %p165 = scmp.eq.s32.totalorder %s22, 1
      %p166 = scmp.ne.s32.totalorder %s161, %s163
      %p167 = scmp.eq.s32.totalorder %s22, 0
      %p168 = por %p166, %p167
      %p169 = scmp.ne.s32.totalorder %s161, %s163
      %p170 = scmp.eq.s32.totalorder %s27, 1
      %p171 = por %p169, %p170
      %p172 = scmp.ne.s32.totalorder %s163, %s164
      %p173 = scmp.eq.s32.totalorder %s27, 0
      %p174 = por %p172, %p173
      %p175 = scmp.ne.s32.totalorder %s163, %s164
      %p176 = scmp.eq.s32.totalorder %s28, 1
      %p177 = por %p175, %p176
      %p179 = scmp.ne.s32.totalorder %s164, %s178
      %p180 = scmp.eq.s32.totalorder %s28, 0
      %p181 = por %p179, %p180
      %s182 = ssub.s32 %s22, %s29
      %p183 = scmp.eq.s32.totalorder %s182, 0
      %s185 = sadd.s32 %s184, 1
      %s186 = scalar_select %p183, %s184, %s185
      %p189 = pneg %p183
      %p190 = scmp.eq.s32.totalorder %s22, 1
      %p191 = por %p189, %p190
      %p192 = scmp.ne.s32.totalorder %s184, %s187
      %p193 = scmp.eq.s32.totalorder %s22, 0
      %p194 = por %p192, %p193
      %p195 = scmp.ne.s32.totalorder %s184, %s187
      %p196 = scmp.eq.s32.totalorder %s27, 1
      %p197 = por %p195, %p196
      %p198 = scmp.ne.s32.totalorder %s187, %s188
      %p199 = scmp.eq.s32.totalorder %s27, 0
      %p200 = por %p198, %p199
      %p201 = scmp.ne.s32.totalorder %s187, %s188
      %p202 = scmp.eq.s32.totalorder %s28, 1
      %p203 = por %p201, %p202
      %p205 = scmp.ne.s32.totalorder %s188, %s204
      %p206 = scmp.eq.s32.totalorder %s28, 0
      %p207 = por %p205, %p206
      %p208 = scmp.le.s32.totalorder 1, %s22
      %p209 = scmp.lt.s32.totalorder %s22, 3
      %p210 = pnand %p208, %p209
      %p211 = pneg %p210
      // Predicated region
      $region9: #{tpu_custom_call.1} parent=5 // pred_check
        _
      $region10: #{tpu_custom_call.1} parent=5 // pred_check_branch
        %213 = sbr.rel (%p210) target = $region12
      $region11: #{tpu_custom_call.1} parent=5 // pred_region
        %s214 = ssub.s32 %s22, 1
        // Predicated region
        $region13: #{tpu_custom_call.1} parent=11 // pred_check
          %p215 = pneg %p69
        $region14: #{tpu_custom_call.1} parent=11 // pred_check_branch
          %217 = sbr.rel (%p215) target = $region16
        $region15: #{tpu_custom_call.1} parent=11 // pred_region
          %219 = vsyncadd [#allocation7], 0
          %s221 = sshll.u32 %s1, 4
          %s222 = int_to_ptr.hbm [resolvable:$true] %s221
          %s223 = sshll.u32 [#allocation6], 4
          %s224 = int_to_ptr.vmem [resolvable:$true] %s223
          %226 = dma.hbm_to_vmem [thread:$0]  %s222, 96, %s224, [#allocation7]
        $region16: #{tpu_custom_call.1} parent=11 // pred_fallthru
          _
        // Predicated region
        $region17: #{tpu_custom_call.1} parent=11 // pred_check
          %p227 = pneg %p90
        $region18: #{tpu_custom_call.1} parent=11 // pred_check_branch
          %229 = sbr.rel (%p227) target = $region20
        $region19: #{tpu_custom_call.1} parent=11 // pred_region
          %231 = vsyncadd [#allocation7], 0
          %s233 = sshll.u32 %s2, 4
          %s234 = int_to_ptr.hbm [resolvable:$true] %s233
          %s235 = sshll.u32 [#allocation8], 4
          %s236 = int_to_ptr.vmem [resolvable:$true] %s235
          %238 = dma.hbm_to_vmem [thread:$0]  %s234, 96, %s236, [#allocation7]
        $region20: #{tpu_custom_call.1} parent=11 // pred_fallthru
          _
        // Predicated region
        $region21: #{tpu_custom_call.1} parent=11 // pred_check
          %p239 = pneg %p111
        $region22: #{tpu_custom_call.1} parent=11 // pred_check_branch
          %241 = sbr.rel (%p239) target = $region24
        $region23: #{tpu_custom_call.1} parent=11 // pred_region
          %243 = vsyncadd [#allocation10], 0
          %s244 = sshll.u32 %s3, 4
          %s245 = int_to_ptr.hbm [resolvable:$true] %s244
          %s246 = sshll.u32 [#allocation9], 4
          %s247 = int_to_ptr.vmem [resolvable:$true] %s246
          %252 = dma.hbm_to_vmem [thread:$0]  %s245, 110592, %s247, [#allocation10], 1152, 1152, 72
        $region24: #{tpu_custom_call.1} parent=11 // pred_fallthru
          _
        // Predicated region
        $region25: #{tpu_custom_call.1} parent=11 // pred_check
          %p253 = pneg %p132
        $region26: #{tpu_custom_call.1} parent=11 // pred_check_branch
          %255 = sbr.rel (%p253) target = $region28
        $region27: #{tpu_custom_call.1} parent=11 // pred_region
          %257 = vsyncadd [#allocation10], 0
          %s259 = sshll.u32 %s4, 4
          %s260 = int_to_ptr.hbm [resolvable:$true] %s259
          %s261 = sshll.u32 [#allocation11], 4
          %s262 = int_to_ptr.vmem [resolvable:$true] %s261
          %264 = dma.hbm_to_vmem [thread:$0]  %s260, 288, %s262, [#allocation10]
        $region28: #{tpu_custom_call.1} parent=11 // pred_fallthru
          _
        // Predicated region
        $region29: #{tpu_custom_call.1} parent=11 // pred_check
          %p265 = pneg %p153
        $region30: #{tpu_custom_call.1} parent=11 // pred_check_branch
          %267 = sbr.rel (%p265) target = $region32
        $region31: #{tpu_custom_call.1} parent=11 // pred_region
          %269 = vsyncadd [#allocation13], 0
          %s270 = sshll.u32 %s5, 4
          %s271 = int_to_ptr.hbm [resolvable:$true] %s270
          %s272 = sshll.u32 [#allocation12], 4
          %s273 = int_to_ptr.vmem [resolvable:$true] %s272
          %278 = dma.hbm_to_vmem [thread:$0]  %s271, 36864, %s273, [#allocation13], 384, 384, 24
        $region32: #{tpu_custom_call.1} parent=11 // pred_fallthru
          _
        // Predicated region
        $region33: #{tpu_custom_call.1} parent=11 // pred_check
          %p279 = pneg %p174
        $region34: #{tpu_custom_call.1} parent=11 // pred_check_branch
          %281 = sbr.rel (%p279) target = $region36
        $region35: #{tpu_custom_call.1} parent=11 // pred_region
          %283 = vsyncadd [#allocation13], 0
          %s285 = sshll.u32 %s6, 4
          %s286 = int_to_ptr.hbm [resolvable:$true] %s285
          %s287 = sshll.u32 [#allocation14], 4
          %s288 = int_to_ptr.vmem [resolvable:$true] %s287
          %290 = dma.hbm_to_vmem [thread:$0]  %s286, 96, %s288, [#allocation13]
        $region36: #{tpu_custom_call.1} parent=11 // pred_fallthru
          _
      $region12: #{tpu_custom_call.1} parent=5 // pred_fallthru
        _
      %p291 = scmp.lt.s32.totalorder %s22, 2
      // Predicated region
      $region37: #{tpu_custom_call.1} parent=5 // pred_check
        %p292 = pneg %p291
      $region38: #{tpu_custom_call.1} parent=5 // pred_check_branch
        %294 = sbr.rel (%p292) target = $region40
      $region39: #{tpu_custom_call.1} parent=5 // pred_region
        // Predicated region
        $region41: #{tpu_custom_call.1} parent=39 // pred_check
          %p295 = pneg %p42
        $region42: #{tpu_custom_call.1} parent=39 // pred_check_branch
          %297 = sbr.rel (%p295) target = $region44
        $region43: #{tpu_custom_call.1} parent=39 // pred_region
          %s298 = sand.u32 %s32, 1
          %s299 = scalar_lea.sflag [#allocation4], %s298
          %s300 = sand.u32 %s32, 1
          %s301 = smul.addr %s300, 48
          %s302 = scalar_lea.vmem [#allocation3], %s301
          %304 = vsyncadd %s299, 0
          %s305 = smul.addr %s22, 6
          %s306 = smul.addr %s305, 8
          %s307 = scalar_lea.hbm %s0, %s306
          %s309 = sshll.u32 %s307, 4
          %s310 = int_to_ptr.hbm [resolvable:$true] %s309
          %s311 = sshll.u32 %s302, 4
          %s312 = int_to_ptr.vmem [resolvable:$true] %s311
          %314 = dma.hbm_to_vmem [thread:$0]  %s310, 768, %s312, %s299
        $region44: #{tpu_custom_call.1} parent=39 // pred_fallthru
          _
      $region40: #{tpu_custom_call.1} parent=5 // pred_fallthru
        _
      %p315 = scmp.le.s32.totalorder 1, %s22
      %p316 = scmp.lt.s32.totalorder %s22, 3
      %p317 = pnand %p315, %p316
      %p318 = pneg %p317
      // Predicated region
      $region45: #{tpu_custom_call.1} parent=5 // pred_check
        _
      $region46: #{tpu_custom_call.1} parent=5 // pred_check_branch
        %320 = sbr.rel (%p317) target = $region48
      $region47: #{tpu_custom_call.1} parent=5 // pred_region
        %s321 = ssub.s32 %s22, 1
        %s322 = sand.u32 %s35, 1
        %s323 = scalar_lea.sflag [#allocation4], %s322
        %s324 = sand.u32 %s35, 1
        %s325 = smul.addr %s324, 48
        %s326 = scalar_lea.vmem [#allocation3], %s325
        // Predicated region
        $region49: #{tpu_custom_call.1} parent=47 // pred_check
          %p327 = pneg %p48
        $region50: #{tpu_custom_call.1} parent=47 // pred_check_branch
          %329 = sbr.rel (%p327) target = $region52
        $region51: #{tpu_custom_call.1} parent=47 // pred_region
          %331 = dma.done %s323, 768
        $region52: #{tpu_custom_call.1} parent=47 // pred_fallthru
          _
        // Predicated region
        $region53: #{tpu_custom_call.1} parent=47 // pred_check
          %p332 = pneg %p69
        $region54: #{tpu_custom_call.1} parent=47 // pred_check_branch
          %334 = sbr.rel (%p332) target = $region56
        $region55: #{tpu_custom_call.1} parent=47 // pred_region
          %336 = dma.done [#allocation7], 96
        $region56: #{tpu_custom_call.1} parent=47 // pred_fallthru
          _
        // Predicated region
        $region57: #{tpu_custom_call.1} parent=47 // pred_check
          %p337 = pneg %p90
        $region58: #{tpu_custom_call.1} parent=47 // pred_check_branch
          %339 = sbr.rel (%p337) target = $region60
        $region59: #{tpu_custom_call.1} parent=47 // pred_region
          %341 = dma.done [#allocation7], 96
        $region60: #{tpu_custom_call.1} parent=47 // pred_fallthru
          _
        // Predicated region
        $region61: #{tpu_custom_call.1} parent=47 // pred_check
          %p342 = pneg %p111
        $region62: #{tpu_custom_call.1} parent=47 // pred_check_branch
          %344 = sbr.rel (%p342) target = $region64
        $region63: #{tpu_custom_call.1} parent=47 // pred_region
          %346 = dma.done [#allocation10], 110592
        $region64: #{tpu_custom_call.1} parent=47 // pred_fallthru
          _
        // Predicated region
        $region65: #{tpu_custom_call.1} parent=47 // pred_check
          %p347 = pneg %p132
        $region66: #{tpu_custom_call.1} parent=47 // pred_check_branch
          %349 = sbr.rel (%p347) target = $region68
        $region67: #{tpu_custom_call.1} parent=47 // pred_region
          %351 = dma.done [#allocation10], 288
        $region68: #{tpu_custom_call.1} parent=47 // pred_fallthru
          _
        // Predicated region
        $region69: #{tpu_custom_call.1} parent=47 // pred_check
          %p352 = pneg %p153
        $region70: #{tpu_custom_call.1} parent=47 // pred_check_branch
          %354 = sbr.rel (%p352) target = $region72
        $region71: #{tpu_custom_call.1} parent=47 // pred_region
          %356 = dma.done [#allocation13], 36864
        $region72: #{tpu_custom_call.1} parent=47 // pred_fallthru
          _
        // Predicated region
        $region73: #{tpu_custom_call.1} parent=47 // pred_check
          %p357 = pneg %p174
        $region74: #{tpu_custom_call.1} parent=47 // pred_check_branch
          %359 = sbr.rel (%p357) target = $region76
        $region75: #{tpu_custom_call.1} parent=47 // pred_region
          %361 = dma.done [#allocation13], 96
        $region76: #{tpu_custom_call.1} parent=47 // pred_fallthru
          _
        %s362 = sand.u32 %s35, 1
        %s363 = scalar_lea.sflag [#allocation4], %s362
        %s364 = sand.u32 %s35, 1
        %s365 = smul.addr %s364, 48
        %s366 = scalar_lea.vmem [#allocation3], %s365
        %p367 = pneg %p48
        %p368 = pneg %p45
        %p369 = pneg %p69
        %p370 = pneg %p66
        %p371 = pneg %p90
        %p372 = pneg %p87
        %p373 = pneg %p111
        %p374 = pneg %p108
        %p375 = pneg %p132
        %p376 = pneg %p129
        %p377 = pneg %p153
        %p378 = pneg %p150
        %p379 = pneg %p174
        %p380 = pneg %p171
        %p381 = pneg %p200
        %p382 = pneg %p197
        %s383 = sand.u32 %s187, 1
        %s384 = scalar_lea.sflag [#allocation5], %s383
        %s385 = sand.u32 %s187, 1
        %s386 = smul.addr %s385, 48
        %s387 = scalar_lea.vmem [#allocation15], %s386
        %v389 = vld [vmem:[%s326] sm:$0xff]
        %v390 = vld [vmem:[%s326 + $0x8] sm:$0xff]
        %v391 = vld [vmem:[%s326 + $0x10] sm:$0xff]
        %v392 = vld [vmem:[%s326 + $0x18] sm:$0xff]
        %v393 = vld [vmem:[%s326 + $0x20] sm:$0xff]
        %v394 = vld [vmem:[%s326 + $0x28] sm:$0xff]
        %v395 = vadd.f32 %v389, %v390
        %v396 = vadd.f32 %v395, %v391
        %v397 = vadd.f32 %v396, %v392
        %v398 = vadd.f32 %v397, %v393
        %v399 = vadd.f32 %v398, %v394
        %400 = vadd.xlane.f32.xlu0 %v399
        %v401 = vpop.xlane.xlu0 %400
        %v402 = vrcp.pop 768.0
        %v403 = vmul.f32 768.0, %v402
        %v404 = vsub.f32 1.0, %v403
        %v405 = vmul.f32 %v402, %v404
        %v406 = vadd.f32 %v402, %v405
        %vm407 = vweird.f32 %v402
        %v408 = vsel %vm407, %v402, %v406
        %v409 = vmul.f32 %v401, %v408
        %v410 = vsub.f32 %v389, %v409
        %v411 = vsub.f32 %v390, %v409
        %v412 = vsub.f32 %v391, %v409
        %v413 = vsub.f32 %v392, %v409
        %v414 = vsub.f32 %v393, %v409
        %v415 = vsub.f32 %v394, %v409
        %v416 = vmul.f32 %v410, %v410
        %v417 = vmul.f32 %v411, %v411
        %v418 = vmul.f32 %v412, %v412
        %v419 = vmul.f32 %v413, %v413
        %v420 = vmul.f32 %v414, %v414
        %v421 = vmul.f32 %v415, %v415
        %v422 = vadd.f32 %v416, %v417
        %v423 = vadd.f32 %v422, %v418
        %v424 = vadd.f32 %v423, %v419
        %v425 = vadd.f32 %v424, %v420
        %v426 = vadd.f32 %v425, %v421
        %427 = vadd.xlane.f32.xlu0 %v426
        %v428 = vpop.xlane.xlu0 %427
        %v429 = vmul.f32 %v428, %v408
        %v430 = vadd.f32 %v429, 1e-05
        %v431 = vrsqrt.pop %v430
        %v432 = vmul.f32 %v431, %v430
        %v433 = vmul.f32 %v432, %v431
        %v434 = vmul.f32 0.5, %v433
        %v435 = vsub.f32 1.5, %v434
        %v436 = vmul.f32 %v431, %v435
        %vm437 = vweird.f32 %v430
        %vm438 = vweird.f32 %v431
        %vm439 = vmor %vm437, %vm438
        %v440 = vsel %vm439, %v431, %v436
        %v441 = vmul.f32 %v410, %v440
        %v442 = vmul.f32 %v411, %v440
        %v443 = vmul.f32 %v412, %v440
        %v444 = vmul.f32 %v413, %v440
        %v445 = vmul.f32 %v414, %v440
        %v446 = vmul.f32 %v415, %v440
        %v447 = vld [vmem:[#allocation6] sm:$0x3f]
        %v449 = vperm.slane %v447, 0
        %v450 = vperm.slane %v447, 1
        %v451 = vperm.slane %v447, 2
        %v452 = vperm.slane %v447, 3
        %v453 = vperm.slane %v447, 4
        %v454 = vperm.slane %v447, 5
        %v461 = vmul.f32 %v441, %v449
        %v462 = vmul.f32 %v442, %v450
        %v463 = vmul.f32 %v443, %v451
        %v464 = vmul.f32 %v444, %v452
        %v465 = vmul.f32 %v445, %v453
        %v466 = vmul.f32 %v446, %v454
        %v467 = vld [vmem:[#allocation8] sm:$0x3f]
        %v469 = vperm.slane %v467, 0
        %v470 = vperm.slane %v467, 1
        %v471 = vperm.slane %v467, 2
        %v472 = vperm.slane %v467, 3
        %v473 = vperm.slane %v467, 4
        %v474 = vperm.slane %v467, 5
        %v481 = vadd.f32 %v461, %v469
        %v482 = vadd.f32 %v462, %v470
        %v483 = vadd.f32 %v463, %v471
        %v484 = vadd.f32 %v464, %v472
        %v485 = vadd.f32 %v465, %v473
        %v486 = vadd.f32 %v466, %v474
        %v487 = vpack.c.bf16 %v481, %v481
        %v488 = vpack.c.bf16 %v482, %v482
        %v489 = vpack.c.bf16 %v483, %v483
        %v490 = vpack.c.bf16 %v484, %v484
        %v491 = vpack.c.bf16 %v485, %v485
        %v492 = vpack.c.bf16 %v486, %v486
        %v493 = vld [vmem:[#allocation9] sm:$0xff]
        %v494 = vld [vmem:[#allocation9 + $0x8] sm:$0xff]
        %v495 = vld [vmem:[#allocation9 + $0x10] sm:$0xff]
        %v496 = vld [vmem:[#allocation9 + $0x18] sm:$0xff]
        %v497 = vld [vmem:[#allocation9 + $0x20] sm:$0xff]
        %v498 = vld [vmem:[#allocation9 + $0x28] sm:$0xff]
        %v499 = vld [vmem:[#allocation9 + $0x30] sm:$0xff]
        %v500 = vld [vmem:[#allocation9 + $0x38] sm:$0xff]
        %v501 = vld [vmem:[#allocation9 + $0x40] sm:$0xff]
        %v502 = vld [vmem:[#allocation9 + $0x48] sm:$0xff]
        %v503 = vld [vmem:[#allocation9 + $0x50] sm:$0xff]
        %v504 = vld [vmem:[#allocation9 + $0x58] sm:$0xff]
        %v505 = vld [vmem:[#allocation9 + $0x60] sm:$0xff]
        %v506 = vld [vmem:[#allocation9 + $0x68] sm:$0xff]
        %v507 = vld [vmem:[#allocation9 + $0x70] sm:$0xff]
        %v508 = vld [vmem:[#allocation9 + $0x78] sm:$0xff]
        %v509 = vld [vmem:[#allocation9 + $0x80] sm:$0xff]
        %v510 = vld [vmem:[#allocation9 + $0x88] sm:$0xff]
        %v511 = vld [vmem:[#allocation9 + $0x90] sm:$0xff]
        %v512 = vld [vmem:[#allocation9 + $0x98] sm:$0xff]
        %v513 = vld [vmem:[#allocation9 + $0xa0] sm:$0xff]
        %v514 = vld [vmem:[#allocation9 + $0xa8] sm:$0xff]
        %v515 = vld [vmem:[#allocation9 + $0xb0] sm:$0xff]
        %v516 = vld [vmem:[#allocation9 + $0xb8] sm:$0xff]
        %v517 = vld [vmem:[#allocation9 + $0xc0] sm:$0xff]
        %v518 = vld [vmem:[#allocation9 + $0xc8] sm:$0xff]
        %v519 = vld [vmem:[#allocation9 + $0xd0] sm:$0xff]
        %v520 = vld [vmem:[#allocation9 + $0xd8] sm:$0xff]
        %v521 = vld [vmem:[#allocation9 + $0xe0] sm:$0xff]
        %v522 = vld [vmem:[#allocation9 + $0xe8] sm:$0xff]
        %v523 = vld [vmem:[#allocation9 + $0xf0] sm:$0xff]
        %v524 = vld [vmem:[#allocation9 + $0xf8] sm:$0xff]
        %v525 = vld [vmem:[#allocation9 + $0x100] sm:$0xff]
        %v526 = vld [vmem:[#allocation9 + $0x108] sm:$0xff]
        %v527 = vld [vmem:[#allocation9 + $0x110] sm:$0xff]
        %v528 = vld [vmem:[#allocation9 + $0x118] sm:$0xff]
        %v529 = vld [vmem:[#allocation9 + $0x120] sm:$0xff]
        %v530 = vld [vmem:[#allocation9 + $0x128] sm:$0xff]
        %v531 = vld [vmem:[#allocation9 + $0x130] sm:$0xff]
        %v532 = vld [vmem:[#allocation9 + $0x138] sm:$0xff]
        %v533 = vld [vmem:[#allocation9 + $0x140] sm:$0xff]
        %v534 = vld [vmem:[#allocation9 + $0x148] sm:$0xff]
        %v535 = vld [vmem:[#allocation9 + $0x150] sm:$0xff]
        %v536 = vld [vmem:[#allocation9 + $0x158] sm:$0xff]
        %v537 = vld [vmem:[#allocation9 + $0x160] sm:$0xff]
        %v538 = vld [vmem:[#allocation9 + $0x168] sm:$0xff]
        %v539 = vld [vmem:[#allocation9 + $0x170] sm:$0xff]
        %v540 = vld [vmem:[#allocation9 + $0x178] sm:$0xff]
        %v541 = vld [vmem:[#allocation9 + $0x180] sm:$0xff]
        %v542 = vld [vmem:[#allocation9 + $0x188] sm:$0xff]
        %v543 = vld [vmem:[#allocation9 + $0x190] sm:$0xff]
        %v544 = vld [vmem:[#allocation9 + $0x198] sm:$0xff]
        %v545 = vld [vmem:[#allocation9 + $0x1a0] sm:$0xff]
        %v546 = vld [vmem:[#allocation9 + $0x1a8] sm:$0xff]
        %v547 = vld [vmem:[#allocation9 + $0x1b0] sm:$0xff]
        %v548 = vld [vmem:[#allocation9 + $0x1b8] sm:$0xff]
        %v549 = vld [vmem:[#allocation9 + $0x1c0] sm:$0xff]
        %v550 = vld [vmem:[#allocation9 + $0x1c8] sm:$0xff]
        %v551 = vld [vmem:[#allocation9 + $0x1d0] sm:$0xff]
        %v552 = vld [vmem:[#allocation9 + $0x1d8] sm:$0xff]
        %v553 = vld [vmem:[#allocation9 + $0x1e0] sm:$0xff]
        %v554 = vld [vmem:[#allocation9 + $0x1e8] sm:$0xff]
        %v555 = vld [vmem:[#allocation9 + $0x1f0] sm:$0xff]
        %v556 = vld [vmem:[#allocation9 + $0x1f8] sm:$0xff]
        %v557 = vld [vmem:[#allocation9 + $0x200] sm:$0xff]
        %v558 = vld [vmem:[#allocation9 + $0x208] sm:$0xff]
        %v559 = vld [vmem:[#allocation9 + $0x210] sm:$0xff]
        %v560 = vld [vmem:[#allocation9 + $0x218] sm:$0xff]
        %v561 = vld [vmem:[#allocation9 + $0x220] sm:$0xff]
        %v562 = vld [vmem:[#allocation9 + $0x228] sm:$0xff]
        %v563 = vld [vmem:[#allocation9 + $0x230] sm:$0xff]
        %v564 = vld [vmem:[#allocation9 + $0x238] sm:$0xff]
        %v565 = vld [vmem:[#allocation9 + $0x240] sm:$0xff]
        %v566 = vld [vmem:[#allocation9 + $0x248] sm:$0xff]
        %v567 = vld [vmem:[#allocation9 + $0x250] sm:$0xff]
        %v568 = vld [vmem:[#allocation9 + $0x258] sm:$0xff]
        %v569 = vld [vmem:[#allocation9 + $0x260] sm:$0xff]
        %v570 = vld [vmem:[#allocation9 + $0x268] sm:$0xff]
        %v571 = vld [vmem:[#allocation9 + $0x270] sm:$0xff]
        %v572 = vld [vmem:[#allocation9 + $0x278] sm:$0xff]
        %v573 = vld [vmem:[#allocation9 + $0x280] sm:$0xff]
        %v574 = vld [vmem:[#allocation9 + $0x288] sm:$0xff]
        %v575 = vld [vmem:[#allocation9 + $0x290] sm:$0xff]
        %v576 = vld [vmem:[#allocation9 + $0x298] sm:$0xff]
        %v577 = vld [vmem:[#allocation9 + $0x2a0] sm:$0xff]
        %v578 = vld [vmem:[#allocation9 + $0x2a8] sm:$0xff]
        %v579 = vld [vmem:[#allocation9 + $0x2b0] sm:$0xff]
        %v580 = vld [vmem:[#allocation9 + $0x2b8] sm:$0xff]
        %v581 = vld [vmem:[#allocation9 + $0x2c0] sm:$0xff]
        %v582 = vld [vmem:[#allocation9 + $0x2c8] sm:$0xff]
        %v583 = vld [vmem:[#allocation9 + $0x2d0] sm:$0xff]
        %v584 = vld [vmem:[#allocation9 + $0x2d8] sm:$0xff]
        %v585 = vld [vmem:[#allocation9 + $0x2e0] sm:$0xff]
        %v586 = vld [vmem:[#allocation9 + $0x2e8] sm:$0xff]
        %v587 = vld [vmem:[#allocation9 + $0x2f0] sm:$0xff]
        %v588 = vld [vmem:[#allocation9 + $0x2f8] sm:$0xff]
        %v589 = vld [vmem:[#allocation9 + $0x300] sm:$0xff]
        %v590 = vld [vmem:[#allocation9 + $0x308] sm:$0xff]
        %v591 = vld [vmem:[#allocation9 + $0x310] sm:$0xff]
        %v592 = vld [vmem:[#allocation9 + $0x318] sm:$0xff]
        %v593 = vld [vmem:[#allocation9 + $0x320] sm:$0xff]
        %v594 = vld [vmem:[#allocation9 + $0x328] sm:$0xff]
        %v595 = vld [vmem:[#allocation9 + $0x330] sm:$0xff]
        %v596 = vld [vmem:[#allocation9 + $0x338] sm:$0xff]
        %v597 = vld [vmem:[#allocation9 + $0x340] sm:$0xff]
        %v598 = vld [vmem:[#allocation9 + $0x348] sm:$0xff]
        %v599 = vld [vmem:[#allocation9 + $0x350] sm:$0xff]
        %v600 = vld [vmem:[#allocation9 + $0x358] sm:$0xff]
        %v601 = vld [vmem:[#allocation9 + $0x360] sm:$0xff]
        %v602 = vld [vmem:[#allocation9 + $0x368] sm:$0xff]
        %v603 = vld [vmem:[#allocation9 + $0x370] sm:$0xff]
        %v604 = vld [vmem:[#allocation9 + $0x378] sm:$0xff]
        %v605 = vld [vmem:[#allocation9 + $0x380] sm:$0xff]
        %v606 = vld [vmem:[#allocation9 + $0x388] sm:$0xff]
        %v607 = vld [vmem:[#allocation9 + $0x390] sm:$0xff]
        %v608 = vld [vmem:[#allocation9 + $0x398] sm:$0xff]
        %v609 = vld [vmem:[#allocation9 + $0x3a0] sm:$0xff]
        %v610 = vld [vmem:[#allocation9 + $0x3a8] sm:$0xff]
        %v611 = vld [vmem:[#allocation9 + $0x3b0] sm:$0xff]
        %v612 = vld [vmem:[#allocation9 + $0x3b8] sm:$0xff]
        %v613 = vld [vmem:[#allocation9 + $0x3c0] sm:$0xff]
        %v614 = vld [vmem:[#allocation9 + $0x3c8] sm:$0xff]
        %v615 = vld [vmem:[#allocation9 + $0x3d0] sm:$0xff]
        %v616 = vld [vmem:[#allocation9 + $0x3d8] sm:$0xff]
        %v617 = vld [vmem:[#allocation9 + $0x3e0] sm:$0xff]
        %v618 = vld [vmem:[#allocation9 + $0x3e8] sm:$0xff]
        %v619 = vld [vmem:[#allocation9 + $0x3f0] sm:$0xff]
        %v620 = vld [vmem:[#allocation9 + $0x3f8] sm:$0xff]
        %v621 = vld [vmem:[#allocation9 + $0x400] sm:$0xff]
        %v622 = vld [vmem:[#allocation9 + $0x408] sm:$0xff]
        %v623 = vld [vmem:[#allocation9 + $0x410] sm:$0xff]
        %v624 = vld [vmem:[#allocation9 + $0x418] sm:$0xff]
        %v625 = vld [vmem:[#allocation9 + $0x420] sm:$0xff]
        %v626 = vld [vmem:[#allocation9 + $0x428] sm:$0xff]
        %v627 = vld [vmem:[#allocation9 + $0x430] sm:$0xff]
        %v628 = vld [vmem:[#allocation9 + $0x438] sm:$0xff]
        %v629 = vld [vmem:[#allocation9 + $0x440] sm:$0xff]
        %v630 = vld [vmem:[#allocation9 + $0x448] sm:$0xff]
        %v631 = vld [vmem:[#allocation9 + $0x450] sm:$0xff]
        %v632 = vld [vmem:[#allocation9 + $0x458] sm:$0xff]
        %v633 = vld [vmem:[#allocation9 + $0x460] sm:$0xff]
        %v634 = vld [vmem:[#allocation9 + $0x468] sm:$0xff]
        %v635 = vld [vmem:[#allocation9 + $0x470] sm:$0xff]
        %v636 = vld [vmem:[#allocation9 + $0x478] sm:$0xff]
        %v637 = vld [vmem:[#allocation9 + $0x480] sm:$0xff]
        %v638 = vld [vmem:[#allocation9 + $0x488] sm:$0xff]
        %v639 = vld [vmem:[#allocation9 + $0x490] sm:$0xff]
        %v640 = vld [vmem:[#allocation9 + $0x498] sm:$0xff]
        %v641 = vld [vmem:[#allocation9 + $0x4a0] sm:$0xff]
        %v642 = vld [vmem:[#allocation9 + $0x4a8] sm:$0xff]
        %v643 = vld [vmem:[#allocation9 + $0x4b0] sm:$0xff]
        %v644 = vld [vmem:[#allocation9 + $0x4b8] sm:$0xff]
        %v645 = vld [vmem:[#allocation9 + $0x4c0] sm:$0xff]
        %v646 = vld [vmem:[#allocation9 + $0x4c8] sm:$0xff]
        %v647 = vld [vmem:[#allocation9 + $0x4d0] sm:$0xff]
        %v648 = vld [vmem:[#allocation9 + $0x4d8] sm:$0xff]
        %v649 = vld [vmem:[#allocation9 + $0x4e0] sm:$0xff]
        %v650 = vld [vmem:[#allocation9 + $0x4e8] sm:$0xff]
        %v651 = vld [vmem:[#allocation9 + $0x4f0] sm:$0xff]
        %v652 = vld [vmem:[#allocation9 + $0x4f8] sm:$0xff]
        %v653 = vld [vmem:[#allocation9 + $0x500] sm:$0xff]
        %v654 = vld [vmem:[#allocation9 + $0x508] sm:$0xff]
        %v655 = vld [vmem:[#allocation9 + $0x510] sm:$0xff]
        %v656 = vld [vmem:[#allocation9 + $0x518] sm:$0xff]
        %v657 = vld [vmem:[#allocation9 + $0x520] sm:$0xff]
        %v658 = vld [vmem:[#allocation9 + $0x528] sm:$0xff]
        %v659 = vld [vmem:[#allocation9 + $0x530] sm:$0xff]
        %v660 = vld [vmem:[#allocation9 + $0x538] sm:$0xff]
        %v661 = vld [vmem:[#allocation9 + $0x540] sm:$0xff]
        %v662 = vld [vmem:[#allocation9 + $0x548] sm:$0xff]
        %v663 = vld [vmem:[#allocation9 + $0x550] sm:$0xff]
        %v664 = vld [vmem:[#allocation9 + $0x558] sm:$0xff]
        %v665 = vld [vmem:[#allocation9 + $0x560] sm:$0xff]
        %v666 = vld [vmem:[#allocation9 + $0x568] sm:$0xff]
        %v667 = vld [vmem:[#allocation9 + $0x570] sm:$0xff]
        %v668 = vld [vmem:[#allocation9 + $0x578] sm:$0xff]
        %v669 = vld [vmem:[#allocation9 + $0x580] sm:$0xff]
        %v670 = vld [vmem:[#allocation9 + $0x588] sm:$0xff]
        %v671 = vld [vmem:[#allocation9 + $0x590] sm:$0xff]
        %v672 = vld [vmem:[#allocation9 + $0x598] sm:$0xff]
        %v673 = vld [vmem:[#allocation9 + $0x5a0] sm:$0xff]
        %v674 = vld [vmem:[#allocation9 + $0x5a8] sm:$0xff]
        %v675 = vld [vmem:[#allocation9 + $0x5b0] sm:$0xff]
        %v676 = vld [vmem:[#allocation9 + $0x5b8] sm:$0xff]
        %v677 = vld [vmem:[#allocation9 + $0x5c0] sm:$0xff]
        %v678 = vld [vmem:[#allocation9 + $0x5c8] sm:$0xff]
        %v679 = vld [vmem:[#allocation9 + $0x5d0] sm:$0xff]
        %v680 = vld [vmem:[#allocation9 + $0x5d8] sm:$0xff]
        %v681 = vld [vmem:[#allocation9 + $0x5e0] sm:$0xff]
        %v682 = vld [vmem:[#allocation9 + $0x5e8] sm:$0xff]
        %v683 = vld [vmem:[#allocation9 + $0x5f0] sm:$0xff]
        %v684 = vld [vmem:[#allocation9 + $0x5f8] sm:$0xff]
        %v685 = vld [vmem:[#allocation9 + $0x600] sm:$0xff]
        %v686 = vld [vmem:[#allocation9 + $0x608] sm:$0xff]
        %v687 = vld [vmem:[#allocation9 + $0x610] sm:$0xff]
        %v688 = vld [vmem:[#allocation9 + $0x618] sm:$0xff]
        %v689 = vld [vmem:[#allocation9 + $0x620] sm:$0xff]
        %v690 = vld [vmem:[#allocation9 + $0x628] sm:$0xff]
        %v691 = vld [vmem:[#allocation9 + $0x630] sm:$0xff]
        %v692 = vld [vmem:[#allocation9 + $0x638] sm:$0xff]
        %v693 = vld [vmem:[#allocation9 + $0x640] sm:$0xff]
        %v694 = vld [vmem:[#allocation9 + $0x648] sm:$0xff]
        %v695 = vld [vmem:[#allocation9 + $0x650] sm:$0xff]
        %v696 = vld [vmem:[#allocation9 + $0x658] sm:$0xff]
        %v697 = vld [vmem:[#allocation9 + $0x660] sm:$0xff]
        %v698 = vld [vmem:[#allocation9 + $0x668] sm:$0xff]
        %v699 = vld [vmem:[#allocation9 + $0x670] sm:$0xff]
        %v700 = vld [vmem:[#allocation9 + $0x678] sm:$0xff]
        %v701 = vld [vmem:[#allocation9 + $0x680] sm:$0xff]
        %v702 = vld [vmem:[#allocation9 + $0x688] sm:$0xff]
        %v703 = vld [vmem:[#allocation9 + $0x690] sm:$0xff]
        %v704 = vld [vmem:[#allocation9 + $0x698] sm:$0xff]
        %v705 = vld [vmem:[#allocation9 + $0x6a0] sm:$0xff]
        %v706 = vld [vmem:[#allocation9 + $0x6a8] sm:$0xff]
        %v707 = vld [vmem:[#allocation9 + $0x6b0] sm:$0xff]
        %v708 = vld [vmem:[#allocation9 + $0x6b8] sm:$0xff]
        %v709 = vld [vmem:[#allocation9 + $0x6c0] sm:$0xff]
        %v710 = vld [vmem:[#allocation9 + $0x6c8] sm:$0xff]
        %v711 = vld [vmem:[#allocation9 + $0x6d0] sm:$0xff]
        %v712 = vld [vmem:[#allocation9 + $0x6d8] sm:$0xff]
        %v713 = vld [vmem:[#allocation9 + $0x6e0] sm:$0xff]
        %v714 = vld [vmem:[#allocation9 + $0x6e8] sm:$0xff]
        %v715 = vld [vmem:[#allocation9 + $0x6f0] sm:$0xff]
        %v716 = vld [vmem:[#allocation9 + $0x6f8] sm:$0xff]
        %v717 = vld [vmem:[#allocation9 + $0x700] sm:$0xff]
        %v718 = vld [vmem:[#allocation9 + $0x708] sm:$0xff]
        %v719 = vld [vmem:[#allocation9 + $0x710] sm:$0xff]
        %v720 = vld [vmem:[#allocation9 + $0x718] sm:$0xff]
        %v721 = vld [vmem:[#allocation9 + $0x720] sm:$0xff]
        %v722 = vld [vmem:[#allocation9 + $0x728] sm:$0xff]
        %v723 = vld [vmem:[#allocation9 + $0x730] sm:$0xff]
        %v724 = vld [vmem:[#allocation9 + $0x738] sm:$0xff]
        %v725 = vld [vmem:[#allocation9 + $0x740] sm:$0xff]
        %v726 = vld [vmem:[#allocation9 + $0x748] sm:$0xff]
        %v727 = vld [vmem:[#allocation9 + $0x750] sm:$0xff]
        %v728 = vld [vmem:[#allocation9 + $0x758] sm:$0xff]
        %v729 = vld [vmem:[#allocation9 + $0x760] sm:$0xff]
        %v730 = vld [vmem:[#allocation9 + $0x768] sm:$0xff]
        %v731 = vld [vmem:[#allocation9 + $0x770] sm:$0xff]
        %v732 = vld [vmem:[#allocation9 + $0x778] sm:$0xff]
        %v733 = vld [vmem:[#allocation9 + $0x780] sm:$0xff]
        %v734 = vld [vmem:[#allocation9 + $0x788] sm:$0xff]
        %v735 = vld [vmem:[#allocation9 + $0x790] sm:$0xff]
        %v736 = vld [vmem:[#allocation9 + $0x798] sm:$0xff]
        %v737 = vld [vmem:[#allocation9 + $0x7a0] sm:$0xff]
        %v738 = vld [vmem:[#allocation9 + $0x7a8] sm:$0xff]
        %v739 = vld [vmem:[#allocation9 + $0x7b0] sm:$0xff]
        %v740 = vld [vmem:[#allocation9 + $0x7b8] sm:$0xff]
        %v741 = vld [vmem:[#allocation9 + $0x7c0] sm:$0xff]
        %v742 = vld [vmem:[#allocation9 + $0x7c8] sm:$0xff]
        %v743 = vld [vmem:[#allocation9 + $0x7d0] sm:$0xff]
        %v744 = vld [vmem:[#allocation9 + $0x7d8] sm:$0xff]
        %v745 = vld [vmem:[#allocation9 + $0x7e0] sm:$0xff]
        %v746 = vld [vmem:[#allocation9 + $0x7e8] sm:$0xff]
        %v747 = vld [vmem:[#allocation9 + $0x7f0] sm:$0xff]
        %v748 = vld [vmem:[#allocation9 + $0x7f8] sm:$0xff]
        %v749 = vld [vmem:[#allocation9 + $0x800] sm:$0xff]
        %v750 = vld [vmem:[#allocation9 + $0x808] sm:$0xff]
        %v751 = vld [vmem:[#allocation9 + $0x810] sm:$0xff]
        %v752 = vld [vmem:[#allocation9 + $0x818] sm:$0xff]
        %v753 = vld [vmem:[#allocation9 + $0x820] sm:$0xff]
        %v754 = vld [vmem:[#allocation9 + $0x828] sm:$0xff]
        %v755 = vld [vmem:[#allocation9 + $0x830] sm:$0xff]
        %v756 = vld [vmem:[#allocation9 + $0x838] sm:$0xff]
        %v757 = vld [vmem:[#allocation9 + $0x840] sm:$0xff]
        %v758 = vld [vmem:[#allocation9 + $0x848] sm:$0xff]
        %v759 = vld [vmem:[#allocation9 + $0x850] sm:$0xff]
        %v760 = vld [vmem:[#allocation9 + $0x858] sm:$0xff]
        %v761 = vld [vmem:[#allocation9 + $0x860] sm:$0xff]
        %v762 = vld [vmem:[#allocation9 + $0x868] sm:$0xff]
        %v763 = vld [vmem:[#allocation9 + $0x870] sm:$0xff]
        %v764 = vld [vmem:[#allocation9 + $0x878] sm:$0xff]
        %v765 = vld [vmem:[#allocation9 + $0x880] sm:$0xff]
        %v766 = vld [vmem:[#allocation9 + $0x888] sm:$0xff]
        %v767 = vld [vmem:[#allocation9 + $0x890] sm:$0xff]
        %v768 = vld [vmem:[#allocation9 + $0x898] sm:$0xff]
        %v769 = vld [vmem:[#allocation9 + $0x8a0] sm:$0xff]
        %v770 = vld [vmem:[#allocation9 + $0x8a8] sm:$0xff]
        %v771 = vld [vmem:[#allocation9 + $0x8b0] sm:$0xff]
        %v772 = vld [vmem:[#allocation9 + $0x8b8] sm:$0xff]
        %v773 = vld [vmem:[#allocation9 + $0x8c0] sm:$0xff]
        %v774 = vld [vmem:[#allocation9 + $0x8c8] sm:$0xff]
        %v775 = vld [vmem:[#allocation9 + $0x8d0] sm:$0xff]
        %v776 = vld [vmem:[#allocation9 + $0x8d8] sm:$0xff]
        %v777 = vld [vmem:[#allocation9 + $0x8e0] sm:$0xff]
        %v778 = vld [vmem:[#allocation9 + $0x8e8] sm:$0xff]
        %v779 = vld [vmem:[#allocation9 + $0x8f0] sm:$0xff]
        %v780 = vld [vmem:[#allocation9 + $0x8f8] sm:$0xff]
        %v781 = vld [vmem:[#allocation9 + $0x900] sm:$0xff]
        %v782 = vld [vmem:[#allocation9 + $0x908] sm:$0xff]
        %v783 = vld [vmem:[#allocation9 + $0x910] sm:$0xff]
        %v784 = vld [vmem:[#allocation9 + $0x918] sm:$0xff]
        %v785 = vld [vmem:[#allocation9 + $0x920] sm:$0xff]
        %v786 = vld [vmem:[#allocation9 + $0x928] sm:$0xff]
        %v787 = vld [vmem:[#allocation9 + $0x930] sm:$0xff]
        %v788 = vld [vmem:[#allocation9 + $0x938] sm:$0xff]
        %v789 = vld [vmem:[#allocation9 + $0x940] sm:$0xff]
        %v790 = vld [vmem:[#allocation9 + $0x948] sm:$0xff]
        %v791 = vld [vmem:[#allocation9 + $0x950] sm:$0xff]
        %v792 = vld [vmem:[#allocation9 + $0x958] sm:$0xff]
        %v793 = vld [vmem:[#allocation9 + $0x960] sm:$0xff]
        %v794 = vld [vmem:[#allocation9 + $0x968] sm:$0xff]
        %v795 = vld [vmem:[#allocation9 + $0x970] sm:$0xff]
        %v796 = vld [vmem:[#allocation9 + $0x978] sm:$0xff]
        %v797 = vld [vmem:[#allocation9 + $0x980] sm:$0xff]
        %v798 = vld [vmem:[#allocation9 + $0x988] sm:$0xff]
        %v799 = vld [vmem:[#allocation9 + $0x990] sm:$0xff]
        %v800 = vld [vmem:[#allocation9 + $0x998] sm:$0xff]
        %v801 = vld [vmem:[#allocation9 + $0x9a0] sm:$0xff]
        %v802 = vld [vmem:[#allocation9 + $0x9a8] sm:$0xff]
        %v803 = vld [vmem:[#allocation9 + $0x9b0] sm:$0xff]
        %v804 = vld [vmem:[#allocation9 + $0x9b8] sm:$0xff]
        %v805 = vld [vmem:[#allocation9 + $0x9c0] sm:$0xff]
        %v806 = vld [vmem:[#allocation9 + $0x9c8] sm:$0xff]
        %v807 = vld [vmem:[#allocation9 + $0x9d0] sm:$0xff]
        %v808 = vld [vmem:[#allocation9 + $0x9d8] sm:$0xff]
        %v809 = vld [vmem:[#allocation9 + $0x9e0] sm:$0xff]
        %v810 = vld [vmem:[#allocation9 + $0x9e8] sm:$0xff]
        %v811 = vld [vmem:[#allocation9 + $0x9f0] sm:$0xff]
        %v812 = vld [vmem:[#allocation9 + $0x9f8] sm:$0xff]
        %v813 = vld [vmem:[#allocation9 + $0xa00] sm:$0xff]
        %v814 = vld [vmem:[#allocation9 + $0xa08] sm:$0xff]
        %v815 = vld [vmem:[#allocation9 + $0xa10] sm:$0xff]
        %v816 = vld [vmem:[#allocation9 + $0xa18] sm:$0xff]
        %v817 = vld [vmem:[#allocation9 + $0xa20] sm:$0xff]
        %v818 = vld [vmem:[#allocation9 + $0xa28] sm:$0xff]
        %v819 = vld [vmem:[#allocation9 + $0xa30] sm:$0xff]
        %v820 = vld [vmem:[#allocation9 + $0xa38] sm:$0xff]
        %v821 = vld [vmem:[#allocation9 + $0xa40] sm:$0xff]
        %v822 = vld [vmem:[#allocation9 + $0xa48] sm:$0xff]
        %v823 = vld [vmem:[#allocation9 + $0xa50] sm:$0xff]
        %v824 = vld [vmem:[#allocation9 + $0xa58] sm:$0xff]
        %v825 = vld [vmem:[#allocation9 + $0xa60] sm:$0xff]
        %v826 = vld [vmem:[#allocation9 + $0xa68] sm:$0xff]
        %v827 = vld [vmem:[#allocation9 + $0xa70] sm:$0xff]
        %v828 = vld [vmem:[#allocation9 + $0xa78] sm:$0xff]
        %v829 = vld [vmem:[#allocation9 + $0xa80] sm:$0xff]
        %v830 = vld [vmem:[#allocation9 + $0xa88] sm:$0xff]
        %v831 = vld [vmem:[#allocation9 + $0xa90] sm:$0xff]
        %v832 = vld [vmem:[#allocation9 + $0xa98] sm:$0xff]
        %v833 = vld [vmem:[#allocation9 + $0xaa0] sm:$0xff]
        %v834 = vld [vmem:[#allocation9 + $0xaa8] sm:$0xff]
        %v835 = vld [vmem:[#allocation9 + $0xab0] sm:$0xff]
        %v836 = vld [vmem:[#allocation9 + $0xab8] sm:$0xff]
        %v837 = vld [vmem:[#allocation9 + $0xac0] sm:$0xff]
        %v838 = vld [vmem:[#allocation9 + $0xac8] sm:$0xff]
        %v839 = vld [vmem:[#allocation9 + $0xad0] sm:$0xff]
        %v840 = vld [vmem:[#allocation9 + $0xad8] sm:$0xff]
        %v841 = vld [vmem:[#allocation9 + $0xae0] sm:$0xff]
        %v842 = vld [vmem:[#allocation9 + $0xae8] sm:$0xff]
        %v843 = vld [vmem:[#allocation9 + $0xaf0] sm:$0xff]
        %v844 = vld [vmem:[#allocation9 + $0xaf8] sm:$0xff]
        %v845 = vld [vmem:[#allocation9 + $0xb00] sm:$0xff]
        %v846 = vld [vmem:[#allocation9 + $0xb08] sm:$0xff]
        %v847 = vld [vmem:[#allocation9 + $0xb10] sm:$0xff]
        %v848 = vld [vmem:[#allocation9 + $0xb18] sm:$0xff]
        %v849 = vld [vmem:[#allocation9 + $0xb20] sm:$0xff]
        %v850 = vld [vmem:[#allocation9 + $0xb28] sm:$0xff]
        %v851 = vld [vmem:[#allocation9 + $0xb30] sm:$0xff]
        %v852 = vld [vmem:[#allocation9 + $0xb38] sm:$0xff]
        %v853 = vld [vmem:[#allocation9 + $0xb40] sm:$0xff]
        %v854 = vld [vmem:[#allocation9 + $0xb48] sm:$0xff]
        %v855 = vld [vmem:[#allocation9 + $0xb50] sm:$0xff]
        %v856 = vld [vmem:[#allocation9 + $0xb58] sm:$0xff]
        %v857 = vld [vmem:[#allocation9 + $0xb60] sm:$0xff]
        %v858 = vld [vmem:[#allocation9 + $0xb68] sm:$0xff]
        %v859 = vld [vmem:[#allocation9 + $0xb70] sm:$0xff]
        %v860 = vld [vmem:[#allocation9 + $0xb78] sm:$0xff]
        %v861 = vld [vmem:[#allocation9 + $0xb80] sm:$0xff]
        %v862 = vld [vmem:[#allocation9 + $0xb88] sm:$0xff]
        %v863 = vld [vmem:[#allocation9 + $0xb90] sm:$0xff]
        %v864 = vld [vmem:[#allocation9 + $0xb98] sm:$0xff]
        %v865 = vld [vmem:[#allocation9 + $0xba0] sm:$0xff]
        %v866 = vld [vmem:[#allocation9 + $0xba8] sm:$0xff]
        %v867 = vld [vmem:[#allocation9 + $0xbb0] sm:$0xff]
        %v868 = vld [vmem:[#allocation9 + $0xbb8] sm:$0xff]
        %v869 = vld [vmem:[#allocation9 + $0xbc0] sm:$0xff]
        %v870 = vld [vmem:[#allocation9 + $0xbc8] sm:$0xff]
        %v871 = vld [vmem:[#allocation9 + $0xbd0] sm:$0xff]
        %v872 = vld [vmem:[#allocation9 + $0xbd8] sm:$0xff]
        %v873 = vld [vmem:[#allocation9 + $0xbe0] sm:$0xff]
        %v874 = vld [vmem:[#allocation9 + $0xbe8] sm:$0xff]
        %v875 = vld [vmem:[#allocation9 + $0xbf0] sm:$0xff]
        %v876 = vld [vmem:[#allocation9 + $0xbf8] sm:$0xff]
        %v877 = vld [vmem:[#allocation9 + $0xc00] sm:$0xff]
        %v878 = vld [vmem:[#allocation9 + $0xc08] sm:$0xff]
        %v879 = vld [vmem:[#allocation9 + $0xc10] sm:$0xff]
        %v880 = vld [vmem:[#allocation9 + $0xc18] sm:$0xff]
        %v881 = vld [vmem:[#allocation9 + $0xc20] sm:$0xff]
        %v882 = vld [vmem:[#allocation9 + $0xc28] sm:$0xff]
        %v883 = vld [vmem:[#allocation9 + $0xc30] sm:$0xff]
        %v884 = vld [vmem:[#allocation9 + $0xc38] sm:$0xff]
        %v885 = vld [vmem:[#allocation9 + $0xc40] sm:$0xff]
        %v886 = vld [vmem:[#allocation9 + $0xc48] sm:$0xff]
        %v887 = vld [vmem:[#allocation9 + $0xc50] sm:$0xff]
        %v888 = vld [vmem:[#allocation9 + $0xc58] sm:$0xff]
        %v889 = vld [vmem:[#allocation9 + $0xc60] sm:$0xff]
        %v890 = vld [vmem:[#allocation9 + $0xc68] sm:$0xff]
        %v891 = vld [vmem:[#allocation9 + $0xc70] sm:$0xff]
        %v892 = vld [vmem:[#allocation9 + $0xc78] sm:$0xff]
        %v893 = vld [vmem:[#allocation9 + $0xc80] sm:$0xff]
        %v894 = vld [vmem:[#allocation9 + $0xc88] sm:$0xff]
        %v895 = vld [vmem:[#allocation9 + $0xc90] sm:$0xff]
        %v896 = vld [vmem:[#allocation9 + $0xc98] sm:$0xff]
        %v897 = vld [vmem:[#allocation9 + $0xca0] sm:$0xff]
        %v898 = vld [vmem:[#allocation9 + $0xca8] sm:$0xff]
        %v899 = vld [vmem:[#allocation9 + $0xcb0] sm:$0xff]
        %v900 = vld [vmem:[#allocation9 + $0xcb8] sm:$0xff]
        %v901 = vld [vmem:[#allocation9 + $0xcc0] sm:$0xff]
        %v902 = vld [vmem:[#allocation9 + $0xcc8] sm:$0xff]
        %v903 = vld [vmem:[#allocation9 + $0xcd0] sm:$0xff]
        %v904 = vld [vmem:[#allocation9 + $0xcd8] sm:$0xff]
        %v905 = vld [vmem:[#allocation9 + $0xce0] sm:$0xff]
        %v906 = vld [vmem:[#allocation9 + $0xce8] sm:$0xff]
        %v907 = vld [vmem:[#allocation9 + $0xcf0] sm:$0xff]
        %v908 = vld [vmem:[#allocation9 + $0xcf8] sm:$0xff]
        %v909 = vld [vmem:[#allocation9 + $0xd00] sm:$0xff]
        %v910 = vld [vmem:[#allocation9 + $0xd08] sm:$0xff]
        %v911 = vld [vmem:[#allocation9 + $0xd10] sm:$0xff]
        %v912 = vld [vmem:[#allocation9 + $0xd18] sm:$0xff]
        %v913 = vld [vmem:[#allocation9 + $0xd20] sm:$0xff]
        %v914 = vld [vmem:[#allocation9 + $0xd28] sm:$0xff]
        %v915 = vld [vmem:[#allocation9 + $0xd30] sm:$0xff]
        %v916 = vld [vmem:[#allocation9 + $0xd38] sm:$0xff]
        %v917 = vld [vmem:[#allocation9 + $0xd40] sm:$0xff]
        %v918 = vld [vmem:[#allocation9 + $0xd48] sm:$0xff]
        %v919 = vld [vmem:[#allocation9 + $0xd50] sm:$0xff]
        %v920 = vld [vmem:[#allocation9 + $0xd58] sm:$0xff]
        %v921 = vld [vmem:[#allocation9 + $0xd60] sm:$0xff]
        %v922 = vld [vmem:[#allocation9 + $0xd68] sm:$0xff]
        %v923 = vld [vmem:[#allocation9 + $0xd70] sm:$0xff]
        %v924 = vld [vmem:[#allocation9 + $0xd78] sm:$0xff]
        %v925 = vld [vmem:[#allocation9 + $0xd80] sm:$0xff]
        %v926 = vld [vmem:[#allocation9 + $0xd88] sm:$0xff]
        %v927 = vld [vmem:[#allocation9 + $0xd90] sm:$0xff]
        %v928 = vld [vmem:[#allocation9 + $0xd98] sm:$0xff]
        %v929 = vld [vmem:[#allocation9 + $0xda0] sm:$0xff]
        %v930 = vld [vmem:[#allocation9 + $0xda8] sm:$0xff]
        %v931 = vld [vmem:[#allocation9 + $0xdb0] sm:$0xff]
        %v932 = vld [vmem:[#allocation9 + $0xdb8] sm:$0xff]
        %v933 = vld [vmem:[#allocation9 + $0xdc0] sm:$0xff]
        %v934 = vld [vmem:[#allocation9 + $0xdc8] sm:$0xff]
        %v935 = vld [vmem:[#allocation9 + $0xdd0] sm:$0xff]
        %v936 = vld [vmem:[#allocation9 + $0xdd8] sm:$0xff]
        %v937 = vld [vmem:[#allocation9 + $0xde0] sm:$0xff]
        %v938 = vld [vmem:[#allocation9 + $0xde8] sm:$0xff]
        %v939 = vld [vmem:[#allocation9 + $0xdf0] sm:$0xff]
        %v940 = vld [vmem:[#allocation9 + $0xdf8] sm:$0xff]
        %v941 = vld [vmem:[#allocation9 + $0xe00] sm:$0xff]
        %v942 = vld [vmem:[#allocation9 + $0xe08] sm:$0xff]
        %v943 = vld [vmem:[#allocation9 + $0xe10] sm:$0xff]
        %v944 = vld [vmem:[#allocation9 + $0xe18] sm:$0xff]
        %v945 = vld [vmem:[#allocation9 + $0xe20] sm:$0xff]
        %v946 = vld [vmem:[#allocation9 + $0xe28] sm:$0xff]
        %v947 = vld [vmem:[#allocation9 + $0xe30] sm:$0xff]
        %v948 = vld [vmem:[#allocation9 + $0xe38] sm:$0xff]
        %v949 = vld [vmem:[#allocation9 + $0xe40] sm:$0xff]
        %v950 = vld [vmem:[#allocation9 + $0xe48] sm:$0xff]
        %v951 = vld [vmem:[#allocation9 + $0xe50] sm:$0xff]
        %v952 = vld [vmem:[#allocation9 + $0xe58] sm:$0xff]
        %v953 = vld [vmem:[#allocation9 + $0xe60] sm:$0xff]
        %v954 = vld [vmem:[#allocation9 + $0xe68] sm:$0xff]
        %v955 = vld [vmem:[#allocation9 + $0xe70] sm:$0xff]
        %v956 = vld [vmem:[#allocation9 + $0xe78] sm:$0xff]
        %v957 = vld [vmem:[#allocation9 + $0xe80] sm:$0xff]
        %v958 = vld [vmem:[#allocation9 + $0xe88] sm:$0xff]
        %v959 = vld [vmem:[#allocation9 + $0xe90] sm:$0xff]
        %v960 = vld [vmem:[#allocation9 + $0xe98] sm:$0xff]
        %v961 = vld [vmem:[#allocation9 + $0xea0] sm:$0xff]
        %v962 = vld [vmem:[#allocation9 + $0xea8] sm:$0xff]
        %v963 = vld [vmem:[#allocation9 + $0xeb0] sm:$0xff]
        %v964 = vld [vmem:[#allocation9 + $0xeb8] sm:$0xff]
        %v965 = vld [vmem:[#allocation9 + $0xec0] sm:$0xff]
        %v966 = vld [vmem:[#allocation9 + $0xec8] sm:$0xff]
        %v967 = vld [vmem:[#allocation9 + $0xed0] sm:$0xff]
        %v968 = vld [vmem:[#allocation9 + $0xed8] sm:$0xff]
        %v969 = vld [vmem:[#allocation9 + $0xee0] sm:$0xff]
        %v970 = vld [vmem:[#allocation9 + $0xee8] sm:$0xff]
        %v971 = vld [vmem:[#allocation9 + $0xef0] sm:$0xff]
        %v972 = vld [vmem:[#allocation9 + $0xef8] sm:$0xff]
        %v973 = vld [vmem:[#allocation9 + $0xf00] sm:$0xff]
        %v974 = vld [vmem:[#allocation9 + $0xf08] sm:$0xff]
        %v975 = vld [vmem:[#allocation9 + $0xf10] sm:$0xff]
        %v976 = vld [vmem:[#allocation9 + $0xf18] sm:$0xff]
        %v977 = vld [vmem:[#allocation9 + $0xf20] sm:$0xff]
        %v978 = vld [vmem:[#allocation9 + $0xf28] sm:$0xff]
        %v979 = vld [vmem:[#allocation9 + $0xf30] sm:$0xff]
        %v980 = vld [vmem:[#allocation9 + $0xf38] sm:$0xff]
        %v981 = vld [vmem:[#allocation9 + $0xf40] sm:$0xff]
        %v982 = vld [vmem:[#allocation9 + $0xf48] sm:$0xff]
        %v983 = vld [vmem:[#allocation9 + $0xf50] sm:$0xff]
        %v984 = vld [vmem:[#allocation9 + $0xf58] sm:$0xff]
        %v985 = vld [vmem:[#allocation9 + $0xf60] sm:$0xff]
        %v986 = vld [vmem:[#allocation9 + $0xf68] sm:$0xff]
        %v987 = vld [vmem:[#allocation9 + $0xf70] sm:$0xff]
        %v988 = vld [vmem:[#allocation9 + $0xf78] sm:$0xff]
        %v989 = vld [vmem:[#allocation9 + $0xf80] sm:$0xff]
        %v990 = vld [vmem:[#allocation9 + $0xf88] sm:$0xff]
        %v991 = vld [vmem:[#allocation9 + $0xf90] sm:$0xff]
        %v992 = vld [vmem:[#allocation9 + $0xf98] sm:$0xff]
        %v993 = vld [vmem:[#allocation9 + $0xfa0] sm:$0xff]
        %v994 = vld [vmem:[#allocation9 + $0xfa8] sm:$0xff]
        %v995 = vld [vmem:[#allocation9 + $0xfb0] sm:$0xff]
        %v996 = vld [vmem:[#allocation9 + $0xfb8] sm:$0xff]
        %v997 = vld [vmem:[#allocation9 + $0xfc0] sm:$0xff]
        %v998 = vld [vmem:[#allocation9 + $0xfc8] sm:$0xff]
        %v999 = vld [vmem:[#allocation9 + $0xfd0] sm:$0xff]
        %v1000 = vld [vmem:[#allocation9 + $0xfd8] sm:$0xff]
        %v1001 = vld [vmem:[#allocation9 + $0xfe0] sm:$0xff]
        %v1002 = vld [vmem:[#allocation9 + $0xfe8] sm:$0xff]
        %v1003 = vld [vmem:[#allocation9 + $0xff0] sm:$0xff]
        %v1004 = vld [vmem:[#allocation9 + $0xff8] sm:$0xff]
        %v1005 = vld [vmem:[#allocation9 + $0x1000] sm:$0xff]
        %v1006 = vld [vmem:[#allocation9 + $0x1008] sm:$0xff]
        %v1007 = vld [vmem:[#allocation9 + $0x1010] sm:$0xff]
        %v1008 = vld [vmem:[#allocation9 + $0x1018] sm:$0xff]
        %v1009 = vld [vmem:[#allocation9 + $0x1020] sm:$0xff]
        %v1010 = vld [vmem:[#allocation9 + $0x1028] sm:$0xff]
        %v1011 = vld [vmem:[#allocation9 + $0x1030] sm:$0xff]
        %v1012 = vld [vmem:[#allocation9 + $0x1038] sm:$0xff]
        %v1013 = vld [vmem:[#allocation9 + $0x1040] sm:$0xff]
        %v1014 = vld [vmem:[#allocation9 + $0x1048] sm:$0xff]
        %v1015 = vld [vmem:[#allocation9 + $0x1050] sm:$0xff]
        %v1016 = vld [vmem:[#allocation9 + $0x1058] sm:$0xff]
        %v1017 = vld [vmem:[#allocation9 + $0x1060] sm:$0xff]
        %v1018 = vld [vmem:[#allocation9 + $0x1068] sm:$0xff]
        %v1019 = vld [vmem:[#allocation9 + $0x1070] sm:$0xff]
        %v1020 = vld [vmem:[#allocation9 + $0x1078] sm:$0xff]
        %v1021 = vld [vmem:[#allocation9 + $0x1080] sm:$0xff]
        %v1022 = vld [vmem:[#allocation9 + $0x1088] sm:$0xff]
        %v1023 = vld [vmem:[#allocation9 + $0x1090] sm:$0xff]
        %v1024 = vld [vmem:[#allocation9 + $0x1098] sm:$0xff]
        %v1025 = vld [vmem:[#allocation9 + $0x10a0] sm:$0xff]
        %v1026 = vld [vmem:[#allocation9 + $0x10a8] sm:$0xff]
        %v1027 = vld [vmem:[#allocation9 + $0x10b0] sm:$0xff]
        %v1028 = vld [vmem:[#allocation9 + $0x10b8] sm:$0xff]
        %v1029 = vld [vmem:[#allocation9 + $0x10c0] sm:$0xff]
        %v1030 = vld [vmem:[#allocation9 + $0x10c8] sm:$0xff]
        %v1031 = vld [vmem:[#allocation9 + $0x10d0] sm:$0xff]
        %v1032 = vld [vmem:[#allocation9 + $0x10d8] sm:$0xff]
        %v1033 = vld [vmem:[#allocation9 + $0x10e0] sm:$0xff]
        %v1034 = vld [vmem:[#allocation9 + $0x10e8] sm:$0xff]
        %v1035 = vld [vmem:[#allocation9 + $0x10f0] sm:$0xff]
        %v1036 = vld [vmem:[#allocation9 + $0x10f8] sm:$0xff]
        %v1037 = vld [vmem:[#allocation9 + $0x1100] sm:$0xff]
        %v1038 = vld [vmem:[#allocation9 + $0x1108] sm:$0xff]
        %v1039 = vld [vmem:[#allocation9 + $0x1110] sm:$0xff]
        %v1040 = vld [vmem:[#allocation9 + $0x1118] sm:$0xff]
        %v1041 = vld [vmem:[#allocation9 + $0x1120] sm:$0xff]
        %v1042 = vld [vmem:[#allocation9 + $0x1128] sm:$0xff]
        %v1043 = vld [vmem:[#allocation9 + $0x1130] sm:$0xff]
        %v1044 = vld [vmem:[#allocation9 + $0x1138] sm:$0xff]
        %v1045 = vld [vmem:[#allocation9 + $0x1140] sm:$0xff]
        %v1046 = vld [vmem:[#allocation9 + $0x1148] sm:$0xff]
        %v1047 = vld [vmem:[#allocation9 + $0x1150] sm:$0xff]
        %v1048 = vld [vmem:[#allocation9 + $0x1158] sm:$0xff]
        %v1049 = vld [vmem:[#allocation9 + $0x1160] sm:$0xff]
        %v1050 = vld [vmem:[#allocation9 + $0x1168] sm:$0xff]
        %v1051 = vld [vmem:[#allocation9 + $0x1170] sm:$0xff]
        %v1052 = vld [vmem:[#allocation9 + $0x1178] sm:$0xff]
        %v1053 = vld [vmem:[#allocation9 + $0x1180] sm:$0xff]
        %v1054 = vld [vmem:[#allocation9 + $0x1188] sm:$0xff]
        %v1055 = vld [vmem:[#allocation9 + $0x1190] sm:$0xff]
        %v1056 = vld [vmem:[#allocation9 + $0x1198] sm:$0xff]
        %v1057 = vld [vmem:[#allocation9 + $0x11a0] sm:$0xff]
        %v1058 = vld [vmem:[#allocation9 + $0x11a8] sm:$0xff]
        %v1059 = vld [vmem:[#allocation9 + $0x11b0] sm:$0xff]
        %v1060 = vld [vmem:[#allocation9 + $0x11b8] sm:$0xff]
        %v1061 = vld [vmem:[#allocation9 + $0x11c0] sm:$0xff]
        %v1062 = vld [vmem:[#allocation9 + $0x11c8] sm:$0xff]
        %v1063 = vld [vmem:[#allocation9 + $0x11d0] sm:$0xff]
        %v1064 = vld [vmem:[#allocation9 + $0x11d8] sm:$0xff]
        %v1065 = vld [vmem:[#allocation9 + $0x11e0] sm:$0xff]
        %v1066 = vld [vmem:[#allocation9 + $0x11e8] sm:$0xff]
        %v1067 = vld [vmem:[#allocation9 + $0x11f0] sm:$0xff]
        %v1068 = vld [vmem:[#allocation9 + $0x11f8] sm:$0xff]
        %v1069 = vld [vmem:[#allocation9 + $0x1200] sm:$0xff]
        %v1070 = vld [vmem:[#allocation9 + $0x1208] sm:$0xff]
        %v1071 = vld [vmem:[#allocation9 + $0x1210] sm:$0xff]
        %v1072 = vld [vmem:[#allocation9 + $0x1218] sm:$0xff]
        %v1073 = vld [vmem:[#allocation9 + $0x1220] sm:$0xff]
        %v1074 = vld [vmem:[#allocation9 + $0x1228] sm:$0xff]
        %v1075 = vld [vmem:[#allocation9 + $0x1230] sm:$0xff]
        %v1076 = vld [vmem:[#allocation9 + $0x1238] sm:$0xff]
        %v1077 = vld [vmem:[#allocation9 + $0x1240] sm:$0xff]
        %v1078 = vld [vmem:[#allocation9 + $0x1248] sm:$0xff]
        %v1079 = vld [vmem:[#allocation9 + $0x1250] sm:$0xff]
        %v1080 = vld [vmem:[#allocation9 + $0x1258] sm:$0xff]
        %v1081 = vld [vmem:[#allocation9 + $0x1260] sm:$0xff]
        %v1082 = vld [vmem:[#allocation9 + $0x1268] sm:$0xff]
        %v1083 = vld [vmem:[#allocation9 + $0x1270] sm:$0xff]
        %v1084 = vld [vmem:[#allocation9 + $0x1278] sm:$0xff]
        %v1085 = vld [vmem:[#allocation9 + $0x1280] sm:$0xff]
        %v1086 = vld [vmem:[#allocation9 + $0x1288] sm:$0xff]
        %v1087 = vld [vmem:[#allocation9 + $0x1290] sm:$0xff]
        %v1088 = vld [vmem:[#allocation9 + $0x1298] sm:$0xff]
        %v1089 = vld [vmem:[#allocation9 + $0x12a0] sm:$0xff]
        %v1090 = vld [vmem:[#allocation9 + $0x12a8] sm:$0xff]
        %v1091 = vld [vmem:[#allocation9 + $0x12b0] sm:$0xff]
        %v1092 = vld [vmem:[#allocation9 + $0x12b8] sm:$0xff]
        %v1093 = vld [vmem:[#allocation9 + $0x12c0] sm:$0xff]
        %v1094 = vld [vmem:[#allocation9 + $0x12c8] sm:$0xff]
        %v1095 = vld [vmem:[#allocation9 + $0x12d0] sm:$0xff]
        %v1096 = vld [vmem:[#allocation9 + $0x12d8] sm:$0xff]
        %v1097 = vld [vmem:[#allocation9 + $0x12e0] sm:$0xff]
        %v1098 = vld [vmem:[#allocation9 + $0x12e8] sm:$0xff]
        %v1099 = vld [vmem:[#allocation9 + $0x12f0] sm:$0xff]
        %v1100 = vld [vmem:[#allocation9 + $0x12f8] sm:$0xff]
        %v1101 = vld [vmem:[#allocation9 + $0x1300] sm:$0xff]
        %v1102 = vld [vmem:[#allocation9 + $0x1308] sm:$0xff]
        %v1103 = vld [vmem:[#allocation9 + $0x1310] sm:$0xff]
        %v1104 = vld [vmem:[#allocation9 + $0x1318] sm:$0xff]
        %v1105 = vld [vmem:[#allocation9 + $0x1320] sm:$0xff]
        %v1106 = vld [vmem:[#allocation9 + $0x1328] sm:$0xff]
        %v1107 = vld [vmem:[#allocation9 + $0x1330] sm:$0xff]
        %v1108 = vld [vmem:[#allocation9 + $0x1338] sm:$0xff]
        %v1109 = vld [vmem:[#allocation9 + $0x1340] sm:$0xff]
        %v1110 = vld [vmem:[#allocation9 + $0x1348] sm:$0xff]
        %v1111 = vld [vmem:[#allocation9 + $0x1350] sm:$0xff]
        %v1112 = vld [vmem:[#allocation9 + $0x1358] sm:$0xff]
        %v1113 = vld [vmem:[#allocation9 + $0x1360] sm:$0xff]
        %v1114 = vld [vmem:[#allocation9 + $0x1368] sm:$0xff]
        %v1115 = vld [vmem:[#allocation9 + $0x1370] sm:$0xff]
        %v1116 = vld [vmem:[#allocation9 + $0x1378] sm:$0xff]
        %v1117 = vld [vmem:[#allocation9 + $0x1380] sm:$0xff]
        %v1118 = vld [vmem:[#allocation9 + $0x1388] sm:$0xff]
        %v1119 = vld [vmem:[#allocation9 + $0x1390] sm:$0xff]
        %v1120 = vld [vmem:[#allocation9 + $0x1398] sm:$0xff]
        %v1121 = vld [vmem:[#allocation9 + $0x13a0] sm:$0xff]
        %v1122 = vld [vmem:[#allocation9 + $0x13a8] sm:$0xff]
        %v1123 = vld [vmem:[#allocation9 + $0x13b0] sm:$0xff]
        %v1124 = vld [vmem:[#allocation9 + $0x13b8] sm:$0xff]
        %v1125 = vld [vmem:[#allocation9 + $0x13c0] sm:$0xff]
        %v1126 = vld [vmem:[#allocation9 + $0x13c8] sm:$0xff]
        %v1127 = vld [vmem:[#allocation9 + $0x13d0] sm:$0xff]
        %v1128 = vld [vmem:[#allocation9 + $0x13d8] sm:$0xff]
        %v1129 = vld [vmem:[#allocation9 + $0x13e0] sm:$0xff]
        %v1130 = vld [vmem:[#allocation9 + $0x13e8] sm:$0xff]
        %v1131 = vld [vmem:[#allocation9 + $0x13f0] sm:$0xff]
        %v1132 = vld [vmem:[#allocation9 + $0x13f8] sm:$0xff]
        %v1133 = vld [vmem:[#allocation9 + $0x1400] sm:$0xff]
        %v1134 = vld [vmem:[#allocation9 + $0x1408] sm:$0xff]
        %v1135 = vld [vmem:[#allocation9 + $0x1410] sm:$0xff]
        %v1136 = vld [vmem:[#allocation9 + $0x1418] sm:$0xff]
        %v1137 = vld [vmem:[#allocation9 + $0x1420] sm:$0xff]
        %v1138 = vld [vmem:[#allocation9 + $0x1428] sm:$0xff]
        %v1139 = vld [vmem:[#allocation9 + $0x1430] sm:$0xff]
        %v1140 = vld [vmem:[#allocation9 + $0x1438] sm:$0xff]
        %v1141 = vld [vmem:[#allocation9 + $0x1440] sm:$0xff]
        %v1142 = vld [vmem:[#allocation9 + $0x1448] sm:$0xff]
        %v1143 = vld [vmem:[#allocation9 + $0x1450] sm:$0xff]
        %v1144 = vld [vmem:[#allocation9 + $0x1458] sm:$0xff]
        %v1145 = vld [vmem:[#allocation9 + $0x1460] sm:$0xff]
        %v1146 = vld [vmem:[#allocation9 + $0x1468] sm:$0xff]
        %v1147 = vld [vmem:[#allocation9 + $0x1470] sm:$0xff]
        %v1148 = vld [vmem:[#allocation9 + $0x1478] sm:$0xff]
        %v1149 = vld [vmem:[#allocation9 + $0x1480] sm:$0xff]
        %v1150 = vld [vmem:[#allocation9 + $0x1488] sm:$0xff]
        %v1151 = vld [vmem:[#allocation9 + $0x1490] sm:$0xff]
        %v1152 = vld [vmem:[#allocation9 + $0x1498] sm:$0xff]
        %v1153 = vld [vmem:[#allocation9 + $0x14a0] sm:$0xff]
        %v1154 = vld [vmem:[#allocation9 + $0x14a8] sm:$0xff]
        %v1155 = vld [vmem:[#allocation9 + $0x14b0] sm:$0xff]
        %v1156 = vld [vmem:[#allocation9 + $0x14b8] sm:$0xff]
        %v1157 = vld [vmem:[#allocation9 + $0x14c0] sm:$0xff]
        %v1158 = vld [vmem:[#allocation9 + $0x14c8] sm:$0xff]
        %v1159 = vld [vmem:[#allocation9 + $0x14d0] sm:$0xff]
        %v1160 = vld [vmem:[#allocation9 + $0x14d8] sm:$0xff]
        %v1161 = vld [vmem:[#allocation9 + $0x14e0] sm:$0xff]
        %v1162 = vld [vmem:[#allocation9 + $0x14e8] sm:$0xff]
        %v1163 = vld [vmem:[#allocation9 + $0x14f0] sm:$0xff]
        %v1164 = vld [vmem:[#allocation9 + $0x14f8] sm:$0xff]
        %v1165 = vld [vmem:[#allocation9 + $0x1500] sm:$0xff]
        %v1166 = vld [vmem:[#allocation9 + $0x1508] sm:$0xff]
        %v1167 = vld [vmem:[#allocation9 + $0x1510] sm:$0xff]
        %v1168 = vld [vmem:[#allocation9 + $0x1518] sm:$0xff]
        %v1169 = vld [vmem:[#allocation9 + $0x1520] sm:$0xff]
        %v1170 = vld [vmem:[#allocation9 + $0x1528] sm:$0xff]
        %v1171 = vld [vmem:[#allocation9 + $0x1530] sm:$0xff]
        %v1172 = vld [vmem:[#allocation9 + $0x1538] sm:$0xff]
        %v1173 = vld [vmem:[#allocation9 + $0x1540] sm:$0xff]
        %v1174 = vld [vmem:[#allocation9 + $0x1548] sm:$0xff]
        %v1175 = vld [vmem:[#allocation9 + $0x1550] sm:$0xff]
        %v1176 = vld [vmem:[#allocation9 + $0x1558] sm:$0xff]
        %v1177 = vld [vmem:[#allocation9 + $0x1560] sm:$0xff]
        %v1178 = vld [vmem:[#allocation9 + $0x1568] sm:$0xff]
        %v1179 = vld [vmem:[#allocation9 + $0x1570] sm:$0xff]
        %v1180 = vld [vmem:[#allocation9 + $0x1578] sm:$0xff]
        %v1181 = vld [vmem:[#allocation9 + $0x1580] sm:$0xff]
        %v1182 = vld [vmem:[#allocation9 + $0x1588] sm:$0xff]
        %v1183 = vld [vmem:[#allocation9 + $0x1590] sm:$0xff]
        %v1184 = vld [vmem:[#allocation9 + $0x1598] sm:$0xff]
        %v1185 = vld [vmem:[#allocation9 + $0x15a0] sm:$0xff]
        %v1186 = vld [vmem:[#allocation9 + $0x15a8] sm:$0xff]
        %v1187 = vld [vmem:[#allocation9 + $0x15b0] sm:$0xff]
        %v1188 = vld [vmem:[#allocation9 + $0x15b8] sm:$0xff]
        %v1189 = vld [vmem:[#allocation9 + $0x15c0] sm:$0xff]
        %v1190 = vld [vmem:[#allocation9 + $0x15c8] sm:$0xff]
        %v1191 = vld [vmem:[#allocation9 + $0x15d0] sm:$0xff]
        %v1192 = vld [vmem:[#allocation9 + $0x15d8] sm:$0xff]
        %v1193 = vld [vmem:[#allocation9 + $0x15e0] sm:$0xff]
        %v1194 = vld [vmem:[#allocation9 + $0x15e8] sm:$0xff]
        %v1195 = vld [vmem:[#allocation9 + $0x15f0] sm:$0xff]
        %v1196 = vld [vmem:[#allocation9 + $0x15f8] sm:$0xff]
        %v1197 = vld [vmem:[#allocation9 + $0x1600] sm:$0xff]
        %v1198 = vld [vmem:[#allocation9 + $0x1608] sm:$0xff]
        %v1199 = vld [vmem:[#allocation9 + $0x1610] sm:$0xff]
        %v1200 = vld [vmem:[#allocation9 + $0x1618] sm:$0xff]
        %v1201 = vld [vmem:[#allocation9 + $0x1620] sm:$0xff]
        %v1202 = vld [vmem:[#allocation9 + $0x1628] sm:$0xff]
        %v1203 = vld [vmem:[#allocation9 + $0x1630] sm:$0xff]
        %v1204 = vld [vmem:[#allocation9 + $0x1638] sm:$0xff]
        %v1205 = vld [vmem:[#allocation9 + $0x1640] sm:$0xff]
        %v1206 = vld [vmem:[#allocation9 + $0x1648] sm:$0xff]
        %v1207 = vld [vmem:[#allocation9 + $0x1650] sm:$0xff]
        %v1208 = vld [vmem:[#allocation9 + $0x1658] sm:$0xff]
        %v1209 = vld [vmem:[#allocation9 + $0x1660] sm:$0xff]
        %v1210 = vld [vmem:[#allocation9 + $0x1668] sm:$0xff]
        %v1211 = vld [vmem:[#allocation9 + $0x1670] sm:$0xff]
        %v1212 = vld [vmem:[#allocation9 + $0x1678] sm:$0xff]
        %v1213 = vld [vmem:[#allocation9 + $0x1680] sm:$0xff]
        %v1214 = vld [vmem:[#allocation9 + $0x1688] sm:$0xff]
        %v1215 = vld [vmem:[#allocation9 + $0x1690] sm:$0xff]
        %v1216 = vld [vmem:[#allocation9 + $0x1698] sm:$0xff]
        %v1217 = vld [vmem:[#allocation9 + $0x16a0] sm:$0xff]
        %v1218 = vld [vmem:[#allocation9 + $0x16a8] sm:$0xff]
        %v1219 = vld [vmem:[#allocation9 + $0x16b0] sm:$0xff]
        %v1220 = vld [vmem:[#allocation9 + $0x16b8] sm:$0xff]
        %v1221 = vld [vmem:[#allocation9 + $0x16c0] sm:$0xff]
        %v1222 = vld [vmem:[#allocation9 + $0x16c8] sm:$0xff]
        %v1223 = vld [vmem:[#allocation9 + $0x16d0] sm:$0xff]
        %v1224 = vld [vmem:[#allocation9 + $0x16d8] sm:$0xff]
        %v1225 = vld [vmem:[#allocation9 + $0x16e0] sm:$0xff]
        %v1226 = vld [vmem:[#allocation9 + $0x16e8] sm:$0xff]
        %v1227 = vld [vmem:[#allocation9 + $0x16f0] sm:$0xff]
        %v1228 = vld [vmem:[#allocation9 + $0x16f8] sm:$0xff]
        %v1229 = vld [vmem:[#allocation9 + $0x1700] sm:$0xff]
        %v1230 = vld [vmem:[#allocation9 + $0x1708] sm:$0xff]
        %v1231 = vld [vmem:[#allocation9 + $0x1710] sm:$0xff]
        %v1232 = vld [vmem:[#allocation9 + $0x1718] sm:$0xff]
        %v1233 = vld [vmem:[#allocation9 + $0x1720] sm:$0xff]
        %v1234 = vld [vmem:[#allocation9 + $0x1728] sm:$0xff]
        %v1235 = vld [vmem:[#allocation9 + $0x1730] sm:$0xff]
        %v1236 = vld [vmem:[#allocation9 + $0x1738] sm:$0xff]
        %v1237 = vld [vmem:[#allocation9 + $0x1740] sm:$0xff]
        %v1238 = vld [vmem:[#allocation9 + $0x1748] sm:$0xff]
        %v1239 = vld [vmem:[#allocation9 + $0x1750] sm:$0xff]
        %v1240 = vld [vmem:[#allocation9 + $0x1758] sm:$0xff]
        %v1241 = vld [vmem:[#allocation9 + $0x1760] sm:$0xff]
        %v1242 = vld [vmem:[#allocation9 + $0x1768] sm:$0xff]
        %v1243 = vld [vmem:[#allocation9 + $0x1770] sm:$0xff]
        %v1244 = vld [vmem:[#allocation9 + $0x1778] sm:$0xff]
        %v1245 = vld [vmem:[#allocation9 + $0x1780] sm:$0xff]
        %v1246 = vld [vmem:[#allocation9 + $0x1788] sm:$0xff]
        %v1247 = vld [vmem:[#allocation9 + $0x1790] sm:$0xff]
        %v1248 = vld [vmem:[#allocation9 + $0x1798] sm:$0xff]
        %v1249 = vld [vmem:[#allocation9 + $0x17a0] sm:$0xff]
        %v1250 = vld [vmem:[#allocation9 + $0x17a8] sm:$0xff]
        %v1251 = vld [vmem:[#allocation9 + $0x17b0] sm:$0xff]
        %v1252 = vld [vmem:[#allocation9 + $0x17b8] sm:$0xff]
        %v1253 = vld [vmem:[#allocation9 + $0x17c0] sm:$0xff]
        %v1254 = vld [vmem:[#allocation9 + $0x17c8] sm:$0xff]
        %v1255 = vld [vmem:[#allocation9 + $0x17d0] sm:$0xff]
        %v1256 = vld [vmem:[#allocation9 + $0x17d8] sm:$0xff]
        %v1257 = vld [vmem:[#allocation9 + $0x17e0] sm:$0xff]
        %v1258 = vld [vmem:[#allocation9 + $0x17e8] sm:$0xff]
        %v1259 = vld [vmem:[#allocation9 + $0x17f0] sm:$0xff]
        %v1260 = vld [vmem:[#allocation9 + $0x17f8] sm:$0xff]
        %v1261 = vld [vmem:[#allocation9 + $0x1800] sm:$0xff]
        %v1262 = vld [vmem:[#allocation9 + $0x1808] sm:$0xff]
        %v1263 = vld [vmem:[#allocation9 + $0x1810] sm:$0xff]
        %v1264 = vld [vmem:[#allocation9 + $0x1818] sm:$0xff]
        %v1265 = vld [vmem:[#allocation9 + $0x1820] sm:$0xff]
        %v1266 = vld [vmem:[#allocation9 + $0x1828] sm:$0xff]
        %v1267 = vld [vmem:[#allocation9 + $0x1830] sm:$0xff]
        %v1268 = vld [vmem:[#allocation9 + $0x1838] sm:$0xff]
        %v1269 = vld [vmem:[#allocation9 + $0x1840] sm:$0xff]
        %v1270 = vld [vmem:[#allocation9 + $0x1848] sm:$0xff]
        %v1271 = vld [vmem:[#allocation9 + $0x1850] sm:$0xff]
        %v1272 = vld [vmem:[#allocation9 + $0x1858] sm:$0xff]
        %v1273 = vld [vmem:[#allocation9 + $0x1860] sm:$0xff]
        %v1274 = vld [vmem:[#allocation9 + $0x1868] sm:$0xff]
        %v1275 = vld [vmem:[#allocation9 + $0x1870] sm:$0xff]
        %v1276 = vld [vmem:[#allocation9 + $0x1878] sm:$0xff]
        %v1277 = vld [vmem:[#allocation9 + $0x1880] sm:$0xff]
        %v1278 = vld [vmem:[#allocation9 + $0x1888] sm:$0xff]
        %v1279 = vld [vmem:[#allocation9 + $0x1890] sm:$0xff]
        %v1280 = vld [vmem:[#allocation9 + $0x1898] sm:$0xff]
        %v1281 = vld [vmem:[#allocation9 + $0x18a0] sm:$0xff]
        %v1282 = vld [vmem:[#allocation9 + $0x18a8] sm:$0xff]
        %v1283 = vld [vmem:[#allocation9 + $0x18b0] sm:$0xff]
        %v1284 = vld [vmem:[#allocation9 + $0x18b8] sm:$0xff]
        %v1285 = vld [vmem:[#allocation9 + $0x18c0] sm:$0xff]
        %v1286 = vld [vmem:[#allocation9 + $0x18c8] sm:$0xff]
        %v1287 = vld [vmem:[#allocation9 + $0x18d0] sm:$0xff]
        %v1288 = vld [vmem:[#allocation9 + $0x18d8] sm:$0xff]
        %v1289 = vld [vmem:[#allocation9 + $0x18e0] sm:$0xff]
        %v1290 = vld [vmem:[#allocation9 + $0x18e8] sm:$0xff]
        %v1291 = vld [vmem:[#allocation9 + $0x18f0] sm:$0xff]
        %v1292 = vld [vmem:[#allocation9 + $0x18f8] sm:$0xff]
        %v1293 = vld [vmem:[#allocation9 + $0x1900] sm:$0xff]
        %v1294 = vld [vmem:[#allocation9 + $0x1908] sm:$0xff]
        %v1295 = vld [vmem:[#allocation9 + $0x1910] sm:$0xff]
        %v1296 = vld [vmem:[#allocation9 + $0x1918] sm:$0xff]
        %v1297 = vld [vmem:[#allocation9 + $0x1920] sm:$0xff]
        %v1298 = vld [vmem:[#allocation9 + $0x1928] sm:$0xff]
        %v1299 = vld [vmem:[#allocation9 + $0x1930] sm:$0xff]
        %v1300 = vld [vmem:[#allocation9 + $0x1938] sm:$0xff]
        %v1301 = vld [vmem:[#allocation9 + $0x1940] sm:$0xff]
        %v1302 = vld [vmem:[#allocation9 + $0x1948] sm:$0xff]
        %v1303 = vld [vmem:[#allocation9 + $0x1950] sm:$0xff]
        %v1304 = vld [vmem:[#allocation9 + $0x1958] sm:$0xff]
        %v1305 = vld [vmem:[#allocation9 + $0x1960] sm:$0xff]
        %v1306 = vld [vmem:[#allocation9 + $0x1968] sm:$0xff]
        %v1307 = vld [vmem:[#allocation9 + $0x1970] sm:$0xff]
        %v1308 = vld [vmem:[#allocation9 + $0x1978] sm:$0xff]
        %v1309 = vld [vmem:[#allocation9 + $0x1980] sm:$0xff]
        %v1310 = vld [vmem:[#allocation9 + $0x1988] sm:$0xff]
        %v1311 = vld [vmem:[#allocation9 + $0x1990] sm:$0xff]
        %v1312 = vld [vmem:[#allocation9 + $0x1998] sm:$0xff]
        %v1313 = vld [vmem:[#allocation9 + $0x19a0] sm:$0xff]
        %v1314 = vld [vmem:[#allocation9 + $0x19a8] sm:$0xff]
        %v1315 = vld [vmem:[#allocation9 + $0x19b0] sm:$0xff]
        %v1316 = vld [vmem:[#allocation9 + $0x19b8] sm:$0xff]
        %v1317 = vld [vmem:[#allocation9 + $0x19c0] sm:$0xff]
        %v1318 = vld [vmem:[#allocation9 + $0x19c8] sm:$0xff]
        %v1319 = vld [vmem:[#allocation9 + $0x19d0] sm:$0xff]
        %v1320 = vld [vmem:[#allocation9 + $0x19d8] sm:$0xff]
        %v1321 = vld [vmem:[#allocation9 + $0x19e0] sm:$0xff]
        %v1322 = vld [vmem:[#allocation9 + $0x19e8] sm:$0xff]
        %v1323 = vld [vmem:[#allocation9 + $0x19f0] sm:$0xff]
        %v1324 = vld [vmem:[#allocation9 + $0x19f8] sm:$0xff]
        %v1325 = vld [vmem:[#allocation9 + $0x1a00] sm:$0xff]
        %v1326 = vld [vmem:[#allocation9 + $0x1a08] sm:$0xff]
        %v1327 = vld [vmem:[#allocation9 + $0x1a10] sm:$0xff]
        %v1328 = vld [vmem:[#allocation9 + $0x1a18] sm:$0xff]
        %v1329 = vld [vmem:[#allocation9 + $0x1a20] sm:$0xff]
        %v1330 = vld [vmem:[#allocation9 + $0x1a28] sm:$0xff]
        %v1331 = vld [vmem:[#allocation9 + $0x1a30] sm:$0xff]
        %v1332 = vld [vmem:[#allocation9 + $0x1a38] sm:$0xff]
        %v1333 = vld [vmem:[#allocation9 + $0x1a40] sm:$0xff]
        %v1334 = vld [vmem:[#allocation9 + $0x1a48] sm:$0xff]
        %v1335 = vld [vmem:[#allocation9 + $0x1a50] sm:$0xff]
        %v1336 = vld [vmem:[#allocation9 + $0x1a58] sm:$0xff]
        %v1337 = vld [vmem:[#allocation9 + $0x1a60] sm:$0xff]
        %v1338 = vld [vmem:[#allocation9 + $0x1a68] sm:$0xff]
        %v1339 = vld [vmem:[#allocation9 + $0x1a70] sm:$0xff]
        %v1340 = vld [vmem:[#allocation9 + $0x1a78] sm:$0xff]
        %v1341 = vld [vmem:[#allocation9 + $0x1a80] sm:$0xff]
        %v1342 = vld [vmem:[#allocation9 + $0x1a88] sm:$0xff]
        %v1343 = vld [vmem:[#allocation9 + $0x1a90] sm:$0xff]
        %v1344 = vld [vmem:[#allocation9 + $0x1a98] sm:$0xff]
        %v1345 = vld [vmem:[#allocation9 + $0x1aa0] sm:$0xff]
        %v1346 = vld [vmem:[#allocation9 + $0x1aa8] sm:$0xff]
        %v1347 = vld [vmem:[#allocation9 + $0x1ab0] sm:$0xff]
        %v1348 = vld [vmem:[#allocation9 + $0x1ab8] sm:$0xff]
        %v1349 = vld [vmem:[#allocation9 + $0x1ac0] sm:$0xff]
        %v1350 = vld [vmem:[#allocation9 + $0x1ac8] sm:$0xff]
        %v1351 = vld [vmem:[#allocation9 + $0x1ad0] sm:$0xff]
        %v1352 = vld [vmem:[#allocation9 + $0x1ad8] sm:$0xff]
        %v1353 = vld [vmem:[#allocation9 + $0x1ae0] sm:$0xff]
        %v1354 = vld [vmem:[#allocation9 + $0x1ae8] sm:$0xff]
        %v1355 = vld [vmem:[#allocation9 + $0x1af0] sm:$0xff]
        %v1356 = vld [vmem:[#allocation9 + $0x1af8] sm:$0xff]
        %v1357 = vld [vmem:[#allocation11] sm:$0xff]
        %v1358 = vld [vmem:[#allocation11 + $0x8] sm:$0xff]
        %v1359 = vld [vmem:[#allocation11 + $0x10] sm:$0x3]
        %v1363 = vperm.slane %v1357, 0
        %v1364 = vperm.slane %v1357, 1
        %v1365 = vperm.slane %v1357, 2
        %v1366 = vperm.slane %v1357, 3
        %v1367 = vperm.slane %v1357, 4
        %v1368 = vperm.slane %v1357, 5
        %v1369 = vperm.slane %v1357, 6
        %v1370 = vperm.slane %v1357, 7
        %v1371 = vperm.slane %v1358, 0
        %v1372 = vperm.slane %v1358, 1
        %v1373 = vperm.slane %v1358, 2
        %v1374 = vperm.slane %v1358, 3
        %v1375 = vperm.slane %v1358, 4
        %v1376 = vperm.slane %v1358, 5
        %v1377 = vperm.slane %v1358, 6
        %v1378 = vperm.slane %v1358, 7
        %v1379 = vperm.slane %v1359, 0
        %v1380 = vperm.slane %v1359, 1
        %v2263 = vunpack.c.l.b16 %v493
        %v2264 = vunpack.c.h.b16 %v493
        %v2265 = vunpack.c.l.b16 %v494
        %v2266 = vunpack.c.h.b16 %v494
        %v2267 = vunpack.c.l.b16 %v495
        %v2268 = vunpack.c.h.b16 %v495
        %v2269 = vunpack.c.l.b16 %v496
        %v2270 = vunpack.c.h.b16 %v496
        %v2271 = vunpack.c.l.b16 %v497
        %v2272 = vunpack.c.h.b16 %v497
        %v2273 = vunpack.c.l.b16 %v498
        %v2274 = vunpack.c.h.b16 %v498
        %v2275 = vunpack.c.l.b16 %v499
        %v2276 = vunpack.c.h.b16 %v499
        %v2277 = vunpack.c.l.b16 %v500
        %v2278 = vunpack.c.h.b16 %v500
        %v2279 = vunpack.c.l.b16 %v501
        %v2280 = vunpack.c.h.b16 %v501
        %v2281 = vunpack.c.l.b16 %v502
        %v2282 = vunpack.c.h.b16 %v502
        %v2283 = vunpack.c.l.b16 %v503
        %v2284 = vunpack.c.h.b16 %v503
        %v2285 = vunpack.c.l.b16 %v504
        %v2286 = vunpack.c.h.b16 %v504
        %v2287 = vunpack.c.l.b16 %v505
        %v2288 = vunpack.c.h.b16 %v505
        %v2289 = vunpack.c.l.b16 %v506
        %v2290 = vunpack.c.h.b16 %v506
        %v2291 = vunpack.c.l.b16 %v507
        %v2292 = vunpack.c.h.b16 %v507
        %v2293 = vunpack.c.l.b16 %v508
        %v2294 = vunpack.c.h.b16 %v508
        %v2295 = vunpack.c.l.b16 %v509
        %v2296 = vunpack.c.h.b16 %v509
        %v2297 = vunpack.c.l.b16 %v510
        %v2298 = vunpack.c.h.b16 %v510
        %v2299 = vunpack.c.l.b16 %v511
        %v2300 = vunpack.c.h.b16 %v511
        %v2301 = vunpack.c.l.b16 %v512
        %v2302 = vunpack.c.h.b16 %v512
        %v2303 = vunpack.c.l.b16 %v513
        %v2304 = vunpack.c.h.b16 %v513
        %v2305 = vunpack.c.l.b16 %v514
        %v2306 = vunpack.c.h.b16 %v514
        %v2307 = vunpack.c.l.b16 %v515
        %v2308 = vunpack.c.h.b16 %v515
        %v2309 = vunpack.c.l.b16 %v516
        %v2310 = vunpack.c.h.b16 %v516
        %v2311 = vunpack.c.l.b16 %v517
        %v2312 = vunpack.c.h.b16 %v517
        %v2313 = vunpack.c.l.b16 %v518
        %v2314 = vunpack.c.h.b16 %v518
        %v2315 = vunpack.c.l.b16 %v519
        %v2316 = vunpack.c.h.b16 %v519
        %v2317 = vunpack.c.l.b16 %v520
        %v2318 = vunpack.c.h.b16 %v520
        %v2319 = vunpack.c.l.b16 %v521
        %v2320 = vunpack.c.h.b16 %v521
        %v2321 = vunpack.c.l.b16 %v522
        %v2322 = vunpack.c.h.b16 %v522
        %v2323 = vunpack.c.l.b16 %v523
        %v2324 = vunpack.c.h.b16 %v523
        %v2325 = vunpack.c.l.b16 %v524
        %v2326 = vunpack.c.h.b16 %v524
        %v2327 = vunpack.c.l.b16 %v525
        %v2328 = vunpack.c.h.b16 %v525
        %v2329 = vunpack.c.l.b16 %v526
        %v2330 = vunpack.c.h.b16 %v526
        %v2331 = vunpack.c.l.b16 %v527
        %v2332 = vunpack.c.h.b16 %v527
        %v2333 = vunpack.c.l.b16 %v528
        %v2334 = vunpack.c.h.b16 %v528
        %v2335 = vunpack.c.l.b16 %v529
        %v2336 = vunpack.c.h.b16 %v529
        %v2337 = vunpack.c.l.b16 %v530
        %v2338 = vunpack.c.h.b16 %v530
        %v2339 = vunpack.c.l.b16 %v531
        %v2340 = vunpack.c.h.b16 %v531
        %v2341 = vunpack.c.l.b16 %v532
        %v2342 = vunpack.c.h.b16 %v532
        %v2343 = vunpack.c.l.b16 %v533
        %v2344 = vunpack.c.h.b16 %v533
        %v2345 = vunpack.c.l.b16 %v534
        %v2346 = vunpack.c.h.b16 %v534
        %v2347 = vunpack.c.l.b16 %v535
        %v2348 = vunpack.c.h.b16 %v535
        %v2349 = vunpack.c.l.b16 %v536
        %v2350 = vunpack.c.h.b16 %v536
        %v2351 = vunpack.c.l.b16 %v537
        %v2352 = vunpack.c.h.b16 %v537
        %v2353 = vunpack.c.l.b16 %v538
        %v2354 = vunpack.c.h.b16 %v538
        %v2355 = vunpack.c.l.b16 %v539
        %v2356 = vunpack.c.h.b16 %v539
        %v2357 = vunpack.c.l.b16 %v540
        %v2358 = vunpack.c.h.b16 %v540
        %v2359 = vunpack.c.l.b16 %v541
        %v2360 = vunpack.c.h.b16 %v541
        %v2361 = vunpack.c.l.b16 %v542
        %v2362 = vunpack.c.h.b16 %v542
        %v2363 = vunpack.c.l.b16 %v543
        %v2364 = vunpack.c.h.b16 %v543
        %v2365 = vunpack.c.l.b16 %v544
        %v2366 = vunpack.c.h.b16 %v544
        %v2367 = vunpack.c.l.b16 %v545
        %v2368 = vunpack.c.h.b16 %v545
        %v2369 = vunpack.c.l.b16 %v546
        %v2370 = vunpack.c.h.b16 %v546
        %v2371 = vunpack.c.l.b16 %v547
        %v2372 = vunpack.c.h.b16 %v547
        %v2373 = vunpack.c.l.b16 %v548
        %v2374 = vunpack.c.h.b16 %v548
        %v2375 = vunpack.c.l.b16 %v549
        %v2376 = vunpack.c.h.b16 %v549
        %v2377 = vunpack.c.l.b16 %v550
        %v2378 = vunpack.c.h.b16 %v550
        %v2379 = vunpack.c.l.b16 %v551
        %v2380 = vunpack.c.h.b16 %v551
        %v2381 = vunpack.c.l.b16 %v552
        %v2382 = vunpack.c.h.b16 %v552
        %v2383 = vunpack.c.l.b16 %v553
        %v2384 = vunpack.c.h.b16 %v553
        %v2385 = vunpack.c.l.b16 %v554
        %v2386 = vunpack.c.h.b16 %v554
        %v2387 = vunpack.c.l.b16 %v555
        %v2388 = vunpack.c.h.b16 %v555
        %v2389 = vunpack.c.l.b16 %v556
        %v2390 = vunpack.c.h.b16 %v556
        %v2391 = vunpack.c.l.b16 %v557
        %v2392 = vunpack.c.h.b16 %v557
        %v2393 = vunpack.c.l.b16 %v558
        %v2394 = vunpack.c.h.b16 %v558
        %v2395 = vunpack.c.l.b16 %v559
        %v2396 = vunpack.c.h.b16 %v559
        %v2397 = vunpack.c.l.b16 %v560
        %v2398 = vunpack.c.h.b16 %v560
        %v2399 = vunpack.c.l.b16 %v561
        %v2400 = vunpack.c.h.b16 %v561
        %v2401 = vunpack.c.l.b16 %v562
        %v2402 = vunpack.c.h.b16 %v562
        %v2403 = vunpack.c.l.b16 %v563
        %v2404 = vunpack.c.h.b16 %v563
        %v2405 = vunpack.c.l.b16 %v564
        %v2406 = vunpack.c.h.b16 %v564
        %v2407 = vunpack.c.l.b16 %v565
        %v2408 = vunpack.c.h.b16 %v565
        %v2409 = vunpack.c.l.b16 %v566
        %v2410 = vunpack.c.h.b16 %v566
        %v2411 = vunpack.c.l.b16 %v567
        %v2412 = vunpack.c.h.b16 %v567
        %v2413 = vunpack.c.l.b16 %v568
        %v2414 = vunpack.c.h.b16 %v568
        %v2415 = vunpack.c.l.b16 %v569
        %v2416 = vunpack.c.h.b16 %v569
        %v2417 = vunpack.c.l.b16 %v570
        %v2418 = vunpack.c.h.b16 %v570
        %v2419 = vunpack.c.l.b16 %v571
        %v2420 = vunpack.c.h.b16 %v571
        %v2421 = vunpack.c.l.b16 %v572
        %v2422 = vunpack.c.h.b16 %v572
        %v2423 = vunpack.c.l.b16 %v573
        %v2424 = vunpack.c.h.b16 %v573
        %v2425 = vunpack.c.l.b16 %v574
        %v2426 = vunpack.c.h.b16 %v574
        %v2427 = vunpack.c.l.b16 %v575
        %v2428 = vunpack.c.h.b16 %v575
        %v2429 = vunpack.c.l.b16 %v576
        %v2430 = vunpack.c.h.b16 %v576
        %v2431 = vunpack.c.l.b16 %v577
        %v2432 = vunpack.c.h.b16 %v577
        %v2433 = vunpack.c.l.b16 %v578
        %v2434 = vunpack.c.h.b16 %v578
        %v2435 = vunpack.c.l.b16 %v579
        %v2436 = vunpack.c.h.b16 %v579
        %v2437 = vunpack.c.l.b16 %v580
        %v2438 = vunpack.c.h.b16 %v580
        %v2439 = vunpack.c.l.b16 %v581
        %v2440 = vunpack.c.h.b16 %v581
        %v2441 = vunpack.c.l.b16 %v582
        %v2442 = vunpack.c.h.b16 %v582
        %v2443 = vunpack.c.l.b16 %v583
        %v2444 = vunpack.c.h.b16 %v583
        %v2445 = vunpack.c.l.b16 %v584
        %v2446 = vunpack.c.h.b16 %v584
        %v2447 = vunpack.c.l.b16 %v585
        %v2448 = vunpack.c.h.b16 %v585
        %v2449 = vunpack.c.l.b16 %v586
        %v2450 = vunpack.c.h.b16 %v586
        %v2451 = vunpack.c.l.b16 %v587
        %v2452 = vunpack.c.h.b16 %v587
        %v2453 = vunpack.c.l.b16 %v588
        %v2454 = vunpack.c.h.b16 %v588
        %v2455 = vunpack.c.l.b16 %v589
        %v2456 = vunpack.c.h.b16 %v589
        %v2457 = vunpack.c.l.b16 %v590
        %v2458 = vunpack.c.h.b16 %v590
        %v2459 = vunpack.c.l.b16 %v591
        %v2460 = vunpack.c.h.b16 %v591
        %v2461 = vunpack.c.l.b16 %v592
        %v2462 = vunpack.c.h.b16 %v592
        %v2463 = vunpack.c.l.b16 %v593
        %v2464 = vunpack.c.h.b16 %v593
        %v2465 = vunpack.c.l.b16 %v594
        %v2466 = vunpack.c.h.b16 %v594
        %v2467 = vunpack.c.l.b16 %v595
        %v2468 = vunpack.c.h.b16 %v595
        %v2469 = vunpack.c.l.b16 %v596
        %v2470 = vunpack.c.h.b16 %v596
        %v2471 = vunpack.c.l.b16 %v597
        %v2472 = vunpack.c.h.b16 %v597
        %v2473 = vunpack.c.l.b16 %v598
        %v2474 = vunpack.c.h.b16 %v598
        %v2475 = vunpack.c.l.b16 %v599
        %v2476 = vunpack.c.h.b16 %v599
        %v2477 = vunpack.c.l.b16 %v600
        %v2478 = vunpack.c.h.b16 %v600
        %v2479 = vunpack.c.l.b16 %v601
        %v2480 = vunpack.c.h.b16 %v601
        %v2481 = vunpack.c.l.b16 %v602
        %v2482 = vunpack.c.h.b16 %v602
        %v2483 = vunpack.c.l.b16 %v603
        %v2484 = vunpack.c.h.b16 %v603
        %v2485 = vunpack.c.l.b16 %v604
        %v2486 = vunpack.c.h.b16 %v604
        %v2487 = vunpack.c.l.b16 %v605
        %v2488 = vunpack.c.h.b16 %v605
        %v2489 = vunpack.c.l.b16 %v606
        %v2490 = vunpack.c.h.b16 %v606
        %v2491 = vunpack.c.l.b16 %v607
        %v2492 = vunpack.c.h.b16 %v607
        %v2493 = vunpack.c.l.b16 %v608
        %v2494 = vunpack.c.h.b16 %v608
        %v2495 = vunpack.c.l.b16 %v609
        %v2496 = vunpack.c.h.b16 %v609
        %v2497 = vunpack.c.l.b16 %v610
        %v2498 = vunpack.c.h.b16 %v610
        %v2499 = vunpack.c.l.b16 %v611
        %v2500 = vunpack.c.h.b16 %v611
        %v2501 = vunpack.c.l.b16 %v612
        %v2502 = vunpack.c.h.b16 %v612
        %v2503 = vunpack.c.l.b16 %v613
        %v2504 = vunpack.c.h.b16 %v613
        %v2505 = vunpack.c.l.b16 %v614
        %v2506 = vunpack.c.h.b16 %v614
        %v2507 = vunpack.c.l.b16 %v615
        %v2508 = vunpack.c.h.b16 %v615
        %v2509 = vunpack.c.l.b16 %v616
        %v2510 = vunpack.c.h.b16 %v616
        %v2511 = vunpack.c.l.b16 %v617
        %v2512 = vunpack.c.h.b16 %v617
        %v2513 = vunpack.c.l.b16 %v618
        %v2514 = vunpack.c.h.b16 %v618
        %v2515 = vunpack.c.l.b16 %v619
        %v2516 = vunpack.c.h.b16 %v619
        %v2517 = vunpack.c.l.b16 %v620
        %v2518 = vunpack.c.h.b16 %v620
        %v2519 = vunpack.c.l.b16 %v621
        %v2520 = vunpack.c.h.b16 %v621
        %v2521 = vunpack.c.l.b16 %v622
        %v2522 = vunpack.c.h.b16 %v622
        %v2523 = vunpack.c.l.b16 %v623
        %v2524 = vunpack.c.h.b16 %v623
        %v2525 = vunpack.c.l.b16 %v624
        %v2526 = vunpack.c.h.b16 %v624
        %v2527 = vunpack.c.l.b16 %v625
        %v2528 = vunpack.c.h.b16 %v625
        %v2529 = vunpack.c.l.b16 %v626
        %v2530 = vunpack.c.h.b16 %v626
        %v2531 = vunpack.c.l.b16 %v627
        %v2532 = vunpack.c.h.b16 %v627
        %v2533 = vunpack.c.l.b16 %v628
        %v2534 = vunpack.c.h.b16 %v628
        %v2535 = vunpack.c.l.b16 %v629
        %v2536 = vunpack.c.h.b16 %v629
        %v2537 = vunpack.c.l.b16 %v630
        %v2538 = vunpack.c.h.b16 %v630
        %v2539 = vunpack.c.l.b16 %v631
        %v2540 = vunpack.c.h.b16 %v631
        %v2541 = vunpack.c.l.b16 %v632
        %v2542 = vunpack.c.h.b16 %v632
        %v2543 = vunpack.c.l.b16 %v633
        %v2544 = vunpack.c.h.b16 %v633
        %v2545 = vunpack.c.l.b16 %v634
        %v2546 = vunpack.c.h.b16 %v634
        %v2547 = vunpack.c.l.b16 %v635
        %v2548 = vunpack.c.h.b16 %v635
        %v2549 = vunpack.c.l.b16 %v636
        %v2550 = vunpack.c.h.b16 %v636
        %v2551 = vunpack.c.l.b16 %v637
        %v2552 = vunpack.c.h.b16 %v637
        %v2553 = vunpack.c.l.b16 %v638
        %v2554 = vunpack.c.h.b16 %v638
        %v2555 = vunpack.c.l.b16 %v639
        %v2556 = vunpack.c.h.b16 %v639
        %v2557 = vunpack.c.l.b16 %v640
        %v2558 = vunpack.c.h.b16 %v640
        %v2559 = vunpack.c.l.b16 %v641
        %v2560 = vunpack.c.h.b16 %v641
        %v2561 = vunpack.c.l.b16 %v642
        %v2562 = vunpack.c.h.b16 %v642
        %v2563 = vunpack.c.l.b16 %v643
        %v2564 = vunpack.c.h.b16 %v643
        %v2565 = vunpack.c.l.b16 %v644
        %v2566 = vunpack.c.h.b16 %v644
        %v2567 = vunpack.c.l.b16 %v645
        %v2568 = vunpack.c.h.b16 %v645
        %v2569 = vunpack.c.l.b16 %v646
        %v2570 = vunpack.c.h.b16 %v646
        %v2571 = vunpack.c.l.b16 %v647
        %v2572 = vunpack.c.h.b16 %v647
        %v2573 = vunpack.c.l.b16 %v648
        %v2574 = vunpack.c.h.b16 %v648
        %v2575 = vunpack.c.l.b16 %v649
        %v2576 = vunpack.c.h.b16 %v649
        %v2577 = vunpack.c.l.b16 %v650
        %v2578 = vunpack.c.h.b16 %v650
        %v2579 = vunpack.c.l.b16 %v651
        %v2580 = vunpack.c.h.b16 %v651
        %v2581 = vunpack.c.l.b16 %v652
        %v2582 = vunpack.c.h.b16 %v652
        %v2583 = vunpack.c.l.b16 %v653
        %v2584 = vunpack.c.h.b16 %v653
        %v2585 = vunpack.c.l.b16 %v654
        %v2586 = vunpack.c.h.b16 %v654
        %v2587 = vunpack.c.l.b16 %v655
        %v2588 = vunpack.c.h.b16 %v655
        %v2589 = vunpack.c.l.b16 %v656
        %v2590 = vunpack.c.h.b16 %v656
        %v2591 = vunpack.c.l.b16 %v657
        %v2592 = vunpack.c.h.b16 %v657
        %v2593 = vunpack.c.l.b16 %v658
        %v2594 = vunpack.c.h.b16 %v658
        %v2595 = vunpack.c.l.b16 %v659
        %v2596 = vunpack.c.h.b16 %v659
        %v2597 = vunpack.c.l.b16 %v660
        %v2598 = vunpack.c.h.b16 %v660
        %v2599 = vunpack.c.l.b16 %v661
        %v2600 = vunpack.c.h.b16 %v661
        %v2601 = vunpack.c.l.b16 %v662
        %v2602 = vunpack.c.h.b16 %v662
        %v2603 = vunpack.c.l.b16 %v663
        %v2604 = vunpack.c.h.b16 %v663
        %v2605 = vunpack.c.l.b16 %v664
        %v2606 = vunpack.c.h.b16 %v664
        %v2607 = vunpack.c.l.b16 %v665
        %v2608 = vunpack.c.h.b16 %v665
        %v2609 = vunpack.c.l.b16 %v666
        %v2610 = vunpack.c.h.b16 %v666
        %v2611 = vunpack.c.l.b16 %v667
        %v2612 = vunpack.c.h.b16 %v667
        %v2613 = vunpack.c.l.b16 %v668
        %v2614 = vunpack.c.h.b16 %v668
        %v2615 = vunpack.c.l.b16 %v669
        %v2616 = vunpack.c.h.b16 %v669
        %v2617 = vunpack.c.l.b16 %v670
        %v2618 = vunpack.c.h.b16 %v670
        %v2619 = vunpack.c.l.b16 %v671
        %v2620 = vunpack.c.h.b16 %v671
        %v2621 = vunpack.c.l.b16 %v672
        %v2622 = vunpack.c.h.b16 %v672
        %v2623 = vunpack.c.l.b16 %v673
        %v2624 = vunpack.c.h.b16 %v673
        %v2625 = vunpack.c.l.b16 %v674
        %v2626 = vunpack.c.h.b16 %v674
        %v2627 = vunpack.c.l.b16 %v675
        %v2628 = vunpack.c.h.b16 %v675
        %v2629 = vunpack.c.l.b16 %v676
        %v2630 = vunpack.c.h.b16 %v676
        %v2631 = vunpack.c.l.b16 %v677
        %v2632 = vunpack.c.h.b16 %v677
        %v2633 = vunpack.c.l.b16 %v678
        %v2634 = vunpack.c.h.b16 %v678
        %v2635 = vunpack.c.l.b16 %v679
        %v2636 = vunpack.c.h.b16 %v679
        %v2637 = vunpack.c.l.b16 %v680
        %v2638 = vunpack.c.h.b16 %v680
        %v2639 = vunpack.c.l.b16 %v681
        %v2640 = vunpack.c.h.b16 %v681
        %v2641 = vunpack.c.l.b16 %v682
        %v2642 = vunpack.c.h.b16 %v682
        %v2643 = vunpack.c.l.b16 %v683
        %v2644 = vunpack.c.h.b16 %v683
        %v2645 = vunpack.c.l.b16 %v684
        %v2646 = vunpack.c.h.b16 %v684
        %v2647 = vunpack.c.l.b16 %v685
        %v2648 = vunpack.c.h.b16 %v685
        %v2649 = vunpack.c.l.b16 %v686
        %v2650 = vunpack.c.h.b16 %v686
        %v2651 = vunpack.c.l.b16 %v687
        %v2652 = vunpack.c.h.b16 %v687
        %v2653 = vunpack.c.l.b16 %v688
        %v2654 = vunpack.c.h.b16 %v688
        %v2655 = vunpack.c.l.b16 %v689
        %v2656 = vunpack.c.h.b16 %v689
        %v2657 = vunpack.c.l.b16 %v690
        %v2658 = vunpack.c.h.b16 %v690
        %v2659 = vunpack.c.l.b16 %v691
        %v2660 = vunpack.c.h.b16 %v691
        %v2661 = vunpack.c.l.b16 %v692
        %v2662 = vunpack.c.h.b16 %v692
        %v2663 = vunpack.c.l.b16 %v693
        %v2664 = vunpack.c.h.b16 %v693
        %v2665 = vunpack.c.l.b16 %v694
        %v2666 = vunpack.c.h.b16 %v694
        %v2667 = vunpack.c.l.b16 %v695
        %v2668 = vunpack.c.h.b16 %v695
        %v2669 = vunpack.c.l.b16 %v696
        %v2670 = vunpack.c.h.b16 %v696
        %v2671 = vunpack.c.l.b16 %v697
        %v2672 = vunpack.c.h.b16 %v697
        %v2673 = vunpack.c.l.b16 %v698
        %v2674 = vunpack.c.h.b16 %v698
        %v2675 = vunpack.c.l.b16 %v699
        %v2676 = vunpack.c.h.b16 %v699
        %v2677 = vunpack.c.l.b16 %v700
        %v2678 = vunpack.c.h.b16 %v700
        %v2679 = vunpack.c.l.b16 %v701
        %v2680 = vunpack.c.h.b16 %v701
        %v2681 = vunpack.c.l.b16 %v702
        %v2682 = vunpack.c.h.b16 %v702
        %v2683 = vunpack.c.l.b16 %v703
        %v2684 = vunpack.c.h.b16 %v703
        %v2685 = vunpack.c.l.b16 %v704
        %v2686 = vunpack.c.h.b16 %v704
        %v2687 = vunpack.c.l.b16 %v705
        %v2688 = vunpack.c.h.b16 %v705
        %v2689 = vunpack.c.l.b16 %v706
        %v2690 = vunpack.c.h.b16 %v706
        %v2691 = vunpack.c.l.b16 %v707
        %v2692 = vunpack.c.h.b16 %v707
        %v2693 = vunpack.c.l.b16 %v708
        %v2694 = vunpack.c.h.b16 %v708
        %v2695 = vunpack.c.l.b16 %v709
        %v2696 = vunpack.c.h.b16 %v709
        %v2697 = vunpack.c.l.b16 %v710
        %v2698 = vunpack.c.h.b16 %v710
        %v2699 = vunpack.c.l.b16 %v711
        %v2700 = vunpack.c.h.b16 %v711
        %v2701 = vunpack.c.l.b16 %v712
        %v2702 = vunpack.c.h.b16 %v712
        %v2703 = vunpack.c.l.b16 %v713
        %v2704 = vunpack.c.h.b16 %v713
        %v2705 = vunpack.c.l.b16 %v714
        %v2706 = vunpack.c.h.b16 %v714
        %v2707 = vunpack.c.l.b16 %v715
        %v2708 = vunpack.c.h.b16 %v715
        %v2709 = vunpack.c.l.b16 %v716
        %v2710 = vunpack.c.h.b16 %v716
        %v2711 = vunpack.c.l.b16 %v717
        %v2712 = vunpack.c.h.b16 %v717
        %v2713 = vunpack.c.l.b16 %v718
        %v2714 = vunpack.c.h.b16 %v718
        %v2715 = vunpack.c.l.b16 %v719
        %v2716 = vunpack.c.h.b16 %v719
        %v2717 = vunpack.c.l.b16 %v720
        %v2718 = vunpack.c.h.b16 %v720
        %v2719 = vunpack.c.l.b16 %v721
        %v2720 = vunpack.c.h.b16 %v721
        %v2721 = vunpack.c.l.b16 %v722
        %v2722 = vunpack.c.h.b16 %v722
        %v2723 = vunpack.c.l.b16 %v723
        %v2724 = vunpack.c.h.b16 %v723
        %v2725 = vunpack.c.l.b16 %v724
        %v2726 = vunpack.c.h.b16 %v724
        %v2727 = vunpack.c.l.b16 %v725
        %v2728 = vunpack.c.h.b16 %v725
        %v2729 = vunpack.c.l.b16 %v726
        %v2730 = vunpack.c.h.b16 %v726
        %v2731 = vunpack.c.l.b16 %v727
        %v2732 = vunpack.c.h.b16 %v727
        %v2733 = vunpack.c.l.b16 %v728
        %v2734 = vunpack.c.h.b16 %v728
        %v2735 = vunpack.c.l.b16 %v729
        %v2736 = vunpack.c.h.b16 %v729
        %v2737 = vunpack.c.l.b16 %v730
        %v2738 = vunpack.c.h.b16 %v730
        %v2739 = vunpack.c.l.b16 %v731
        %v2740 = vunpack.c.h.b16 %v731
        %v2741 = vunpack.c.l.b16 %v732
        %v2742 = vunpack.c.h.b16 %v732
        %v2743 = vunpack.c.l.b16 %v733
        %v2744 = vunpack.c.h.b16 %v733
        %v2745 = vunpack.c.l.b16 %v734
        %v2746 = vunpack.c.h.b16 %v734
        %v2747 = vunpack.c.l.b16 %v735
        %v2748 = vunpack.c.h.b16 %v735
        %v2749 = vunpack.c.l.b16 %v736
        %v2750 = vunpack.c.h.b16 %v736
        %v2751 = vunpack.c.l.b16 %v737
        %v2752 = vunpack.c.h.b16 %v737
        %v2753 = vunpack.c.l.b16 %v738
        %v2754 = vunpack.c.h.b16 %v738
        %v2755 = vunpack.c.l.b16 %v739
        %v2756 = vunpack.c.h.b16 %v739
        %v2757 = vunpack.c.l.b16 %v740
        %v2758 = vunpack.c.h.b16 %v740
        %v2759 = vunpack.c.l.b16 %v741
        %v2760 = vunpack.c.h.b16 %v741
        %v2761 = vunpack.c.l.b16 %v742
        %v2762 = vunpack.c.h.b16 %v742
        %v2763 = vunpack.c.l.b16 %v743
        %v2764 = vunpack.c.h.b16 %v743
        %v2765 = vunpack.c.l.b16 %v744
        %v2766 = vunpack.c.h.b16 %v744
        %v2767 = vunpack.c.l.b16 %v745
        %v2768 = vunpack.c.h.b16 %v745
        %v2769 = vunpack.c.l.b16 %v746
        %v2770 = vunpack.c.h.b16 %v746
        %v2771 = vunpack.c.l.b16 %v747
        %v2772 = vunpack.c.h.b16 %v747
        %v2773 = vunpack.c.l.b16 %v748
        %v2774 = vunpack.c.h.b16 %v748
        %v2775 = vunpack.c.l.b16 %v749
        %v2776 = vunpack.c.h.b16 %v749
        %v2777 = vunpack.c.l.b16 %v750
        %v2778 = vunpack.c.h.b16 %v750
        %v2779 = vunpack.c.l.b16 %v751
        %v2780 = vunpack.c.h.b16 %v751
        %v2781 = vunpack.c.l.b16 %v752
        %v2782 = vunpack.c.h.b16 %v752
        %v2783 = vunpack.c.l.b16 %v753
        %v2784 = vunpack.c.h.b16 %v753
        %v2785 = vunpack.c.l.b16 %v754
        %v2786 = vunpack.c.h.b16 %v754
        %v2787 = vunpack.c.l.b16 %v755
        %v2788 = vunpack.c.h.b16 %v755
        %v2789 = vunpack.c.l.b16 %v756
        %v2790 = vunpack.c.h.b16 %v756
        %v2791 = vunpack.c.l.b16 %v757
        %v2792 = vunpack.c.h.b16 %v757
        %v2793 = vunpack.c.l.b16 %v758
        %v2794 = vunpack.c.h.b16 %v758
        %v2795 = vunpack.c.l.b16 %v759
        %v2796 = vunpack.c.h.b16 %v759
        %v2797 = vunpack.c.l.b16 %v760
        %v2798 = vunpack.c.h.b16 %v760
        %v2799 = vunpack.c.l.b16 %v761
        %v2800 = vunpack.c.h.b16 %v761
        %v2801 = vunpack.c.l.b16 %v762
        %v2802 = vunpack.c.h.b16 %v762
        %v2803 = vunpack.c.l.b16 %v763
        %v2804 = vunpack.c.h.b16 %v763
        %v2805 = vunpack.c.l.b16 %v764
        %v2806 = vunpack.c.h.b16 %v764
        %v2807 = vunpack.c.l.b16 %v765
        %v2808 = vunpack.c.h.b16 %v765
        %v2809 = vunpack.c.l.b16 %v766
        %v2810 = vunpack.c.h.b16 %v766
        %v2811 = vunpack.c.l.b16 %v767
        %v2812 = vunpack.c.h.b16 %v767
        %v2813 = vunpack.c.l.b16 %v768
        %v2814 = vunpack.c.h.b16 %v768
        %v2815 = vunpack.c.l.b16 %v769
        %v2816 = vunpack.c.h.b16 %v769
        %v2817 = vunpack.c.l.b16 %v770
        %v2818 = vunpack.c.h.b16 %v770
        %v2819 = vunpack.c.l.b16 %v771
        %v2820 = vunpack.c.h.b16 %v771
        %v2821 = vunpack.c.l.b16 %v772
        %v2822 = vunpack.c.h.b16 %v772
        %v2823 = vunpack.c.l.b16 %v773
        %v2824 = vunpack.c.h.b16 %v773
        %v2825 = vunpack.c.l.b16 %v774
        %v2826 = vunpack.c.h.b16 %v774
        %v2827 = vunpack.c.l.b16 %v775
        %v2828 = vunpack.c.h.b16 %v775
        %v2829 = vunpack.c.l.b16 %v776
        %v2830 = vunpack.c.h.b16 %v776
        %v2831 = vunpack.c.l.b16 %v777
        %v2832 = vunpack.c.h.b16 %v777
        %v2833 = vunpack.c.l.b16 %v778
        %v2834 = vunpack.c.h.b16 %v778
        %v2835 = vunpack.c.l.b16 %v779
        %v2836 = vunpack.c.h.b16 %v779
        %v2837 = vunpack.c.l.b16 %v780
        %v2838 = vunpack.c.h.b16 %v780
        %v2839 = vunpack.c.l.b16 %v781
        %v2840 = vunpack.c.h.b16 %v781
        %v2841 = vunpack.c.l.b16 %v782
        %v2842 = vunpack.c.h.b16 %v782
        %v2843 = vunpack.c.l.b16 %v783
        %v2844 = vunpack.c.h.b16 %v783
        %v2845 = vunpack.c.l.b16 %v784
        %v2846 = vunpack.c.h.b16 %v784
        %v2847 = vunpack.c.l.b16 %v785
        %v2848 = vunpack.c.h.b16 %v785
        %v2849 = vunpack.c.l.b16 %v786
        %v2850 = vunpack.c.h.b16 %v786
        %v2851 = vunpack.c.l.b16 %v787
        %v2852 = vunpack.c.h.b16 %v787
        %v2853 = vunpack.c.l.b16 %v788
        %v2854 = vunpack.c.h.b16 %v788
        %v2855 = vunpack.c.l.b16 %v789
        %v2856 = vunpack.c.h.b16 %v789
        %v2857 = vunpack.c.l.b16 %v790
        %v2858 = vunpack.c.h.b16 %v790
        %v2859 = vunpack.c.l.b16 %v791
        %v2860 = vunpack.c.h.b16 %v791
        %v2861 = vunpack.c.l.b16 %v792
        %v2862 = vunpack.c.h.b16 %v792
        %v2863 = vunpack.c.l.b16 %v793
        %v2864 = vunpack.c.h.b16 %v793
        %v2865 = vunpack.c.l.b16 %v794
        %v2866 = vunpack.c.h.b16 %v794
        %v2867 = vunpack.c.l.b16 %v795
        %v2868 = vunpack.c.h.b16 %v795
        %v2869 = vunpack.c.l.b16 %v796
        %v2870 = vunpack.c.h.b16 %v796
        %v2871 = vunpack.c.l.b16 %v797
        %v2872 = vunpack.c.h.b16 %v797
        %v2873 = vunpack.c.l.b16 %v798
        %v2874 = vunpack.c.h.b16 %v798
        %v2875 = vunpack.c.l.b16 %v799
        %v2876 = vunpack.c.h.b16 %v799
        %v2877 = vunpack.c.l.b16 %v800
        %v2878 = vunpack.c.h.b16 %v800
        %v2879 = vunpack.c.l.b16 %v801
        %v2880 = vunpack.c.h.b16 %v801
        %v2881 = vunpack.c.l.b16 %v802
        %v2882 = vunpack.c.h.b16 %v802
        %v2883 = vunpack.c.l.b16 %v803
        %v2884 = vunpack.c.h.b16 %v803
        %v2885 = vunpack.c.l.b16 %v804
        %v2886 = vunpack.c.h.b16 %v804
        %v2887 = vunpack.c.l.b16 %v805
        %v2888 = vunpack.c.h.b16 %v805
        %v2889 = vunpack.c.l.b16 %v806
        %v2890 = vunpack.c.h.b16 %v806
        %v2891 = vunpack.c.l.b16 %v807
        %v2892 = vunpack.c.h.b16 %v807
        %v2893 = vunpack.c.l.b16 %v808
        %v2894 = vunpack.c.h.b16 %v808
        %v2895 = vunpack.c.l.b16 %v809
        %v2896 = vunpack.c.h.b16 %v809
        %v2897 = vunpack.c.l.b16 %v810
        %v2898 = vunpack.c.h.b16 %v810
        %v2899 = vunpack.c.l.b16 %v811
        %v2900 = vunpack.c.h.b16 %v811
        %v2901 = vunpack.c.l.b16 %v812
        %v2902 = vunpack.c.h.b16 %v812
        %v2903 = vunpack.c.l.b16 %v813
        %v2904 = vunpack.c.h.b16 %v813
        %v2905 = vunpack.c.l.b16 %v814
        %v2906 = vunpack.c.h.b16 %v814
        %v2907 = vunpack.c.l.b16 %v815
        %v2908 = vunpack.c.h.b16 %v815
        %v2909 = vunpack.c.l.b16 %v816
        %v2910 = vunpack.c.h.b16 %v816
        %v2911 = vunpack.c.l.b16 %v817
        %v2912 = vunpack.c.h.b16 %v817
        %v2913 = vunpack.c.l.b16 %v818
        %v2914 = vunpack.c.h.b16 %v818
        %v2915 = vunpack.c.l.b16 %v819
        %v2916 = vunpack.c.h.b16 %v819
        %v2917 = vunpack.c.l.b16 %v820
        %v2918 = vunpack.c.h.b16 %v820
        %v2919 = vunpack.c.l.b16 %v821
        %v2920 = vunpack.c.h.b16 %v821
        %v2921 = vunpack.c.l.b16 %v822
        %v2922 = vunpack.c.h.b16 %v822
        %v2923 = vunpack.c.l.b16 %v823
        %v2924 = vunpack.c.h.b16 %v823
        %v2925 = vunpack.c.l.b16 %v824
        %v2926 = vunpack.c.h.b16 %v824
        %v2927 = vunpack.c.l.b16 %v825
        %v2928 = vunpack.c.h.b16 %v825
        %v2929 = vunpack.c.l.b16 %v826
        %v2930 = vunpack.c.h.b16 %v826
        %v2931 = vunpack.c.l.b16 %v827
        %v2932 = vunpack.c.h.b16 %v827
        %v2933 = vunpack.c.l.b16 %v828
        %v2934 = vunpack.c.h.b16 %v828
        %v2935 = vunpack.c.l.b16 %v829
        %v2936 = vunpack.c.h.b16 %v829
        %v2937 = vunpack.c.l.b16 %v830
        %v2938 = vunpack.c.h.b16 %v830
        %v2939 = vunpack.c.l.b16 %v831
        %v2940 = vunpack.c.h.b16 %v831
        %v2941 = vunpack.c.l.b16 %v832
        %v2942 = vunpack.c.h.b16 %v832
        %v2943 = vunpack.c.l.b16 %v833
        %v2944 = vunpack.c.h.b16 %v833
        %v2945 = vunpack.c.l.b16 %v834
        %v2946 = vunpack.c.h.b16 %v834
        %v2947 = vunpack.c.l.b16 %v835
        %v2948 = vunpack.c.h.b16 %v835
        %v2949 = vunpack.c.l.b16 %v836
        %v2950 = vunpack.c.h.b16 %v836
        %v2951 = vunpack.c.l.b16 %v837
        %v2952 = vunpack.c.h.b16 %v837
        %v2953 = vunpack.c.l.b16 %v838
        %v2954 = vunpack.c.h.b16 %v838
        %v2955 = vunpack.c.l.b16 %v839
        %v2956 = vunpack.c.h.b16 %v839
        %v2957 = vunpack.c.l.b16 %v840
        %v2958 = vunpack.c.h.b16 %v840
        %v2959 = vunpack.c.l.b16 %v841
        %v2960 = vunpack.c.h.b16 %v841
        %v2961 = vunpack.c.l.b16 %v842
        %v2962 = vunpack.c.h.b16 %v842
        %v2963 = vunpack.c.l.b16 %v843
        %v2964 = vunpack.c.h.b16 %v843
        %v2965 = vunpack.c.l.b16 %v844
        %v2966 = vunpack.c.h.b16 %v844
        %v2967 = vunpack.c.l.b16 %v845
        %v2968 = vunpack.c.h.b16 %v845
        %v2969 = vunpack.c.l.b16 %v846
        %v2970 = vunpack.c.h.b16 %v846
        %v2971 = vunpack.c.l.b16 %v847
        %v2972 = vunpack.c.h.b16 %v847
        %v2973 = vunpack.c.l.b16 %v848
        %v2974 = vunpack.c.h.b16 %v848
        %v2975 = vunpack.c.l.b16 %v849
        %v2976 = vunpack.c.h.b16 %v849
        %v2977 = vunpack.c.l.b16 %v850
        %v2978 = vunpack.c.h.b16 %v850
        %v2979 = vunpack.c.l.b16 %v851
        %v2980 = vunpack.c.h.b16 %v851
        %v2981 = vunpack.c.l.b16 %v852
        %v2982 = vunpack.c.h.b16 %v852
        %v2983 = vunpack.c.l.b16 %v853
        %v2984 = vunpack.c.h.b16 %v853
        %v2985 = vunpack.c.l.b16 %v854
        %v2986 = vunpack.c.h.b16 %v854
        %v2987 = vunpack.c.l.b16 %v855
        %v2988 = vunpack.c.h.b16 %v855
        %v2989 = vunpack.c.l.b16 %v856
        %v2990 = vunpack.c.h.b16 %v856
        %v2991 = vunpack.c.l.b16 %v857
        %v2992 = vunpack.c.h.b16 %v857
        %v2993 = vunpack.c.l.b16 %v858
        %v2994 = vunpack.c.h.b16 %v858
        %v2995 = vunpack.c.l.b16 %v859
        %v2996 = vunpack.c.h.b16 %v859
        %v2997 = vunpack.c.l.b16 %v860
        %v2998 = vunpack.c.h.b16 %v860
        %v2999 = vunpack.c.l.b16 %v861
        %v3000 = vunpack.c.h.b16 %v861
        %v3001 = vunpack.c.l.b16 %v862
        %v3002 = vunpack.c.h.b16 %v862
        %v3003 = vunpack.c.l.b16 %v863
        %v3004 = vunpack.c.h.b16 %v863
        %v3005 = vunpack.c.l.b16 %v864
        %v3006 = vunpack.c.h.b16 %v864
        %v3007 = vunpack.c.l.b16 %v865
        %v3008 = vunpack.c.h.b16 %v865
        %v3009 = vunpack.c.l.b16 %v866
        %v3010 = vunpack.c.h.b16 %v866
        %v3011 = vunpack.c.l.b16 %v867
        %v3012 = vunpack.c.h.b16 %v867
        %v3013 = vunpack.c.l.b16 %v868
        %v3014 = vunpack.c.h.b16 %v868
        %v3015 = vunpack.c.l.b16 %v869
        %v3016 = vunpack.c.h.b16 %v869
        %v3017 = vunpack.c.l.b16 %v870
        %v3018 = vunpack.c.h.b16 %v870
        %v3019 = vunpack.c.l.b16 %v871
        %v3020 = vunpack.c.h.b16 %v871
        %v3021 = vunpack.c.l.b16 %v872
        %v3022 = vunpack.c.h.b16 %v872
        %v3023 = vunpack.c.l.b16 %v873
        %v3024 = vunpack.c.h.b16 %v873
        %v3025 = vunpack.c.l.b16 %v874
        %v3026 = vunpack.c.h.b16 %v874
        %v3027 = vunpack.c.l.b16 %v875
        %v3028 = vunpack.c.h.b16 %v875
        %v3029 = vunpack.c.l.b16 %v876
        %v3030 = vunpack.c.h.b16 %v876
        %v3031 = vunpack.c.l.b16 %v877
        %v3032 = vunpack.c.h.b16 %v877
        %v3033 = vunpack.c.l.b16 %v878
        %v3034 = vunpack.c.h.b16 %v878
        %v3035 = vunpack.c.l.b16 %v879
        %v3036 = vunpack.c.h.b16 %v879
        %v3037 = vunpack.c.l.b16 %v880
        %v3038 = vunpack.c.h.b16 %v880
        %v3039 = vunpack.c.l.b16 %v881
        %v3040 = vunpack.c.h.b16 %v881
        %v3041 = vunpack.c.l.b16 %v882
        %v3042 = vunpack.c.h.b16 %v882
        %v3043 = vunpack.c.l.b16 %v883
        %v3044 = vunpack.c.h.b16 %v883
        %v3045 = vunpack.c.l.b16 %v884
        %v3046 = vunpack.c.h.b16 %v884
        %v3047 = vunpack.c.l.b16 %v885
        %v3048 = vunpack.c.h.b16 %v885
        %v3049 = vunpack.c.l.b16 %v886
        %v3050 = vunpack.c.h.b16 %v886
        %v3051 = vunpack.c.l.b16 %v887
        %v3052 = vunpack.c.h.b16 %v887
        %v3053 = vunpack.c.l.b16 %v888
        %v3054 = vunpack.c.h.b16 %v888
        %v3055 = vunpack.c.l.b16 %v889
        %v3056 = vunpack.c.h.b16 %v889
        %v3057 = vunpack.c.l.b16 %v890
        %v3058 = vunpack.c.h.b16 %v890
        %v3059 = vunpack.c.l.b16 %v891
        %v3060 = vunpack.c.h.b16 %v891
        %v3061 = vunpack.c.l.b16 %v892
        %v3062 = vunpack.c.h.b16 %v892
        %v3063 = vunpack.c.l.b16 %v893
        %v3064 = vunpack.c.h.b16 %v893
        %v3065 = vunpack.c.l.b16 %v894
        %v3066 = vunpack.c.h.b16 %v894
        %v3067 = vunpack.c.l.b16 %v895
        %v3068 = vunpack.c.h.b16 %v895
        %v3069 = vunpack.c.l.b16 %v896
        %v3070 = vunpack.c.h.b16 %v896
        %v3071 = vunpack.c.l.b16 %v897
        %v3072 = vunpack.c.h.b16 %v897
        %v3073 = vunpack.c.l.b16 %v898
        %v3074 = vunpack.c.h.b16 %v898
        %v3075 = vunpack.c.l.b16 %v899
        %v3076 = vunpack.c.h.b16 %v899
        %v3077 = vunpack.c.l.b16 %v900
        %v3078 = vunpack.c.h.b16 %v900
        %v3079 = vunpack.c.l.b16 %v901
        %v3080 = vunpack.c.h.b16 %v901
        %v3081 = vunpack.c.l.b16 %v902
        %v3082 = vunpack.c.h.b16 %v902
        %v3083 = vunpack.c.l.b16 %v903
        %v3084 = vunpack.c.h.b16 %v903
        %v3085 = vunpack.c.l.b16 %v904
        %v3086 = vunpack.c.h.b16 %v904
        %v3087 = vunpack.c.l.b16 %v905
        %v3088 = vunpack.c.h.b16 %v905
        %v3089 = vunpack.c.l.b16 %v906
        %v3090 = vunpack.c.h.b16 %v906
        %v3091 = vunpack.c.l.b16 %v907
        %v3092 = vunpack.c.h.b16 %v907
        %v3093 = vunpack.c.l.b16 %v908
        %v3094 = vunpack.c.h.b16 %v908
        %v3095 = vunpack.c.l.b16 %v909
        %v3096 = vunpack.c.h.b16 %v909
        %v3097 = vunpack.c.l.b16 %v910
        %v3098 = vunpack.c.h.b16 %v910
        %v3099 = vunpack.c.l.b16 %v911
        %v3100 = vunpack.c.h.b16 %v911
        %v3101 = vunpack.c.l.b16 %v912
        %v3102 = vunpack.c.h.b16 %v912
        %v3103 = vunpack.c.l.b16 %v913
        %v3104 = vunpack.c.h.b16 %v913
        %v3105 = vunpack.c.l.b16 %v914
        %v3106 = vunpack.c.h.b16 %v914
        %v3107 = vunpack.c.l.b16 %v915
        %v3108 = vunpack.c.h.b16 %v915
        %v3109 = vunpack.c.l.b16 %v916
        %v3110 = vunpack.c.h.b16 %v916
        %v3111 = vunpack.c.l.b16 %v917
        %v3112 = vunpack.c.h.b16 %v917
        %v3113 = vunpack.c.l.b16 %v918
        %v3114 = vunpack.c.h.b16 %v918
        %v3115 = vunpack.c.l.b16 %v919
        %v3116 = vunpack.c.h.b16 %v919
        %v3117 = vunpack.c.l.b16 %v920
        %v3118 = vunpack.c.h.b16 %v920
        %v3119 = vunpack.c.l.b16 %v921
        %v3120 = vunpack.c.h.b16 %v921
        %v3121 = vunpack.c.l.b16 %v922
        %v3122 = vunpack.c.h.b16 %v922
        %v3123 = vunpack.c.l.b16 %v923
        %v3124 = vunpack.c.h.b16 %v923
        %v3125 = vunpack.c.l.b16 %v924
        %v3126 = vunpack.c.h.b16 %v924
        %v3127 = vunpack.c.l.b16 %v925
        %v3128 = vunpack.c.h.b16 %v925
        %v3129 = vunpack.c.l.b16 %v926
        %v3130 = vunpack.c.h.b16 %v926
        %v3131 = vunpack.c.l.b16 %v927
        %v3132 = vunpack.c.h.b16 %v927
        %v3133 = vunpack.c.l.b16 %v928
        %v3134 = vunpack.c.h.b16 %v928
        %v3135 = vunpack.c.l.b16 %v929
        %v3136 = vunpack.c.h.b16 %v929
        %v3137 = vunpack.c.l.b16 %v930
        %v3138 = vunpack.c.h.b16 %v930
        %v3139 = vunpack.c.l.b16 %v931
        %v3140 = vunpack.c.h.b16 %v931
        %v3141 = vunpack.c.l.b16 %v932
        %v3142 = vunpack.c.h.b16 %v932
        %v3143 = vunpack.c.l.b16 %v933
        %v3144 = vunpack.c.h.b16 %v933
        %v3145 = vunpack.c.l.b16 %v934
        %v3146 = vunpack.c.h.b16 %v934
        %v3147 = vunpack.c.l.b16 %v935
        %v3148 = vunpack.c.h.b16 %v935
        %v3149 = vunpack.c.l.b16 %v936
        %v3150 = vunpack.c.h.b16 %v936
        %v3151 = vunpack.c.l.b16 %v937
        %v3152 = vunpack.c.h.b16 %v937
        %v3153 = vunpack.c.l.b16 %v938
        %v3154 = vunpack.c.h.b16 %v938
        %v3155 = vunpack.c.l.b16 %v939
        %v3156 = vunpack.c.h.b16 %v939
        %v3157 = vunpack.c.l.b16 %v940
        %v3158 = vunpack.c.h.b16 %v940
        %v3159 = vunpack.c.l.b16 %v941
        %v3160 = vunpack.c.h.b16 %v941
        %v3161 = vunpack.c.l.b16 %v942
        %v3162 = vunpack.c.h.b16 %v942
        %v3163 = vunpack.c.l.b16 %v943
        %v3164 = vunpack.c.h.b16 %v943
        %v3165 = vunpack.c.l.b16 %v944
        %v3166 = vunpack.c.h.b16 %v944
        %v3167 = vunpack.c.l.b16 %v945
        %v3168 = vunpack.c.h.b16 %v945
        %v3169 = vunpack.c.l.b16 %v946
        %v3170 = vunpack.c.h.b16 %v946
        %v3171 = vunpack.c.l.b16 %v947
        %v3172 = vunpack.c.h.b16 %v947
        %v3173 = vunpack.c.l.b16 %v948
        %v3174 = vunpack.c.h.b16 %v948
        %v3175 = vunpack.c.l.b16 %v949
        %v3176 = vunpack.c.h.b16 %v949
        %v3177 = vunpack.c.l.b16 %v950
        %v3178 = vunpack.c.h.b16 %v950
        %v3179 = vunpack.c.l.b16 %v951
        %v3180 = vunpack.c.h.b16 %v951
        %v3181 = vunpack.c.l.b16 %v952
        %v3182 = vunpack.c.h.b16 %v952
        %v3183 = vunpack.c.l.b16 %v953
        %v3184 = vunpack.c.h.b16 %v953
        %v3185 = vunpack.c.l.b16 %v954
        %v3186 = vunpack.c.h.b16 %v954
        %v3187 = vunpack.c.l.b16 %v955
        %v3188 = vunpack.c.h.b16 %v955
        %v3189 = vunpack.c.l.b16 %v956
        %v3190 = vunpack.c.h.b16 %v956
        %v3191 = vunpack.c.l.b16 %v957
        %v3192 = vunpack.c.h.b16 %v957
        %v3193 = vunpack.c.l.b16 %v958
        %v3194 = vunpack.c.h.b16 %v958
        %v3195 = vunpack.c.l.b16 %v959
        %v3196 = vunpack.c.h.b16 %v959
        %v3197 = vunpack.c.l.b16 %v960
        %v3198 = vunpack.c.h.b16 %v960
        %v3199 = vunpack.c.l.b16 %v961
        %v3200 = vunpack.c.h.b16 %v961
        %v3201 = vunpack.c.l.b16 %v962
        %v3202 = vunpack.c.h.b16 %v962
        %v3203 = vunpack.c.l.b16 %v963
        %v3204 = vunpack.c.h.b16 %v963
        %v3205 = vunpack.c.l.b16 %v964
        %v3206 = vunpack.c.h.b16 %v964
        %v3207 = vunpack.c.l.b16 %v965
        %v3208 = vunpack.c.h.b16 %v965
        %v3209 = vunpack.c.l.b16 %v966
        %v3210 = vunpack.c.h.b16 %v966
        %v3211 = vunpack.c.l.b16 %v967
        %v3212 = vunpack.c.h.b16 %v967
        %v3213 = vunpack.c.l.b16 %v968
        %v3214 = vunpack.c.h.b16 %v968
        %v3215 = vunpack.c.l.b16 %v969
        %v3216 = vunpack.c.h.b16 %v969
        %v3217 = vunpack.c.l.b16 %v970
        %v3218 = vunpack.c.h.b16 %v970
        %v3219 = vunpack.c.l.b16 %v971
        %v3220 = vunpack.c.h.b16 %v971
        %v3221 = vunpack.c.l.b16 %v972
        %v3222 = vunpack.c.h.b16 %v972
        %v3223 = vunpack.c.l.b16 %v973
        %v3224 = vunpack.c.h.b16 %v973
        %v3225 = vunpack.c.l.b16 %v974
        %v3226 = vunpack.c.h.b16 %v974
        %v3227 = vunpack.c.l.b16 %v975
        %v3228 = vunpack.c.h.b16 %v975
        %v3229 = vunpack.c.l.b16 %v976
        %v3230 = vunpack.c.h.b16 %v976
        %v3231 = vunpack.c.l.b16 %v977
        %v3232 = vunpack.c.h.b16 %v977
        %v3233 = vunpack.c.l.b16 %v978
        %v3234 = vunpack.c.h.b16 %v978
        %v3235 = vunpack.c.l.b16 %v979
        %v3236 = vunpack.c.h.b16 %v979
        %v3237 = vunpack.c.l.b16 %v980
        %v3238 = vunpack.c.h.b16 %v980
        %v3239 = vunpack.c.l.b16 %v981
        %v3240 = vunpack.c.h.b16 %v981
        %v3241 = vunpack.c.l.b16 %v982
        %v3242 = vunpack.c.h.b16 %v982
        %v3243 = vunpack.c.l.b16 %v983
        %v3244 = vunpack.c.h.b16 %v983
        %v3245 = vunpack.c.l.b16 %v984
        %v3246 = vunpack.c.h.b16 %v984
        %v3247 = vunpack.c.l.b16 %v985
        %v3248 = vunpack.c.h.b16 %v985
        %v3249 = vunpack.c.l.b16 %v986
        %v3250 = vunpack.c.h.b16 %v986
        %v3251 = vunpack.c.l.b16 %v987
        %v3252 = vunpack.c.h.b16 %v987
        %v3253 = vunpack.c.l.b16 %v988
        %v3254 = vunpack.c.h.b16 %v988
        %v3255 = vunpack.c.l.b16 %v989
        %v3256 = vunpack.c.h.b16 %v989
        %v3257 = vunpack.c.l.b16 %v990
        %v3258 = vunpack.c.h.b16 %v990
        %v3259 = vunpack.c.l.b16 %v991
        %v3260 = vunpack.c.h.b16 %v991
        %v3261 = vunpack.c.l.b16 %v992
        %v3262 = vunpack.c.h.b16 %v992
        %v3263 = vunpack.c.l.b16 %v993
        %v3264 = vunpack.c.h.b16 %v993
        %v3265 = vunpack.c.l.b16 %v994
        %v3266 = vunpack.c.h.b16 %v994
        %v3267 = vunpack.c.l.b16 %v995
        %v3268 = vunpack.c.h.b16 %v995
        %v3269 = vunpack.c.l.b16 %v996
        %v3270 = vunpack.c.h.b16 %v996
        %v3271 = vunpack.c.l.b16 %v997
        %v3272 = vunpack.c.h.b16 %v997
        %v3273 = vunpack.c.l.b16 %v998
        %v3274 = vunpack.c.h.b16 %v998
        %v3275 = vunpack.c.l.b16 %v999
        %v3276 = vunpack.c.h.b16 %v999
        %v3277 = vunpack.c.l.b16 %v1000
        %v3278 = vunpack.c.h.b16 %v1000
        %v3279 = vunpack.c.l.b16 %v1001
        %v3280 = vunpack.c.h.b16 %v1001
        %v3281 = vunpack.c.l.b16 %v1002
        %v3282 = vunpack.c.h.b16 %v1002
        %v3283 = vunpack.c.l.b16 %v1003
        %v3284 = vunpack.c.h.b16 %v1003
        %v3285 = vunpack.c.l.b16 %v1004
        %v3286 = vunpack.c.h.b16 %v1004
        %v3287 = vunpack.c.l.b16 %v1005
        %v3288 = vunpack.c.h.b16 %v1005
        %v3289 = vunpack.c.l.b16 %v1006
        %v3290 = vunpack.c.h.b16 %v1006
        %v3291 = vunpack.c.l.b16 %v1007
        %v3292 = vunpack.c.h.b16 %v1007
        %v3293 = vunpack.c.l.b16 %v1008
        %v3294 = vunpack.c.h.b16 %v1008
        %v3295 = vunpack.c.l.b16 %v1009
        %v3296 = vunpack.c.h.b16 %v1009
        %v3297 = vunpack.c.l.b16 %v1010
        %v3298 = vunpack.c.h.b16 %v1010
        %v3299 = vunpack.c.l.b16 %v1011
        %v3300 = vunpack.c.h.b16 %v1011
        %v3301 = vunpack.c.l.b16 %v1012
        %v3302 = vunpack.c.h.b16 %v1012
        %v3303 = vunpack.c.l.b16 %v1013
        %v3304 = vunpack.c.h.b16 %v1013
        %v3305 = vunpack.c.l.b16 %v1014
        %v3306 = vunpack.c.h.b16 %v1014
        %v3307 = vunpack.c.l.b16 %v1015
        %v3308 = vunpack.c.h.b16 %v1015
        %v3309 = vunpack.c.l.b16 %v1016
        %v3310 = vunpack.c.h.b16 %v1016
        %v3311 = vunpack.c.l.b16 %v1017
        %v3312 = vunpack.c.h.b16 %v1017
        %v3313 = vunpack.c.l.b16 %v1018
        %v3314 = vunpack.c.h.b16 %v1018
        %v3315 = vunpack.c.l.b16 %v1019
        %v3316 = vunpack.c.h.b16 %v1019
        %v3317 = vunpack.c.l.b16 %v1020
        %v3318 = vunpack.c.h.b16 %v1020
        %v3319 = vunpack.c.l.b16 %v1021
        %v3320 = vunpack.c.h.b16 %v1021
        %v3321 = vunpack.c.l.b16 %v1022
        %v3322 = vunpack.c.h.b16 %v1022
        %v3323 = vunpack.c.l.b16 %v1023
        %v3324 = vunpack.c.h.b16 %v1023
        %v3325 = vunpack.c.l.b16 %v1024
        %v3326 = vunpack.c.h.b16 %v1024
        %v3327 = vunpack.c.l.b16 %v1025
        %v3328 = vunpack.c.h.b16 %v1025
        %v3329 = vunpack.c.l.b16 %v1026
        %v3330 = vunpack.c.h.b16 %v1026
        %v3331 = vunpack.c.l.b16 %v1027
        %v3332 = vunpack.c.h.b16 %v1027
        %v3333 = vunpack.c.l.b16 %v1028
        %v3334 = vunpack.c.h.b16 %v1028
        %v3335 = vunpack.c.l.b16 %v1029
        %v3336 = vunpack.c.h.b16 %v1029
        %v3337 = vunpack.c.l.b16 %v1030
        %v3338 = vunpack.c.h.b16 %v1030
        %v3339 = vunpack.c.l.b16 %v1031
        %v3340 = vunpack.c.h.b16 %v1031
        %v3341 = vunpack.c.l.b16 %v1032
        %v3342 = vunpack.c.h.b16 %v1032
        %v3343 = vunpack.c.l.b16 %v1033
        %v3344 = vunpack.c.h.b16 %v1033
        %v3345 = vunpack.c.l.b16 %v1034
        %v3346 = vunpack.c.h.b16 %v1034
        %v3347 = vunpack.c.l.b16 %v1035
        %v3348 = vunpack.c.h.b16 %v1035
        %v3349 = vunpack.c.l.b16 %v1036
        %v3350 = vunpack.c.h.b16 %v1036
        %v3351 = vunpack.c.l.b16 %v1037
        %v3352 = vunpack.c.h.b16 %v1037
        %v3353 = vunpack.c.l.b16 %v1038
        %v3354 = vunpack.c.h.b16 %v1038
        %v3355 = vunpack.c.l.b16 %v1039
        %v3356 = vunpack.c.h.b16 %v1039
        %v3357 = vunpack.c.l.b16 %v1040
        %v3358 = vunpack.c.h.b16 %v1040
        %v3359 = vunpack.c.l.b16 %v1041
        %v3360 = vunpack.c.h.b16 %v1041
        %v3361 = vunpack.c.l.b16 %v1042
        %v3362 = vunpack.c.h.b16 %v1042
        %v3363 = vunpack.c.l.b16 %v1043
        %v3364 = vunpack.c.h.b16 %v1043
        %v3365 = vunpack.c.l.b16 %v1044
        %v3366 = vunpack.c.h.b16 %v1044
        %v3367 = vunpack.c.l.b16 %v1045
        %v3368 = vunpack.c.h.b16 %v1045
        %v3369 = vunpack.c.l.b16 %v1046
        %v3370 = vunpack.c.h.b16 %v1046
        %v3371 = vunpack.c.l.b16 %v1047
        %v3372 = vunpack.c.h.b16 %v1047
        %v3373 = vunpack.c.l.b16 %v1048
        %v3374 = vunpack.c.h.b16 %v1048
        %v3375 = vunpack.c.l.b16 %v1049
        %v3376 = vunpack.c.h.b16 %v1049
        %v3377 = vunpack.c.l.b16 %v1050
        %v3378 = vunpack.c.h.b16 %v1050
        %v3379 = vunpack.c.l.b16 %v1051
        %v3380 = vunpack.c.h.b16 %v1051
        %v3381 = vunpack.c.l.b16 %v1052
        %v3382 = vunpack.c.h.b16 %v1052
        %v3383 = vunpack.c.l.b16 %v1053
        %v3384 = vunpack.c.h.b16 %v1053
        %v3385 = vunpack.c.l.b16 %v1054
        %v3386 = vunpack.c.h.b16 %v1054
        %v3387 = vunpack.c.l.b16 %v1055
        %v3388 = vunpack.c.h.b16 %v1055
        %v3389 = vunpack.c.l.b16 %v1056
        %v3390 = vunpack.c.h.b16 %v1056
        %v3391 = vunpack.c.l.b16 %v1057
        %v3392 = vunpack.c.h.b16 %v1057
        %v3393 = vunpack.c.l.b16 %v1058
        %v3394 = vunpack.c.h.b16 %v1058
        %v3395 = vunpack.c.l.b16 %v1059
        %v3396 = vunpack.c.h.b16 %v1059
        %v3397 = vunpack.c.l.b16 %v1060
        %v3398 = vunpack.c.h.b16 %v1060
        %v3399 = vunpack.c.l.b16 %v1061
        %v3400 = vunpack.c.h.b16 %v1061
        %v3401 = vunpack.c.l.b16 %v1062
        %v3402 = vunpack.c.h.b16 %v1062
        %v3403 = vunpack.c.l.b16 %v1063
        %v3404 = vunpack.c.h.b16 %v1063
        %v3405 = vunpack.c.l.b16 %v1064
        %v3406 = vunpack.c.h.b16 %v1064
        %v3407 = vunpack.c.l.b16 %v1065
        %v3408 = vunpack.c.h.b16 %v1065
        %v3409 = vunpack.c.l.b16 %v1066
        %v3410 = vunpack.c.h.b16 %v1066
        %v3411 = vunpack.c.l.b16 %v1067
        %v3412 = vunpack.c.h.b16 %v1067
        %v3413 = vunpack.c.l.b16 %v1068
        %v3414 = vunpack.c.h.b16 %v1068
        %v3415 = vunpack.c.l.b16 %v1069
        %v3416 = vunpack.c.h.b16 %v1069
        %v3417 = vunpack.c.l.b16 %v1070
        %v3418 = vunpack.c.h.b16 %v1070
        %v3419 = vunpack.c.l.b16 %v1071
        %v3420 = vunpack.c.h.b16 %v1071
        %v3421 = vunpack.c.l.b16 %v1072
        %v3422 = vunpack.c.h.b16 %v1072
        %v3423 = vunpack.c.l.b16 %v1073
        %v3424 = vunpack.c.h.b16 %v1073
        %v3425 = vunpack.c.l.b16 %v1074
        %v3426 = vunpack.c.h.b16 %v1074
        %v3427 = vunpack.c.l.b16 %v1075
        %v3428 = vunpack.c.h.b16 %v1075
        %v3429 = vunpack.c.l.b16 %v1076
        %v3430 = vunpack.c.h.b16 %v1076
        %v3431 = vunpack.c.l.b16 %v1077
        %v3432 = vunpack.c.h.b16 %v1077
        %v3433 = vunpack.c.l.b16 %v1078
        %v3434 = vunpack.c.h.b16 %v1078
        %v3435 = vunpack.c.l.b16 %v1079
        %v3436 = vunpack.c.h.b16 %v1079
        %v3437 = vunpack.c.l.b16 %v1080
        %v3438 = vunpack.c.h.b16 %v1080
        %v3439 = vunpack.c.l.b16 %v1081
        %v3440 = vunpack.c.h.b16 %v1081
        %v3441 = vunpack.c.l.b16 %v1082
        %v3442 = vunpack.c.h.b16 %v1082
        %v3443 = vunpack.c.l.b16 %v1083
        %v3444 = vunpack.c.h.b16 %v1083
        %v3445 = vunpack.c.l.b16 %v1084
        %v3446 = vunpack.c.h.b16 %v1084
        %v3447 = vunpack.c.l.b16 %v1085
        %v3448 = vunpack.c.h.b16 %v1085
        %v3449 = vunpack.c.l.b16 %v1086
        %v3450 = vunpack.c.h.b16 %v1086
        %v3451 = vunpack.c.l.b16 %v1087
        %v3452 = vunpack.c.h.b16 %v1087
        %v3453 = vunpack.c.l.b16 %v1088
        %v3454 = vunpack.c.h.b16 %v1088
        %v3455 = vunpack.c.l.b16 %v1089
        %v3456 = vunpack.c.h.b16 %v1089
        %v3457 = vunpack.c.l.b16 %v1090
        %v3458 = vunpack.c.h.b16 %v1090
        %v3459 = vunpack.c.l.b16 %v1091
        %v3460 = vunpack.c.h.b16 %v1091
        %v3461 = vunpack.c.l.b16 %v1092
        %v3462 = vunpack.c.h.b16 %v1092
        %v3463 = vunpack.c.l.b16 %v1093
        %v3464 = vunpack.c.h.b16 %v1093
        %v3465 = vunpack.c.l.b16 %v1094
        %v3466 = vunpack.c.h.b16 %v1094
        %v3467 = vunpack.c.l.b16 %v1095
        %v3468 = vunpack.c.h.b16 %v1095
        %v3469 = vunpack.c.l.b16 %v1096
        %v3470 = vunpack.c.h.b16 %v1096
        %v3471 = vunpack.c.l.b16 %v1097
        %v3472 = vunpack.c.h.b16 %v1097
        %v3473 = vunpack.c.l.b16 %v1098
        %v3474 = vunpack.c.h.b16 %v1098
        %v3475 = vunpack.c.l.b16 %v1099
        %v3476 = vunpack.c.h.b16 %v1099
        %v3477 = vunpack.c.l.b16 %v1100
        %v3478 = vunpack.c.h.b16 %v1100
        %v3479 = vunpack.c.l.b16 %v1101
        %v3480 = vunpack.c.h.b16 %v1101
        %v3481 = vunpack.c.l.b16 %v1102
        %v3482 = vunpack.c.h.b16 %v1102
        %v3483 = vunpack.c.l.b16 %v1103
        %v3484 = vunpack.c.h.b16 %v1103
        %v3485 = vunpack.c.l.b16 %v1104
        %v3486 = vunpack.c.h.b16 %v1104
        %v3487 = vunpack.c.l.b16 %v1105
        %v3488 = vunpack.c.h.b16 %v1105
        %v3489 = vunpack.c.l.b16 %v1106
        %v3490 = vunpack.c.h.b16 %v1106
        %v3491 = vunpack.c.l.b16 %v1107
        %v3492 = vunpack.c.h.b16 %v1107
        %v3493 = vunpack.c.l.b16 %v1108
        %v3494 = vunpack.c.h.b16 %v1108
        %v3495 = vunpack.c.l.b16 %v1109
        %v3496 = vunpack.c.h.b16 %v1109
        %v3497 = vunpack.c.l.b16 %v1110
        %v3498 = vunpack.c.h.b16 %v1110
        %v3499 = vunpack.c.l.b16 %v1111
        %v3500 = vunpack.c.h.b16 %v1111
        %v3501 = vunpack.c.l.b16 %v1112
        %v3502 = vunpack.c.h.b16 %v1112
        %v3503 = vunpack.c.l.b16 %v1113
        %v3504 = vunpack.c.h.b16 %v1113
        %v3505 = vunpack.c.l.b16 %v1114
        %v3506 = vunpack.c.h.b16 %v1114
        %v3507 = vunpack.c.l.b16 %v1115
        %v3508 = vunpack.c.h.b16 %v1115
        %v3509 = vunpack.c.l.b16 %v1116
        %v3510 = vunpack.c.h.b16 %v1116
        %v3511 = vunpack.c.l.b16 %v1117
        %v3512 = vunpack.c.h.b16 %v1117
        %v3513 = vunpack.c.l.b16 %v1118
        %v3514 = vunpack.c.h.b16 %v1118
        %v3515 = vunpack.c.l.b16 %v1119
        %v3516 = vunpack.c.h.b16 %v1119
        %v3517 = vunpack.c.l.b16 %v1120
        %v3518 = vunpack.c.h.b16 %v1120
        %v3519 = vunpack.c.l.b16 %v1121
        %v3520 = vunpack.c.h.b16 %v1121
        %v3521 = vunpack.c.l.b16 %v1122
        %v3522 = vunpack.c.h.b16 %v1122
        %v3523 = vunpack.c.l.b16 %v1123
        %v3524 = vunpack.c.h.b16 %v1123
        %v3525 = vunpack.c.l.b16 %v1124
        %v3526 = vunpack.c.h.b16 %v1124
        %v3527 = vunpack.c.l.b16 %v1125
        %v3528 = vunpack.c.h.b16 %v1125
        %v3529 = vunpack.c.l.b16 %v1126
        %v3530 = vunpack.c.h.b16 %v1126
        %v3531 = vunpack.c.l.b16 %v1127
        %v3532 = vunpack.c.h.b16 %v1127
        %v3533 = vunpack.c.l.b16 %v1128
        %v3534 = vunpack.c.h.b16 %v1128
        %v3535 = vunpack.c.l.b16 %v1129
        %v3536 = vunpack.c.h.b16 %v1129
        %v3537 = vunpack.c.l.b16 %v1130
        %v3538 = vunpack.c.h.b16 %v1130
        %v3539 = vunpack.c.l.b16 %v1131
        %v3540 = vunpack.c.h.b16 %v1131
        %v3541 = vunpack.c.l.b16 %v1132
        %v3542 = vunpack.c.h.b16 %v1132
        %v3543 = vunpack.c.l.b16 %v1133
        %v3544 = vunpack.c.h.b16 %v1133
        %v3545 = vunpack.c.l.b16 %v1134
        %v3546 = vunpack.c.h.b16 %v1134
        %v3547 = vunpack.c.l.b16 %v1135
        %v3548 = vunpack.c.h.b16 %v1135
        %v3549 = vunpack.c.l.b16 %v1136
        %v3550 = vunpack.c.h.b16 %v1136
        %v3551 = vunpack.c.l.b16 %v1137
        %v3552 = vunpack.c.h.b16 %v1137
        %v3553 = vunpack.c.l.b16 %v1138
        %v3554 = vunpack.c.h.b16 %v1138
        %v3555 = vunpack.c.l.b16 %v1139
        %v3556 = vunpack.c.h.b16 %v1139
        %v3557 = vunpack.c.l.b16 %v1140
        %v3558 = vunpack.c.h.b16 %v1140
        %v3559 = vunpack.c.l.b16 %v1141
        %v3560 = vunpack.c.h.b16 %v1141
        %v3561 = vunpack.c.l.b16 %v1142
        %v3562 = vunpack.c.h.b16 %v1142
        %v3563 = vunpack.c.l.b16 %v1143
        %v3564 = vunpack.c.h.b16 %v1143
        %v3565 = vunpack.c.l.b16 %v1144
        %v3566 = vunpack.c.h.b16 %v1144
        %v3567 = vunpack.c.l.b16 %v1145
        %v3568 = vunpack.c.h.b16 %v1145
        %v3569 = vunpack.c.l.b16 %v1146
        %v3570 = vunpack.c.h.b16 %v1146
        %v3571 = vunpack.c.l.b16 %v1147
        %v3572 = vunpack.c.h.b16 %v1147
        %v3573 = vunpack.c.l.b16 %v1148
        %v3574 = vunpack.c.h.b16 %v1148
        %v3575 = vunpack.c.l.b16 %v1149
        %v3576 = vunpack.c.h.b16 %v1149
        %v3577 = vunpack.c.l.b16 %v1150
        %v3578 = vunpack.c.h.b16 %v1150
        %v3579 = vunpack.c.l.b16 %v1151
        %v3580 = vunpack.c.h.b16 %v1151
        %v3581 = vunpack.c.l.b16 %v1152
        %v3582 = vunpack.c.h.b16 %v1152
        %v3583 = vunpack.c.l.b16 %v1153
        %v3584 = vunpack.c.h.b16 %v1153
        %v3585 = vunpack.c.l.b16 %v1154
        %v3586 = vunpack.c.h.b16 %v1154
        %v3587 = vunpack.c.l.b16 %v1155
        %v3588 = vunpack.c.h.b16 %v1155
        %v3589 = vunpack.c.l.b16 %v1156
        %v3590 = vunpack.c.h.b16 %v1156
        %v3591 = vunpack.c.l.b16 %v1157
        %v3592 = vunpack.c.h.b16 %v1157
        %v3593 = vunpack.c.l.b16 %v1158
        %v3594 = vunpack.c.h.b16 %v1158
        %v3595 = vunpack.c.l.b16 %v1159
        %v3596 = vunpack.c.h.b16 %v1159
        %v3597 = vunpack.c.l.b16 %v1160
        %v3598 = vunpack.c.h.b16 %v1160
        %v3599 = vunpack.c.l.b16 %v1161
        %v3600 = vunpack.c.h.b16 %v1161
        %v3601 = vunpack.c.l.b16 %v1162
        %v3602 = vunpack.c.h.b16 %v1162
        %v3603 = vunpack.c.l.b16 %v1163
        %v3604 = vunpack.c.h.b16 %v1163
        %v3605 = vunpack.c.l.b16 %v1164
        %v3606 = vunpack.c.h.b16 %v1164
        %v3607 = vunpack.c.l.b16 %v1165
        %v3608 = vunpack.c.h.b16 %v1165
        %v3609 = vunpack.c.l.b16 %v1166
        %v3610 = vunpack.c.h.b16 %v1166
        %v3611 = vunpack.c.l.b16 %v1167
        %v3612 = vunpack.c.h.b16 %v1167
        %v3613 = vunpack.c.l.b16 %v1168
        %v3614 = vunpack.c.h.b16 %v1168
        %v3615 = vunpack.c.l.b16 %v1169
        %v3616 = vunpack.c.h.b16 %v1169
        %v3617 = vunpack.c.l.b16 %v1170
        %v3618 = vunpack.c.h.b16 %v1170
        %v3619 = vunpack.c.l.b16 %v1171
        %v3620 = vunpack.c.h.b16 %v1171
        %v3621 = vunpack.c.l.b16 %v1172
        %v3622 = vunpack.c.h.b16 %v1172
        %v3623 = vunpack.c.l.b16 %v1173
        %v3624 = vunpack.c.h.b16 %v1173
        %v3625 = vunpack.c.l.b16 %v1174
        %v3626 = vunpack.c.h.b16 %v1174
        %v3627 = vunpack.c.l.b16 %v1175
        %v3628 = vunpack.c.h.b16 %v1175
        %v3629 = vunpack.c.l.b16 %v1176
        %v3630 = vunpack.c.h.b16 %v1176
        %v3631 = vunpack.c.l.b16 %v1177
        %v3632 = vunpack.c.h.b16 %v1177
        %v3633 = vunpack.c.l.b16 %v1178
        %v3634 = vunpack.c.h.b16 %v1178
        %v3635 = vunpack.c.l.b16 %v1179
        %v3636 = vunpack.c.h.b16 %v1179
        %v3637 = vunpack.c.l.b16 %v1180
        %v3638 = vunpack.c.h.b16 %v1180
        %v3639 = vunpack.c.l.b16 %v1181
        %v3640 = vunpack.c.h.b16 %v1181
        %v3641 = vunpack.c.l.b16 %v1182
        %v3642 = vunpack.c.h.b16 %v1182
        %v3643 = vunpack.c.l.b16 %v1183
        %v3644 = vunpack.c.h.b16 %v1183
        %v3645 = vunpack.c.l.b16 %v1184
        %v3646 = vunpack.c.h.b16 %v1184
        %v3647 = vunpack.c.l.b16 %v1185
        %v3648 = vunpack.c.h.b16 %v1185
        %v3649 = vunpack.c.l.b16 %v1186
        %v3650 = vunpack.c.h.b16 %v1186
        %v3651 = vunpack.c.l.b16 %v1187
        %v3652 = vunpack.c.h.b16 %v1187
        %v3653 = vunpack.c.l.b16 %v1188
        %v3654 = vunpack.c.h.b16 %v1188
        %v3655 = vunpack.c.l.b16 %v1189
        %v3656 = vunpack.c.h.b16 %v1189
        %v3657 = vunpack.c.l.b16 %v1190
        %v3658 = vunpack.c.h.b16 %v1190
        %v3659 = vunpack.c.l.b16 %v1191
        %v3660 = vunpack.c.h.b16 %v1191
        %v3661 = vunpack.c.l.b16 %v1192
        %v3662 = vunpack.c.h.b16 %v1192
        %v3663 = vunpack.c.l.b16 %v1193
        %v3664 = vunpack.c.h.b16 %v1193
        %v3665 = vunpack.c.l.b16 %v1194
        %v3666 = vunpack.c.h.b16 %v1194
        %v3667 = vunpack.c.l.b16 %v1195
        %v3668 = vunpack.c.h.b16 %v1195
        %v3669 = vunpack.c.l.b16 %v1196
        %v3670 = vunpack.c.h.b16 %v1196
        %v3671 = vunpack.c.l.b16 %v1197
        %v3672 = vunpack.c.h.b16 %v1197
        %v3673 = vunpack.c.l.b16 %v1198
        %v3674 = vunpack.c.h.b16 %v1198
        %v3675 = vunpack.c.l.b16 %v1199
        %v3676 = vunpack.c.h.b16 %v1199
        %v3677 = vunpack.c.l.b16 %v1200
        %v3678 = vunpack.c.h.b16 %v1200
        %v3679 = vunpack.c.l.b16 %v1201
        %v3680 = vunpack.c.h.b16 %v1201
        %v3681 = vunpack.c.l.b16 %v1202
        %v3682 = vunpack.c.h.b16 %v1202
        %v3683 = vunpack.c.l.b16 %v1203
        %v3684 = vunpack.c.h.b16 %v1203
        %v3685 = vunpack.c.l.b16 %v1204
        %v3686 = vunpack.c.h.b16 %v1204
        %v3687 = vunpack.c.l.b16 %v1205
        %v3688 = vunpack.c.h.b16 %v1205
        %v3689 = vunpack.c.l.b16 %v1206
        %v3690 = vunpack.c.h.b16 %v1206
        %v3691 = vunpack.c.l.b16 %v1207
        %v3692 = vunpack.c.h.b16 %v1207
        %v3693 = vunpack.c.l.b16 %v1208
        %v3694 = vunpack.c.h.b16 %v1208
        %v3695 = vunpack.c.l.b16 %v1209
        %v3696 = vunpack.c.h.b16 %v1209
        %v3697 = vunpack.c.l.b16 %v1210
        %v3698 = vunpack.c.h.b16 %v1210
        %v3699 = vunpack.c.l.b16 %v1211
        %v3700 = vunpack.c.h.b16 %v1211
        %v3701 = vunpack.c.l.b16 %v1212
        %v3702 = vunpack.c.h.b16 %v1212
        %v3703 = vunpack.c.l.b16 %v1213
        %v3704 = vunpack.c.h.b16 %v1213
        %v3705 = vunpack.c.l.b16 %v1214
        %v3706 = vunpack.c.h.b16 %v1214
        %v3707 = vunpack.c.l.b16 %v1215
        %v3708 = vunpack.c.h.b16 %v1215
        %v3709 = vunpack.c.l.b16 %v1216
        %v3710 = vunpack.c.h.b16 %v1216
        %v3711 = vunpack.c.l.b16 %v1217
        %v3712 = vunpack.c.h.b16 %v1217
        %v3713 = vunpack.c.l.b16 %v1218
        %v3714 = vunpack.c.h.b16 %v1218
        %v3715 = vunpack.c.l.b16 %v1219
        %v3716 = vunpack.c.h.b16 %v1219
        %v3717 = vunpack.c.l.b16 %v1220
        %v3718 = vunpack.c.h.b16 %v1220
        %v3719 = vunpack.c.l.b16 %v1221
        %v3720 = vunpack.c.h.b16 %v1221
        %v3721 = vunpack.c.l.b16 %v1222
        %v3722 = vunpack.c.h.b16 %v1222
        %v3723 = vunpack.c.l.b16 %v1223
        %v3724 = vunpack.c.h.b16 %v1223
        %v3725 = vunpack.c.l.b16 %v1224
        %v3726 = vunpack.c.h.b16 %v1224
        %v3727 = vunpack.c.l.b16 %v1225
        %v3728 = vunpack.c.h.b16 %v1225
        %v3729 = vunpack.c.l.b16 %v1226
        %v3730 = vunpack.c.h.b16 %v1226
        %v3731 = vunpack.c.l.b16 %v1227
        %v3732 = vunpack.c.h.b16 %v1227
        %v3733 = vunpack.c.l.b16 %v1228
        %v3734 = vunpack.c.h.b16 %v1228
        %v3735 = vunpack.c.l.b16 %v1229
        %v3736 = vunpack.c.h.b16 %v1229
        %v3737 = vunpack.c.l.b16 %v1230
        %v3738 = vunpack.c.h.b16 %v1230
        %v3739 = vunpack.c.l.b16 %v1231
        %v3740 = vunpack.c.h.b16 %v1231
        %v3741 = vunpack.c.l.b16 %v1232
        %v3742 = vunpack.c.h.b16 %v1232
        %v3743 = vunpack.c.l.b16 %v1233
        %v3744 = vunpack.c.h.b16 %v1233
        %v3745 = vunpack.c.l.b16 %v1234
        %v3746 = vunpack.c.h.b16 %v1234
        %v3747 = vunpack.c.l.b16 %v1235
        %v3748 = vunpack.c.h.b16 %v1235
        %v3749 = vunpack.c.l.b16 %v1236
        %v3750 = vunpack.c.h.b16 %v1236
        %v3751 = vunpack.c.l.b16 %v1237
        %v3752 = vunpack.c.h.b16 %v1237
        %v3753 = vunpack.c.l.b16 %v1238
        %v3754 = vunpack.c.h.b16 %v1238
        %v3755 = vunpack.c.l.b16 %v1239
        %v3756 = vunpack.c.h.b16 %v1239
        %v3757 = vunpack.c.l.b16 %v1240
        %v3758 = vunpack.c.h.b16 %v1240
        %v3759 = vunpack.c.l.b16 %v1241
        %v3760 = vunpack.c.h.b16 %v1241
        %v3761 = vunpack.c.l.b16 %v1242
        %v3762 = vunpack.c.h.b16 %v1242
        %v3763 = vunpack.c.l.b16 %v1243
        %v3764 = vunpack.c.h.b16 %v1243
        %v3765 = vunpack.c.l.b16 %v1244
        %v3766 = vunpack.c.h.b16 %v1244
        %v3767 = vunpack.c.l.b16 %v1245
        %v3768 = vunpack.c.h.b16 %v1245
        %v3769 = vunpack.c.l.b16 %v1246
        %v3770 = vunpack.c.h.b16 %v1246
        %v3771 = vunpack.c.l.b16 %v1247
        %v3772 = vunpack.c.h.b16 %v1247
        %v3773 = vunpack.c.l.b16 %v1248
        %v3774 = vunpack.c.h.b16 %v1248
        %v3775 = vunpack.c.l.b16 %v1249
        %v3776 = vunpack.c.h.b16 %v1249
        %v3777 = vunpack.c.l.b16 %v1250
        %v3778 = vunpack.c.h.b16 %v1250
        %v3779 = vunpack.c.l.b16 %v1251
        %v3780 = vunpack.c.h.b16 %v1251
        %v3781 = vunpack.c.l.b16 %v1252
        %v3782 = vunpack.c.h.b16 %v1252
        %v3783 = vunpack.c.l.b16 %v1253
        %v3784 = vunpack.c.h.b16 %v1253
        %v3785 = vunpack.c.l.b16 %v1254
        %v3786 = vunpack.c.h.b16 %v1254
        %v3787 = vunpack.c.l.b16 %v1255
        %v3788 = vunpack.c.h.b16 %v1255
        %v3789 = vunpack.c.l.b16 %v1256
        %v3790 = vunpack.c.h.b16 %v1256
        %v3791 = vunpack.c.l.b16 %v1257
        %v3792 = vunpack.c.h.b16 %v1257
        %v3793 = vunpack.c.l.b16 %v1258
        %v3794 = vunpack.c.h.b16 %v1258
        %v3795 = vunpack.c.l.b16 %v1259
        %v3796 = vunpack.c.h.b16 %v1259
        %v3797 = vunpack.c.l.b16 %v1260
        %v3798 = vunpack.c.h.b16 %v1260
        %v3799 = vunpack.c.l.b16 %v1261
        %v3800 = vunpack.c.h.b16 %v1261
        %v3801 = vunpack.c.l.b16 %v1262
        %v3802 = vunpack.c.h.b16 %v1262
        %v3803 = vunpack.c.l.b16 %v1263
        %v3804 = vunpack.c.h.b16 %v1263
        %v3805 = vunpack.c.l.b16 %v1264
        %v3806 = vunpack.c.h.b16 %v1264
        %v3807 = vunpack.c.l.b16 %v1265
        %v3808 = vunpack.c.h.b16 %v1265
        %v3809 = vunpack.c.l.b16 %v1266
        %v3810 = vunpack.c.h.b16 %v1266
        %v3811 = vunpack.c.l.b16 %v1267
        %v3812 = vunpack.c.h.b16 %v1267
        %v3813 = vunpack.c.l.b16 %v1268
        %v3814 = vunpack.c.h.b16 %v1268
        %v3815 = vunpack.c.l.b16 %v1269
        %v3816 = vunpack.c.h.b16 %v1269
        %v3817 = vunpack.c.l.b16 %v1270
        %v3818 = vunpack.c.h.b16 %v1270
        %v3819 = vunpack.c.l.b16 %v1271
        %v3820 = vunpack.c.h.b16 %v1271
        %v3821 = vunpack.c.l.b16 %v1272
        %v3822 = vunpack.c.h.b16 %v1272
        %v3823 = vunpack.c.l.b16 %v1273
        %v3824 = vunpack.c.h.b16 %v1273
        %v3825 = vunpack.c.l.b16 %v1274
        %v3826 = vunpack.c.h.b16 %v1274
        %v3827 = vunpack.c.l.b16 %v1275
        %v3828 = vunpack.c.h.b16 %v1275
        %v3829 = vunpack.c.l.b16 %v1276
        %v3830 = vunpack.c.h.b16 %v1276
        %v3831 = vunpack.c.l.b16 %v1277
        %v3832 = vunpack.c.h.b16 %v1277
        %v3833 = vunpack.c.l.b16 %v1278
        %v3834 = vunpack.c.h.b16 %v1278
        %v3835 = vunpack.c.l.b16 %v1279
        %v3836 = vunpack.c.h.b16 %v1279
        %v3837 = vunpack.c.l.b16 %v1280
        %v3838 = vunpack.c.h.b16 %v1280
        %v3839 = vunpack.c.l.b16 %v1281
        %v3840 = vunpack.c.h.b16 %v1281
        %v3841 = vunpack.c.l.b16 %v1282
        %v3842 = vunpack.c.h.b16 %v1282
        %v3843 = vunpack.c.l.b16 %v1283
        %v3844 = vunpack.c.h.b16 %v1283
        %v3845 = vunpack.c.l.b16 %v1284
        %v3846 = vunpack.c.h.b16 %v1284
        %v3847 = vunpack.c.l.b16 %v1285
        %v3848 = vunpack.c.h.b16 %v1285
        %v3849 = vunpack.c.l.b16 %v1286
        %v3850 = vunpack.c.h.b16 %v1286
        %v3851 = vunpack.c.l.b16 %v1287
        %v3852 = vunpack.c.h.b16 %v1287
        %v3853 = vunpack.c.l.b16 %v1288
        %v3854 = vunpack.c.h.b16 %v1288
        %v3855 = vunpack.c.l.b16 %v1289
        %v3856 = vunpack.c.h.b16 %v1289
        %v3857 = vunpack.c.l.b16 %v1290
        %v3858 = vunpack.c.h.b16 %v1290
        %v3859 = vunpack.c.l.b16 %v1291
        %v3860 = vunpack.c.h.b16 %v1291
        %v3861 = vunpack.c.l.b16 %v1292
        %v3862 = vunpack.c.h.b16 %v1292
        %v3863 = vunpack.c.l.b16 %v1293
        %v3864 = vunpack.c.h.b16 %v1293
        %v3865 = vunpack.c.l.b16 %v1294
        %v3866 = vunpack.c.h.b16 %v1294
        %v3867 = vunpack.c.l.b16 %v1295
        %v3868 = vunpack.c.h.b16 %v1295
        %v3869 = vunpack.c.l.b16 %v1296
        %v3870 = vunpack.c.h.b16 %v1296
        %v3871 = vunpack.c.l.b16 %v1297
        %v3872 = vunpack.c.h.b16 %v1297
        %v3873 = vunpack.c.l.b16 %v1298
        %v3874 = vunpack.c.h.b16 %v1298
        %v3875 = vunpack.c.l.b16 %v1299
        %v3876 = vunpack.c.h.b16 %v1299
        %v3877 = vunpack.c.l.b16 %v1300
        %v3878 = vunpack.c.h.b16 %v1300
        %v3879 = vunpack.c.l.b16 %v1301
        %v3880 = vunpack.c.h.b16 %v1301
        %v3881 = vunpack.c.l.b16 %v1302
        %v3882 = vunpack.c.h.b16 %v1302
        %v3883 = vunpack.c.l.b16 %v1303
        %v3884 = vunpack.c.h.b16 %v1303
        %v3885 = vunpack.c.l.b16 %v1304
        %v3886 = vunpack.c.h.b16 %v1304
        %v3887 = vunpack.c.l.b16 %v1305
        %v3888 = vunpack.c.h.b16 %v1305
        %v3889 = vunpack.c.l.b16 %v1306
        %v3890 = vunpack.c.h.b16 %v1306
        %v3891 = vunpack.c.l.b16 %v1307
        %v3892 = vunpack.c.h.b16 %v1307
        %v3893 = vunpack.c.l.b16 %v1308
        %v3894 = vunpack.c.h.b16 %v1308
        %v3895 = vunpack.c.l.b16 %v1309
        %v3896 = vunpack.c.h.b16 %v1309
        %v3897 = vunpack.c.l.b16 %v1310
        %v3898 = vunpack.c.h.b16 %v1310
        %v3899 = vunpack.c.l.b16 %v1311
        %v3900 = vunpack.c.h.b16 %v1311
        %v3901 = vunpack.c.l.b16 %v1312
        %v3902 = vunpack.c.h.b16 %v1312
        %v3903 = vunpack.c.l.b16 %v1313
        %v3904 = vunpack.c.h.b16 %v1313
        %v3905 = vunpack.c.l.b16 %v1314
        %v3906 = vunpack.c.h.b16 %v1314
        %v3907 = vunpack.c.l.b16 %v1315
        %v3908 = vunpack.c.h.b16 %v1315
        %v3909 = vunpack.c.l.b16 %v1316
        %v3910 = vunpack.c.h.b16 %v1316
        %v3911 = vunpack.c.l.b16 %v1317
        %v3912 = vunpack.c.h.b16 %v1317
        %v3913 = vunpack.c.l.b16 %v1318
        %v3914 = vunpack.c.h.b16 %v1318
        %v3915 = vunpack.c.l.b16 %v1319
        %v3916 = vunpack.c.h.b16 %v1319
        %v3917 = vunpack.c.l.b16 %v1320
        %v3918 = vunpack.c.h.b16 %v1320
        %v3919 = vunpack.c.l.b16 %v1321
        %v3920 = vunpack.c.h.b16 %v1321
        %v3921 = vunpack.c.l.b16 %v1322
        %v3922 = vunpack.c.h.b16 %v1322
        %v3923 = vunpack.c.l.b16 %v1323
        %v3924 = vunpack.c.h.b16 %v1323
        %v3925 = vunpack.c.l.b16 %v1324
        %v3926 = vunpack.c.h.b16 %v1324
        %v3927 = vunpack.c.l.b16 %v1325
        %v3928 = vunpack.c.h.b16 %v1325
        %v3929 = vunpack.c.l.b16 %v1326
        %v3930 = vunpack.c.h.b16 %v1326
        %v3931 = vunpack.c.l.b16 %v1327
        %v3932 = vunpack.c.h.b16 %v1327
        %v3933 = vunpack.c.l.b16 %v1328
        %v3934 = vunpack.c.h.b16 %v1328
        %v3935 = vunpack.c.l.b16 %v1329
        %v3936 = vunpack.c.h.b16 %v1329
        %v3937 = vunpack.c.l.b16 %v1330
        %v3938 = vunpack.c.h.b16 %v1330
        %v3939 = vunpack.c.l.b16 %v1331
        %v3940 = vunpack.c.h.b16 %v1331
        %v3941 = vunpack.c.l.b16 %v1332
        %v3942 = vunpack.c.h.b16 %v1332
        %v3943 = vunpack.c.l.b16 %v1333
        %v3944 = vunpack.c.h.b16 %v1333
        %v3945 = vunpack.c.l.b16 %v1334
        %v3946 = vunpack.c.h.b16 %v1334
        %v3947 = vunpack.c.l.b16 %v1335
        %v3948 = vunpack.c.h.b16 %v1335
        %v3949 = vunpack.c.l.b16 %v1336
        %v3950 = vunpack.c.h.b16 %v1336
        %v3951 = vunpack.c.l.b16 %v1337
        %v3952 = vunpack.c.h.b16 %v1337
        %v3953 = vunpack.c.l.b16 %v1338
        %v3954 = vunpack.c.h.b16 %v1338
        %v3955 = vunpack.c.l.b16 %v1339
        %v3956 = vunpack.c.h.b16 %v1339
        %v3957 = vunpack.c.l.b16 %v1340
        %v3958 = vunpack.c.h.b16 %v1340
        %v3959 = vunpack.c.l.b16 %v1341
        %v3960 = vunpack.c.h.b16 %v1341
        %v3961 = vunpack.c.l.b16 %v1342
        %v3962 = vunpack.c.h.b16 %v1342
        %v3963 = vunpack.c.l.b16 %v1343
        %v3964 = vunpack.c.h.b16 %v1343
        %v3965 = vunpack.c.l.b16 %v1344
        %v3966 = vunpack.c.h.b16 %v1344
        %v3967 = vunpack.c.l.b16 %v1345
        %v3968 = vunpack.c.h.b16 %v1345
        %v3969 = vunpack.c.l.b16 %v1346
        %v3970 = vunpack.c.h.b16 %v1346
        %v3971 = vunpack.c.l.b16 %v1347
        %v3972 = vunpack.c.h.b16 %v1347
        %v3973 = vunpack.c.l.b16 %v1348
        %v3974 = vunpack.c.h.b16 %v1348
        %v3975 = vunpack.c.l.b16 %v1349
        %v3976 = vunpack.c.h.b16 %v1349
        %v3977 = vunpack.c.l.b16 %v1350
        %v3978 = vunpack.c.h.b16 %v1350
        %v3979 = vunpack.c.l.b16 %v1351
        %v3980 = vunpack.c.h.b16 %v1351
        %v3981 = vunpack.c.l.b16 %v1352
        %v3982 = vunpack.c.h.b16 %v1352
        %v3983 = vunpack.c.l.b16 %v1353
        %v3984 = vunpack.c.h.b16 %v1353
        %v3985 = vunpack.c.l.b16 %v1354
        %v3986 = vunpack.c.h.b16 %v1354
        %v3987 = vunpack.c.l.b16 %v1355
        %v3988 = vunpack.c.h.b16 %v1355
        %v3989 = vunpack.c.l.b16 %v1356
        %v3990 = vunpack.c.h.b16 %v1356
        %v3991 = vpack.c.b16 %v2281, %v2263
        %v3992 = vpack.c.b16 %v2282, %v2264
        %v3993 = vpack.c.b16 %v2283, %v2265
        %v3994 = vpack.c.b16 %v2284, %v2266
        %v3995 = vpack.c.b16 %v2285, %v2267
        %v3996 = vpack.c.b16 %v2286, %v2268
        %v3997 = vpack.c.b16 %v2287, %v2269
        %v3998 = vpack.c.b16 %v2288, %v2270
        %v3999 = vpack.c.b16 %v2289, %v2271
        %v4000 = vpack.c.b16 %v2290, %v2272
        %v4001 = vpack.c.b16 %v2291, %v2273
        %v4002 = vpack.c.b16 %v2292, %v2274
        %v4003 = vpack.c.b16 %v2293, %v2275
        %v4004 = vpack.c.b16 %v2294, %v2276
        %v4005 = vpack.c.b16 %v2295, %v2277
        %v4006 = vpack.c.b16 %v2296, %v2278
        %v4007 = vpack.c.b16 %v2297, %v2279
        %v4008 = vpack.c.b16 %v2298, %v2280
        %v4009 = vpack.c.b16 %v2317, %v2299
        %v4010 = vpack.c.b16 %v2318, %v2300
        %v4011 = vpack.c.b16 %v2319, %v2301
        %v4012 = vpack.c.b16 %v2320, %v2302
        %v4013 = vpack.c.b16 %v2321, %v2303
        %v4014 = vpack.c.b16 %v2322, %v2304
        %v4015 = vpack.c.b16 %v2323, %v2305
        %v4016 = vpack.c.b16 %v2324, %v2306
        %v4017 = vpack.c.b16 %v2325, %v2307
        %v4018 = vpack.c.b16 %v2326, %v2308
        %v4019 = vpack.c.b16 %v2327, %v2309
        %v4020 = vpack.c.b16 %v2328, %v2310
        %v4021 = vpack.c.b16 %v2329, %v2311
        %v4022 = vpack.c.b16 %v2330, %v2312
        %v4023 = vpack.c.b16 %v2331, %v2313
        %v4024 = vpack.c.b16 %v2332, %v2314
        %v4025 = vpack.c.b16 %v2333, %v2315
        %v4026 = vpack.c.b16 %v2334, %v2316
        %v4027 = vpack.c.b16 %v2353, %v2335
        %v4028 = vpack.c.b16 %v2354, %v2336
        %v4029 = vpack.c.b16 %v2355, %v2337
        %v4030 = vpack.c.b16 %v2356, %v2338
        %v4031 = vpack.c.b16 %v2357, %v2339
        %v4032 = vpack.c.b16 %v2358, %v2340
        %v4033 = vpack.c.b16 %v2359, %v2341
        %v4034 = vpack.c.b16 %v2360, %v2342
        %v4035 = vpack.c.b16 %v2361, %v2343
        %v4036 = vpack.c.b16 %v2362, %v2344
        %v4037 = vpack.c.b16 %v2363, %v2345
        %v4038 = vpack.c.b16 %v2364, %v2346
        %v4039 = vpack.c.b16 %v2365, %v2347
        %v4040 = vpack.c.b16 %v2366, %v2348
        %v4041 = vpack.c.b16 %v2367, %v2349
        %v4042 = vpack.c.b16 %v2368, %v2350
        %v4043 = vpack.c.b16 %v2369, %v2351
        %v4044 = vpack.c.b16 %v2370, %v2352
        %v4045 = vpack.c.b16 %v2389, %v2371
        %v4046 = vpack.c.b16 %v2390, %v2372
        %v4047 = vpack.c.b16 %v2391, %v2373
        %v4048 = vpack.c.b16 %v2392, %v2374
        %v4049 = vpack.c.b16 %v2393, %v2375
        %v4050 = vpack.c.b16 %v2394, %v2376
        %v4051 = vpack.c.b16 %v2395, %v2377
        %v4052 = vpack.c.b16 %v2396, %v2378
        %v4053 = vpack.c.b16 %v2397, %v2379
        %v4054 = vpack.c.b16 %v2398, %v2380
        %v4055 = vpack.c.b16 %v2399, %v2381
        %v4056 = vpack.c.b16 %v2400, %v2382
        %v4057 = vpack.c.b16 %v2401, %v2383
        %v4058 = vpack.c.b16 %v2402, %v2384
        %v4059 = vpack.c.b16 %v2403, %v2385
        %v4060 = vpack.c.b16 %v2404, %v2386
        %v4061 = vpack.c.b16 %v2405, %v2387
        %v4062 = vpack.c.b16 %v2406, %v2388
        %v4063 = vpack.c.b16 %v2425, %v2407
        %v4064 = vpack.c.b16 %v2426, %v2408
        %v4065 = vpack.c.b16 %v2427, %v2409
        %v4066 = vpack.c.b16 %v2428, %v2410
        %v4067 = vpack.c.b16 %v2429, %v2411
        %v4068 = vpack.c.b16 %v2430, %v2412
        %v4069 = vpack.c.b16 %v2431, %v2413
        %v4070 = vpack.c.b16 %v2432, %v2414
        %v4071 = vpack.c.b16 %v2433, %v2415
        %v4072 = vpack.c.b16 %v2434, %v2416
        %v4073 = vpack.c.b16 %v2435, %v2417
        %v4074 = vpack.c.b16 %v2436, %v2418
        %v4075 = vpack.c.b16 %v2437, %v2419
        %v4076 = vpack.c.b16 %v2438, %v2420
        %v4077 = vpack.c.b16 %v2439, %v2421
        %v4078 = vpack.c.b16 %v2440, %v2422
        %v4079 = vpack.c.b16 %v2441, %v2423
        %v4080 = vpack.c.b16 %v2442, %v2424
        %v4081 = vpack.c.b16 %v2461, %v2443
        %v4082 = vpack.c.b16 %v2462, %v2444
        %v4083 = vpack.c.b16 %v2463, %v2445
        %v4084 = vpack.c.b16 %v2464, %v2446
        %v4085 = vpack.c.b16 %v2465, %v2447
        %v4086 = vpack.c.b16 %v2466, %v2448
        %v4087 = vpack.c.b16 %v2467, %v2449
        %v4088 = vpack.c.b16 %v2468, %v2450
        %v4089 = vpack.c.b16 %v2469, %v2451
        %v4090 = vpack.c.b16 %v2470, %v2452
        %v4091 = vpack.c.b16 %v2471, %v2453
        %v4092 = vpack.c.b16 %v2472, %v2454
        %v4093 = vpack.c.b16 %v2473, %v2455
        %v4094 = vpack.c.b16 %v2474, %v2456
        %v4095 = vpack.c.b16 %v2475, %v2457
        %v4096 = vpack.c.b16 %v2476, %v2458
        %v4097 = vpack.c.b16 %v2477, %v2459
        %v4098 = vpack.c.b16 %v2478, %v2460
        %v4099 = vpack.c.b16 %v2497, %v2479
        %v4100 = vpack.c.b16 %v2498, %v2480
        %v4101 = vpack.c.b16 %v2499, %v2481
        %v4102 = vpack.c.b16 %v2500, %v2482
        %v4103 = vpack.c.b16 %v2501, %v2483
        %v4104 = vpack.c.b16 %v2502, %v2484
        %v4105 = vpack.c.b16 %v2503, %v2485
        %v4106 = vpack.c.b16 %v2504, %v2486
        %v4107 = vpack.c.b16 %v2505, %v2487
        %v4108 = vpack.c.b16 %v2506, %v2488
        %v4109 = vpack.c.b16 %v2507, %v2489
        %v4110 = vpack.c.b16 %v2508, %v2490
        %v4111 = vpack.c.b16 %v2509, %v2491
        %v4112 = vpack.c.b16 %v2510, %v2492
        %v4113 = vpack.c.b16 %v2511, %v2493
        %v4114 = vpack.c.b16 %v2512, %v2494
        %v4115 = vpack.c.b16 %v2513, %v2495
        %v4116 = vpack.c.b16 %v2514, %v2496
        %v4117 = vpack.c.b16 %v2533, %v2515
        %v4118 = vpack.c.b16 %v2534, %v2516
        %v4119 = vpack.c.b16 %v2535, %v2517
        %v4120 = vpack.c.b16 %v2536, %v2518
        %v4121 = vpack.c.b16 %v2537, %v2519
        %v4122 = vpack.c.b16 %v2538, %v2520
        %v4123 = vpack.c.b16 %v2539, %v2521
        %v4124 = vpack.c.b16 %v2540, %v2522
        %v4125 = vpack.c.b16 %v2541, %v2523
        %v4126 = vpack.c.b16 %v2542, %v2524
        %v4127 = vpack.c.b16 %v2543, %v2525
        %v4128 = vpack.c.b16 %v2544, %v2526
        %v4129 = vpack.c.b16 %v2545, %v2527
        %v4130 = vpack.c.b16 %v2546, %v2528
        %v4131 = vpack.c.b16 %v2547, %v2529
        %v4132 = vpack.c.b16 %v2548, %v2530
        %v4133 = vpack.c.b16 %v2549, %v2531
        %v4134 = vpack.c.b16 %v2550, %v2532
        %v4135 = vpack.c.b16 %v2569, %v2551
        %v4136 = vpack.c.b16 %v2570, %v2552
        %v4137 = vpack.c.b16 %v2571, %v2553
        %v4138 = vpack.c.b16 %v2572, %v2554
        %v4139 = vpack.c.b16 %v2573, %v2555
        %v4140 = vpack.c.b16 %v2574, %v2556
        %v4141 = vpack.c.b16 %v2575, %v2557
        %v4142 = vpack.c.b16 %v2576, %v2558
        %v4143 = vpack.c.b16 %v2577, %v2559
        %v4144 = vpack.c.b16 %v2578, %v2560
        %v4145 = vpack.c.b16 %v2579, %v2561
        %v4146 = vpack.c.b16 %v2580, %v2562
        %v4147 = vpack.c.b16 %v2581, %v2563
        %v4148 = vpack.c.b16 %v2582, %v2564
        %v4149 = vpack.c.b16 %v2583, %v2565
        %v4150 = vpack.c.b16 %v2584, %v2566
        %v4151 = vpack.c.b16 %v2585, %v2567
        %v4152 = vpack.c.b16 %v2586, %v2568
        %v4153 = vpack.c.b16 %v2605, %v2587
        %v4154 = vpack.c.b16 %v2606, %v2588
        %v4155 = vpack.c.b16 %v2607, %v2589
        %v4156 = vpack.c.b16 %v2608, %v2590
        %v4157 = vpack.c.b16 %v2609, %v2591
        %v4158 = vpack.c.b16 %v2610, %v2592
        %v4159 = vpack.c.b16 %v2611, %v2593
        %v4160 = vpack.c.b16 %v2612, %v2594
        %v4161 = vpack.c.b16 %v2613, %v2595
        %v4162 = vpack.c.b16 %v2614, %v2596
        %v4163 = vpack.c.b16 %v2615, %v2597
        %v4164 = vpack.c.b16 %v2616, %v2598
        %v4165 = vpack.c.b16 %v2617, %v2599
        %v4166 = vpack.c.b16 %v2618, %v2600
        %v4167 = vpack.c.b16 %v2619, %v2601
        %v4168 = vpack.c.b16 %v2620, %v2602
        %v4169 = vpack.c.b16 %v2621, %v2603
        %v4170 = vpack.c.b16 %v2622, %v2604
        %v4171 = vpack.c.b16 %v2641, %v2623
        %v4172 = vpack.c.b16 %v2642, %v2624
        %v4173 = vpack.c.b16 %v2643, %v2625
        %v4174 = vpack.c.b16 %v2644, %v2626
        %v4175 = vpack.c.b16 %v2645, %v2627
        %v4176 = vpack.c.b16 %v2646, %v2628
        %v4177 = vpack.c.b16 %v2647, %v2629
        %v4178 = vpack.c.b16 %v2648, %v2630
        %v4179 = vpack.c.b16 %v2649, %v2631
        %v4180 = vpack.c.b16 %v2650, %v2632
        %v4181 = vpack.c.b16 %v2651, %v2633
        %v4182 = vpack.c.b16 %v2652, %v2634
        %v4183 = vpack.c.b16 %v2653, %v2635
        %v4184 = vpack.c.b16 %v2654, %v2636
        %v4185 = vpack.c.b16 %v2655, %v2637
        %v4186 = vpack.c.b16 %v2656, %v2638
        %v4187 = vpack.c.b16 %v2657, %v2639
        %v4188 = vpack.c.b16 %v2658, %v2640
        %v4189 = vpack.c.b16 %v2677, %v2659
        %v4190 = vpack.c.b16 %v2678, %v2660
        %v4191 = vpack.c.b16 %v2679, %v2661
        %v4192 = vpack.c.b16 %v2680, %v2662
        %v4193 = vpack.c.b16 %v2681, %v2663
        %v4194 = vpack.c.b16 %v2682, %v2664
        %v4195 = vpack.c.b16 %v2683, %v2665
        %v4196 = vpack.c.b16 %v2684, %v2666
        %v4197 = vpack.c.b16 %v2685, %v2667
        %v4198 = vpack.c.b16 %v2686, %v2668
        %v4199 = vpack.c.b16 %v2687, %v2669
        %v4200 = vpack.c.b16 %v2688, %v2670
        %v4201 = vpack.c.b16 %v2689, %v2671
        %v4202 = vpack.c.b16 %v2690, %v2672
        %v4203 = vpack.c.b16 %v2691, %v2673
        %v4204 = vpack.c.b16 %v2692, %v2674
        %v4205 = vpack.c.b16 %v2693, %v2675
        %v4206 = vpack.c.b16 %v2694, %v2676
        %v4207 = vpack.c.b16 %v2713, %v2695
        %v4208 = vpack.c.b16 %v2714, %v2696
        %v4209 = vpack.c.b16 %v2715, %v2697
        %v4210 = vpack.c.b16 %v2716, %v2698
        %v4211 = vpack.c.b16 %v2717, %v2699
        %v4212 = vpack.c.b16 %v2718, %v2700
        %v4213 = vpack.c.b16 %v2719, %v2701
        %v4214 = vpack.c.b16 %v2720, %v2702
        %v4215 = vpack.c.b16 %v2721, %v2703
        %v4216 = vpack.c.b16 %v2722, %v2704
        %v4217 = vpack.c.b16 %v2723, %v2705
        %v4218 = vpack.c.b16 %v2724, %v2706
        %v4219 = vpack.c.b16 %v2725, %v2707
        %v4220 = vpack.c.b16 %v2726, %v2708
        %v4221 = vpack.c.b16 %v2727, %v2709
        %v4222 = vpack.c.b16 %v2728, %v2710
        %v4223 = vpack.c.b16 %v2729, %v2711
        %v4224 = vpack.c.b16 %v2730, %v2712
        %v4225 = vpack.c.b16 %v2749, %v2731
        %v4226 = vpack.c.b16 %v2750, %v2732
        %v4227 = vpack.c.b16 %v2751, %v2733
        %v4228 = vpack.c.b16 %v2752, %v2734
        %v4229 = vpack.c.b16 %v2753, %v2735
        %v4230 = vpack.c.b16 %v2754, %v2736
        %v4231 = vpack.c.b16 %v2755, %v2737
        %v4232 = vpack.c.b16 %v2756, %v2738
        %v4233 = vpack.c.b16 %v2757, %v2739
        %v4234 = vpack.c.b16 %v2758, %v2740
        %v4235 = vpack.c.b16 %v2759, %v2741
        %v4236 = vpack.c.b16 %v2760, %v2742
        %v4237 = vpack.c.b16 %v2761, %v2743
        %v4238 = vpack.c.b16 %v2762, %v2744
        %v4239 = vpack.c.b16 %v2763, %v2745
        %v4240 = vpack.c.b16 %v2764, %v2746
        %v4241 = vpack.c.b16 %v2765, %v2747
        %v4242 = vpack.c.b16 %v2766, %v2748
        %v4243 = vpack.c.b16 %v2785, %v2767
        %v4244 = vpack.c.b16 %v2786, %v2768
        %v4245 = vpack.c.b16 %v2787, %v2769
        %v4246 = vpack.c.b16 %v2788, %v2770
        %v4247 = vpack.c.b16 %v2789, %v2771
        %v4248 = vpack.c.b16 %v2790, %v2772
        %v4249 = vpack.c.b16 %v2791, %v2773
        %v4250 = vpack.c.b16 %v2792, %v2774
        %v4251 = vpack.c.b16 %v2793, %v2775
        %v4252 = vpack.c.b16 %v2794, %v2776
        %v4253 = vpack.c.b16 %v2795, %v2777
        %v4254 = vpack.c.b16 %v2796, %v2778
        %v4255 = vpack.c.b16 %v2797, %v2779
        %v4256 = vpack.c.b16 %v2798, %v2780
        %v4257 = vpack.c.b16 %v2799, %v2781
        %v4258 = vpack.c.b16 %v2800, %v2782
        %v4259 = vpack.c.b16 %v2801, %v2783
        %v4260 = vpack.c.b16 %v2802, %v2784
        %v4261 = vpack.c.b16 %v2821, %v2803
        %v4262 = vpack.c.b16 %v2822, %v2804
        %v4263 = vpack.c.b16 %v2823, %v2805
        %v4264 = vpack.c.b16 %v2824, %v2806
        %v4265 = vpack.c.b16 %v2825, %v2807
        %v4266 = vpack.c.b16 %v2826, %v2808
        %v4267 = vpack.c.b16 %v2827, %v2809
        %v4268 = vpack.c.b16 %v2828, %v2810
        %v4269 = vpack.c.b16 %v2829, %v2811
        %v4270 = vpack.c.b16 %v2830, %v2812
        %v4271 = vpack.c.b16 %v2831, %v2813
        %v4272 = vpack.c.b16 %v2832, %v2814
        %v4273 = vpack.c.b16 %v2833, %v2815
        %v4274 = vpack.c.b16 %v2834, %v2816
        %v4275 = vpack.c.b16 %v2835, %v2817
        %v4276 = vpack.c.b16 %v2836, %v2818
        %v4277 = vpack.c.b16 %v2837, %v2819
        %v4278 = vpack.c.b16 %v2838, %v2820
        %v4279 = vpack.c.b16 %v2857, %v2839
        %v4280 = vpack.c.b16 %v2858, %v2840
        %v4281 = vpack.c.b16 %v2859, %v2841
        %v4282 = vpack.c.b16 %v2860, %v2842
        %v4283 = vpack.c.b16 %v2861, %v2843
        %v4284 = vpack.c.b16 %v2862, %v2844
        %v4285 = vpack.c.b16 %v2863, %v2845
        %v4286 = vpack.c.b16 %v2864, %v2846
        %v4287 = vpack.c.b16 %v2865, %v2847
        %v4288 = vpack.c.b16 %v2866, %v2848
        %v4289 = vpack.c.b16 %v2867, %v2849
        %v4290 = vpack.c.b16 %v2868, %v2850
        %v4291 = vpack.c.b16 %v2869, %v2851
        %v4292 = vpack.c.b16 %v2870, %v2852
        %v4293 = vpack.c.b16 %v2871, %v2853
        %v4294 = vpack.c.b16 %v2872, %v2854
        %v4295 = vpack.c.b16 %v2873, %v2855
        %v4296 = vpack.c.b16 %v2874, %v2856
        %v4297 = vpack.c.b16 %v2893, %v2875
        %v4298 = vpack.c.b16 %v2894, %v2876
        %v4299 = vpack.c.b16 %v2895, %v2877
        %v4300 = vpack.c.b16 %v2896, %v2878
        %v4301 = vpack.c.b16 %v2897, %v2879
        %v4302 = vpack.c.b16 %v2898, %v2880
        %v4303 = vpack.c.b16 %v2899, %v2881
        %v4304 = vpack.c.b16 %v2900, %v2882
        %v4305 = vpack.c.b16 %v2901, %v2883
        %v4306 = vpack.c.b16 %v2902, %v2884
        %v4307 = vpack.c.b16 %v2903, %v2885
        %v4308 = vpack.c.b16 %v2904, %v2886
        %v4309 = vpack.c.b16 %v2905, %v2887
        %v4310 = vpack.c.b16 %v2906, %v2888
        %v4311 = vpack.c.b16 %v2907, %v2889
        %v4312 = vpack.c.b16 %v2908, %v2890
        %v4313 = vpack.c.b16 %v2909, %v2891
        %v4314 = vpack.c.b16 %v2910, %v2892
        %v4315 = vpack.c.b16 %v2929, %v2911
        %v4316 = vpack.c.b16 %v2930, %v2912
        %v4317 = vpack.c.b16 %v2931, %v2913
        %v4318 = vpack.c.b16 %v2932, %v2914
        %v4319 = vpack.c.b16 %v2933, %v2915
        %v4320 = vpack.c.b16 %v2934, %v2916
        %v4321 = vpack.c.b16 %v2935, %v2917
        %v4322 = vpack.c.b16 %v2936, %v2918
        %v4323 = vpack.c.b16 %v2937, %v2919
        %v4324 = vpack.c.b16 %v2938, %v2920
        %v4325 = vpack.c.b16 %v2939, %v2921
        %v4326 = vpack.c.b16 %v2940, %v2922
        %v4327 = vpack.c.b16 %v2941, %v2923
        %v4328 = vpack.c.b16 %v2942, %v2924
        %v4329 = vpack.c.b16 %v2943, %v2925
        %v4330 = vpack.c.b16 %v2944, %v2926
        %v4331 = vpack.c.b16 %v2945, %v2927
        %v4332 = vpack.c.b16 %v2946, %v2928
        %v4333 = vpack.c.b16 %v2965, %v2947
        %v4334 = vpack.c.b16 %v2966, %v2948
        %v4335 = vpack.c.b16 %v2967, %v2949
        %v4336 = vpack.c.b16 %v2968, %v2950
        %v4337 = vpack.c.b16 %v2969, %v2951
        %v4338 = vpack.c.b16 %v2970, %v2952
        %v4339 = vpack.c.b16 %v2971, %v2953
        %v4340 = vpack.c.b16 %v2972, %v2954
        %v4341 = vpack.c.b16 %v2973, %v2955
        %v4342 = vpack.c.b16 %v2974, %v2956
        %v4343 = vpack.c.b16 %v2975, %v2957
        %v4344 = vpack.c.b16 %v2976, %v2958
        %v4345 = vpack.c.b16 %v2977, %v2959
        %v4346 = vpack.c.b16 %v2978, %v2960
        %v4347 = vpack.c.b16 %v2979, %v2961
        %v4348 = vpack.c.b16 %v2980, %v2962
        %v4349 = vpack.c.b16 %v2981, %v2963
        %v4350 = vpack.c.b16 %v2982, %v2964
        %v4351 = vpack.c.b16 %v3001, %v2983
        %v4352 = vpack.c.b16 %v3002, %v2984
        %v4353 = vpack.c.b16 %v3003, %v2985
        %v4354 = vpack.c.b16 %v3004, %v2986
        %v4355 = vpack.c.b16 %v3005, %v2987
        %v4356 = vpack.c.b16 %v3006, %v2988
        %v4357 = vpack.c.b16 %v3007, %v2989
        %v4358 = vpack.c.b16 %v3008, %v2990
        %v4359 = vpack.c.b16 %v3009, %v2991
        %v4360 = vpack.c.b16 %v3010, %v2992
        %v4361 = vpack.c.b16 %v3011, %v2993
        %v4362 = vpack.c.b16 %v3012, %v2994
        %v4363 = vpack.c.b16 %v3013, %v2995
        %v4364 = vpack.c.b16 %v3014, %v2996
        %v4365 = vpack.c.b16 %v3015, %v2997
        %v4366 = vpack.c.b16 %v3016, %v2998
        %v4367 = vpack.c.b16 %v3017, %v2999
        %v4368 = vpack.c.b16 %v3018, %v3000
        %v4369 = vpack.c.b16 %v3037, %v3019
        %v4370 = vpack.c.b16 %v3038, %v3020
        %v4371 = vpack.c.b16 %v3039, %v3021
        %v4372 = vpack.c.b16 %v3040, %v3022
        %v4373 = vpack.c.b16 %v3041, %v3023
        %v4374 = vpack.c.b16 %v3042, %v3024
        %v4375 = vpack.c.b16 %v3043, %v3025
        %v4376 = vpack.c.b16 %v3044, %v3026
        %v4377 = vpack.c.b16 %v3045, %v3027
        %v4378 = vpack.c.b16 %v3046, %v3028
        %v4379 = vpack.c.b16 %v3047, %v3029
        %v4380 = vpack.c.b16 %v3048, %v3030
        %v4381 = vpack.c.b16 %v3049, %v3031
        %v4382 = vpack.c.b16 %v3050, %v3032
        %v4383 = vpack.c.b16 %v3051, %v3033
        %v4384 = vpack.c.b16 %v3052, %v3034
        %v4385 = vpack.c.b16 %v3053, %v3035
        %v4386 = vpack.c.b16 %v3054, %v3036
        %v4387 = vpack.c.b16 %v3073, %v3055
        %v4388 = vpack.c.b16 %v3074, %v3056
        %v4389 = vpack.c.b16 %v3075, %v3057
        %v4390 = vpack.c.b16 %v3076, %v3058
        %v4391 = vpack.c.b16 %v3077, %v3059
        %v4392 = vpack.c.b16 %v3078, %v3060
        %v4393 = vpack.c.b16 %v3079, %v3061
        %v4394 = vpack.c.b16 %v3080, %v3062
        %v4395 = vpack.c.b16 %v3081, %v3063
        %v4396 = vpack.c.b16 %v3082, %v3064
        %v4397 = vpack.c.b16 %v3083, %v3065
        %v4398 = vpack.c.b16 %v3084, %v3066
        %v4399 = vpack.c.b16 %v3085, %v3067
        %v4400 = vpack.c.b16 %v3086, %v3068
        %v4401 = vpack.c.b16 %v3087, %v3069
        %v4402 = vpack.c.b16 %v3088, %v3070
        %v4403 = vpack.c.b16 %v3089, %v3071
        %v4404 = vpack.c.b16 %v3090, %v3072
        %v4405 = vpack.c.b16 %v3109, %v3091
        %v4406 = vpack.c.b16 %v3110, %v3092
        %v4407 = vpack.c.b16 %v3111, %v3093
        %v4408 = vpack.c.b16 %v3112, %v3094
        %v4409 = vpack.c.b16 %v3113, %v3095
        %v4410 = vpack.c.b16 %v3114, %v3096
        %v4411 = vpack.c.b16 %v3115, %v3097
        %v4412 = vpack.c.b16 %v3116, %v3098
        %v4413 = vpack.c.b16 %v3117, %v3099
        %v4414 = vpack.c.b16 %v3118, %v3100
        %v4415 = vpack.c.b16 %v3119, %v3101
        %v4416 = vpack.c.b16 %v3120, %v3102
        %v4417 = vpack.c.b16 %v3121, %v3103
        %v4418 = vpack.c.b16 %v3122, %v3104
        %v4419 = vpack.c.b16 %v3123, %v3105
        %v4420 = vpack.c.b16 %v3124, %v3106
        %v4421 = vpack.c.b16 %v3125, %v3107
        %v4422 = vpack.c.b16 %v3126, %v3108
        %v4423 = vpack.c.b16 %v3145, %v3127
        %v4424 = vpack.c.b16 %v3146, %v3128
        %v4425 = vpack.c.b16 %v3147, %v3129
        %v4426 = vpack.c.b16 %v3148, %v3130
        %v4427 = vpack.c.b16 %v3149, %v3131
        %v4428 = vpack.c.b16 %v3150, %v3132
        %v4429 = vpack.c.b16 %v3151, %v3133
        %v4430 = vpack.c.b16 %v3152, %v3134
        %v4431 = vpack.c.b16 %v3153, %v3135
        %v4432 = vpack.c.b16 %v3154, %v3136
        %v4433 = vpack.c.b16 %v3155, %v3137
        %v4434 = vpack.c.b16 %v3156, %v3138
        %v4435 = vpack.c.b16 %v3157, %v3139
        %v4436 = vpack.c.b16 %v3158, %v3140
        %v4437 = vpack.c.b16 %v3159, %v3141
        %v4438 = vpack.c.b16 %v3160, %v3142
        %v4439 = vpack.c.b16 %v3161, %v3143
        %v4440 = vpack.c.b16 %v3162, %v3144
        %v4441 = vpack.c.b16 %v3181, %v3163
        %v4442 = vpack.c.b16 %v3182, %v3164
        %v4443 = vpack.c.b16 %v3183, %v3165
        %v4444 = vpack.c.b16 %v3184, %v3166
        %v4445 = vpack.c.b16 %v3185, %v3167
        %v4446 = vpack.c.b16 %v3186, %v3168
        %v4447 = vpack.c.b16 %v3187, %v3169
        %v4448 = vpack.c.b16 %v3188, %v3170
        %v4449 = vpack.c.b16 %v3189, %v3171
        %v4450 = vpack.c.b16 %v3190, %v3172
        %v4451 = vpack.c.b16 %v3191, %v3173
        %v4452 = vpack.c.b16 %v3192, %v3174
        %v4453 = vpack.c.b16 %v3193, %v3175
        %v4454 = vpack.c.b16 %v3194, %v3176
        %v4455 = vpack.c.b16 %v3195, %v3177
        %v4456 = vpack.c.b16 %v3196, %v3178
        %v4457 = vpack.c.b16 %v3197, %v3179
        %v4458 = vpack.c.b16 %v3198, %v3180
        %v4459 = vpack.c.b16 %v3217, %v3199
        %v4460 = vpack.c.b16 %v3218, %v3200
        %v4461 = vpack.c.b16 %v3219, %v3201
        %v4462 = vpack.c.b16 %v3220, %v3202
        %v4463 = vpack.c.b16 %v3221, %v3203
        %v4464 = vpack.c.b16 %v3222, %v3204
        %v4465 = vpack.c.b16 %v3223, %v3205
        %v4466 = vpack.c.b16 %v3224, %v3206
        %v4467 = vpack.c.b16 %v3225, %v3207
        %v4468 = vpack.c.b16 %v3226, %v3208
        %v4469 = vpack.c.b16 %v3227, %v3209
        %v4470 = vpack.c.b16 %v3228, %v3210
        %v4471 = vpack.c.b16 %v3229, %v3211
        %v4472 = vpack.c.b16 %v3230, %v3212
        %v4473 = vpack.c.b16 %v3231, %v3213
        %v4474 = vpack.c.b16 %v3232, %v3214
        %v4475 = vpack.c.b16 %v3233, %v3215
        %v4476 = vpack.c.b16 %v3234, %v3216
        %v4477 = vpack.c.b16 %v3253, %v3235
        %v4478 = vpack.c.b16 %v3254, %v3236
        %v4479 = vpack.c.b16 %v3255, %v3237
        %v4480 = vpack.c.b16 %v3256, %v3238
        %v4481 = vpack.c.b16 %v3257, %v3239
        %v4482 = vpack.c.b16 %v3258, %v3240
        %v4483 = vpack.c.b16 %v3259, %v3241
        %v4484 = vpack.c.b16 %v3260, %v3242
        %v4485 = vpack.c.b16 %v3261, %v3243
        %v4486 = vpack.c.b16 %v3262, %v3244
        %v4487 = vpack.c.b16 %v3263, %v3245
        %v4488 = vpack.c.b16 %v3264, %v3246
        %v4489 = vpack.c.b16 %v3265, %v3247
        %v4490 = vpack.c.b16 %v3266, %v3248
        %v4491 = vpack.c.b16 %v3267, %v3249
        %v4492 = vpack.c.b16 %v3268, %v3250
        %v4493 = vpack.c.b16 %v3269, %v3251
        %v4494 = vpack.c.b16 %v3270, %v3252
        %v4495 = vpack.c.b16 %v3289, %v3271
        %v4496 = vpack.c.b16 %v3290, %v3272
        %v4497 = vpack.c.b16 %v3291, %v3273
        %v4498 = vpack.c.b16 %v3292, %v3274
        %v4499 = vpack.c.b16 %v3293, %v3275
        %v4500 = vpack.c.b16 %v3294, %v3276
        %v4501 = vpack.c.b16 %v3295, %v3277
        %v4502 = vpack.c.b16 %v3296, %v3278
        %v4503 = vpack.c.b16 %v3297, %v3279
        %v4504 = vpack.c.b16 %v3298, %v3280
        %v4505 = vpack.c.b16 %v3299, %v3281
        %v4506 = vpack.c.b16 %v3300, %v3282
        %v4507 = vpack.c.b16 %v3301, %v3283
        %v4508 = vpack.c.b16 %v3302, %v3284
        %v4509 = vpack.c.b16 %v3303, %v3285
        %v4510 = vpack.c.b16 %v3304, %v3286
        %v4511 = vpack.c.b16 %v3305, %v3287
        %v4512 = vpack.c.b16 %v3306, %v3288
        %v4513 = vpack.c.b16 %v3325, %v3307
        %v4514 = vpack.c.b16 %v3326, %v3308
        %v4515 = vpack.c.b16 %v3327, %v3309
        %v4516 = vpack.c.b16 %v3328, %v3310
        %v4517 = vpack.c.b16 %v3329, %v3311
        %v4518 = vpack.c.b16 %v3330, %v3312
        %v4519 = vpack.c.b16 %v3331, %v3313
        %v4520 = vpack.c.b16 %v3332, %v3314
        %v4521 = vpack.c.b16 %v3333, %v3315
        %v4522 = vpack.c.b16 %v3334, %v3316
        %v4523 = vpack.c.b16 %v3335, %v3317
        %v4524 = vpack.c.b16 %v3336, %v3318
        %v4525 = vpack.c.b16 %v3337, %v3319
        %v4526 = vpack.c.b16 %v3338, %v3320
        %v4527 = vpack.c.b16 %v3339, %v3321
        %v4528 = vpack.c.b16 %v3340, %v3322
        %v4529 = vpack.c.b16 %v3341, %v3323
        %v4530 = vpack.c.b16 %v3342, %v3324
        %v4531 = vpack.c.b16 %v3361, %v3343
        %v4532 = vpack.c.b16 %v3362, %v3344
        %v4533 = vpack.c.b16 %v3363, %v3345
        %v4534 = vpack.c.b16 %v3364, %v3346
        %v4535 = vpack.c.b16 %v3365, %v3347
        %v4536 = vpack.c.b16 %v3366, %v3348
        %v4537 = vpack.c.b16 %v3367, %v3349
        %v4538 = vpack.c.b16 %v3368, %v3350
        %v4539 = vpack.c.b16 %v3369, %v3351
        %v4540 = vpack.c.b16 %v3370, %v3352
        %v4541 = vpack.c.b16 %v3371, %v3353
        %v4542 = vpack.c.b16 %v3372, %v3354
        %v4543 = vpack.c.b16 %v3373, %v3355
        %v4544 = vpack.c.b16 %v3374, %v3356
        %v4545 = vpack.c.b16 %v3375, %v3357
        %v4546 = vpack.c.b16 %v3376, %v3358
        %v4547 = vpack.c.b16 %v3377, %v3359
        %v4548 = vpack.c.b16 %v3378, %v3360
        %v4549 = vpack.c.b16 %v3397, %v3379
        %v4550 = vpack.c.b16 %v3398, %v3380
        %v4551 = vpack.c.b16 %v3399, %v3381
        %v4552 = vpack.c.b16 %v3400, %v3382
        %v4553 = vpack.c.b16 %v3401, %v3383
        %v4554 = vpack.c.b16 %v3402, %v3384
        %v4555 = vpack.c.b16 %v3403, %v3385
        %v4556 = vpack.c.b16 %v3404, %v3386
        %v4557 = vpack.c.b16 %v3405, %v3387
        %v4558 = vpack.c.b16 %v3406, %v3388
        %v4559 = vpack.c.b16 %v3407, %v3389
        %v4560 = vpack.c.b16 %v3408, %v3390
        %v4561 = vpack.c.b16 %v3409, %v3391
        %v4562 = vpack.c.b16 %v3410, %v3392
        %v4563 = vpack.c.b16 %v3411, %v3393
        %v4564 = vpack.c.b16 %v3412, %v3394
        %v4565 = vpack.c.b16 %v3413, %v3395
        %v4566 = vpack.c.b16 %v3414, %v3396
        %v4567 = vpack.c.b16 %v3433, %v3415
        %v4568 = vpack.c.b16 %v3434, %v3416
        %v4569 = vpack.c.b16 %v3435, %v3417
        %v4570 = vpack.c.b16 %v3436, %v3418
        %v4571 = vpack.c.b16 %v3437, %v3419
        %v4572 = vpack.c.b16 %v3438, %v3420
        %v4573 = vpack.c.b16 %v3439, %v3421
        %v4574 = vpack.c.b16 %v3440, %v3422
        %v4575 = vpack.c.b16 %v3441, %v3423
        %v4576 = vpack.c.b16 %v3442, %v3424
        %v4577 = vpack.c.b16 %v3443, %v3425
        %v4578 = vpack.c.b16 %v3444, %v3426
        %v4579 = vpack.c.b16 %v3445, %v3427
        %v4580 = vpack.c.b16 %v3446, %v3428
        %v4581 = vpack.c.b16 %v3447, %v3429
        %v4582 = vpack.c.b16 %v3448, %v3430
        %v4583 = vpack.c.b16 %v3449, %v3431
        %v4584 = vpack.c.b16 %v3450, %v3432
        %v4585 = vpack.c.b16 %v3469, %v3451
        %v4586 = vpack.c.b16 %v3470, %v3452
        %v4587 = vpack.c.b16 %v3471, %v3453
        %v4588 = vpack.c.b16 %v3472, %v3454
        %v4589 = vpack.c.b16 %v3473, %v3455
        %v4590 = vpack.c.b16 %v3474, %v3456
        %v4591 = vpack.c.b16 %v3475, %v3457
        %v4592 = vpack.c.b16 %v3476, %v3458
        %v4593 = vpack.c.b16 %v3477, %v3459
        %v4594 = vpack.c.b16 %v3478, %v3460
        %v4595 = vpack.c.b16 %v3479, %v3461
        %v4596 = vpack.c.b16 %v3480, %v3462
        %v4597 = vpack.c.b16 %v3481, %v3463
        %v4598 = vpack.c.b16 %v3482, %v3464
        %v4599 = vpack.c.b16 %v3483, %v3465
        %v4600 = vpack.c.b16 %v3484, %v3466
        %v4601 = vpack.c.b16 %v3485, %v3467
        %v4602 = vpack.c.b16 %v3486, %v3468
        %v4603 = vpack.c.b16 %v3505, %v3487
        %v4604 = vpack.c.b16 %v3506, %v3488
        %v4605 = vpack.c.b16 %v3507, %v3489
        %v4606 = vpack.c.b16 %v3508, %v3490
        %v4607 = vpack.c.b16 %v3509, %v3491
        %v4608 = vpack.c.b16 %v3510, %v3492
        %v4609 = vpack.c.b16 %v3511, %v3493
        %v4610 = vpack.c.b16 %v3512, %v3494
        %v4611 = vpack.c.b16 %v3513, %v3495
        %v4612 = vpack.c.b16 %v3514, %v3496
        %v4613 = vpack.c.b16 %v3515, %v3497
        %v4614 = vpack.c.b16 %v3516, %v3498
        %v4615 = vpack.c.b16 %v3517, %v3499
        %v4616 = vpack.c.b16 %v3518, %v3500
        %v4617 = vpack.c.b16 %v3519, %v3501
        %v4618 = vpack.c.b16 %v3520, %v3502
        %v4619 = vpack.c.b16 %v3521, %v3503
        %v4620 = vpack.c.b16 %v3522, %v3504
        %v4621 = vpack.c.b16 %v3541, %v3523
        %v4622 = vpack.c.b16 %v3542, %v3524
        %v4623 = vpack.c.b16 %v3543, %v3525
        %v4624 = vpack.c.b16 %v3544, %v3526
        %v4625 = vpack.c.b16 %v3545, %v3527
        %v4626 = vpack.c.b16 %v3546, %v3528
        %v4627 = vpack.c.b16 %v3547, %v3529
        %v4628 = vpack.c.b16 %v3548, %v3530
        %v4629 = vpack.c.b16 %v3549, %v3531
        %v4630 = vpack.c.b16 %v3550, %v3532
        %v4631 = vpack.c.b16 %v3551, %v3533
        %v4632 = vpack.c.b16 %v3552, %v3534
        %v4633 = vpack.c.b16 %v3553, %v3535
        %v4634 = vpack.c.b16 %v3554, %v3536
        %v4635 = vpack.c.b16 %v3555, %v3537
        %v4636 = vpack.c.b16 %v3556, %v3538
        %v4637 = vpack.c.b16 %v3557, %v3539
        %v4638 = vpack.c.b16 %v3558, %v3540
        %v4639 = vpack.c.b16 %v3577, %v3559
        %v4640 = vpack.c.b16 %v3578, %v3560
        %v4641 = vpack.c.b16 %v3579, %v3561
        %v4642 = vpack.c.b16 %v3580, %v3562
        %v4643 = vpack.c.b16 %v3581, %v3563
        %v4644 = vpack.c.b16 %v3582, %v3564
        %v4645 = vpack.c.b16 %v3583, %v3565
        %v4646 = vpack.c.b16 %v3584, %v3566
        %v4647 = vpack.c.b16 %v3585, %v3567
        %v4648 = vpack.c.b16 %v3586, %v3568
        %v4649 = vpack.c.b16 %v3587, %v3569
        %v4650 = vpack.c.b16 %v3588, %v3570
        %v4651 = vpack.c.b16 %v3589, %v3571
        %v4652 = vpack.c.b16 %v3590, %v3572
        %v4653 = vpack.c.b16 %v3591, %v3573
        %v4654 = vpack.c.b16 %v3592, %v3574
        %v4655 = vpack.c.b16 %v3593, %v3575
        %v4656 = vpack.c.b16 %v3594, %v3576
        %v4657 = vpack.c.b16 %v3613, %v3595
        %v4658 = vpack.c.b16 %v3614, %v3596
        %v4659 = vpack.c.b16 %v3615, %v3597
        %v4660 = vpack.c.b16 %v3616, %v3598
        %v4661 = vpack.c.b16 %v3617, %v3599
        %v4662 = vpack.c.b16 %v3618, %v3600
        %v4663 = vpack.c.b16 %v3619, %v3601
        %v4664 = vpack.c.b16 %v3620, %v3602
        %v4665 = vpack.c.b16 %v3621, %v3603
        %v4666 = vpack.c.b16 %v3622, %v3604
        %v4667 = vpack.c.b16 %v3623, %v3605
        %v4668 = vpack.c.b16 %v3624, %v3606
        %v4669 = vpack.c.b16 %v3625, %v3607
        %v4670 = vpack.c.b16 %v3626, %v3608
        %v4671 = vpack.c.b16 %v3627, %v3609
        %v4672 = vpack.c.b16 %v3628, %v3610
        %v4673 = vpack.c.b16 %v3629, %v3611
        %v4674 = vpack.c.b16 %v3630, %v3612
        %v4675 = vpack.c.b16 %v3649, %v3631
        %v4676 = vpack.c.b16 %v3650, %v3632
        %v4677 = vpack.c.b16 %v3651, %v3633
        %v4678 = vpack.c.b16 %v3652, %v3634
        %v4679 = vpack.c.b16 %v3653, %v3635
        %v4680 = vpack.c.b16 %v3654, %v3636
        %v4681 = vpack.c.b16 %v3655, %v3637
        %v4682 = vpack.c.b16 %v3656, %v3638
        %v4683 = vpack.c.b16 %v3657, %v3639
        %v4684 = vpack.c.b16 %v3658, %v3640
        %v4685 = vpack.c.b16 %v3659, %v3641
        %v4686 = vpack.c.b16 %v3660, %v3642
        %v4687 = vpack.c.b16 %v3661, %v3643
        %v4688 = vpack.c.b16 %v3662, %v3644
        %v4689 = vpack.c.b16 %v3663, %v3645
        %v4690 = vpack.c.b16 %v3664, %v3646
        %v4691 = vpack.c.b16 %v3665, %v3647
        %v4692 = vpack.c.b16 %v3666, %v3648
        %v4693 = vpack.c.b16 %v3685, %v3667
        %v4694 = vpack.c.b16 %v3686, %v3668
        %v4695 = vpack.c.b16 %v3687, %v3669
        %v4696 = vpack.c.b16 %v3688, %v3670
        %v4697 = vpack.c.b16 %v3689, %v3671
        %v4698 = vpack.c.b16 %v3690, %v3672
        %v4699 = vpack.c.b16 %v3691, %v3673
        %v4700 = vpack.c.b16 %v3692, %v3674
        %v4701 = vpack.c.b16 %v3693, %v3675
        %v4702 = vpack.c.b16 %v3694, %v3676
        %v4703 = vpack.c.b16 %v3695, %v3677
        %v4704 = vpack.c.b16 %v3696, %v3678
        %v4705 = vpack.c.b16 %v3697, %v3679
        %v4706 = vpack.c.b16 %v3698, %v3680
        %v4707 = vpack.c.b16 %v3699, %v3681
        %v4708 = vpack.c.b16 %v3700, %v3682
        %v4709 = vpack.c.b16 %v3701, %v3683
        %v4710 = vpack.c.b16 %v3702, %v3684
        %v4711 = vpack.c.b16 %v3721, %v3703
        %v4712 = vpack.c.b16 %v3722, %v3704
        %v4713 = vpack.c.b16 %v3723, %v3705
        %v4714 = vpack.c.b16 %v3724, %v3706
        %v4715 = vpack.c.b16 %v3725, %v3707
        %v4716 = vpack.c.b16 %v3726, %v3708
        %v4717 = vpack.c.b16 %v3727, %v3709
        %v4718 = vpack.c.b16 %v3728, %v3710
        %v4719 = vpack.c.b16 %v3729, %v3711
        %v4720 = vpack.c.b16 %v3730, %v3712
        %v4721 = vpack.c.b16 %v3731, %v3713
        %v4722 = vpack.c.b16 %v3732, %v3714
        %v4723 = vpack.c.b16 %v3733, %v3715
        %v4724 = vpack.c.b16 %v3734, %v3716
        %v4725 = vpack.c.b16 %v3735, %v3717
        %v4726 = vpack.c.b16 %v3736, %v3718
        %v4727 = vpack.c.b16 %v3737, %v3719
        %v4728 = vpack.c.b16 %v3738, %v3720
        %v4729 = vpack.c.b16 %v3757, %v3739
        %v4730 = vpack.c.b16 %v3758, %v3740
        %v4731 = vpack.c.b16 %v3759, %v3741
        %v4732 = vpack.c.b16 %v3760, %v3742
        %v4733 = vpack.c.b16 %v3761, %v3743
        %v4734 = vpack.c.b16 %v3762, %v3744
        %v4735 = vpack.c.b16 %v3763, %v3745
        %v4736 = vpack.c.b16 %v3764, %v3746
        %v4737 = vpack.c.b16 %v3765, %v3747
        %v4738 = vpack.c.b16 %v3766, %v3748
        %v4739 = vpack.c.b16 %v3767, %v3749
        %v4740 = vpack.c.b16 %v3768, %v3750
        %v4741 = vpack.c.b16 %v3769, %v3751
        %v4742 = vpack.c.b16 %v3770, %v3752
        %v4743 = vpack.c.b16 %v3771, %v3753
        %v4744 = vpack.c.b16 %v3772, %v3754
        %v4745 = vpack.c.b16 %v3773, %v3755
        %v4746 = vpack.c.b16 %v3774, %v3756
        %v4747 = vpack.c.b16 %v3793, %v3775
        %v4748 = vpack.c.b16 %v3794, %v3776
        %v4749 = vpack.c.b16 %v3795, %v3777
        %v4750 = vpack.c.b16 %v3796, %v3778
        %v4751 = vpack.c.b16 %v3797, %v3779
        %v4752 = vpack.c.b16 %v3798, %v3780
        %v4753 = vpack.c.b16 %v3799, %v3781
        %v4754 = vpack.c.b16 %v3800, %v3782
        %v4755 = vpack.c.b16 %v3801, %v3783
        %v4756 = vpack.c.b16 %v3802, %v3784
        %v4757 = vpack.c.b16 %v3803, %v3785
        %v4758 = vpack.c.b16 %v3804, %v3786
        %v4759 = vpack.c.b16 %v3805, %v3787
        %v4760 = vpack.c.b16 %v3806, %v3788
        %v4761 = vpack.c.b16 %v3807, %v3789
        %v4762 = vpack.c.b16 %v3808, %v3790
        %v4763 = vpack.c.b16 %v3809, %v3791
        %v4764 = vpack.c.b16 %v3810, %v3792
        %v4765 = vpack.c.b16 %v3829, %v3811
        %v4766 = vpack.c.b16 %v3830, %v3812
        %v4767 = vpack.c.b16 %v3831, %v3813
        %v4768 = vpack.c.b16 %v3832, %v3814
        %v4769 = vpack.c.b16 %v3833, %v3815
        %v4770 = vpack.c.b16 %v3834, %v3816
        %v4771 = vpack.c.b16 %v3835, %v3817
        %v4772 = vpack.c.b16 %v3836, %v3818
        %v4773 = vpack.c.b16 %v3837, %v3819
        %v4774 = vpack.c.b16 %v3838, %v3820
        %v4775 = vpack.c.b16 %v3839, %v3821
        %v4776 = vpack.c.b16 %v3840, %v3822
        %v4777 = vpack.c.b16 %v3841, %v3823
        %v4778 = vpack.c.b16 %v3842, %v3824
        %v4779 = vpack.c.b16 %v3843, %v3825
        %v4780 = vpack.c.b16 %v3844, %v3826
        %v4781 = vpack.c.b16 %v3845, %v3827
        %v4782 = vpack.c.b16 %v3846, %v3828
        %v4783 = vpack.c.b16 %v3865, %v3847
        %v4784 = vpack.c.b16 %v3866, %v3848
        %v4785 = vpack.c.b16 %v3867, %v3849
        %v4786 = vpack.c.b16 %v3868, %v3850
        %v4787 = vpack.c.b16 %v3869, %v3851
        %v4788 = vpack.c.b16 %v3870, %v3852
        %v4789 = vpack.c.b16 %v3871, %v3853
        %v4790 = vpack.c.b16 %v3872, %v3854
        %v4791 = vpack.c.b16 %v3873, %v3855
        %v4792 = vpack.c.b16 %v3874, %v3856
        %v4793 = vpack.c.b16 %v3875, %v3857
        %v4794 = vpack.c.b16 %v3876, %v3858
        %v4795 = vpack.c.b16 %v3877, %v3859
        %v4796 = vpack.c.b16 %v3878, %v3860
        %v4797 = vpack.c.b16 %v3879, %v3861
        %v4798 = vpack.c.b16 %v3880, %v3862
        %v4799 = vpack.c.b16 %v3881, %v3863
        %v4800 = vpack.c.b16 %v3882, %v3864
        %v4801 = vpack.c.b16 %v3901, %v3883
        %v4802 = vpack.c.b16 %v3902, %v3884
        %v4803 = vpack.c.b16 %v3903, %v3885
        %v4804 = vpack.c.b16 %v3904, %v3886
        %v4805 = vpack.c.b16 %v3905, %v3887
        %v4806 = vpack.c.b16 %v3906, %v3888
        %v4807 = vpack.c.b16 %v3907, %v3889
        %v4808 = vpack.c.b16 %v3908, %v3890
        %v4809 = vpack.c.b16 %v3909, %v3891
        %v4810 = vpack.c.b16 %v3910, %v3892
        %v4811 = vpack.c.b16 %v3911, %v3893
        %v4812 = vpack.c.b16 %v3912, %v3894
        %v4813 = vpack.c.b16 %v3913, %v3895
        %v4814 = vpack.c.b16 %v3914, %v3896
        %v4815 = vpack.c.b16 %v3915, %v3897
        %v4816 = vpack.c.b16 %v3916, %v3898
        %v4817 = vpack.c.b16 %v3917, %v3899
        %v4818 = vpack.c.b16 %v3918, %v3900
        %v4819 = vpack.c.b16 %v3937, %v3919
        %v4820 = vpack.c.b16 %v3938, %v3920
        %v4821 = vpack.c.b16 %v3939, %v3921
        %v4822 = vpack.c.b16 %v3940, %v3922
        %v4823 = vpack.c.b16 %v3941, %v3923
        %v4824 = vpack.c.b16 %v3942, %v3924
        %v4825 = vpack.c.b16 %v3943, %v3925
        %v4826 = vpack.c.b16 %v3944, %v3926
        %v4827 = vpack.c.b16 %v3945, %v3927
        %v4828 = vpack.c.b16 %v3946, %v3928
        %v4829 = vpack.c.b16 %v3947, %v3929
        %v4830 = vpack.c.b16 %v3948, %v3930
        %v4831 = vpack.c.b16 %v3949, %v3931
        %v4832 = vpack.c.b16 %v3950, %v3932
        %v4833 = vpack.c.b16 %v3951, %v3933
        %v4834 = vpack.c.b16 %v3952, %v3934
        %v4835 = vpack.c.b16 %v3953, %v3935
        %v4836 = vpack.c.b16 %v3954, %v3936
        %v4837 = vpack.c.b16 %v3973, %v3955
        %v4838 = vpack.c.b16 %v3974, %v3956
        %v4839 = vpack.c.b16 %v3975, %v3957
        %v4840 = vpack.c.b16 %v3976, %v3958
        %v4841 = vpack.c.b16 %v3977, %v3959
        %v4842 = vpack.c.b16 %v3978, %v3960
        %v4843 = vpack.c.b16 %v3979, %v3961
        %v4844 = vpack.c.b16 %v3980, %v3962
        %v4845 = vpack.c.b16 %v3981, %v3963
        %v4846 = vpack.c.b16 %v3982, %v3964
        %v4847 = vpack.c.b16 %v3983, %v3965
        %v4848 = vpack.c.b16 %v3984, %v3966
        %v4849 = vpack.c.b16 %v3985, %v3967
        %v4850 = vpack.c.b16 %v3986, %v3968
        %v4851 = vpack.c.b16 %v3987, %v3969
        %v4852 = vpack.c.b16 %v3988, %v3970
        %v4853 = vpack.c.b16 %v3989, %v3971
        %v4854 = vpack.c.b16 %v3990, %v3972
        %5719 = vmatpush.bf16.msra.mxu0 %v4117
        %5720 = vmatpush.bf16.msra.mxu0 %v4099
        %5721 = vmatpush.bf16.msra.mxu0 %v4081
        %5722 = vmatpush.bf16.msra.mxu0 %v4063
        %5723 = vmatpush.bf16.msra.mxu0 %v4045
        %5724 = vmatpush.bf16.msra.mxu0 %v4027
        %5725 = vmatpush.bf16.msra.mxu0 %v4009
        %5726 = vmatpush.bf16.msra.mxu0 %v3991
        %5727 = vmatmul.bf16.gmra.mxu0 %v487
        %v5728 = vpop.f32.mrf.mxu0
        %v5729 = vadd.f32 %v1363, %v5728
        %v5730 = vpop.f32.mrf.mxu0
        %5731 = vdwg.mxu0
        %5732 = vmatpush.bf16.msra.mxu0 %v4261
        %5733 = vmatpush.bf16.msra.mxu0 %v4243
        %5734 = vmatpush.bf16.msra.mxu0 %v4225
        %5735 = vmatpush.bf16.msra.mxu0 %v4207
        %5736 = vmatpush.bf16.msra.mxu0 %v4189
        %5737 = vmatpush.bf16.msra.mxu0 %v4171
        %5738 = vmatpush.bf16.msra.mxu0 %v4153
        %5739 = vmatpush.bf16.msra.mxu0 %v4135
        %5740 = vmatmul.bf16.gmra.mxu0 %v488
        %v5741 = vpop.f32.mrf.mxu0
        %v5742 = vadd.f32 %v5729, %v5741
        %v5743 = vpop.f32.mrf.mxu0
        %5744 = vdwg.mxu0
        %5745 = vmatpush.bf16.msra.mxu0 %v4405
        %5746 = vmatpush.bf16.msra.mxu0 %v4387
        %5747 = vmatpush.bf16.msra.mxu0 %v4369
        %5748 = vmatpush.bf16.msra.mxu0 %v4351
        %5749 = vmatpush.bf16.msra.mxu0 %v4333
        %5750 = vmatpush.bf16.msra.mxu0 %v4315
        %5751 = vmatpush.bf16.msra.mxu0 %v4297
        %5752 = vmatpush.bf16.msra.mxu0 %v4279
        %5753 = vmatmul.bf16.gmra.mxu0 %v489
        %v5754 = vpop.f32.mrf.mxu0
        %v5755 = vadd.f32 %v5742, %v5754
        %v5756 = vpop.f32.mrf.mxu0
        %5757 = vdwg.mxu0
        %5758 = vmatpush.bf16.msra.mxu0 %v4549
        %5759 = vmatpush.bf16.msra.mxu0 %v4531
        %5760 = vmatpush.bf16.msra.mxu0 %v4513
        %5761 = vmatpush.bf16.msra.mxu0 %v4495
        %5762 = vmatpush.bf16.msra.mxu0 %v4477
        %5763 = vmatpush.bf16.msra.mxu0 %v4459
        %5764 = vmatpush.bf16.msra.mxu0 %v4441
        %5765 = vmatpush.bf16.msra.mxu0 %v4423
        %5766 = vmatmul.bf16.gmra.mxu0 %v490
        %v5767 = vpop.f32.mrf.mxu0
        %v5768 = vadd.f32 %v5755, %v5767
        %v5769 = vpop.f32.mrf.mxu0
        %5770 = vdwg.mxu0
        %5771 = vmatpush.bf16.msra.mxu0 %v4693
        %5772 = vmatpush.bf16.msra.mxu0 %v4675
        %5773 = vmatpush.bf16.msra.mxu0 %v4657
        %5774 = vmatpush.bf16.msra.mxu0 %v4639
        %5775 = vmatpush.bf16.msra.mxu0 %v4621
        %5776 = vmatpush.bf16.msra.mxu0 %v4603
        %5777 = vmatpush.bf16.msra.mxu0 %v4585
        %5778 = vmatpush.bf16.msra.mxu0 %v4567
        %5779 = vmatmul.bf16.gmra.mxu0 %v491
        %v5780 = vpop.f32.mrf.mxu0
        %v5781 = vadd.f32 %v5768, %v5780
        %v5782 = vpop.f32.mrf.mxu0
        %5783 = vdwg.mxu0
        %5784 = vmatpush.bf16.msra.mxu0 %v4837
        %5785 = vmatpush.bf16.msra.mxu0 %v4819
        %5786 = vmatpush.bf16.msra.mxu0 %v4801
        %5787 = vmatpush.bf16.msra.mxu0 %v4783
        %5788 = vmatpush.bf16.msra.mxu0 %v4765
        %5789 = vmatpush.bf16.msra.mxu0 %v4747
        %5790 = vmatpush.bf16.msra.mxu0 %v4729
        %5791 = vmatpush.bf16.msra.mxu0 %v4711
        %5792 = vmatmul.bf16.gmra.mxu0 %v492
        %v5793 = vpop.f32.mrf.mxu0
        %v5794 = vadd.f32 %v5781, %v5793
        %v5795 = vpop.f32.mrf.mxu0
        %5796 = vdwg.mxu0
        %5797 = vmatpush.bf16.msra.mxu0 %v4118
        %5798 = vmatpush.bf16.msra.mxu0 %v4100
        %5799 = vmatpush.bf16.msra.mxu0 %v4082
        %5800 = vmatpush.bf16.msra.mxu0 %v4064
        %5801 = vmatpush.bf16.msra.mxu0 %v4046
        %5802 = vmatpush.bf16.msra.mxu0 %v4028
        %5803 = vmatpush.bf16.msra.mxu0 %v4010
        %5804 = vmatpush.bf16.msra.mxu0 %v3992
        %5805 = vmatmul.bf16.gmra.mxu0 %v487
        %v5806 = vpop.f32.mrf.mxu0
        %v5807 = vadd.f32 %v1364, %v5806
        %v5808 = vpop.f32.mrf.mxu0
        %5809 = vdwg.mxu0
        %5810 = vmatpush.bf16.msra.mxu0 %v4262
        %5811 = vmatpush.bf16.msra.mxu0 %v4244
        %5812 = vmatpush.bf16.msra.mxu0 %v4226
        %5813 = vmatpush.bf16.msra.mxu0 %v4208
        %5814 = vmatpush.bf16.msra.mxu0 %v4190
        %5815 = vmatpush.bf16.msra.mxu0 %v4172
        %5816 = vmatpush.bf16.msra.mxu0 %v4154
        %5817 = vmatpush.bf16.msra.mxu0 %v4136
        %5818 = vmatmul.bf16.gmra.mxu0 %v488
        %v5819 = vpop.f32.mrf.mxu0
        %v5820 = vadd.f32 %v5807, %v5819
        %v5821 = vpop.f32.mrf.mxu0
        %5822 = vdwg.mxu0
        %5823 = vmatpush.bf16.msra.mxu0 %v4406
        %5824 = vmatpush.bf16.msra.mxu0 %v4388
        %5825 = vmatpush.bf16.msra.mxu0 %v4370
        %5826 = vmatpush.bf16.msra.mxu0 %v4352
        %5827 = vmatpush.bf16.msra.mxu0 %v4334
        %5828 = vmatpush.bf16.msra.mxu0 %v4316
        %5829 = vmatpush.bf16.msra.mxu0 %v4298
        %5830 = vmatpush.bf16.msra.mxu0 %v4280
        %5831 = vmatmul.bf16.gmra.mxu0 %v489
        %v5832 = vpop.f32.mrf.mxu0
        %v5833 = vadd.f32 %v5820, %v5832
        %v5834 = vpop.f32.mrf.mxu0
        %5835 = vdwg.mxu0
        %5836 = vmatpush.bf16.msra.mxu0 %v4550
        %5837 = vmatpush.bf16.msra.mxu0 %v4532
        %5838 = vmatpush.bf16.msra.mxu0 %v4514
        %5839 = vmatpush.bf16.msra.mxu0 %v4496
        %5840 = vmatpush.bf16.msra.mxu0 %v4478
        %5841 = vmatpush.bf16.msra.mxu0 %v4460
        %5842 = vmatpush.bf16.msra.mxu0 %v4442
        %5843 = vmatpush.bf16.msra.mxu0 %v4424
        %5844 = vmatmul.bf16.gmra.mxu0 %v490
        %v5845 = vpop.f32.mrf.mxu0
        %v5846 = vadd.f32 %v5833, %v5845
        %v5847 = vpop.f32.mrf.mxu0
        %5848 = vdwg.mxu0
        %5849 = vmatpush.bf16.msra.mxu0 %v4694
        %5850 = vmatpush.bf16.msra.mxu0 %v4676
        %5851 = vmatpush.bf16.msra.mxu0 %v4658
        %5852 = vmatpush.bf16.msra.mxu0 %v4640
        %5853 = vmatpush.bf16.msra.mxu0 %v4622
        %5854 = vmatpush.bf16.msra.mxu0 %v4604
        %5855 = vmatpush.bf16.msra.mxu0 %v4586
        %5856 = vmatpush.bf16.msra.mxu0 %v4568
        %5857 = vmatmul.bf16.gmra.mxu0 %v491
        %v5858 = vpop.f32.mrf.mxu0
        %v5859 = vadd.f32 %v5846, %v5858
        %v5860 = vpop.f32.mrf.mxu0
        %5861 = vdwg.mxu0
        %5862 = vmatpush.bf16.msra.mxu0 %v4838
        %5863 = vmatpush.bf16.msra.mxu0 %v4820
        %5864 = vmatpush.bf16.msra.mxu0 %v4802
        %5865 = vmatpush.bf16.msra.mxu0 %v4784
        %5866 = vmatpush.bf16.msra.mxu0 %v4766
        %5867 = vmatpush.bf16.msra.mxu0 %v4748
        %5868 = vmatpush.bf16.msra.mxu0 %v4730
        %5869 = vmatpush.bf16.msra.mxu0 %v4712
        %5870 = vmatmul.bf16.gmra.mxu0 %v492
        %v5871 = vpop.f32.mrf.mxu0
        %v5872 = vadd.f32 %v5859, %v5871
        %v5873 = vpop.f32.mrf.mxu0
        %5874 = vdwg.mxu0
        %5875 = vmatpush.bf16.msra.mxu0 %v4119
        %5876 = vmatpush.bf16.msra.mxu0 %v4101
        %5877 = vmatpush.bf16.msra.mxu0 %v4083
        %5878 = vmatpush.bf16.msra.mxu0 %v4065
        %5879 = vmatpush.bf16.msra.mxu0 %v4047
        %5880 = vmatpush.bf16.msra.mxu0 %v4029
        %5881 = vmatpush.bf16.msra.mxu0 %v4011
        %5882 = vmatpush.bf16.msra.mxu0 %v3993
        %5883 = vmatmul.bf16.gmra.mxu0 %v487
        %v5884 = vpop.f32.mrf.mxu0
        %v5885 = vadd.f32 %v1365, %v5884
        %v5886 = vpop.f32.mrf.mxu0
        %5887 = vdwg.mxu0
        %5888 = vmatpush.bf16.msra.mxu0 %v4263
        %5889 = vmatpush.bf16.msra.mxu0 %v4245
        %5890 = vmatpush.bf16.msra.mxu0 %v4227
        %5891 = vmatpush.bf16.msra.mxu0 %v4209
        %5892 = vmatpush.bf16.msra.mxu0 %v4191
        %5893 = vmatpush.bf16.msra.mxu0 %v4173
        %5894 = vmatpush.bf16.msra.mxu0 %v4155
        %5895 = vmatpush.bf16.msra.mxu0 %v4137
        %5896 = vmatmul.bf16.gmra.mxu0 %v488
        %v5897 = vpop.f32.mrf.mxu0
        %v5898 = vadd.f32 %v5885, %v5897
        %v5899 = vpop.f32.mrf.mxu0
        %5900 = vdwg.mxu0
        %5901 = vmatpush.bf16.msra.mxu0 %v4407
        %5902 = vmatpush.bf16.msra.mxu0 %v4389
        %5903 = vmatpush.bf16.msra.mxu0 %v4371
        %5904 = vmatpush.bf16.msra.mxu0 %v4353
        %5905 = vmatpush.bf16.msra.mxu0 %v4335
        %5906 = vmatpush.bf16.msra.mxu0 %v4317
        %5907 = vmatpush.bf16.msra.mxu0 %v4299
        %5908 = vmatpush.bf16.msra.mxu0 %v4281
        %5909 = vmatmul.bf16.gmra.mxu0 %v489
        %v5910 = vpop.f32.mrf.mxu0
        %v5911 = vadd.f32 %v5898, %v5910
        %v5912 = vpop.f32.mrf.mxu0
        %5913 = vdwg.mxu0
        %5914 = vmatpush.bf16.msra.mxu0 %v4551
        %5915 = vmatpush.bf16.msra.mxu0 %v4533
        %5916 = vmatpush.bf16.msra.mxu0 %v4515
        %5917 = vmatpush.bf16.msra.mxu0 %v4497
        %5918 = vmatpush.bf16.msra.mxu0 %v4479
        %5919 = vmatpush.bf16.msra.mxu0 %v4461
        %5920 = vmatpush.bf16.msra.mxu0 %v4443
        %5921 = vmatpush.bf16.msra.mxu0 %v4425
        %5922 = vmatmul.bf16.gmra.mxu0 %v490
        %v5923 = vpop.f32.mrf.mxu0
        %v5924 = vadd.f32 %v5911, %v5923
        %v5925 = vpop.f32.mrf.mxu0
        %5926 = vdwg.mxu0
        %5927 = vmatpush.bf16.msra.mxu0 %v4695
        %5928 = vmatpush.bf16.msra.mxu0 %v4677
        %5929 = vmatpush.bf16.msra.mxu0 %v4659
        %5930 = vmatpush.bf16.msra.mxu0 %v4641
        %5931 = vmatpush.bf16.msra.mxu0 %v4623
        %5932 = vmatpush.bf16.msra.mxu0 %v4605
        %5933 = vmatpush.bf16.msra.mxu0 %v4587
        %5934 = vmatpush.bf16.msra.mxu0 %v4569
        %5935 = vmatmul.bf16.gmra.mxu0 %v491
        %v5936 = vpop.f32.mrf.mxu0
        %v5937 = vadd.f32 %v5924, %v5936
        %v5938 = vpop.f32.mrf.mxu0
        %5939 = vdwg.mxu0
        %5940 = vmatpush.bf16.msra.mxu0 %v4839
        %5941 = vmatpush.bf16.msra.mxu0 %v4821
        %5942 = vmatpush.bf16.msra.mxu0 %v4803
        %5943 = vmatpush.bf16.msra.mxu0 %v4785
        %5944 = vmatpush.bf16.msra.mxu0 %v4767
        %5945 = vmatpush.bf16.msra.mxu0 %v4749
        %5946 = vmatpush.bf16.msra.mxu0 %v4731
        %5947 = vmatpush.bf16.msra.mxu0 %v4713
        %5948 = vmatmul.bf16.gmra.mxu0 %v492
        %v5949 = vpop.f32.mrf.mxu0
        %v5950 = vadd.f32 %v5937, %v5949
        %v5951 = vpop.f32.mrf.mxu0
        %5952 = vdwg.mxu0
        %5953 = vmatpush.bf16.msra.mxu0 %v4120
        %5954 = vmatpush.bf16.msra.mxu0 %v4102
        %5955 = vmatpush.bf16.msra.mxu0 %v4084
        %5956 = vmatpush.bf16.msra.mxu0 %v4066
        %5957 = vmatpush.bf16.msra.mxu0 %v4048
        %5958 = vmatpush.bf16.msra.mxu0 %v4030
        %5959 = vmatpush.bf16.msra.mxu0 %v4012
        %5960 = vmatpush.bf16.msra.mxu0 %v3994
        %5961 = vmatmul.bf16.gmra.mxu0 %v487
        %v5962 = vpop.f32.mrf.mxu0
        %v5963 = vadd.f32 %v1366, %v5962
        %v5964 = vpop.f32.mrf.mxu0
        %5965 = vdwg.mxu0
        %5966 = vmatpush.bf16.msra.mxu0 %v4264
        %5967 = vmatpush.bf16.msra.mxu0 %v4246
        %5968 = vmatpush.bf16.msra.mxu0 %v4228
        %5969 = vmatpush.bf16.msra.mxu0 %v4210
        %5970 = vmatpush.bf16.msra.mxu0 %v4192
        %5971 = vmatpush.bf16.msra.mxu0 %v4174
        %5972 = vmatpush.bf16.msra.mxu0 %v4156
        %5973 = vmatpush.bf16.msra.mxu0 %v4138
        %5974 = vmatmul.bf16.gmra.mxu0 %v488
        %v5975 = vpop.f32.mrf.mxu0
        %v5976 = vadd.f32 %v5963, %v5975
        %v5977 = vpop.f32.mrf.mxu0
        %5978 = vdwg.mxu0
        %5979 = vmatpush.bf16.msra.mxu0 %v4408
        %5980 = vmatpush.bf16.msra.mxu0 %v4390
        %5981 = vmatpush.bf16.msra.mxu0 %v4372
        %5982 = vmatpush.bf16.msra.mxu0 %v4354
        %5983 = vmatpush.bf16.msra.mxu0 %v4336
        %5984 = vmatpush.bf16.msra.mxu0 %v4318
        %5985 = vmatpush.bf16.msra.mxu0 %v4300
        %5986 = vmatpush.bf16.msra.mxu0 %v4282
        %5987 = vmatmul.bf16.gmra.mxu0 %v489
        %v5988 = vpop.f32.mrf.mxu0
        %v5989 = vadd.f32 %v5976, %v5988
        %v5990 = vpop.f32.mrf.mxu0
        %5991 = vdwg.mxu0
        %5992 = vmatpush.bf16.msra.mxu0 %v4552
        %5993 = vmatpush.bf16.msra.mxu0 %v4534
        %5994 = vmatpush.bf16.msra.mxu0 %v4516
        %5995 = vmatpush.bf16.msra.mxu0 %v4498
        %5996 = vmatpush.bf16.msra.mxu0 %v4480
        %5997 = vmatpush.bf16.msra.mxu0 %v4462
        %5998 = vmatpush.bf16.msra.mxu0 %v4444
        %5999 = vmatpush.bf16.msra.mxu0 %v4426
        %6000 = vmatmul.bf16.gmra.mxu0 %v490
        %v6001 = vpop.f32.mrf.mxu0
        %v6002 = vadd.f32 %v5989, %v6001
        %v6003 = vpop.f32.mrf.mxu0
        %6004 = vdwg.mxu0
        %6005 = vmatpush.bf16.msra.mxu0 %v4696
        %6006 = vmatpush.bf16.msra.mxu0 %v4678
        %6007 = vmatpush.bf16.msra.mxu0 %v4660
        %6008 = vmatpush.bf16.msra.mxu0 %v4642
        %6009 = vmatpush.bf16.msra.mxu0 %v4624
        %6010 = vmatpush.bf16.msra.mxu0 %v4606
        %6011 = vmatpush.bf16.msra.mxu0 %v4588
        %6012 = vmatpush.bf16.msra.mxu0 %v4570
        %6013 = vmatmul.bf16.gmra.mxu0 %v491
        %v6014 = vpop.f32.mrf.mxu0
        %v6015 = vadd.f32 %v6002, %v6014
        %v6016 = vpop.f32.mrf.mxu0
        %6017 = vdwg.mxu0
        %6018 = vmatpush.bf16.msra.mxu0 %v4840
        %6019 = vmatpush.bf16.msra.mxu0 %v4822
        %6020 = vmatpush.bf16.msra.mxu0 %v4804
        %6021 = vmatpush.bf16.msra.mxu0 %v4786
        %6022 = vmatpush.bf16.msra.mxu0 %v4768
        %6023 = vmatpush.bf16.msra.mxu0 %v4750
        %6024 = vmatpush.bf16.msra.mxu0 %v4732
        %6025 = vmatpush.bf16.msra.mxu0 %v4714
        %6026 = vmatmul.bf16.gmra.mxu0 %v492
        %v6027 = vpop.f32.mrf.mxu0
        %v6028 = vadd.f32 %v6015, %v6027
        %v6029 = vpop.f32.mrf.mxu0
        %6030 = vdwg.mxu0
        %6031 = vmatpush.bf16.msra.mxu0 %v4121
        %6032 = vmatpush.bf16.msra.mxu0 %v4103
        %6033 = vmatpush.bf16.msra.mxu0 %v4085
        %6034 = vmatpush.bf16.msra.mxu0 %v4067
        %6035 = vmatpush.bf16.msra.mxu0 %v4049
        %6036 = vmatpush.bf16.msra.mxu0 %v4031
        %6037 = vmatpush.bf16.msra.mxu0 %v4013
        %6038 = vmatpush.bf16.msra.mxu0 %v3995
        %6039 = vmatmul.bf16.gmra.mxu0 %v487
        %v6040 = vpop.f32.mrf.mxu0
        %v6041 = vadd.f32 %v1367, %v6040
        %v6042 = vpop.f32.mrf.mxu0
        %6043 = vdwg.mxu0
        %6044 = vmatpush.bf16.msra.mxu0 %v4265
        %6045 = vmatpush.bf16.msra.mxu0 %v4247
        %6046 = vmatpush.bf16.msra.mxu0 %v4229
        %6047 = vmatpush.bf16.msra.mxu0 %v4211
        %6048 = vmatpush.bf16.msra.mxu0 %v4193
        %6049 = vmatpush.bf16.msra.mxu0 %v4175
        %6050 = vmatpush.bf16.msra.mxu0 %v4157
        %6051 = vmatpush.bf16.msra.mxu0 %v4139
        %6052 = vmatmul.bf16.gmra.mxu0 %v488
        %v6053 = vpop.f32.mrf.mxu0
        %v6054 = vadd.f32 %v6041, %v6053
        %v6055 = vpop.f32.mrf.mxu0
        %6056 = vdwg.mxu0
        %6057 = vmatpush.bf16.msra.mxu0 %v4409
        %6058 = vmatpush.bf16.msra.mxu0 %v4391
        %6059 = vmatpush.bf16.msra.mxu0 %v4373
        %6060 = vmatpush.bf16.msra.mxu0 %v4355
        %6061 = vmatpush.bf16.msra.mxu0 %v4337
        %6062 = vmatpush.bf16.msra.mxu0 %v4319
        %6063 = vmatpush.bf16.msra.mxu0 %v4301
        %6064 = vmatpush.bf16.msra.mxu0 %v4283
        %6065 = vmatmul.bf16.gmra.mxu0 %v489
        %v6066 = vpop.f32.mrf.mxu0
        %v6067 = vadd.f32 %v6054, %v6066
        %v6068 = vpop.f32.mrf.mxu0
        %6069 = vdwg.mxu0
        %6070 = vmatpush.bf16.msra.mxu0 %v4553
        %6071 = vmatpush.bf16.msra.mxu0 %v4535
        %6072 = vmatpush.bf16.msra.mxu0 %v4517
        %6073 = vmatpush.bf16.msra.mxu0 %v4499
        %6074 = vmatpush.bf16.msra.mxu0 %v4481
        %6075 = vmatpush.bf16.msra.mxu0 %v4463
        %6076 = vmatpush.bf16.msra.mxu0 %v4445
        %6077 = vmatpush.bf16.msra.mxu0 %v4427
        %6078 = vmatmul.bf16.gmra.mxu0 %v490
        %v6079 = vpop.f32.mrf.mxu0
        %v6080 = vadd.f32 %v6067, %v6079
        %v6081 = vpop.f32.mrf.mxu0
        %6082 = vdwg.mxu0
        %6083 = vmatpush.bf16.msra.mxu0 %v4697
        %6084 = vmatpush.bf16.msra.mxu0 %v4679
        %6085 = vmatpush.bf16.msra.mxu0 %v4661
        %6086 = vmatpush.bf16.msra.mxu0 %v4643
        %6087 = vmatpush.bf16.msra.mxu0 %v4625
        %6088 = vmatpush.bf16.msra.mxu0 %v4607
        %6089 = vmatpush.bf16.msra.mxu0 %v4589
        %6090 = vmatpush.bf16.msra.mxu0 %v4571
        %6091 = vmatmul.bf16.gmra.mxu0 %v491
        %v6092 = vpop.f32.mrf.mxu0
        %v6093 = vadd.f32 %v6080, %v6092
        %v6094 = vpop.f32.mrf.mxu0
        %6095 = vdwg.mxu0
        %6096 = vmatpush.bf16.msra.mxu0 %v4841
        %6097 = vmatpush.bf16.msra.mxu0 %v4823
        %6098 = vmatpush.bf16.msra.mxu0 %v4805
        %6099 = vmatpush.bf16.msra.mxu0 %v4787
        %6100 = vmatpush.bf16.msra.mxu0 %v4769
        %6101 = vmatpush.bf16.msra.mxu0 %v4751
        %6102 = vmatpush.bf16.msra.mxu0 %v4733
        %6103 = vmatpush.bf16.msra.mxu0 %v4715
        %6104 = vmatmul.bf16.gmra.mxu0 %v492
        %v6105 = vpop.f32.mrf.mxu0
        %v6106 = vadd.f32 %v6093, %v6105
        %v6107 = vpop.f32.mrf.mxu0
        %6108 = vdwg.mxu0
        %6109 = vmatpush.bf16.msra.mxu0 %v4122
        %6110 = vmatpush.bf16.msra.mxu0 %v4104
        %6111 = vmatpush.bf16.msra.mxu0 %v4086
        %6112 = vmatpush.bf16.msra.mxu0 %v4068
        %6113 = vmatpush.bf16.msra.mxu0 %v4050
        %6114 = vmatpush.bf16.msra.mxu0 %v4032
        %6115 = vmatpush.bf16.msra.mxu0 %v4014
        %6116 = vmatpush.bf16.msra.mxu0 %v3996
        %6117 = vmatmul.bf16.gmra.mxu0 %v487
        %v6118 = vpop.f32.mrf.mxu0
        %v6119 = vadd.f32 %v1368, %v6118
        %v6120 = vpop.f32.mrf.mxu0
        %6121 = vdwg.mxu0
        %6122 = vmatpush.bf16.msra.mxu0 %v4266
        %6123 = vmatpush.bf16.msra.mxu0 %v4248
        %6124 = vmatpush.bf16.msra.mxu0 %v4230
        %6125 = vmatpush.bf16.msra.mxu0 %v4212
        %6126 = vmatpush.bf16.msra.mxu0 %v4194
        %6127 = vmatpush.bf16.msra.mxu0 %v4176
        %6128 = vmatpush.bf16.msra.mxu0 %v4158
        %6129 = vmatpush.bf16.msra.mxu0 %v4140
        %6130 = vmatmul.bf16.gmra.mxu0 %v488
        %v6131 = vpop.f32.mrf.mxu0
        %v6132 = vadd.f32 %v6119, %v6131
        %v6133 = vpop.f32.mrf.mxu0
        %6134 = vdwg.mxu0
        %6135 = vmatpush.bf16.msra.mxu0 %v4410
        %6136 = vmatpush.bf16.msra.mxu0 %v4392
        %6137 = vmatpush.bf16.msra.mxu0 %v4374
        %6138 = vmatpush.bf16.msra.mxu0 %v4356
        %6139 = vmatpush.bf16.msra.mxu0 %v4338
        %6140 = vmatpush.bf16.msra.mxu0 %v4320
        %6141 = vmatpush.bf16.msra.mxu0 %v4302
        %6142 = vmatpush.bf16.msra.mxu0 %v4284
        %6143 = vmatmul.bf16.gmra.mxu0 %v489
        %v6144 = vpop.f32.mrf.mxu0
        %v6145 = vadd.f32 %v6132, %v6144
        %v6146 = vpop.f32.mrf.mxu0
        %6147 = vdwg.mxu0
        %6148 = vmatpush.bf16.msra.mxu0 %v4554
        %6149 = vmatpush.bf16.msra.mxu0 %v4536
        %6150 = vmatpush.bf16.msra.mxu0 %v4518
        %6151 = vmatpush.bf16.msra.mxu0 %v4500
        %6152 = vmatpush.bf16.msra.mxu0 %v4482
        %6153 = vmatpush.bf16.msra.mxu0 %v4464
        %6154 = vmatpush.bf16.msra.mxu0 %v4446
        %6155 = vmatpush.bf16.msra.mxu0 %v4428
        %6156 = vmatmul.bf16.gmra.mxu0 %v490
        %v6157 = vpop.f32.mrf.mxu0
        %v6158 = vadd.f32 %v6145, %v6157
        %v6159 = vpop.f32.mrf.mxu0
        %6160 = vdwg.mxu0
        %6161 = vmatpush.bf16.msra.mxu0 %v4698
        %6162 = vmatpush.bf16.msra.mxu0 %v4680
        %6163 = vmatpush.bf16.msra.mxu0 %v4662
        %6164 = vmatpush.bf16.msra.mxu0 %v4644
        %6165 = vmatpush.bf16.msra.mxu0 %v4626
        %6166 = vmatpush.bf16.msra.mxu0 %v4608
        %6167 = vmatpush.bf16.msra.mxu0 %v4590
        %6168 = vmatpush.bf16.msra.mxu0 %v4572
        %6169 = vmatmul.bf16.gmra.mxu0 %v491
        %v6170 = vpop.f32.mrf.mxu0
        %v6171 = vadd.f32 %v6158, %v6170
        %v6172 = vpop.f32.mrf.mxu0
        %6173 = vdwg.mxu0
        %6174 = vmatpush.bf16.msra.mxu0 %v4842
        %6175 = vmatpush.bf16.msra.mxu0 %v4824
        %6176 = vmatpush.bf16.msra.mxu0 %v4806
        %6177 = vmatpush.bf16.msra.mxu0 %v4788
        %6178 = vmatpush.bf16.msra.mxu0 %v4770
        %6179 = vmatpush.bf16.msra.mxu0 %v4752
        %6180 = vmatpush.bf16.msra.mxu0 %v4734
        %6181 = vmatpush.bf16.msra.mxu0 %v4716
        %6182 = vmatmul.bf16.gmra.mxu0 %v492
        %v6183 = vpop.f32.mrf.mxu0
        %v6184 = vadd.f32 %v6171, %v6183
        %v6185 = vpop.f32.mrf.mxu0
        %6186 = vdwg.mxu0
        %6187 = vmatpush.bf16.msra.mxu0 %v4123
        %6188 = vmatpush.bf16.msra.mxu0 %v4105
        %6189 = vmatpush.bf16.msra.mxu0 %v4087
        %6190 = vmatpush.bf16.msra.mxu0 %v4069
        %6191 = vmatpush.bf16.msra.mxu0 %v4051
        %6192 = vmatpush.bf16.msra.mxu0 %v4033
        %6193 = vmatpush.bf16.msra.mxu0 %v4015
        %6194 = vmatpush.bf16.msra.mxu0 %v3997
        %6195 = vmatmul.bf16.gmra.mxu0 %v487
        %v6196 = vpop.f32.mrf.mxu0
        %v6197 = vadd.f32 %v1369, %v6196
        %v6198 = vpop.f32.mrf.mxu0
        %6199 = vdwg.mxu0
        %6200 = vmatpush.bf16.msra.mxu0 %v4267
        %6201 = vmatpush.bf16.msra.mxu0 %v4249
        %6202 = vmatpush.bf16.msra.mxu0 %v4231
        %6203 = vmatpush.bf16.msra.mxu0 %v4213
        %6204 = vmatpush.bf16.msra.mxu0 %v4195
        %6205 = vmatpush.bf16.msra.mxu0 %v4177
        %6206 = vmatpush.bf16.msra.mxu0 %v4159
        %6207 = vmatpush.bf16.msra.mxu0 %v4141
        %6208 = vmatmul.bf16.gmra.mxu0 %v488
        %v6209 = vpop.f32.mrf.mxu0
        %v6210 = vadd.f32 %v6197, %v6209
        %v6211 = vpop.f32.mrf.mxu0
        %6212 = vdwg.mxu0
        %6213 = vmatpush.bf16.msra.mxu0 %v4411
        %6214 = vmatpush.bf16.msra.mxu0 %v4393
        %6215 = vmatpush.bf16.msra.mxu0 %v4375
        %6216 = vmatpush.bf16.msra.mxu0 %v4357
        %6217 = vmatpush.bf16.msra.mxu0 %v4339
        %6218 = vmatpush.bf16.msra.mxu0 %v4321
        %6219 = vmatpush.bf16.msra.mxu0 %v4303
        %6220 = vmatpush.bf16.msra.mxu0 %v4285
        %6221 = vmatmul.bf16.gmra.mxu0 %v489
        %v6222 = vpop.f32.mrf.mxu0
        %v6223 = vadd.f32 %v6210, %v6222
        %v6224 = vpop.f32.mrf.mxu0
        %6225 = vdwg.mxu0
        %6226 = vmatpush.bf16.msra.mxu0 %v4555
        %6227 = vmatpush.bf16.msra.mxu0 %v4537
        %6228 = vmatpush.bf16.msra.mxu0 %v4519
        %6229 = vmatpush.bf16.msra.mxu0 %v4501
        %6230 = vmatpush.bf16.msra.mxu0 %v4483
        %6231 = vmatpush.bf16.msra.mxu0 %v4465
        %6232 = vmatpush.bf16.msra.mxu0 %v4447
        %6233 = vmatpush.bf16.msra.mxu0 %v4429
        %6234 = vmatmul.bf16.gmra.mxu0 %v490
        %v6235 = vpop.f32.mrf.mxu0
        %v6236 = vadd.f32 %v6223, %v6235
        %v6237 = vpop.f32.mrf.mxu0
        %6238 = vdwg.mxu0
        %6239 = vmatpush.bf16.msra.mxu0 %v4699
        %6240 = vmatpush.bf16.msra.mxu0 %v4681
        %6241 = vmatpush.bf16.msra.mxu0 %v4663
        %6242 = vmatpush.bf16.msra.mxu0 %v4645
        %6243 = vmatpush.bf16.msra.mxu0 %v4627
        %6244 = vmatpush.bf16.msra.mxu0 %v4609
        %6245 = vmatpush.bf16.msra.mxu0 %v4591
        %6246 = vmatpush.bf16.msra.mxu0 %v4573
        %6247 = vmatmul.bf16.gmra.mxu0 %v491
        %v6248 = vpop.f32.mrf.mxu0
        %v6249 = vadd.f32 %v6236, %v6248
        %v6250 = vpop.f32.mrf.mxu0
        %6251 = vdwg.mxu0
        %6252 = vmatpush.bf16.msra.mxu0 %v4843
        %6253 = vmatpush.bf16.msra.mxu0 %v4825
        %6254 = vmatpush.bf16.msra.mxu0 %v4807
        %6255 = vmatpush.bf16.msra.mxu0 %v4789
        %6256 = vmatpush.bf16.msra.mxu0 %v4771
        %6257 = vmatpush.bf16.msra.mxu0 %v4753
        %6258 = vmatpush.bf16.msra.mxu0 %v4735
        %6259 = vmatpush.bf16.msra.mxu0 %v4717
        %6260 = vmatmul.bf16.gmra.mxu0 %v492
        %v6261 = vpop.f32.mrf.mxu0
        %v6262 = vadd.f32 %v6249, %v6261
        %v6263 = vpop.f32.mrf.mxu0
        %6264 = vdwg.mxu0
        %6265 = vmatpush.bf16.msra.mxu0 %v4124
        %6266 = vmatpush.bf16.msra.mxu0 %v4106
        %6267 = vmatpush.bf16.msra.mxu0 %v4088
        %6268 = vmatpush.bf16.msra.mxu0 %v4070
        %6269 = vmatpush.bf16.msra.mxu0 %v4052
        %6270 = vmatpush.bf16.msra.mxu0 %v4034
        %6271 = vmatpush.bf16.msra.mxu0 %v4016
        %6272 = vmatpush.bf16.msra.mxu0 %v3998
        %6273 = vmatmul.bf16.gmra.mxu0 %v487
        %v6274 = vpop.f32.mrf.mxu0
        %v6275 = vadd.f32 %v1370, %v6274
        %v6276 = vpop.f32.mrf.mxu0
        %6277 = vdwg.mxu0
        %6278 = vmatpush.bf16.msra.mxu0 %v4268
        %6279 = vmatpush.bf16.msra.mxu0 %v4250
        %6280 = vmatpush.bf16.msra.mxu0 %v4232
        %6281 = vmatpush.bf16.msra.mxu0 %v4214
        %6282 = vmatpush.bf16.msra.mxu0 %v4196
        %6283 = vmatpush.bf16.msra.mxu0 %v4178
        %6284 = vmatpush.bf16.msra.mxu0 %v4160
        %6285 = vmatpush.bf16.msra.mxu0 %v4142
        %6286 = vmatmul.bf16.gmra.mxu0 %v488
        %v6287 = vpop.f32.mrf.mxu0
        %v6288 = vadd.f32 %v6275, %v6287
        %v6289 = vpop.f32.mrf.mxu0
        %6290 = vdwg.mxu0
        %6291 = vmatpush.bf16.msra.mxu0 %v4412
        %6292 = vmatpush.bf16.msra.mxu0 %v4394
        %6293 = vmatpush.bf16.msra.mxu0 %v4376
        %6294 = vmatpush.bf16.msra.mxu0 %v4358
        %6295 = vmatpush.bf16.msra.mxu0 %v4340
        %6296 = vmatpush.bf16.msra.mxu0 %v4322
        %6297 = vmatpush.bf16.msra.mxu0 %v4304
        %6298 = vmatpush.bf16.msra.mxu0 %v4286
        %6299 = vmatmul.bf16.gmra.mxu0 %v489
        %v6300 = vpop.f32.mrf.mxu0
        %v6301 = vadd.f32 %v6288, %v6300
        %v6302 = vpop.f32.mrf.mxu0
        %6303 = vdwg.mxu0
        %6304 = vmatpush.bf16.msra.mxu0 %v4556
        %6305 = vmatpush.bf16.msra.mxu0 %v4538
        %6306 = vmatpush.bf16.msra.mxu0 %v4520
        %6307 = vmatpush.bf16.msra.mxu0 %v4502
        %6308 = vmatpush.bf16.msra.mxu0 %v4484
        %6309 = vmatpush.bf16.msra.mxu0 %v4466
        %6310 = vmatpush.bf16.msra.mxu0 %v4448
        %6311 = vmatpush.bf16.msra.mxu0 %v4430
        %6312 = vmatmul.bf16.gmra.mxu0 %v490
        %v6313 = vpop.f32.mrf.mxu0
        %v6314 = vadd.f32 %v6301, %v6313
        %v6315 = vpop.f32.mrf.mxu0
        %6316 = vdwg.mxu0
        %6317 = vmatpush.bf16.msra.mxu0 %v4700
        %6318 = vmatpush.bf16.msra.mxu0 %v4682
        %6319 = vmatpush.bf16.msra.mxu0 %v4664
        %6320 = vmatpush.bf16.msra.mxu0 %v4646
        %6321 = vmatpush.bf16.msra.mxu0 %v4628
        %6322 = vmatpush.bf16.msra.mxu0 %v4610
        %6323 = vmatpush.bf16.msra.mxu0 %v4592
        %6324 = vmatpush.bf16.msra.mxu0 %v4574
        %6325 = vmatmul.bf16.gmra.mxu0 %v491
        %v6326 = vpop.f32.mrf.mxu0
        %v6327 = vadd.f32 %v6314, %v6326
        %v6328 = vpop.f32.mrf.mxu0
        %6329 = vdwg.mxu0
        %6330 = vmatpush.bf16.msra.mxu0 %v4844
        %6331 = vmatpush.bf16.msra.mxu0 %v4826
        %6332 = vmatpush.bf16.msra.mxu0 %v4808
        %6333 = vmatpush.bf16.msra.mxu0 %v4790
        %6334 = vmatpush.bf16.msra.mxu0 %v4772
        %6335 = vmatpush.bf16.msra.mxu0 %v4754
        %6336 = vmatpush.bf16.msra.mxu0 %v4736
        %6337 = vmatpush.bf16.msra.mxu0 %v4718
        %6338 = vmatmul.bf16.gmra.mxu0 %v492
        %v6339 = vpop.f32.mrf.mxu0
        %v6340 = vadd.f32 %v6327, %v6339
        %v6341 = vpop.f32.mrf.mxu0
        %6342 = vdwg.mxu0
        %6343 = vmatpush.bf16.msra.mxu0 %v4125
        %6344 = vmatpush.bf16.msra.mxu0 %v4107
        %6345 = vmatpush.bf16.msra.mxu0 %v4089
        %6346 = vmatpush.bf16.msra.mxu0 %v4071
        %6347 = vmatpush.bf16.msra.mxu0 %v4053
        %6348 = vmatpush.bf16.msra.mxu0 %v4035
        %6349 = vmatpush.bf16.msra.mxu0 %v4017
        %6350 = vmatpush.bf16.msra.mxu0 %v3999
        %6351 = vmatmul.bf16.gmra.mxu0 %v487
        %v6352 = vpop.f32.mrf.mxu0
        %v6353 = vadd.f32 %v1371, %v6352
        %v6354 = vpop.f32.mrf.mxu0
        %6355 = vdwg.mxu0
        %6356 = vmatpush.bf16.msra.mxu0 %v4269
        %6357 = vmatpush.bf16.msra.mxu0 %v4251
        %6358 = vmatpush.bf16.msra.mxu0 %v4233
        %6359 = vmatpush.bf16.msra.mxu0 %v4215
        %6360 = vmatpush.bf16.msra.mxu0 %v4197
        %6361 = vmatpush.bf16.msra.mxu0 %v4179
        %6362 = vmatpush.bf16.msra.mxu0 %v4161
        %6363 = vmatpush.bf16.msra.mxu0 %v4143
        %6364 = vmatmul.bf16.gmra.mxu0 %v488
        %v6365 = vpop.f32.mrf.mxu0
        %v6366 = vadd.f32 %v6353, %v6365
        %v6367 = vpop.f32.mrf.mxu0
        %6368 = vdwg.mxu0
        %6369 = vmatpush.bf16.msra.mxu0 %v4413
        %6370 = vmatpush.bf16.msra.mxu0 %v4395
        %6371 = vmatpush.bf16.msra.mxu0 %v4377
        %6372 = vmatpush.bf16.msra.mxu0 %v4359
        %6373 = vmatpush.bf16.msra.mxu0 %v4341
        %6374 = vmatpush.bf16.msra.mxu0 %v4323
        %6375 = vmatpush.bf16.msra.mxu0 %v4305
        %6376 = vmatpush.bf16.msra.mxu0 %v4287
        %6377 = vmatmul.bf16.gmra.mxu0 %v489
        %v6378 = vpop.f32.mrf.mxu0
        %v6379 = vadd.f32 %v6366, %v6378
        %v6380 = vpop.f32.mrf.mxu0
        %6381 = vdwg.mxu0
        %6382 = vmatpush.bf16.msra.mxu0 %v4557
        %6383 = vmatpush.bf16.msra.mxu0 %v4539
        %6384 = vmatpush.bf16.msra.mxu0 %v4521
        %6385 = vmatpush.bf16.msra.mxu0 %v4503
        %6386 = vmatpush.bf16.msra.mxu0 %v4485
        %6387 = vmatpush.bf16.msra.mxu0 %v4467
        %6388 = vmatpush.bf16.msra.mxu0 %v4449
        %6389 = vmatpush.bf16.msra.mxu0 %v4431
        %6390 = vmatmul.bf16.gmra.mxu0 %v490
        %v6391 = vpop.f32.mrf.mxu0
        %v6392 = vadd.f32 %v6379, %v6391
        %v6393 = vpop.f32.mrf.mxu0
        %6394 = vdwg.mxu0
        %6395 = vmatpush.bf16.msra.mxu0 %v4701
        %6396 = vmatpush.bf16.msra.mxu0 %v4683
        %6397 = vmatpush.bf16.msra.mxu0 %v4665
        %6398 = vmatpush.bf16.msra.mxu0 %v4647
        %6399 = vmatpush.bf16.msra.mxu0 %v4629
        %6400 = vmatpush.bf16.msra.mxu0 %v4611
        %6401 = vmatpush.bf16.msra.mxu0 %v4593
        %6402 = vmatpush.bf16.msra.mxu0 %v4575
        %6403 = vmatmul.bf16.gmra.mxu0 %v491
        %v6404 = vpop.f32.mrf.mxu0
        %v6405 = vadd.f32 %v6392, %v6404
        %v6406 = vpop.f32.mrf.mxu0
        %6407 = vdwg.mxu0
        %6408 = vmatpush.bf16.msra.mxu0 %v4845
        %6409 = vmatpush.bf16.msra.mxu0 %v4827
        %6410 = vmatpush.bf16.msra.mxu0 %v4809
        %6411 = vmatpush.bf16.msra.mxu0 %v4791
        %6412 = vmatpush.bf16.msra.mxu0 %v4773
        %6413 = vmatpush.bf16.msra.mxu0 %v4755
        %6414 = vmatpush.bf16.msra.mxu0 %v4737
        %6415 = vmatpush.bf16.msra.mxu0 %v4719
        %6416 = vmatmul.bf16.gmra.mxu0 %v492
        %v6417 = vpop.f32.mrf.mxu0
        %v6418 = vadd.f32 %v6405, %v6417
        %v6419 = vpop.f32.mrf.mxu0
        %6420 = vdwg.mxu0
        %6421 = vmatpush.bf16.msra.mxu0 %v4126
        %6422 = vmatpush.bf16.msra.mxu0 %v4108
        %6423 = vmatpush.bf16.msra.mxu0 %v4090
        %6424 = vmatpush.bf16.msra.mxu0 %v4072
        %6425 = vmatpush.bf16.msra.mxu0 %v4054
        %6426 = vmatpush.bf16.msra.mxu0 %v4036
        %6427 = vmatpush.bf16.msra.mxu0 %v4018
        %6428 = vmatpush.bf16.msra.mxu0 %v4000
        %6429 = vmatmul.bf16.gmra.mxu0 %v487
        %v6430 = vpop.f32.mrf.mxu0
        %v6431 = vadd.f32 %v1372, %v6430
        %v6432 = vpop.f32.mrf.mxu0
        %6433 = vdwg.mxu0
        %6434 = vmatpush.bf16.msra.mxu0 %v4270
        %6435 = vmatpush.bf16.msra.mxu0 %v4252
        %6436 = vmatpush.bf16.msra.mxu0 %v4234
        %6437 = vmatpush.bf16.msra.mxu0 %v4216
        %6438 = vmatpush.bf16.msra.mxu0 %v4198
        %6439 = vmatpush.bf16.msra.mxu0 %v4180
        %6440 = vmatpush.bf16.msra.mxu0 %v4162
        %6441 = vmatpush.bf16.msra.mxu0 %v4144
        %6442 = vmatmul.bf16.gmra.mxu0 %v488
        %v6443 = vpop.f32.mrf.mxu0
        %v6444 = vadd.f32 %v6431, %v6443
        %v6445 = vpop.f32.mrf.mxu0
        %6446 = vdwg.mxu0
        %6447 = vmatpush.bf16.msra.mxu0 %v4414
        %6448 = vmatpush.bf16.msra.mxu0 %v4396
        %6449 = vmatpush.bf16.msra.mxu0 %v4378
        %6450 = vmatpush.bf16.msra.mxu0 %v4360
        %6451 = vmatpush.bf16.msra.mxu0 %v4342
        %6452 = vmatpush.bf16.msra.mxu0 %v4324
        %6453 = vmatpush.bf16.msra.mxu0 %v4306
        %6454 = vmatpush.bf16.msra.mxu0 %v4288
        %6455 = vmatmul.bf16.gmra.mxu0 %v489
        %v6456 = vpop.f32.mrf.mxu0
        %v6457 = vadd.f32 %v6444, %v6456
        %v6458 = vpop.f32.mrf.mxu0
        %6459 = vdwg.mxu0
        %6460 = vmatpush.bf16.msra.mxu0 %v4558
        %6461 = vmatpush.bf16.msra.mxu0 %v4540
        %6462 = vmatpush.bf16.msra.mxu0 %v4522
        %6463 = vmatpush.bf16.msra.mxu0 %v4504
        %6464 = vmatpush.bf16.msra.mxu0 %v4486
        %6465 = vmatpush.bf16.msra.mxu0 %v4468
        %6466 = vmatpush.bf16.msra.mxu0 %v4450
        %6467 = vmatpush.bf16.msra.mxu0 %v4432
        %6468 = vmatmul.bf16.gmra.mxu0 %v490
        %v6469 = vpop.f32.mrf.mxu0
        %v6470 = vadd.f32 %v6457, %v6469
        %v6471 = vpop.f32.mrf.mxu0
        %6472 = vdwg.mxu0
        %6473 = vmatpush.bf16.msra.mxu0 %v4702
        %6474 = vmatpush.bf16.msra.mxu0 %v4684
        %6475 = vmatpush.bf16.msra.mxu0 %v4666
        %6476 = vmatpush.bf16.msra.mxu0 %v4648
        %6477 = vmatpush.bf16.msra.mxu0 %v4630
        %6478 = vmatpush.bf16.msra.mxu0 %v4612
        %6479 = vmatpush.bf16.msra.mxu0 %v4594
        %6480 = vmatpush.bf16.msra.mxu0 %v4576
        %6481 = vmatmul.bf16.gmra.mxu0 %v491
        %v6482 = vpop.f32.mrf.mxu0
        %v6483 = vadd.f32 %v6470, %v6482
        %v6484 = vpop.f32.mrf.mxu0
        %6485 = vdwg.mxu0
        %6486 = vmatpush.bf16.msra.mxu0 %v4846
        %6487 = vmatpush.bf16.msra.mxu0 %v4828
        %6488 = vmatpush.bf16.msra.mxu0 %v4810
        %6489 = vmatpush.bf16.msra.mxu0 %v4792
        %6490 = vmatpush.bf16.msra.mxu0 %v4774
        %6491 = vmatpush.bf16.msra.mxu0 %v4756
        %6492 = vmatpush.bf16.msra.mxu0 %v4738
        %6493 = vmatpush.bf16.msra.mxu0 %v4720
        %6494 = vmatmul.bf16.gmra.mxu0 %v492
        %v6495 = vpop.f32.mrf.mxu0
        %v6496 = vadd.f32 %v6483, %v6495
        %v6497 = vpop.f32.mrf.mxu0
        %6498 = vdwg.mxu0
        %6499 = vmatpush.bf16.msra.mxu0 %v4127
        %6500 = vmatpush.bf16.msra.mxu0 %v4109
        %6501 = vmatpush.bf16.msra.mxu0 %v4091
        %6502 = vmatpush.bf16.msra.mxu0 %v4073
        %6503 = vmatpush.bf16.msra.mxu0 %v4055
        %6504 = vmatpush.bf16.msra.mxu0 %v4037
        %6505 = vmatpush.bf16.msra.mxu0 %v4019
        %6506 = vmatpush.bf16.msra.mxu0 %v4001
        %6507 = vmatmul.bf16.gmra.mxu0 %v487
        %v6508 = vpop.f32.mrf.mxu0
        %v6509 = vadd.f32 %v1373, %v6508
        %v6510 = vpop.f32.mrf.mxu0
        %6511 = vdwg.mxu0
        %6512 = vmatpush.bf16.msra.mxu0 %v4271
        %6513 = vmatpush.bf16.msra.mxu0 %v4253
        %6514 = vmatpush.bf16.msra.mxu0 %v4235
        %6515 = vmatpush.bf16.msra.mxu0 %v4217
        %6516 = vmatpush.bf16.msra.mxu0 %v4199
        %6517 = vmatpush.bf16.msra.mxu0 %v4181
        %6518 = vmatpush.bf16.msra.mxu0 %v4163
        %6519 = vmatpush.bf16.msra.mxu0 %v4145
        %6520 = vmatmul.bf16.gmra.mxu0 %v488
        %v6521 = vpop.f32.mrf.mxu0
        %v6522 = vadd.f32 %v6509, %v6521
        %v6523 = vpop.f32.mrf.mxu0
        %6524 = vdwg.mxu0
        %6525 = vmatpush.bf16.msra.mxu0 %v4415
        %6526 = vmatpush.bf16.msra.mxu0 %v4397
        %6527 = vmatpush.bf16.msra.mxu0 %v4379
        %6528 = vmatpush.bf16.msra.mxu0 %v4361
        %6529 = vmatpush.bf16.msra.mxu0 %v4343
        %6530 = vmatpush.bf16.msra.mxu0 %v4325
        %6531 = vmatpush.bf16.msra.mxu0 %v4307
        %6532 = vmatpush.bf16.msra.mxu0 %v4289
        %6533 = vmatmul.bf16.gmra.mxu0 %v489
        %v6534 = vpop.f32.mrf.mxu0
        %v6535 = vadd.f32 %v6522, %v6534
        %v6536 = vpop.f32.mrf.mxu0
        %6537 = vdwg.mxu0
        %6538 = vmatpush.bf16.msra.mxu0 %v4559
        %6539 = vmatpush.bf16.msra.mxu0 %v4541
        %6540 = vmatpush.bf16.msra.mxu0 %v4523
        %6541 = vmatpush.bf16.msra.mxu0 %v4505
        %6542 = vmatpush.bf16.msra.mxu0 %v4487
        %6543 = vmatpush.bf16.msra.mxu0 %v4469
        %6544 = vmatpush.bf16.msra.mxu0 %v4451
        %6545 = vmatpush.bf16.msra.mxu0 %v4433
        %6546 = vmatmul.bf16.gmra.mxu0 %v490
        %v6547 = vpop.f32.mrf.mxu0
        %v6548 = vadd.f32 %v6535, %v6547
        %v6549 = vpop.f32.mrf.mxu0
        %6550 = vdwg.mxu0
        %6551 = vmatpush.bf16.msra.mxu0 %v4703
        %6552 = vmatpush.bf16.msra.mxu0 %v4685
        %6553 = vmatpush.bf16.msra.mxu0 %v4667
        %6554 = vmatpush.bf16.msra.mxu0 %v4649
        %6555 = vmatpush.bf16.msra.mxu0 %v4631
        %6556 = vmatpush.bf16.msra.mxu0 %v4613
        %6557 = vmatpush.bf16.msra.mxu0 %v4595
        %6558 = vmatpush.bf16.msra.mxu0 %v4577
        %6559 = vmatmul.bf16.gmra.mxu0 %v491
        %v6560 = vpop.f32.mrf.mxu0
        %v6561 = vadd.f32 %v6548, %v6560
        %v6562 = vpop.f32.mrf.mxu0
        %6563 = vdwg.mxu0
        %6564 = vmatpush.bf16.msra.mxu0 %v4847
        %6565 = vmatpush.bf16.msra.mxu0 %v4829
        %6566 = vmatpush.bf16.msra.mxu0 %v4811
        %6567 = vmatpush.bf16.msra.mxu0 %v4793
        %6568 = vmatpush.bf16.msra.mxu0 %v4775
        %6569 = vmatpush.bf16.msra.mxu0 %v4757
        %6570 = vmatpush.bf16.msra.mxu0 %v4739
        %6571 = vmatpush.bf16.msra.mxu0 %v4721
        %6572 = vmatmul.bf16.gmra.mxu0 %v492
        %v6573 = vpop.f32.mrf.mxu0
        %v6574 = vadd.f32 %v6561, %v6573
        %v6575 = vpop.f32.mrf.mxu0
        %6576 = vdwg.mxu0
        %6577 = vmatpush.bf16.msra.mxu0 %v4128
        %6578 = vmatpush.bf16.msra.mxu0 %v4110
        %6579 = vmatpush.bf16.msra.mxu0 %v4092
        %6580 = vmatpush.bf16.msra.mxu0 %v4074
        %6581 = vmatpush.bf16.msra.mxu0 %v4056
        %6582 = vmatpush.bf16.msra.mxu0 %v4038
        %6583 = vmatpush.bf16.msra.mxu0 %v4020
        %6584 = vmatpush.bf16.msra.mxu0 %v4002
        %6585 = vmatmul.bf16.gmra.mxu0 %v487
        %v6586 = vpop.f32.mrf.mxu0
        %v6587 = vadd.f32 %v1374, %v6586
        %v6588 = vpop.f32.mrf.mxu0
        %6589 = vdwg.mxu0
        %6590 = vmatpush.bf16.msra.mxu0 %v4272
        %6591 = vmatpush.bf16.msra.mxu0 %v4254
        %6592 = vmatpush.bf16.msra.mxu0 %v4236
        %6593 = vmatpush.bf16.msra.mxu0 %v4218
        %6594 = vmatpush.bf16.msra.mxu0 %v4200
        %6595 = vmatpush.bf16.msra.mxu0 %v4182
        %6596 = vmatpush.bf16.msra.mxu0 %v4164
        %6597 = vmatpush.bf16.msra.mxu0 %v4146
        %6598 = vmatmul.bf16.gmra.mxu0 %v488
        %v6599 = vpop.f32.mrf.mxu0
        %v6600 = vadd.f32 %v6587, %v6599
        %v6601 = vpop.f32.mrf.mxu0
        %6602 = vdwg.mxu0
        %6603 = vmatpush.bf16.msra.mxu0 %v4416
        %6604 = vmatpush.bf16.msra.mxu0 %v4398
        %6605 = vmatpush.bf16.msra.mxu0 %v4380
        %6606 = vmatpush.bf16.msra.mxu0 %v4362
        %6607 = vmatpush.bf16.msra.mxu0 %v4344
        %6608 = vmatpush.bf16.msra.mxu0 %v4326
        %6609 = vmatpush.bf16.msra.mxu0 %v4308
        %6610 = vmatpush.bf16.msra.mxu0 %v4290
        %6611 = vmatmul.bf16.gmra.mxu0 %v489
        %v6612 = vpop.f32.mrf.mxu0
        %v6613 = vadd.f32 %v6600, %v6612
        %v6614 = vpop.f32.mrf.mxu0
        %6615 = vdwg.mxu0
        %6616 = vmatpush.bf16.msra.mxu0 %v4560
        %6617 = vmatpush.bf16.msra.mxu0 %v4542
        %6618 = vmatpush.bf16.msra.mxu0 %v4524
        %6619 = vmatpush.bf16.msra.mxu0 %v4506
        %6620 = vmatpush.bf16.msra.mxu0 %v4488
        %6621 = vmatpush.bf16.msra.mxu0 %v4470
        %6622 = vmatpush.bf16.msra.mxu0 %v4452
        %6623 = vmatpush.bf16.msra.mxu0 %v4434
        %6624 = vmatmul.bf16.gmra.mxu0 %v490
        %v6625 = vpop.f32.mrf.mxu0
        %v6626 = vadd.f32 %v6613, %v6625
        %v6627 = vpop.f32.mrf.mxu0
        %6628 = vdwg.mxu0
        %6629 = vmatpush.bf16.msra.mxu0 %v4704
        %6630 = vmatpush.bf16.msra.mxu0 %v4686
        %6631 = vmatpush.bf16.msra.mxu0 %v4668
        %6632 = vmatpush.bf16.msra.mxu0 %v4650
        %6633 = vmatpush.bf16.msra.mxu0 %v4632
        %6634 = vmatpush.bf16.msra.mxu0 %v4614
        %6635 = vmatpush.bf16.msra.mxu0 %v4596
        %6636 = vmatpush.bf16.msra.mxu0 %v4578
        %6637 = vmatmul.bf16.gmra.mxu0 %v491
        %v6638 = vpop.f32.mrf.mxu0
        %v6639 = vadd.f32 %v6626, %v6638
        %v6640 = vpop.f32.mrf.mxu0
        %6641 = vdwg.mxu0
        %6642 = vmatpush.bf16.msra.mxu0 %v4848
        %6643 = vmatpush.bf16.msra.mxu0 %v4830
        %6644 = vmatpush.bf16.msra.mxu0 %v4812
        %6645 = vmatpush.bf16.msra.mxu0 %v4794
        %6646 = vmatpush.bf16.msra.mxu0 %v4776
        %6647 = vmatpush.bf16.msra.mxu0 %v4758
        %6648 = vmatpush.bf16.msra.mxu0 %v4740
        %6649 = vmatpush.bf16.msra.mxu0 %v4722
        %6650 = vmatmul.bf16.gmra.mxu0 %v492
        %v6651 = vpop.f32.mrf.mxu0
        %v6652 = vadd.f32 %v6639, %v6651
        %v6653 = vpop.f32.mrf.mxu0
        %6654 = vdwg.mxu0
        %6655 = vmatpush.bf16.msra.mxu0 %v4129
        %6656 = vmatpush.bf16.msra.mxu0 %v4111
        %6657 = vmatpush.bf16.msra.mxu0 %v4093
        %6658 = vmatpush.bf16.msra.mxu0 %v4075
        %6659 = vmatpush.bf16.msra.mxu0 %v4057
        %6660 = vmatpush.bf16.msra.mxu0 %v4039
        %6661 = vmatpush.bf16.msra.mxu0 %v4021
        %6662 = vmatpush.bf16.msra.mxu0 %v4003
        %6663 = vmatmul.bf16.gmra.mxu0 %v487
        %v6664 = vpop.f32.mrf.mxu0
        %v6665 = vadd.f32 %v1375, %v6664
        %v6666 = vpop.f32.mrf.mxu0
        %6667 = vdwg.mxu0
        %6668 = vmatpush.bf16.msra.mxu0 %v4273
        %6669 = vmatpush.bf16.msra.mxu0 %v4255
        %6670 = vmatpush.bf16.msra.mxu0 %v4237
        %6671 = vmatpush.bf16.msra.mxu0 %v4219
        %6672 = vmatpush.bf16.msra.mxu0 %v4201
        %6673 = vmatpush.bf16.msra.mxu0 %v4183
        %6674 = vmatpush.bf16.msra.mxu0 %v4165
        %6675 = vmatpush.bf16.msra.mxu0 %v4147
        %6676 = vmatmul.bf16.gmra.mxu0 %v488
        %v6677 = vpop.f32.mrf.mxu0
        %v6678 = vadd.f32 %v6665, %v6677
        %v6679 = vpop.f32.mrf.mxu0
        %6680 = vdwg.mxu0
        %6681 = vmatpush.bf16.msra.mxu0 %v4417
        %6682 = vmatpush.bf16.msra.mxu0 %v4399
        %6683 = vmatpush.bf16.msra.mxu0 %v4381
        %6684 = vmatpush.bf16.msra.mxu0 %v4363
        %6685 = vmatpush.bf16.msra.mxu0 %v4345
        %6686 = vmatpush.bf16.msra.mxu0 %v4327
        %6687 = vmatpush.bf16.msra.mxu0 %v4309
        %6688 = vmatpush.bf16.msra.mxu0 %v4291
        %6689 = vmatmul.bf16.gmra.mxu0 %v489
        %v6690 = vpop.f32.mrf.mxu0
        %v6691 = vadd.f32 %v6678, %v6690
        %v6692 = vpop.f32.mrf.mxu0
        %6693 = vdwg.mxu0
        %6694 = vmatpush.bf16.msra.mxu0 %v4561
        %6695 = vmatpush.bf16.msra.mxu0 %v4543
        %6696 = vmatpush.bf16.msra.mxu0 %v4525
        %6697 = vmatpush.bf16.msra.mxu0 %v4507
        %6698 = vmatpush.bf16.msra.mxu0 %v4489
        %6699 = vmatpush.bf16.msra.mxu0 %v4471
        %6700 = vmatpush.bf16.msra.mxu0 %v4453
        %6701 = vmatpush.bf16.msra.mxu0 %v4435
        %6702 = vmatmul.bf16.gmra.mxu0 %v490
        %v6703 = vpop.f32.mrf.mxu0
        %v6704 = vadd.f32 %v6691, %v6703
        %v6705 = vpop.f32.mrf.mxu0
        %6706 = vdwg.mxu0
        %6707 = vmatpush.bf16.msra.mxu0 %v4705
        %6708 = vmatpush.bf16.msra.mxu0 %v4687
        %6709 = vmatpush.bf16.msra.mxu0 %v4669
        %6710 = vmatpush.bf16.msra.mxu0 %v4651
        %6711 = vmatpush.bf16.msra.mxu0 %v4633
        %6712 = vmatpush.bf16.msra.mxu0 %v4615
        %6713 = vmatpush.bf16.msra.mxu0 %v4597
        %6714 = vmatpush.bf16.msra.mxu0 %v4579
        %6715 = vmatmul.bf16.gmra.mxu0 %v491
        %v6716 = vpop.f32.mrf.mxu0
        %v6717 = vadd.f32 %v6704, %v6716
        %v6718 = vpop.f32.mrf.mxu0
        %6719 = vdwg.mxu0
        %6720 = vmatpush.bf16.msra.mxu0 %v4849
        %6721 = vmatpush.bf16.msra.mxu0 %v4831
        %6722 = vmatpush.bf16.msra.mxu0 %v4813
        %6723 = vmatpush.bf16.msra.mxu0 %v4795
        %6724 = vmatpush.bf16.msra.mxu0 %v4777
        %6725 = vmatpush.bf16.msra.mxu0 %v4759
        %6726 = vmatpush.bf16.msra.mxu0 %v4741
        %6727 = vmatpush.bf16.msra.mxu0 %v4723
        %6728 = vmatmul.bf16.gmra.mxu0 %v492
        %v6729 = vpop.f32.mrf.mxu0
        %v6730 = vadd.f32 %v6717, %v6729
        %v6731 = vpop.f32.mrf.mxu0
        %6732 = vdwg.mxu0
        %6733 = vmatpush.bf16.msra.mxu0 %v4130
        %6734 = vmatpush.bf16.msra.mxu0 %v4112
        %6735 = vmatpush.bf16.msra.mxu0 %v4094
        %6736 = vmatpush.bf16.msra.mxu0 %v4076
        %6737 = vmatpush.bf16.msra.mxu0 %v4058
        %6738 = vmatpush.bf16.msra.mxu0 %v4040
        %6739 = vmatpush.bf16.msra.mxu0 %v4022
        %6740 = vmatpush.bf16.msra.mxu0 %v4004
        %6741 = vmatmul.bf16.gmra.mxu0 %v487
        %v6742 = vpop.f32.mrf.mxu0
        %v6743 = vadd.f32 %v1376, %v6742
        %v6744 = vpop.f32.mrf.mxu0
        %6745 = vdwg.mxu0
        %6746 = vmatpush.bf16.msra.mxu0 %v4274
        %6747 = vmatpush.bf16.msra.mxu0 %v4256
        %6748 = vmatpush.bf16.msra.mxu0 %v4238
        %6749 = vmatpush.bf16.msra.mxu0 %v4220
        %6750 = vmatpush.bf16.msra.mxu0 %v4202
        %6751 = vmatpush.bf16.msra.mxu0 %v4184
        %6752 = vmatpush.bf16.msra.mxu0 %v4166
        %6753 = vmatpush.bf16.msra.mxu0 %v4148
        %6754 = vmatmul.bf16.gmra.mxu0 %v488
        %v6755 = vpop.f32.mrf.mxu0
        %v6756 = vadd.f32 %v6743, %v6755
        %v6757 = vpop.f32.mrf.mxu0
        %6758 = vdwg.mxu0
        %6759 = vmatpush.bf16.msra.mxu0 %v4418
        %6760 = vmatpush.bf16.msra.mxu0 %v4400
        %6761 = vmatpush.bf16.msra.mxu0 %v4382
        %6762 = vmatpush.bf16.msra.mxu0 %v4364
        %6763 = vmatpush.bf16.msra.mxu0 %v4346
        %6764 = vmatpush.bf16.msra.mxu0 %v4328
        %6765 = vmatpush.bf16.msra.mxu0 %v4310
        %6766 = vmatpush.bf16.msra.mxu0 %v4292
        %6767 = vmatmul.bf16.gmra.mxu0 %v489
        %v6768 = vpop.f32.mrf.mxu0
        %v6769 = vadd.f32 %v6756, %v6768
        %v6770 = vpop.f32.mrf.mxu0
        %6771 = vdwg.mxu0
        %6772 = vmatpush.bf16.msra.mxu0 %v4562
        %6773 = vmatpush.bf16.msra.mxu0 %v4544
        %6774 = vmatpush.bf16.msra.mxu0 %v4526
        %6775 = vmatpush.bf16.msra.mxu0 %v4508
        %6776 = vmatpush.bf16.msra.mxu0 %v4490
        %6777 = vmatpush.bf16.msra.mxu0 %v4472
        %6778 = vmatpush.bf16.msra.mxu0 %v4454
        %6779 = vmatpush.bf16.msra.mxu0 %v4436
        %6780 = vmatmul.bf16.gmra.mxu0 %v490
        %v6781 = vpop.f32.mrf.mxu0
        %v6782 = vadd.f32 %v6769, %v6781
        %v6783 = vpop.f32.mrf.mxu0
        %6784 = vdwg.mxu0
        %6785 = vmatpush.bf16.msra.mxu0 %v4706
        %6786 = vmatpush.bf16.msra.mxu0 %v4688
        %6787 = vmatpush.bf16.msra.mxu0 %v4670
        %6788 = vmatpush.bf16.msra.mxu0 %v4652
        %6789 = vmatpush.bf16.msra.mxu0 %v4634
        %6790 = vmatpush.bf16.msra.mxu0 %v4616
        %6791 = vmatpush.bf16.msra.mxu0 %v4598
        %6792 = vmatpush.bf16.msra.mxu0 %v4580
        %6793 = vmatmul.bf16.gmra.mxu0 %v491
        %v6794 = vpop.f32.mrf.mxu0
        %v6795 = vadd.f32 %v6782, %v6794
        %v6796 = vpop.f32.mrf.mxu0
        %6797 = vdwg.mxu0
        %6798 = vmatpush.bf16.msra.mxu0 %v4850
        %6799 = vmatpush.bf16.msra.mxu0 %v4832
        %6800 = vmatpush.bf16.msra.mxu0 %v4814
        %6801 = vmatpush.bf16.msra.mxu0 %v4796
        %6802 = vmatpush.bf16.msra.mxu0 %v4778
        %6803 = vmatpush.bf16.msra.mxu0 %v4760
        %6804 = vmatpush.bf16.msra.mxu0 %v4742
        %6805 = vmatpush.bf16.msra.mxu0 %v4724
        %6806 = vmatmul.bf16.gmra.mxu0 %v492
        %v6807 = vpop.f32.mrf.mxu0
        %v6808 = vadd.f32 %v6795, %v6807
        %v6809 = vpop.f32.mrf.mxu0
        %6810 = vdwg.mxu0
        %6811 = vmatpush.bf16.msra.mxu0 %v4131
        %6812 = vmatpush.bf16.msra.mxu0 %v4113
        %6813 = vmatpush.bf16.msra.mxu0 %v4095
        %6814 = vmatpush.bf16.msra.mxu0 %v4077
        %6815 = vmatpush.bf16.msra.mxu0 %v4059
        %6816 = vmatpush.bf16.msra.mxu0 %v4041
        %6817 = vmatpush.bf16.msra.mxu0 %v4023
        %6818 = vmatpush.bf16.msra.mxu0 %v4005
        %6819 = vmatmul.bf16.gmra.mxu0 %v487
        %v6820 = vpop.f32.mrf.mxu0
        %v6821 = vadd.f32 %v1377, %v6820
        %v6822 = vpop.f32.mrf.mxu0
        %6823 = vdwg.mxu0
        %6824 = vmatpush.bf16.msra.mxu0 %v4275
        %6825 = vmatpush.bf16.msra.mxu0 %v4257
        %6826 = vmatpush.bf16.msra.mxu0 %v4239
        %6827 = vmatpush.bf16.msra.mxu0 %v4221
        %6828 = vmatpush.bf16.msra.mxu0 %v4203
        %6829 = vmatpush.bf16.msra.mxu0 %v4185
        %6830 = vmatpush.bf16.msra.mxu0 %v4167
        %6831 = vmatpush.bf16.msra.mxu0 %v4149
        %6832 = vmatmul.bf16.gmra.mxu0 %v488
        %v6833 = vpop.f32.mrf.mxu0
        %v6834 = vadd.f32 %v6821, %v6833
        %v6835 = vpop.f32.mrf.mxu0
        %6836 = vdwg.mxu0
        %6837 = vmatpush.bf16.msra.mxu0 %v4419
        %6838 = vmatpush.bf16.msra.mxu0 %v4401
        %6839 = vmatpush.bf16.msra.mxu0 %v4383
        %6840 = vmatpush.bf16.msra.mxu0 %v4365
        %6841 = vmatpush.bf16.msra.mxu0 %v4347
        %6842 = vmatpush.bf16.msra.mxu0 %v4329
        %6843 = vmatpush.bf16.msra.mxu0 %v4311
        %6844 = vmatpush.bf16.msra.mxu0 %v4293
        %6845 = vmatmul.bf16.gmra.mxu0 %v489
        %v6846 = vpop.f32.mrf.mxu0
        %v6847 = vadd.f32 %v6834, %v6846
        %v6848 = vpop.f32.mrf.mxu0
        %6849 = vdwg.mxu0
        %6850 = vmatpush.bf16.msra.mxu0 %v4563
        %6851 = vmatpush.bf16.msra.mxu0 %v4545
        %6852 = vmatpush.bf16.msra.mxu0 %v4527
        %6853 = vmatpush.bf16.msra.mxu0 %v4509
        %6854 = vmatpush.bf16.msra.mxu0 %v4491
        %6855 = vmatpush.bf16.msra.mxu0 %v4473
        %6856 = vmatpush.bf16.msra.mxu0 %v4455
        %6857 = vmatpush.bf16.msra.mxu0 %v4437
        %6858 = vmatmul.bf16.gmra.mxu0 %v490
        %v6859 = vpop.f32.mrf.mxu0
        %v6860 = vadd.f32 %v6847, %v6859
        %v6861 = vpop.f32.mrf.mxu0
        %6862 = vdwg.mxu0
        %6863 = vmatpush.bf16.msra.mxu0 %v4707
        %6864 = vmatpush.bf16.msra.mxu0 %v4689
        %6865 = vmatpush.bf16.msra.mxu0 %v4671
        %6866 = vmatpush.bf16.msra.mxu0 %v4653
        %6867 = vmatpush.bf16.msra.mxu0 %v4635
        %6868 = vmatpush.bf16.msra.mxu0 %v4617
        %6869 = vmatpush.bf16.msra.mxu0 %v4599
        %6870 = vmatpush.bf16.msra.mxu0 %v4581
        %6871 = vmatmul.bf16.gmra.mxu0 %v491
        %v6872 = vpop.f32.mrf.mxu0
        %v6873 = vadd.f32 %v6860, %v6872
        %v6874 = vpop.f32.mrf.mxu0
        %6875 = vdwg.mxu0
        %6876 = vmatpush.bf16.msra.mxu0 %v4851
        %6877 = vmatpush.bf16.msra.mxu0 %v4833
        %6878 = vmatpush.bf16.msra.mxu0 %v4815
        %6879 = vmatpush.bf16.msra.mxu0 %v4797
        %6880 = vmatpush.bf16.msra.mxu0 %v4779
        %6881 = vmatpush.bf16.msra.mxu0 %v4761
        %6882 = vmatpush.bf16.msra.mxu0 %v4743
        %6883 = vmatpush.bf16.msra.mxu0 %v4725
        %6884 = vmatmul.bf16.gmra.mxu0 %v492
        %v6885 = vpop.f32.mrf.mxu0
        %v6886 = vadd.f32 %v6873, %v6885
        %v6887 = vpop.f32.mrf.mxu0
        %6888 = vdwg.mxu0
        %6889 = vmatpush.bf16.msra.mxu0 %v4132
        %6890 = vmatpush.bf16.msra.mxu0 %v4114
        %6891 = vmatpush.bf16.msra.mxu0 %v4096
        %6892 = vmatpush.bf16.msra.mxu0 %v4078
        %6893 = vmatpush.bf16.msra.mxu0 %v4060
        %6894 = vmatpush.bf16.msra.mxu0 %v4042
        %6895 = vmatpush.bf16.msra.mxu0 %v4024
        %6896 = vmatpush.bf16.msra.mxu0 %v4006
        %6897 = vmatmul.bf16.gmra.mxu0 %v487
        %v6898 = vpop.f32.mrf.mxu0
        %v6899 = vadd.f32 %v1378, %v6898
        %v6900 = vpop.f32.mrf.mxu0
        %6901 = vdwg.mxu0
        %6902 = vmatpush.bf16.msra.mxu0 %v4276
        %6903 = vmatpush.bf16.msra.mxu0 %v4258
        %6904 = vmatpush.bf16.msra.mxu0 %v4240
        %6905 = vmatpush.bf16.msra.mxu0 %v4222
        %6906 = vmatpush.bf16.msra.mxu0 %v4204
        %6907 = vmatpush.bf16.msra.mxu0 %v4186
        %6908 = vmatpush.bf16.msra.mxu0 %v4168
        %6909 = vmatpush.bf16.msra.mxu0 %v4150
        %6910 = vmatmul.bf16.gmra.mxu0 %v488
        %v6911 = vpop.f32.mrf.mxu0
        %v6912 = vadd.f32 %v6899, %v6911
        %v6913 = vpop.f32.mrf.mxu0
        %6914 = vdwg.mxu0
        %6915 = vmatpush.bf16.msra.mxu0 %v4420
        %6916 = vmatpush.bf16.msra.mxu0 %v4402
        %6917 = vmatpush.bf16.msra.mxu0 %v4384
        %6918 = vmatpush.bf16.msra.mxu0 %v4366
        %6919 = vmatpush.bf16.msra.mxu0 %v4348
        %6920 = vmatpush.bf16.msra.mxu0 %v4330
        %6921 = vmatpush.bf16.msra.mxu0 %v4312
        %6922 = vmatpush.bf16.msra.mxu0 %v4294
        %6923 = vmatmul.bf16.gmra.mxu0 %v489
        %v6924 = vpop.f32.mrf.mxu0
        %v6925 = vadd.f32 %v6912, %v6924
        %v6926 = vpop.f32.mrf.mxu0
        %6927 = vdwg.mxu0
        %6928 = vmatpush.bf16.msra.mxu0 %v4564
        %6929 = vmatpush.bf16.msra.mxu0 %v4546
        %6930 = vmatpush.bf16.msra.mxu0 %v4528
        %6931 = vmatpush.bf16.msra.mxu0 %v4510
        %6932 = vmatpush.bf16.msra.mxu0 %v4492
        %6933 = vmatpush.bf16.msra.mxu0 %v4474
        %6934 = vmatpush.bf16.msra.mxu0 %v4456
        %6935 = vmatpush.bf16.msra.mxu0 %v4438
        %6936 = vmatmul.bf16.gmra.mxu0 %v490
        %v6937 = vpop.f32.mrf.mxu0
        %v6938 = vadd.f32 %v6925, %v6937
        %v6939 = vpop.f32.mrf.mxu0
        %6940 = vdwg.mxu0
        %6941 = vmatpush.bf16.msra.mxu0 %v4708
        %6942 = vmatpush.bf16.msra.mxu0 %v4690
        %6943 = vmatpush.bf16.msra.mxu0 %v4672
        %6944 = vmatpush.bf16.msra.mxu0 %v4654
        %6945 = vmatpush.bf16.msra.mxu0 %v4636
        %6946 = vmatpush.bf16.msra.mxu0 %v4618
        %6947 = vmatpush.bf16.msra.mxu0 %v4600
        %6948 = vmatpush.bf16.msra.mxu0 %v4582
        %6949 = vmatmul.bf16.gmra.mxu0 %v491
        %v6950 = vpop.f32.mrf.mxu0
        %v6951 = vadd.f32 %v6938, %v6950
        %v6952 = vpop.f32.mrf.mxu0
        %6953 = vdwg.mxu0
        %6954 = vmatpush.bf16.msra.mxu0 %v4852
        %6955 = vmatpush.bf16.msra.mxu0 %v4834
        %6956 = vmatpush.bf16.msra.mxu0 %v4816
        %6957 = vmatpush.bf16.msra.mxu0 %v4798
        %6958 = vmatpush.bf16.msra.mxu0 %v4780
        %6959 = vmatpush.bf16.msra.mxu0 %v4762
        %6960 = vmatpush.bf16.msra.mxu0 %v4744
        %6961 = vmatpush.bf16.msra.mxu0 %v4726
        %6962 = vmatmul.bf16.gmra.mxu0 %v492
        %v6963 = vpop.f32.mrf.mxu0
        %v6964 = vadd.f32 %v6951, %v6963
        %v6965 = vpop.f32.mrf.mxu0
        %6966 = vdwg.mxu0
        %6967 = vmatpush.bf16.msra.mxu0 %v4133
        %6968 = vmatpush.bf16.msra.mxu0 %v4115
        %6969 = vmatpush.bf16.msra.mxu0 %v4097
        %6970 = vmatpush.bf16.msra.mxu0 %v4079
        %6971 = vmatpush.bf16.msra.mxu0 %v4061
        %6972 = vmatpush.bf16.msra.mxu0 %v4043
        %6973 = vmatpush.bf16.msra.mxu0 %v4025
        %6974 = vmatpush.bf16.msra.mxu0 %v4007
        %6975 = vmatmul.bf16.gmra.mxu0 %v487
        %v6976 = vpop.f32.mrf.mxu0
        %v6977 = vadd.f32 %v1379, %v6976
        %v6978 = vpop.f32.mrf.mxu0
        %6979 = vdwg.mxu0
        %6980 = vmatpush.bf16.msra.mxu0 %v4277
        %6981 = vmatpush.bf16.msra.mxu0 %v4259
        %6982 = vmatpush.bf16.msra.mxu0 %v4241
        %6983 = vmatpush.bf16.msra.mxu0 %v4223
        %6984 = vmatpush.bf16.msra.mxu0 %v4205
        %6985 = vmatpush.bf16.msra.mxu0 %v4187
        %6986 = vmatpush.bf16.msra.mxu0 %v4169
        %6987 = vmatpush.bf16.msra.mxu0 %v4151
        %6988 = vmatmul.bf16.gmra.mxu0 %v488
        %v6989 = vpop.f32.mrf.mxu0
        %v6990 = vadd.f32 %v6977, %v6989
        %v6991 = vpop.f32.mrf.mxu0
        %6992 = vdwg.mxu0
        %6993 = vmatpush.bf16.msra.mxu0 %v4421
        %6994 = vmatpush.bf16.msra.mxu0 %v4403
        %6995 = vmatpush.bf16.msra.mxu0 %v4385
        %6996 = vmatpush.bf16.msra.mxu0 %v4367
        %6997 = vmatpush.bf16.msra.mxu0 %v4349
        %6998 = vmatpush.bf16.msra.mxu0 %v4331
        %6999 = vmatpush.bf16.msra.mxu0 %v4313
        %7000 = vmatpush.bf16.msra.mxu0 %v4295
        %7001 = vmatmul.bf16.gmra.mxu0 %v489
        %v7002 = vpop.f32.mrf.mxu0
        %v7003 = vadd.f32 %v6990, %v7002
        %v7004 = vpop.f32.mrf.mxu0
        %7005 = vdwg.mxu0
        %7006 = vmatpush.bf16.msra.mxu0 %v4565
        %7007 = vmatpush.bf16.msra.mxu0 %v4547
        %7008 = vmatpush.bf16.msra.mxu0 %v4529
        %7009 = vmatpush.bf16.msra.mxu0 %v4511
        %7010 = vmatpush.bf16.msra.mxu0 %v4493
        %7011 = vmatpush.bf16.msra.mxu0 %v4475
        %7012 = vmatpush.bf16.msra.mxu0 %v4457
        %7013 = vmatpush.bf16.msra.mxu0 %v4439
        %7014 = vmatmul.bf16.gmra.mxu0 %v490
        %v7015 = vpop.f32.mrf.mxu0
        %v7016 = vadd.f32 %v7003, %v7015
        %v7017 = vpop.f32.mrf.mxu0
        %7018 = vdwg.mxu0
        %7019 = vmatpush.bf16.msra.mxu0 %v4709
        %7020 = vmatpush.bf16.msra.mxu0 %v4691
        %7021 = vmatpush.bf16.msra.mxu0 %v4673
        %7022 = vmatpush.bf16.msra.mxu0 %v4655
        %7023 = vmatpush.bf16.msra.mxu0 %v4637
        %7024 = vmatpush.bf16.msra.mxu0 %v4619
        %7025 = vmatpush.bf16.msra.mxu0 %v4601
        %7026 = vmatpush.bf16.msra.mxu0 %v4583
        %7027 = vmatmul.bf16.gmra.mxu0 %v491
        %v7028 = vpop.f32.mrf.mxu0
        %v7029 = vadd.f32 %v7016, %v7028
        %v7030 = vpop.f32.mrf.mxu0
        %7031 = vdwg.mxu0
        %7032 = vmatpush.bf16.msra.mxu0 %v4853
        %7033 = vmatpush.bf16.msra.mxu0 %v4835
        %7034 = vmatpush.bf16.msra.mxu0 %v4817
        %7035 = vmatpush.bf16.msra.mxu0 %v4799
        %7036 = vmatpush.bf16.msra.mxu0 %v4781
        %7037 = vmatpush.bf16.msra.mxu0 %v4763
        %7038 = vmatpush.bf16.msra.mxu0 %v4745
        %7039 = vmatpush.bf16.msra.mxu0 %v4727
        %7040 = vmatmul.bf16.gmra.mxu0 %v492
        %v7041 = vpop.f32.mrf.mxu0
        %v7042 = vadd.f32 %v7029, %v7041
        %v7043 = vpop.f32.mrf.mxu0
        %7044 = vdwg.mxu0
        %7045 = vmatpush.bf16.msra.mxu0 %v4134
        %7046 = vmatpush.bf16.msra.mxu0 %v4116
        %7047 = vmatpush.bf16.msra.mxu0 %v4098
        %7048 = vmatpush.bf16.msra.mxu0 %v4080
        %7049 = vmatpush.bf16.msra.mxu0 %v4062
        %7050 = vmatpush.bf16.msra.mxu0 %v4044
        %7051 = vmatpush.bf16.msra.mxu0 %v4026
        %7052 = vmatpush.bf16.msra.mxu0 %v4008
        %7053 = vmatmul.bf16.gmra.mxu0 %v487
        %v7054 = vpop.f32.mrf.mxu0
        %v7055 = vadd.f32 %v1380, %v7054
        %v7056 = vpop.f32.mrf.mxu0
        %7057 = vdwg.mxu0
        %7058 = vmatpush.bf16.msra.mxu0 %v4278
        %7059 = vmatpush.bf16.msra.mxu0 %v4260
        %7060 = vmatpush.bf16.msra.mxu0 %v4242
        %7061 = vmatpush.bf16.msra.mxu0 %v4224
        %7062 = vmatpush.bf16.msra.mxu0 %v4206
        %7063 = vmatpush.bf16.msra.mxu0 %v4188
        %7064 = vmatpush.bf16.msra.mxu0 %v4170
        %7065 = vmatpush.bf16.msra.mxu0 %v4152
        %7066 = vmatmul.bf16.gmra.mxu0 %v488
        %v7067 = vpop.f32.mrf.mxu0
        %v7068 = vadd.f32 %v7055, %v7067
        %v7069 = vpop.f32.mrf.mxu0
        %7070 = vdwg.mxu0
        %7071 = vmatpush.bf16.msra.mxu0 %v4422
        %7072 = vmatpush.bf16.msra.mxu0 %v4404
        %7073 = vmatpush.bf16.msra.mxu0 %v4386
        %7074 = vmatpush.bf16.msra.mxu0 %v4368
        %7075 = vmatpush.bf16.msra.mxu0 %v4350
        %7076 = vmatpush.bf16.msra.mxu0 %v4332
        %7077 = vmatpush.bf16.msra.mxu0 %v4314
        %7078 = vmatpush.bf16.msra.mxu0 %v4296
        %7079 = vmatmul.bf16.gmra.mxu0 %v489
        %v7080 = vpop.f32.mrf.mxu0
        %v7081 = vadd.f32 %v7068, %v7080
        %v7082 = vpop.f32.mrf.mxu0
        %7083 = vdwg.mxu0
        %7084 = vmatpush.bf16.msra.mxu0 %v4566
        %7085 = vmatpush.bf16.msra.mxu0 %v4548
        %7086 = vmatpush.bf16.msra.mxu0 %v4530
        %7087 = vmatpush.bf16.msra.mxu0 %v4512
        %7088 = vmatpush.bf16.msra.mxu0 %v4494
        %7089 = vmatpush.bf16.msra.mxu0 %v4476
        %7090 = vmatpush.bf16.msra.mxu0 %v4458
        %7091 = vmatpush.bf16.msra.mxu0 %v4440
        %7092 = vmatmul.bf16.gmra.mxu0 %v490
        %v7093 = vpop.f32.mrf.mxu0
        %v7094 = vadd.f32 %v7081, %v7093
        %v7095 = vpop.f32.mrf.mxu0
        %7096 = vdwg.mxu0
        %7097 = vmatpush.bf16.msra.mxu0 %v4710
        %7098 = vmatpush.bf16.msra.mxu0 %v4692
        %7099 = vmatpush.bf16.msra.mxu0 %v4674
        %7100 = vmatpush.bf16.msra.mxu0 %v4656
        %7101 = vmatpush.bf16.msra.mxu0 %v4638
        %7102 = vmatpush.bf16.msra.mxu0 %v4620
        %7103 = vmatpush.bf16.msra.mxu0 %v4602
        %7104 = vmatpush.bf16.msra.mxu0 %v4584
        %7105 = vmatmul.bf16.gmra.mxu0 %v491
        %v7106 = vpop.f32.mrf.mxu0
        %v7107 = vadd.f32 %v7094, %v7106
        %v7108 = vpop.f32.mrf.mxu0
        %7109 = vdwg.mxu0
        %7110 = vmatpush.bf16.msra.mxu0 %v4854
        %7111 = vmatpush.bf16.msra.mxu0 %v4836
        %7112 = vmatpush.bf16.msra.mxu0 %v4818
        %7113 = vmatpush.bf16.msra.mxu0 %v4800
        %7114 = vmatpush.bf16.msra.mxu0 %v4782
        %7115 = vmatpush.bf16.msra.mxu0 %v4764
        %7116 = vmatpush.bf16.msra.mxu0 %v4746
        %7117 = vmatpush.bf16.msra.mxu0 %v4728
        %7118 = vmatmul.bf16.gmra.mxu0 %v492
        %v7119 = vpop.f32.mrf.mxu0
        %v7120 = vadd.f32 %v7107, %v7119
        %v7121 = vpop.f32.mrf.mxu0
        %7122 = vdwg.mxu0
        %v7123 = vpack.c.bf16 %v5872, %v5794
        %v7124 = vpack.c.bf16 %v6028, %v5950
        %v7125 = vpack.c.bf16 %v6184, %v6106
        %v7126 = vpack.c.bf16 %v6340, %v6262
        %v7127 = vpack.c.bf16 %v6496, %v6418
        %v7128 = vpack.c.bf16 %v6652, %v6574
        %v7129 = vpack.c.bf16 %v6808, %v6730
        %v7130 = vpack.c.bf16 %v6964, %v6886
        %v7131 = vpack.c.bf16 %v7120, %v7042
        %vm7132 = vcmask 523264
        %v7134 = vsel %vm7132, %v7123, 0
        %v7137 = vsel %vm7132, %v7126, 0
        %7139 = vmatpush.bf16.xpose.msra.mxu0 0
        %7140 = vmatpush.bf16.xpose.msra.mxu0 0
        %7141 = vmatpush.bf16.xpose.msra.mxu0 0
        %7142 = vmatpush.bf16.xpose.msra.mxu0 0
        %7143 = vmatpush.bf16.xpose.msra.mxu0 0
        %7144 = vmatpush.bf16.xpose.msra.mxu0 0
        %7145 = vmatpush.bf16.xpose.msra.mxu0 0
        %7146 = vmatpush.bf16.xpose.msra.mxu0 %v7137
        %7147 = vmatmul.bf16.gmra.mxu0 %v7134
        %v7148 = vpop.f32.mrf.mxu0
        %v7149 = vadd.f32 0.0, %v7148
        %v7150 = vpop.f32.mrf.mxu0
        %7151 = vdwg.mxu0
        %vm7152 = vcmask 64512
        %v7153 = vsel %vm7152, %v7149, -inf
        %7154 = vmax.xlane.f32.xlu0 %v7153
        %v7155 = vpop.xlane.xlu0 %7154
        %v7156 = vsub.f32 %v7149, %v7155
        %v7157 = vmul.f32 %v7156, 1.442695
        %v7158 = vpow.pop %v7157
        %v7159 = vsel %vm7152, %v7158, 0.0
        %7160 = vadd.xlane.f32.xlu0 %v7159
        %v7161 = vpop.xlane.xlu0 %7160
        %v7162 = vrcp.pop %v7161
        %v7163 = vmul.f32 %v7161, %v7162
        %v7164 = vsub.f32 1.0, %v7163
        %v7165 = vmul.f32 %v7162, %v7164
        %v7166 = vadd.f32 %v7162, %v7165
        %vm7167 = vweird.f32 %v7161
        %vm7168 = vweird.f32 %v7162
        %vm7169 = vmor %vm7167, %vm7168
        %v7170 = vsel %vm7169, %v7162, %v7166
        %v7171 = vand.u32 2147483647, %v7161
        %vm7172 = vcmp.eq.f32.partialorder %v7171, 8.507059e+37
        %v7173 = vand.u32 %v7161, 2147483648
        %v7174 = vor.u32 1.1754944e-38, %v7173
        %v7175 = vsel %vm7172, %v7174, %v7170
        %v7176 = vmul.f32 %v7158, %v7175
        %v7177 = vpack.c.bf16 %v7176, %v7176
        %v7179 = vsel %vm7152, %v7177, 0
        %vm7181 = vcmask 1043456
        %v7183 = vsel %vm7181, %v7129, 0
        %7185 = vmatpush.bf16.msra.mxu0 0
        %7186 = vmatpush.bf16.msra.mxu0 0
        %7187 = vmatpush.bf16.msra.mxu0 0
        %7188 = vmatpush.bf16.msra.mxu0 0
        %7189 = vmatpush.bf16.msra.mxu0 0
        %7190 = vmatpush.bf16.msra.mxu0 0
        %7191 = vmatpush.bf16.msra.mxu0 0
        %7192 = vmatpush.bf16.msra.mxu0 %v7183
        %7193 = vmatmul.bf16.gmra.mxu0 %v7179
        %v7194 = vpop.f32.mrf.mxu0
        %v7195 = vadd.f32 0.0, %v7194
        %v7196 = vpop.f32.mrf.mxu0
        %7197 = vdwg.mxu0
        %7198 = vst.msk [vmem:[#allocation2] sm:$0xff] %vm7132, %v7195
        %v7200 = vunpack.c.l.b16 %v7123
        %v7201 = vpack.c.b16 %v7200, %v7200
        %7202 = vrot.lane.b32.xlu0 %v7201, 64
        %v7203 = vpop.permute.xlu0 %7202
        %v7205 = vunpack.c.l.b16 %v7126
        %v7206 = vpack.c.b16 %v7205, %v7205
        %7207 = vrot.lane.b32.xlu0 %v7206, 64
        %v7208 = vpop.permute.xlu0 %7207
        %v7210 = vsel %vm7132, %v7203, 0
        %v7213 = vsel %vm7132, %v7208, 0
        %7215 = vmatpush.bf16.xpose.msra.mxu0 0
        %7216 = vmatpush.bf16.xpose.msra.mxu0 0
        %7217 = vmatpush.bf16.xpose.msra.mxu0 0
        %7218 = vmatpush.bf16.xpose.msra.mxu0 0
        %7219 = vmatpush.bf16.xpose.msra.mxu0 0
        %7220 = vmatpush.bf16.xpose.msra.mxu0 0
        %7221 = vmatpush.bf16.xpose.msra.mxu0 0
        %7222 = vmatpush.bf16.xpose.msra.mxu0 %v7213
        %7223 = vmatmul.bf16.gmra.mxu0 %v7210
        %v7224 = vpop.f32.mrf.mxu0
        %v7225 = vadd.f32 0.0, %v7224
        %v7226 = vpop.f32.mrf.mxu0
        %7227 = vdwg.mxu0
        %v7228 = vsel %vm7152, %v7225, -inf
        %7229 = vmax.xlane.f32.xlu0 %v7228
        %v7230 = vpop.xlane.xlu0 %7229
        %v7231 = vsub.f32 %v7225, %v7230
        %v7232 = vmul.f32 %v7231, 1.442695
        %v7233 = vpow.pop %v7232
        %v7234 = vsel %vm7152, %v7233, 0.0
        %7235 = vadd.xlane.f32.xlu0 %v7234
        %v7236 = vpop.xlane.xlu0 %7235
        %v7237 = vrcp.pop %v7236
        %v7238 = vmul.f32 %v7236, %v7237
        %v7239 = vsub.f32 1.0, %v7238
        %v7240 = vmul.f32 %v7237, %v7239
        %v7241 = vadd.f32 %v7237, %v7240
        %vm7242 = vweird.f32 %v7236
        %vm7243 = vweird.f32 %v7237
        %vm7244 = vmor %vm7242, %vm7243
        %v7245 = vsel %vm7244, %v7237, %v7241
        %v7246 = vand.u32 2147483647, %v7236
        %vm7247 = vcmp.eq.f32.partialorder %v7246, 8.507059e+37
        %v7248 = vand.u32 %v7236, 2147483648
        %v7249 = vor.u32 1.1754944e-38, %v7248
        %v7250 = vsel %vm7247, %v7249, %v7245
        %v7251 = vmul.f32 %v7233, %v7250
        %v7252 = vpack.c.bf16 %v7251, %v7251
        %v7254 = vunpack.c.l.b16 %v7129
        %v7255 = vpack.c.b16 %v7254, %v7254
        %7256 = vrot.lane.b32.xlu0 %v7255, 64
        %v7257 = vpop.permute.xlu0 %7256
        %v7259 = vsel %vm7152, %v7252, 0
        %v7262 = vsel %vm7181, %v7257, 0
        %7264 = vmatpush.bf16.msra.mxu0 0
        %7265 = vmatpush.bf16.msra.mxu0 0
        %7266 = vmatpush.bf16.msra.mxu0 0
        %7267 = vmatpush.bf16.msra.mxu0 0
        %7268 = vmatpush.bf16.msra.mxu0 0
        %7269 = vmatpush.bf16.msra.mxu0 0
        %7270 = vmatpush.bf16.msra.mxu0 0
        %7271 = vmatpush.bf16.msra.mxu0 %v7262
        %7272 = vmatmul.bf16.gmra.mxu0 %v7259
        %v7273 = vpop.f32.mrf.mxu0
        %v7274 = vadd.f32 0.0, %v7273
        %v7275 = vpop.f32.mrf.mxu0
        %7276 = vdwg.mxu0
        %7278 = vrot.lane.b32.xlu0 %v7274, 64
        %v7279 = vpop.permute.xlu0 %7278
        %vm7281 = vcmask 1048064
        %7282 = vst.msk [vmem:[#allocation2] sm:$0xff] %vm7281, %v7279
        %v7283 = vunpack.c.h.b16 %v7123
        %v7284 = vpack.c.b16 %v7283, %v7283
        %v7285 = vunpack.c.h.b16 %v7126
        %v7286 = vpack.c.b16 %v7285, %v7285
        %v7288 = vsel %vm7132, %v7284, 0
        %v7291 = vsel %vm7132, %v7286, 0
        %7293 = vmatpush.bf16.xpose.msra.mxu0 0
        %7294 = vmatpush.bf16.xpose.msra.mxu0 0
        %7295 = vmatpush.bf16.xpose.msra.mxu0 0
        %7296 = vmatpush.bf16.xpose.msra.mxu0 0
        %7297 = vmatpush.bf16.xpose.msra.mxu0 0
        %7298 = vmatpush.bf16.xpose.msra.mxu0 0
        %7299 = vmatpush.bf16.xpose.msra.mxu0 0
        %7300 = vmatpush.bf16.xpose.msra.mxu0 %v7291
        %7301 = vmatmul.bf16.gmra.mxu0 %v7288
        %v7302 = vpop.f32.mrf.mxu0
        %v7303 = vadd.f32 0.0, %v7302
        %v7304 = vpop.f32.mrf.mxu0
        %7305 = vdwg.mxu0
        %v7306 = vsel %vm7152, %v7303, -inf
        %7307 = vmax.xlane.f32.xlu0 %v7306
        %v7308 = vpop.xlane.xlu0 %7307
        %v7309 = vsub.f32 %v7303, %v7308
        %v7310 = vmul.f32 %v7309, 1.442695
        %v7311 = vpow.pop %v7310
        %v7312 = vsel %vm7152, %v7311, 0.0
        %7313 = vadd.xlane.f32.xlu0 %v7312
        %v7314 = vpop.xlane.xlu0 %7313
        %v7315 = vrcp.pop %v7314
        %v7316 = vmul.f32 %v7314, %v7315
        %v7317 = vsub.f32 1.0, %v7316
        %v7318 = vmul.f32 %v7315, %v7317
        %v7319 = vadd.f32 %v7315, %v7318
        %vm7320 = vweird.f32 %v7314
        %vm7321 = vweird.f32 %v7315
        %vm7322 = vmor %vm7320, %vm7321
        %v7323 = vsel %vm7322, %v7315, %v7319
        %v7324 = vand.u32 2147483647, %v7314
        %vm7325 = vcmp.eq.f32.partialorder %v7324, 8.507059e+37
        %v7326 = vand.u32 %v7314, 2147483648
        %v7327 = vor.u32 1.1754944e-38, %v7326
        %v7328 = vsel %vm7325, %v7327, %v7323
        %v7329 = vmul.f32 %v7311, %v7328
        %v7330 = vpack.c.bf16 %v7329, %v7329
        %v7331 = vunpack.c.h.b16 %v7129
        %v7332 = vpack.c.b16 %v7331, %v7331
        %v7334 = vsel %vm7152, %v7330, 0
        %v7337 = vsel %vm7181, %v7332, 0
        %7339 = vmatpush.bf16.msra.mxu0 0
        %7340 = vmatpush.bf16.msra.mxu0 0
        %7341 = vmatpush.bf16.msra.mxu0 0
        %7342 = vmatpush.bf16.msra.mxu0 0
        %7343 = vmatpush.bf16.msra.mxu0 0
        %7344 = vmatpush.bf16.msra.mxu0 0
        %7345 = vmatpush.bf16.msra.mxu0 0
        %7346 = vmatpush.bf16.msra.mxu0 %v7337
        %7347 = vmatmul.bf16.gmra.mxu0 %v7334
        %v7348 = vpop.f32.mrf.mxu0
        %v7349 = vadd.f32 0.0, %v7348
        %v7350 = vpop.f32.mrf.mxu0
        %7351 = vdwg.mxu0
        %7352 = vst.msk [vmem:[#allocation2 + $0x8] sm:$0xff] %vm7132, %v7349
        %7353 = vrot.lane.b32.xlu0 %v7284, 64
        %v7354 = vpop.permute.xlu0 %7353
        %7355 = vrot.lane.b32.xlu0 %v7286, 64
        %v7356 = vpop.permute.xlu0 %7355
        %v7358 = vsel %vm7132, %v7354, 0
        %v7361 = vsel %vm7132, %v7356, 0
        %7363 = vmatpush.bf16.xpose.msra.mxu0 0
        %7364 = vmatpush.bf16.xpose.msra.mxu0 0
        %7365 = vmatpush.bf16.xpose.msra.mxu0 0
        %7366 = vmatpush.bf16.xpose.msra.mxu0 0
        %7367 = vmatpush.bf16.xpose.msra.mxu0 0
        %7368 = vmatpush.bf16.xpose.msra.mxu0 0
        %7369 = vmatpush.bf16.xpose.msra.mxu0 0
        %7370 = vmatpush.bf16.xpose.msra.mxu0 %v7361
        %7371 = vmatmul.bf16.gmra.mxu0 %v7358
        %v7372 = vpop.f32.mrf.mxu0
        %v7373 = vadd.f32 0.0, %v7372
        %v7374 = vpop.f32.mrf.mxu0
        %7375 = vdwg.mxu0
        %v7376 = vsel %vm7152, %v7373, -inf
        %7377 = vmax.xlane.f32.xlu0 %v7376
        %v7378 = vpop.xlane.xlu0 %7377
        %v7379 = vsub.f32 %v7373, %v7378
        %v7380 = vmul.f32 %v7379, 1.442695
        %v7381 = vpow.pop %v7380
        %v7382 = vsel %vm7152, %v7381, 0.0
        %7383 = vadd.xlane.f32.xlu0 %v7382
        %v7384 = vpop.xlane.xlu0 %7383
        %v7385 = vrcp.pop %v7384
        %v7386 = vmul.f32 %v7384, %v7385
        %v7387 = vsub.f32 1.0, %v7386
        %v7388 = vmul.f32 %v7385, %v7387
        %v7389 = vadd.f32 %v7385, %v7388
        %vm7390 = vweird.f32 %v7384
        %vm7391 = vweird.f32 %v7385
        %vm7392 = vmor %vm7390, %vm7391
        %v7393 = vsel %vm7392, %v7385, %v7389
        %v7394 = vand.u32 2147483647, %v7384
        %vm7395 = vcmp.eq.f32.partialorder %v7394, 8.507059e+37
        %v7396 = vand.u32 %v7384, 2147483648
        %v7397 = vor.u32 1.1754944e-38, %v7396
        %v7398 = vsel %vm7395, %v7397, %v7393
        %v7399 = vmul.f32 %v7381, %v7398
        %v7400 = vpack.c.bf16 %v7399, %v7399
        %7401 = vrot.lane.b32.xlu0 %v7332, 64
        %v7402 = vpop.permute.xlu0 %7401
        %v7404 = vsel %vm7152, %v7400, 0
        %v7407 = vsel %vm7181, %v7402, 0
        %7409 = vmatpush.bf16.msra.mxu0 0
        %7410 = vmatpush.bf16.msra.mxu0 0
        %7411 = vmatpush.bf16.msra.mxu0 0
        %7412 = vmatpush.bf16.msra.mxu0 0
        %7413 = vmatpush.bf16.msra.mxu0 0
        %7414 = vmatpush.bf16.msra.mxu0 0
        %7415 = vmatpush.bf16.msra.mxu0 0
        %7416 = vmatpush.bf16.msra.mxu0 %v7407
        %7417 = vmatmul.bf16.gmra.mxu0 %v7404
        %v7418 = vpop.f32.mrf.mxu0
        %v7419 = vadd.f32 0.0, %v7418
        %v7420 = vpop.f32.mrf.mxu0
        %7421 = vdwg.mxu0
        %7423 = vrot.lane.b32.xlu0 %v7419, 64
        %v7424 = vpop.permute.xlu0 %7423
        %7426 = vst.msk [vmem:[#allocation2 + $0x8] sm:$0xff] %vm7281, %v7424
        %v7428 = vsel %vm7132, %v7124, 0
        %v7431 = vsel %vm7132, %v7127, 0
        %7433 = vmatpush.bf16.xpose.msra.mxu0 0
        %7434 = vmatpush.bf16.xpose.msra.mxu0 0
        %7435 = vmatpush.bf16.xpose.msra.mxu0 0
        %7436 = vmatpush.bf16.xpose.msra.mxu0 0
        %7437 = vmatpush.bf16.xpose.msra.mxu0 0
        %7438 = vmatpush.bf16.xpose.msra.mxu0 0
        %7439 = vmatpush.bf16.xpose.msra.mxu0 0
        %7440 = vmatpush.bf16.xpose.msra.mxu0 %v7431
        %7441 = vmatmul.bf16.gmra.mxu0 %v7428
        %v7442 = vpop.f32.mrf.mxu0
        %v7443 = vadd.f32 0.0, %v7442
        %v7444 = vpop.f32.mrf.mxu0
        %7445 = vdwg.mxu0
        %v7446 = vsel %vm7152, %v7443, -inf
        %7447 = vmax.xlane.f32.xlu0 %v7446
        %v7448 = vpop.xlane.xlu0 %7447
        %v7449 = vsub.f32 %v7443, %v7448
        %v7450 = vmul.f32 %v7449, 1.442695
        %v7451 = vpow.pop %v7450
        %v7452 = vsel %vm7152, %v7451, 0.0
        %7453 = vadd.xlane.f32.xlu0 %v7452
        %v7454 = vpop.xlane.xlu0 %7453
        %v7455 = vrcp.pop %v7454
        %v7456 = vmul.f32 %v7454, %v7455
        %v7457 = vsub.f32 1.0, %v7456
        %v7458 = vmul.f32 %v7455, %v7457
        %v7459 = vadd.f32 %v7455, %v7458
        %vm7460 = vweird.f32 %v7454
        %vm7461 = vweird.f32 %v7455
        %vm7462 = vmor %vm7460, %vm7461
        %v7463 = vsel %vm7462, %v7455, %v7459
        %v7464 = vand.u32 2147483647, %v7454
        %vm7465 = vcmp.eq.f32.partialorder %v7464, 8.507059e+37
        %v7466 = vand.u32 %v7454, 2147483648
        %v7467 = vor.u32 1.1754944e-38, %v7466
        %v7468 = vsel %vm7465, %v7467, %v7463
        %v7469 = vmul.f32 %v7451, %v7468
        %v7470 = vpack.c.bf16 %v7469, %v7469
        %v7472 = vsel %vm7152, %v7470, 0
        %v7475 = vsel %vm7181, %v7130, 0
        %7477 = vmatpush.bf16.msra.mxu0 0
        %7478 = vmatpush.bf16.msra.mxu0 0
        %7479 = vmatpush.bf16.msra.mxu0 0
        %7480 = vmatpush.bf16.msra.mxu0 0
        %7481 = vmatpush.bf16.msra.mxu0 0
        %7482 = vmatpush.bf16.msra.mxu0 0
        %7483 = vmatpush.bf16.msra.mxu0 0
        %7484 = vmatpush.bf16.msra.mxu0 %v7475
        %7485 = vmatmul.bf16.gmra.mxu0 %v7472
        %v7486 = vpop.f32.mrf.mxu0
        %v7487 = vadd.f32 0.0, %v7486
        %v7488 = vpop.f32.mrf.mxu0
        %7489 = vdwg.mxu0
        %7490 = vst.msk [vmem:[#allocation2 + $0x10] sm:$0xff] %vm7132, %v7487
        %v7492 = vunpack.c.l.b16 %v7124
        %v7493 = vpack.c.b16 %v7492, %v7492
        %7494 = vrot.lane.b32.xlu0 %v7493, 64
        %v7495 = vpop.permute.xlu0 %7494
        %v7497 = vunpack.c.l.b16 %v7127
        %v7498 = vpack.c.b16 %v7497, %v7497
        %7499 = vrot.lane.b32.xlu0 %v7498, 64
        %v7500 = vpop.permute.xlu0 %7499
        %v7502 = vsel %vm7132, %v7495, 0
        %v7505 = vsel %vm7132, %v7500, 0
        %7507 = vmatpush.bf16.xpose.msra.mxu0 0
        %7508 = vmatpush.bf16.xpose.msra.mxu0 0
        %7509 = vmatpush.bf16.xpose.msra.mxu0 0
        %7510 = vmatpush.bf16.xpose.msra.mxu0 0
        %7511 = vmatpush.bf16.xpose.msra.mxu0 0
        %7512 = vmatpush.bf16.xpose.msra.mxu0 0
        %7513 = vmatpush.bf16.xpose.msra.mxu0 0
        %7514 = vmatpush.bf16.xpose.msra.mxu0 %v7505
        %7515 = vmatmul.bf16.gmra.mxu0 %v7502
        %v7516 = vpop.f32.mrf.mxu0
        %v7517 = vadd.f32 0.0, %v7516
        %v7518 = vpop.f32.mrf.mxu0
        %7519 = vdwg.mxu0
        %v7520 = vsel %vm7152, %v7517, -inf
        %7521 = vmax.xlane.f32.xlu0 %v7520
        %v7522 = vpop.xlane.xlu0 %7521
        %v7523 = vsub.f32 %v7517, %v7522
        %v7524 = vmul.f32 %v7523, 1.442695
        %v7525 = vpow.pop %v7524
        %v7526 = vsel %vm7152, %v7525, 0.0
        %7527 = vadd.xlane.f32.xlu0 %v7526
        %v7528 = vpop.xlane.xlu0 %7527
        %v7529 = vrcp.pop %v7528
        %v7530 = vmul.f32 %v7528, %v7529
        %v7531 = vsub.f32 1.0, %v7530
        %v7532 = vmul.f32 %v7529, %v7531
        %v7533 = vadd.f32 %v7529, %v7532
        %vm7534 = vweird.f32 %v7528
        %vm7535 = vweird.f32 %v7529
        %vm7536 = vmor %vm7534, %vm7535
        %v7537 = vsel %vm7536, %v7529, %v7533
        %v7538 = vand.u32 2147483647, %v7528
        %vm7539 = vcmp.eq.f32.partialorder %v7538, 8.507059e+37
        %v7540 = vand.u32 %v7528, 2147483648
        %v7541 = vor.u32 1.1754944e-38, %v7540
        %v7542 = vsel %vm7539, %v7541, %v7537
        %v7543 = vmul.f32 %v7525, %v7542
        %v7544 = vpack.c.bf16 %v7543, %v7543
        %v7546 = vunpack.c.l.b16 %v7130
        %v7547 = vpack.c.b16 %v7546, %v7546
        %7548 = vrot.lane.b32.xlu0 %v7547, 64
        %v7549 = vpop.permute.xlu0 %7548
        %v7551 = vsel %vm7152, %v7544, 0
        %v7554 = vsel %vm7181, %v7549, 0
        %7556 = vmatpush.bf16.msra.mxu0 0
        %7557 = vmatpush.bf16.msra.mxu0 0
        %7558 = vmatpush.bf16.msra.mxu0 0
        %7559 = vmatpush.bf16.msra.mxu0 0
        %7560 = vmatpush.bf16.msra.mxu0 0
        %7561 = vmatpush.bf16.msra.mxu0 0
        %7562 = vmatpush.bf16.msra.mxu0 0
        %7563 = vmatpush.bf16.msra.mxu0 %v7554
        %7564 = vmatmul.bf16.gmra.mxu0 %v7551
        %v7565 = vpop.f32.mrf.mxu0
        %v7566 = vadd.f32 0.0, %v7565
        %v7567 = vpop.f32.mrf.mxu0
        %7568 = vdwg.mxu0
        %7570 = vrot.lane.b32.xlu0 %v7566, 64
        %v7571 = vpop.permute.xlu0 %7570
        %7573 = vst.msk [vmem:[#allocation2 + $0x10] sm:$0xff] %vm7281, %v7571
        %v7574 = vunpack.c.h.b16 %v7124
        %v7575 = vpack.c.b16 %v7574, %v7574
        %v7576 = vunpack.c.h.b16 %v7127
        %v7577 = vpack.c.b16 %v7576, %v7576
        %v7579 = vsel %vm7132, %v7575, 0
        %v7582 = vsel %vm7132, %v7577, 0
        %7584 = vmatpush.bf16.xpose.msra.mxu0 0
        %7585 = vmatpush.bf16.xpose.msra.mxu0 0
        %7586 = vmatpush.bf16.xpose.msra.mxu0 0
        %7587 = vmatpush.bf16.xpose.msra.mxu0 0
        %7588 = vmatpush.bf16.xpose.msra.mxu0 0
        %7589 = vmatpush.bf16.xpose.msra.mxu0 0
        %7590 = vmatpush.bf16.xpose.msra.mxu0 0
        %7591 = vmatpush.bf16.xpose.msra.mxu0 %v7582
        %7592 = vmatmul.bf16.gmra.mxu0 %v7579
        %v7593 = vpop.f32.mrf.mxu0
        %v7594 = vadd.f32 0.0, %v7593
        %v7595 = vpop.f32.mrf.mxu0
        %7596 = vdwg.mxu0
        %v7597 = vsel %vm7152, %v7594, -inf
        %7598 = vmax.xlane.f32.xlu0 %v7597
        %v7599 = vpop.xlane.xlu0 %7598
        %v7600 = vsub.f32 %v7594, %v7599
        %v7601 = vmul.f32 %v7600, 1.442695
        %v7602 = vpow.pop %v7601
        %v7603 = vsel %vm7152, %v7602, 0.0
        %7604 = vadd.xlane.f32.xlu0 %v7603
        %v7605 = vpop.xlane.xlu0 %7604
        %v7606 = vrcp.pop %v7605
        %v7607 = vmul.f32 %v7605, %v7606
        %v7608 = vsub.f32 1.0, %v7607
        %v7609 = vmul.f32 %v7606, %v7608
        %v7610 = vadd.f32 %v7606, %v7609
        %vm7611 = vweird.f32 %v7605
        %vm7612 = vweird.f32 %v7606
        %vm7613 = vmor %vm7611, %vm7612
        %v7614 = vsel %vm7613, %v7606, %v7610
        %v7615 = vand.u32 2147483647, %v7605
        %vm7616 = vcmp.eq.f32.partialorder %v7615, 8.507059e+37
        %v7617 = vand.u32 %v7605, 2147483648
        %v7618 = vor.u32 1.1754944e-38, %v7617
        %v7619 = vsel %vm7616, %v7618, %v7614
        %v7620 = vmul.f32 %v7602, %v7619
        %v7621 = vpack.c.bf16 %v7620, %v7620
        %v7622 = vunpack.c.h.b16 %v7130
        %v7623 = vpack.c.b16 %v7622, %v7622
        %v7625 = vsel %vm7152, %v7621, 0
        %v7628 = vsel %vm7181, %v7623, 0
        %7630 = vmatpush.bf16.msra.mxu0 0
        %7631 = vmatpush.bf16.msra.mxu0 0
        %7632 = vmatpush.bf16.msra.mxu0 0
        %7633 = vmatpush.bf16.msra.mxu0 0
        %7634 = vmatpush.bf16.msra.mxu0 0
        %7635 = vmatpush.bf16.msra.mxu0 0
        %7636 = vmatpush.bf16.msra.mxu0 0
        %7637 = vmatpush.bf16.msra.mxu0 %v7628
        %7638 = vmatmul.bf16.gmra.mxu0 %v7625
        %v7639 = vpop.f32.mrf.mxu0
        %v7640 = vadd.f32 0.0, %v7639
        %v7641 = vpop.f32.mrf.mxu0
        %7642 = vdwg.mxu0
        %7643 = vst.msk [vmem:[#allocation2 + $0x18] sm:$0xff] %vm7132, %v7640
        %7644 = vrot.lane.b32.xlu0 %v7575, 64
        %v7645 = vpop.permute.xlu0 %7644
        %7646 = vrot.lane.b32.xlu0 %v7577, 64
        %v7647 = vpop.permute.xlu0 %7646
        %v7649 = vsel %vm7132, %v7645, 0
        %v7652 = vsel %vm7132, %v7647, 0
        %7654 = vmatpush.bf16.xpose.msra.mxu0 0
        %7655 = vmatpush.bf16.xpose.msra.mxu0 0
        %7656 = vmatpush.bf16.xpose.msra.mxu0 0
        %7657 = vmatpush.bf16.xpose.msra.mxu0 0
        %7658 = vmatpush.bf16.xpose.msra.mxu0 0
        %7659 = vmatpush.bf16.xpose.msra.mxu0 0
        %7660 = vmatpush.bf16.xpose.msra.mxu0 0
        %7661 = vmatpush.bf16.xpose.msra.mxu0 %v7652
        %7662 = vmatmul.bf16.gmra.mxu0 %v7649
        %v7663 = vpop.f32.mrf.mxu0
        %v7664 = vadd.f32 0.0, %v7663
        %v7665 = vpop.f32.mrf.mxu0
        %7666 = vdwg.mxu0
        %v7667 = vsel %vm7152, %v7664, -inf
        %7668 = vmax.xlane.f32.xlu0 %v7667
        %v7669 = vpop.xlane.xlu0 %7668
        %v7670 = vsub.f32 %v7664, %v7669
        %v7671 = vmul.f32 %v7670, 1.442695
        %v7672 = vpow.pop %v7671
        %v7673 = vsel %vm7152, %v7672, 0.0
        %7674 = vadd.xlane.f32.xlu0 %v7673
        %v7675 = vpop.xlane.xlu0 %7674
        %v7676 = vrcp.pop %v7675
        %v7677 = vmul.f32 %v7675, %v7676
        %v7678 = vsub.f32 1.0, %v7677
        %v7679 = vmul.f32 %v7676, %v7678
        %v7680 = vadd.f32 %v7676, %v7679
        %vm7681 = vweird.f32 %v7675
        %vm7682 = vweird.f32 %v7676
        %vm7683 = vmor %vm7681, %vm7682
        %v7684 = vsel %vm7683, %v7676, %v7680
        %v7685 = vand.u32 2147483647, %v7675
        %vm7686 = vcmp.eq.f32.partialorder %v7685, 8.507059e+37
        %v7687 = vand.u32 %v7675, 2147483648
        %v7688 = vor.u32 1.1754944e-38, %v7687
        %v7689 = vsel %vm7686, %v7688, %v7684
        %v7690 = vmul.f32 %v7672, %v7689
        %v7691 = vpack.c.bf16 %v7690, %v7690
        %7692 = vrot.lane.b32.xlu0 %v7623, 64
        %v7693 = vpop.permute.xlu0 %7692
        %v7695 = vsel %vm7152, %v7691, 0
        %v7698 = vsel %vm7181, %v7693, 0
        %7700 = vmatpush.bf16.msra.mxu0 0
        %7701 = vmatpush.bf16.msra.mxu0 0
        %7702 = vmatpush.bf16.msra.mxu0 0
        %7703 = vmatpush.bf16.msra.mxu0 0
        %7704 = vmatpush.bf16.msra.mxu0 0
        %7705 = vmatpush.bf16.msra.mxu0 0
        %7706 = vmatpush.bf16.msra.mxu0 0
        %7707 = vmatpush.bf16.msra.mxu0 %v7698
        %7708 = vmatmul.bf16.gmra.mxu0 %v7695
        %v7709 = vpop.f32.mrf.mxu0
        %v7710 = vadd.f32 0.0, %v7709
        %v7711 = vpop.f32.mrf.mxu0
        %7712 = vdwg.mxu0
        %7714 = vrot.lane.b32.xlu0 %v7710, 64
        %v7715 = vpop.permute.xlu0 %7714
        %7717 = vst.msk [vmem:[#allocation2 + $0x18] sm:$0xff] %vm7281, %v7715
        %v7719 = vsel %vm7132, %v7125, 0
        %v7722 = vsel %vm7132, %v7128, 0
        %7724 = vmatpush.bf16.xpose.msra.mxu0 0
        %7725 = vmatpush.bf16.xpose.msra.mxu0 0
        %7726 = vmatpush.bf16.xpose.msra.mxu0 0
        %7727 = vmatpush.bf16.xpose.msra.mxu0 0
        %7728 = vmatpush.bf16.xpose.msra.mxu0 0
        %7729 = vmatpush.bf16.xpose.msra.mxu0 0
        %7730 = vmatpush.bf16.xpose.msra.mxu0 0
        %7731 = vmatpush.bf16.xpose.msra.mxu0 %v7722
        %7732 = vmatmul.bf16.gmra.mxu0 %v7719
        %v7733 = vpop.f32.mrf.mxu0
        %v7734 = vadd.f32 0.0, %v7733
        %v7735 = vpop.f32.mrf.mxu0
        %7736 = vdwg.mxu0
        %v7737 = vsel %vm7152, %v7734, -inf
        %7738 = vmax.xlane.f32.xlu0 %v7737
        %v7739 = vpop.xlane.xlu0 %7738
        %v7740 = vsub.f32 %v7734, %v7739
        %v7741 = vmul.f32 %v7740, 1.442695
        %v7742 = vpow.pop %v7741
        %v7743 = vsel %vm7152, %v7742, 0.0
        %7744 = vadd.xlane.f32.xlu0 %v7743
        %v7745 = vpop.xlane.xlu0 %7744
        %v7746 = vrcp.pop %v7745
        %v7747 = vmul.f32 %v7745, %v7746
        %v7748 = vsub.f32 1.0, %v7747
        %v7749 = vmul.f32 %v7746, %v7748
        %v7750 = vadd.f32 %v7746, %v7749
        %vm7751 = vweird.f32 %v7745
        %vm7752 = vweird.f32 %v7746
        %vm7753 = vmor %vm7751, %vm7752
        %v7754 = vsel %vm7753, %v7746, %v7750
        %v7755 = vand.u32 2147483647, %v7745
        %vm7756 = vcmp.eq.f32.partialorder %v7755, 8.507059e+37
        %v7757 = vand.u32 %v7745, 2147483648
        %v7758 = vor.u32 1.1754944e-38, %v7757
        %v7759 = vsel %vm7756, %v7758, %v7754
        %v7760 = vmul.f32 %v7742, %v7759
        %v7761 = vpack.c.bf16 %v7760, %v7760
        %v7763 = vsel %vm7152, %v7761, 0
        %v7766 = vsel %vm7181, %v7131, 0
        %7768 = vmatpush.bf16.msra.mxu0 0
        %7769 = vmatpush.bf16.msra.mxu0 0
        %7770 = vmatpush.bf16.msra.mxu0 0
        %7771 = vmatpush.bf16.msra.mxu0 0
        %7772 = vmatpush.bf16.msra.mxu0 0
        %7773 = vmatpush.bf16.msra.mxu0 0
        %7774 = vmatpush.bf16.msra.mxu0 0
        %7775 = vmatpush.bf16.msra.mxu0 %v7766
        %7776 = vmatmul.bf16.gmra.mxu0 %v7763
        %v7777 = vpop.f32.mrf.mxu0
        %v7778 = vadd.f32 0.0, %v7777
        %v7779 = vpop.f32.mrf.mxu0
        %7780 = vdwg.mxu0
        %7781 = vst.msk [vmem:[#allocation2 + $0x20] sm:$0xff] %vm7132, %v7778
        %v7783 = vunpack.c.l.b16 %v7125
        %v7784 = vpack.c.b16 %v7783, %v7783
        %7785 = vrot.lane.b32.xlu0 %v7784, 64
        %v7786 = vpop.permute.xlu0 %7785
        %v7788 = vunpack.c.l.b16 %v7128
        %v7789 = vpack.c.b16 %v7788, %v7788
        %7790 = vrot.lane.b32.xlu0 %v7789, 64
        %v7791 = vpop.permute.xlu0 %7790
        %v7793 = vsel %vm7132, %v7786, 0
        %v7796 = vsel %vm7132, %v7791, 0
        %7798 = vmatpush.bf16.xpose.msra.mxu0 0
        %7799 = vmatpush.bf16.xpose.msra.mxu0 0
        %7800 = vmatpush.bf16.xpose.msra.mxu0 0
        %7801 = vmatpush.bf16.xpose.msra.mxu0 0
        %7802 = vmatpush.bf16.xpose.msra.mxu0 0
        %7803 = vmatpush.bf16.xpose.msra.mxu0 0
        %7804 = vmatpush.bf16.xpose.msra.mxu0 0
        %7805 = vmatpush.bf16.xpose.msra.mxu0 %v7796
        %7806 = vmatmul.bf16.gmra.mxu0 %v7793
        %v7807 = vpop.f32.mrf.mxu0
        %v7808 = vadd.f32 0.0, %v7807
        %v7809 = vpop.f32.mrf.mxu0
        %7810 = vdwg.mxu0
        %v7811 = vsel %vm7152, %v7808, -inf
        %7812 = vmax.xlane.f32.xlu0 %v7811
        %v7813 = vpop.xlane.xlu0 %7812
        %v7814 = vsub.f32 %v7808, %v7813
        %v7815 = vmul.f32 %v7814, 1.442695
        %v7816 = vpow.pop %v7815
        %v7817 = vsel %vm7152, %v7816, 0.0
        %7818 = vadd.xlane.f32.xlu0 %v7817
        %v7819 = vpop.xlane.xlu0 %7818
        %v7820 = vrcp.pop %v7819
        %v7821 = vmul.f32 %v7819, %v7820
        %v7822 = vsub.f32 1.0, %v7821
        %v7823 = vmul.f32 %v7820, %v7822
        %v7824 = vadd.f32 %v7820, %v7823
        %vm7825 = vweird.f32 %v7819
        %vm7826 = vweird.f32 %v7820
        %vm7827 = vmor %vm7825, %vm7826
        %v7828 = vsel %vm7827, %v7820, %v7824
        %v7829 = vand.u32 2147483647, %v7819
        %vm7830 = vcmp.eq.f32.partialorder %v7829, 8.507059e+37
        %v7831 = vand.u32 %v7819, 2147483648
        %v7832 = vor.u32 1.1754944e-38, %v7831
        %v7833 = vsel %vm7830, %v7832, %v7828
        %v7834 = vmul.f32 %v7816, %v7833
        %v7835 = vpack.c.bf16 %v7834, %v7834
        %v7837 = vunpack.c.l.b16 %v7131
        %v7838 = vpack.c.b16 %v7837, %v7837
        %7839 = vrot.lane.b32.xlu0 %v7838, 64
        %v7840 = vpop.permute.xlu0 %7839
        %v7842 = vsel %vm7152, %v7835, 0
        %v7845 = vsel %vm7181, %v7840, 0
        %7847 = vmatpush.bf16.msra.mxu0 0
        %7848 = vmatpush.bf16.msra.mxu0 0
        %7849 = vmatpush.bf16.msra.mxu0 0
        %7850 = vmatpush.bf16.msra.mxu0 0
        %7851 = vmatpush.bf16.msra.mxu0 0
        %7852 = vmatpush.bf16.msra.mxu0 0
        %7853 = vmatpush.bf16.msra.mxu0 0
        %7854 = vmatpush.bf16.msra.mxu0 %v7845
        %7855 = vmatmul.bf16.gmra.mxu0 %v7842
        %v7856 = vpop.f32.mrf.mxu0
        %v7857 = vadd.f32 0.0, %v7856
        %v7858 = vpop.f32.mrf.mxu0
        %7859 = vdwg.mxu0
        %7861 = vrot.lane.b32.xlu0 %v7857, 64
        %v7862 = vpop.permute.xlu0 %7861
        %7864 = vst.msk [vmem:[#allocation2 + $0x20] sm:$0xff] %vm7281, %v7862
        %v7865 = vunpack.c.h.b16 %v7125
        %v7866 = vpack.c.b16 %v7865, %v7865
        %v7867 = vunpack.c.h.b16 %v7128
        %v7868 = vpack.c.b16 %v7867, %v7867
        %v7870 = vsel %vm7132, %v7866, 0
        %v7873 = vsel %vm7132, %v7868, 0
        %7875 = vmatpush.bf16.xpose.msra.mxu0 0
        %7876 = vmatpush.bf16.xpose.msra.mxu0 0
        %7877 = vmatpush.bf16.xpose.msra.mxu0 0
        %7878 = vmatpush.bf16.xpose.msra.mxu0 0
        %7879 = vmatpush.bf16.xpose.msra.mxu0 0
        %7880 = vmatpush.bf16.xpose.msra.mxu0 0
        %7881 = vmatpush.bf16.xpose.msra.mxu0 0
        %7882 = vmatpush.bf16.xpose.msra.mxu0 %v7873
        %7883 = vmatmul.bf16.gmra.mxu0 %v7870
        %v7884 = vpop.f32.mrf.mxu0
        %v7885 = vadd.f32 0.0, %v7884
        %v7886 = vpop.f32.mrf.mxu0
        %7887 = vdwg.mxu0
        %v7888 = vsel %vm7152, %v7885, -inf
        %7889 = vmax.xlane.f32.xlu0 %v7888
        %v7890 = vpop.xlane.xlu0 %7889
        %v7891 = vsub.f32 %v7885, %v7890
        %v7892 = vmul.f32 %v7891, 1.442695
        %v7893 = vpow.pop %v7892
        %v7894 = vsel %vm7152, %v7893, 0.0
        %7895 = vadd.xlane.f32.xlu0 %v7894
        %v7896 = vpop.xlane.xlu0 %7895
        %v7897 = vrcp.pop %v7896
        %v7898 = vmul.f32 %v7896, %v7897
        %v7899 = vsub.f32 1.0, %v7898
        %v7900 = vmul.f32 %v7897, %v7899
        %v7901 = vadd.f32 %v7897, %v7900
        %vm7902 = vweird.f32 %v7896
        %vm7903 = vweird.f32 %v7897
        %vm7904 = vmor %vm7902, %vm7903
        %v7905 = vsel %vm7904, %v7897, %v7901
        %v7906 = vand.u32 2147483647, %v7896
        %vm7907 = vcmp.eq.f32.partialorder %v7906, 8.507059e+37
        %v7908 = vand.u32 %v7896, 2147483648
        %v7909 = vor.u32 1.1754944e-38, %v7908
        %v7910 = vsel %vm7907, %v7909, %v7905
        %v7911 = vmul.f32 %v7893, %v7910
        %v7912 = vpack.c.bf16 %v7911, %v7911
        %v7913 = vunpack.c.h.b16 %v7131
        %v7914 = vpack.c.b16 %v7913, %v7913
        %v7916 = vsel %vm7152, %v7912, 0
        %v7919 = vsel %vm7181, %v7914, 0
        %7921 = vmatpush.bf16.msra.mxu0 0
        %7922 = vmatpush.bf16.msra.mxu0 0
        %7923 = vmatpush.bf16.msra.mxu0 0
        %7924 = vmatpush.bf16.msra.mxu0 0
        %7925 = vmatpush.bf16.msra.mxu0 0
        %7926 = vmatpush.bf16.msra.mxu0 0
        %7927 = vmatpush.bf16.msra.mxu0 0
        %7928 = vmatpush.bf16.msra.mxu0 %v7919
        %7929 = vmatmul.bf16.gmra.mxu0 %v7916
        %v7930 = vpop.f32.mrf.mxu0
        %v7931 = vadd.f32 0.0, %v7930
        %v7932 = vpop.f32.mrf.mxu0
        %7933 = vdwg.mxu0
        %7934 = vst.msk [vmem:[#allocation2 + $0x28] sm:$0xff] %vm7132, %v7931
        %7935 = vrot.lane.b32.xlu0 %v7866, 64
        %v7936 = vpop.permute.xlu0 %7935
        %7937 = vrot.lane.b32.xlu0 %v7868, 64
        %v7938 = vpop.permute.xlu0 %7937
        %v7940 = vsel %vm7132, %v7936, 0
        %v7943 = vsel %vm7132, %v7938, 0
        %7945 = vmatpush.bf16.xpose.msra.mxu0 0
        %7946 = vmatpush.bf16.xpose.msra.mxu0 0
        %7947 = vmatpush.bf16.xpose.msra.mxu0 0
        %7948 = vmatpush.bf16.xpose.msra.mxu0 0
        %7949 = vmatpush.bf16.xpose.msra.mxu0 0
        %7950 = vmatpush.bf16.xpose.msra.mxu0 0
        %7951 = vmatpush.bf16.xpose.msra.mxu0 0
        %7952 = vmatpush.bf16.xpose.msra.mxu0 %v7943
        %7953 = vmatmul.bf16.gmra.mxu0 %v7940
        %v7954 = vpop.f32.mrf.mxu0
        %v7955 = vadd.f32 0.0, %v7954
        %v7956 = vpop.f32.mrf.mxu0
        %7957 = vdwg.mxu0
        %v7958 = vsel %vm7152, %v7955, -inf
        %7959 = vmax.xlane.f32.xlu0 %v7958
        %v7960 = vpop.xlane.xlu0 %7959
        %v7961 = vsub.f32 %v7955, %v7960
        %v7962 = vmul.f32 %v7961, 1.442695
        %v7963 = vpow.pop %v7962
        %v7964 = vsel %vm7152, %v7963, 0.0
        %7965 = vadd.xlane.f32.xlu0 %v7964
        %v7966 = vpop.xlane.xlu0 %7965
        %v7967 = vrcp.pop %v7966
        %v7968 = vmul.f32 %v7966, %v7967
        %v7969 = vsub.f32 1.0, %v7968
        %v7970 = vmul.f32 %v7967, %v7969
        %v7971 = vadd.f32 %v7967, %v7970
        %vm7972 = vweird.f32 %v7966
        %vm7973 = vweird.f32 %v7967
        %vm7974 = vmor %vm7972, %vm7973
        %v7975 = vsel %vm7974, %v7967, %v7971
        %v7976 = vand.u32 2147483647, %v7966
        %vm7977 = vcmp.eq.f32.partialorder %v7976, 8.507059e+37
        %v7978 = vand.u32 %v7966, 2147483648
        %v7979 = vor.u32 1.1754944e-38, %v7978
        %v7980 = vsel %vm7977, %v7979, %v7975
        %v7981 = vmul.f32 %v7963, %v7980
        %v7982 = vpack.c.bf16 %v7981, %v7981
        %7983 = vrot.lane.b32.xlu0 %v7914, 64
        %v7984 = vpop.permute.xlu0 %7983
        %v7986 = vsel %vm7152, %v7982, 0
        %v7989 = vsel %vm7181, %v7984, 0
        %7991 = vmatpush.bf16.msra.mxu0 0
        %7992 = vmatpush.bf16.msra.mxu0 0
        %7993 = vmatpush.bf16.msra.mxu0 0
        %7994 = vmatpush.bf16.msra.mxu0 0
        %7995 = vmatpush.bf16.msra.mxu0 0
        %7996 = vmatpush.bf16.msra.mxu0 0
        %7997 = vmatpush.bf16.msra.mxu0 0
        %7998 = vmatpush.bf16.msra.mxu0 %v7989
        %7999 = vmatmul.bf16.gmra.mxu0 %v7986
        %v8000 = vpop.f32.mrf.mxu0
        %v8001 = vadd.f32 0.0, %v8000
        %v8002 = vpop.f32.mrf.mxu0
        %8003 = vdwg.mxu0
        %8005 = vrot.lane.b32.xlu0 %v8001, 64
        %v8006 = vpop.permute.xlu0 %8005
        %8008 = vst.msk [vmem:[#allocation2 + $0x28] sm:$0xff] %vm7281, %v8006
        %v8009 = vld [vmem:[#allocation2] sm:$0xff]
        %v8010 = vld [vmem:[#allocation2 + $0x8] sm:$0xff]
        %v8011 = vld [vmem:[#allocation2 + $0x10] sm:$0xff]
        %v8012 = vld [vmem:[#allocation2 + $0x18] sm:$0xff]
        %v8013 = vld [vmem:[#allocation2 + $0x20] sm:$0xff]
        %v8014 = vld [vmem:[#allocation2 + $0x28] sm:$0xff]
        %v8015 = vpack.c.bf16 %v8009, %v8009
        %v8016 = vpack.c.bf16 %v8010, %v8010
        %v8017 = vpack.c.bf16 %v8011, %v8011
        %v8018 = vpack.c.bf16 %v8012, %v8012
        %v8019 = vpack.c.bf16 %v8013, %v8013
        %v8020 = vpack.c.bf16 %v8014, %v8014
        %v8021 = vld [vmem:[#allocation12] sm:$0xff]
        %v8022 = vld [vmem:[#allocation12 + $0x8] sm:$0xff]
        %v8023 = vld [vmem:[#allocation12 + $0x10] sm:$0xff]
        %v8024 = vld [vmem:[#allocation12 + $0x18] sm:$0xff]
        %v8025 = vld [vmem:[#allocation12 + $0x20] sm:$0xff]
        %v8026 = vld [vmem:[#allocation12 + $0x28] sm:$0xff]
        %v8027 = vld [vmem:[#allocation12 + $0x30] sm:$0xff]
        %v8028 = vld [vmem:[#allocation12 + $0x38] sm:$0xff]
        %v8029 = vld [vmem:[#allocation12 + $0x40] sm:$0xff]
        %v8030 = vld [vmem:[#allocation12 + $0x48] sm:$0xff]
        %v8031 = vld [vmem:[#allocation12 + $0x50] sm:$0xff]
        %v8032 = vld [vmem:[#allocation12 + $0x58] sm:$0xff]
        %v8033 = vld [vmem:[#allocation12 + $0x60] sm:$0xff]
        %v8034 = vld [vmem:[#allocation12 + $0x68] sm:$0xff]
        %v8035 = vld [vmem:[#allocation12 + $0x70] sm:$0xff]
        %v8036 = vld [vmem:[#allocation12 + $0x78] sm:$0xff]
        %v8037 = vld [vmem:[#allocation12 + $0x80] sm:$0xff]
        %v8038 = vld [vmem:[#allocation12 + $0x88] sm:$0xff]
        %v8039 = vld [vmem:[#allocation12 + $0x90] sm:$0xff]
        %v8040 = vld [vmem:[#allocation12 + $0x98] sm:$0xff]
        %v8041 = vld [vmem:[#allocation12 + $0xa0] sm:$0xff]
        %v8042 = vld [vmem:[#allocation12 + $0xa8] sm:$0xff]
        %v8043 = vld [vmem:[#allocation12 + $0xb0] sm:$0xff]
        %v8044 = vld [vmem:[#allocation12 + $0xb8] sm:$0xff]
        %v8045 = vld [vmem:[#allocation12 + $0xc0] sm:$0xff]
        %v8046 = vld [vmem:[#allocation12 + $0xc8] sm:$0xff]
        %v8047 = vld [vmem:[#allocation12 + $0xd0] sm:$0xff]
        %v8048 = vld [vmem:[#allocation12 + $0xd8] sm:$0xff]
        %v8049 = vld [vmem:[#allocation12 + $0xe0] sm:$0xff]
        %v8050 = vld [vmem:[#allocation12 + $0xe8] sm:$0xff]
        %v8051 = vld [vmem:[#allocation12 + $0xf0] sm:$0xff]
        %v8052 = vld [vmem:[#allocation12 + $0xf8] sm:$0xff]
        %v8053 = vld [vmem:[#allocation12 + $0x100] sm:$0xff]
        %v8054 = vld [vmem:[#allocation12 + $0x108] sm:$0xff]
        %v8055 = vld [vmem:[#allocation12 + $0x110] sm:$0xff]
        %v8056 = vld [vmem:[#allocation12 + $0x118] sm:$0xff]
        %v8057 = vld [vmem:[#allocation12 + $0x120] sm:$0xff]
        %v8058 = vld [vmem:[#allocation12 + $0x128] sm:$0xff]
        %v8059 = vld [vmem:[#allocation12 + $0x130] sm:$0xff]
        %v8060 = vld [vmem:[#allocation12 + $0x138] sm:$0xff]
        %v8061 = vld [vmem:[#allocation12 + $0x140] sm:$0xff]
        %v8062 = vld [vmem:[#allocation12 + $0x148] sm:$0xff]
        %v8063 = vld [vmem:[#allocation12 + $0x150] sm:$0xff]
        %v8064 = vld [vmem:[#allocation12 + $0x158] sm:$0xff]
        %v8065 = vld [vmem:[#allocation12 + $0x160] sm:$0xff]
        %v8066 = vld [vmem:[#allocation12 + $0x168] sm:$0xff]
        %v8067 = vld [vmem:[#allocation12 + $0x170] sm:$0xff]
        %v8068 = vld [vmem:[#allocation12 + $0x178] sm:$0xff]
        %v8069 = vld [vmem:[#allocation12 + $0x180] sm:$0xff]
        %v8070 = vld [vmem:[#allocation12 + $0x188] sm:$0xff]
        %v8071 = vld [vmem:[#allocation12 + $0x190] sm:$0xff]
        %v8072 = vld [vmem:[#allocation12 + $0x198] sm:$0xff]
        %v8073 = vld [vmem:[#allocation12 + $0x1a0] sm:$0xff]
        %v8074 = vld [vmem:[#allocation12 + $0x1a8] sm:$0xff]
        %v8075 = vld [vmem:[#allocation12 + $0x1b0] sm:$0xff]
        %v8076 = vld [vmem:[#allocation12 + $0x1b8] sm:$0xff]
        %v8077 = vld [vmem:[#allocation12 + $0x1c0] sm:$0xff]
        %v8078 = vld [vmem:[#allocation12 + $0x1c8] sm:$0xff]
        %v8079 = vld [vmem:[#allocation12 + $0x1d0] sm:$0xff]
        %v8080 = vld [vmem:[#allocation12 + $0x1d8] sm:$0xff]
        %v8081 = vld [vmem:[#allocation12 + $0x1e0] sm:$0xff]
        %v8082 = vld [vmem:[#allocation12 + $0x1e8] sm:$0xff]
        %v8083 = vld [vmem:[#allocation12 + $0x1f0] sm:$0xff]
        %v8084 = vld [vmem:[#allocation12 + $0x1f8] sm:$0xff]
        %v8085 = vld [vmem:[#allocation12 + $0x200] sm:$0xff]
        %v8086 = vld [vmem:[#allocation12 + $0x208] sm:$0xff]
        %v8087 = vld [vmem:[#allocation12 + $0x210] sm:$0xff]
        %v8088 = vld [vmem:[#allocation12 + $0x218] sm:$0xff]
        %v8089 = vld [vmem:[#allocation12 + $0x220] sm:$0xff]
        %v8090 = vld [vmem:[#allocation12 + $0x228] sm:$0xff]
        %v8091 = vld [vmem:[#allocation12 + $0x230] sm:$0xff]
        %v8092 = vld [vmem:[#allocation12 + $0x238] sm:$0xff]
        %v8093 = vld [vmem:[#allocation12 + $0x240] sm:$0xff]
        %v8094 = vld [vmem:[#allocation12 + $0x248] sm:$0xff]
        %v8095 = vld [vmem:[#allocation12 + $0x250] sm:$0xff]
        %v8096 = vld [vmem:[#allocation12 + $0x258] sm:$0xff]
        %v8097 = vld [vmem:[#allocation12 + $0x260] sm:$0xff]
        %v8098 = vld [vmem:[#allocation12 + $0x268] sm:$0xff]
        %v8099 = vld [vmem:[#allocation12 + $0x270] sm:$0xff]
        %v8100 = vld [vmem:[#allocation12 + $0x278] sm:$0xff]
        %v8101 = vld [vmem:[#allocation12 + $0x280] sm:$0xff]
        %v8102 = vld [vmem:[#allocation12 + $0x288] sm:$0xff]
        %v8103 = vld [vmem:[#allocation12 + $0x290] sm:$0xff]
        %v8104 = vld [vmem:[#allocation12 + $0x298] sm:$0xff]
        %v8105 = vld [vmem:[#allocation12 + $0x2a0] sm:$0xff]
        %v8106 = vld [vmem:[#allocation12 + $0x2a8] sm:$0xff]
        %v8107 = vld [vmem:[#allocation12 + $0x2b0] sm:$0xff]
        %v8108 = vld [vmem:[#allocation12 + $0x2b8] sm:$0xff]
        %v8109 = vld [vmem:[#allocation12 + $0x2c0] sm:$0xff]
        %v8110 = vld [vmem:[#allocation12 + $0x2c8] sm:$0xff]
        %v8111 = vld [vmem:[#allocation12 + $0x2d0] sm:$0xff]
        %v8112 = vld [vmem:[#allocation12 + $0x2d8] sm:$0xff]
        %v8113 = vld [vmem:[#allocation12 + $0x2e0] sm:$0xff]
        %v8114 = vld [vmem:[#allocation12 + $0x2e8] sm:$0xff]
        %v8115 = vld [vmem:[#allocation12 + $0x2f0] sm:$0xff]
        %v8116 = vld [vmem:[#allocation12 + $0x2f8] sm:$0xff]
        %v8117 = vld [vmem:[#allocation12 + $0x300] sm:$0xff]
        %v8118 = vld [vmem:[#allocation12 + $0x308] sm:$0xff]
        %v8119 = vld [vmem:[#allocation12 + $0x310] sm:$0xff]
        %v8120 = vld [vmem:[#allocation12 + $0x318] sm:$0xff]
        %v8121 = vld [vmem:[#allocation12 + $0x320] sm:$0xff]
        %v8122 = vld [vmem:[#allocation12 + $0x328] sm:$0xff]
        %v8123 = vld [vmem:[#allocation12 + $0x330] sm:$0xff]
        %v8124 = vld [vmem:[#allocation12 + $0x338] sm:$0xff]
        %v8125 = vld [vmem:[#allocation12 + $0x340] sm:$0xff]
        %v8126 = vld [vmem:[#allocation12 + $0x348] sm:$0xff]
        %v8127 = vld [vmem:[#allocation12 + $0x350] sm:$0xff]
        %v8128 = vld [vmem:[#allocation12 + $0x358] sm:$0xff]
        %v8129 = vld [vmem:[#allocation12 + $0x360] sm:$0xff]
        %v8130 = vld [vmem:[#allocation12 + $0x368] sm:$0xff]
        %v8131 = vld [vmem:[#allocation12 + $0x370] sm:$0xff]
        %v8132 = vld [vmem:[#allocation12 + $0x378] sm:$0xff]
        %v8133 = vld [vmem:[#allocation12 + $0x380] sm:$0xff]
        %v8134 = vld [vmem:[#allocation12 + $0x388] sm:$0xff]
        %v8135 = vld [vmem:[#allocation12 + $0x390] sm:$0xff]
        %v8136 = vld [vmem:[#allocation12 + $0x398] sm:$0xff]
        %v8137 = vld [vmem:[#allocation12 + $0x3a0] sm:$0xff]
        %v8138 = vld [vmem:[#allocation12 + $0x3a8] sm:$0xff]
        %v8139 = vld [vmem:[#allocation12 + $0x3b0] sm:$0xff]
        %v8140 = vld [vmem:[#allocation12 + $0x3b8] sm:$0xff]
        %v8141 = vld [vmem:[#allocation12 + $0x3c0] sm:$0xff]
        %v8142 = vld [vmem:[#allocation12 + $0x3c8] sm:$0xff]
        %v8143 = vld [vmem:[#allocation12 + $0x3d0] sm:$0xff]
        %v8144 = vld [vmem:[#allocation12 + $0x3d8] sm:$0xff]
        %v8145 = vld [vmem:[#allocation12 + $0x3e0] sm:$0xff]
        %v8146 = vld [vmem:[#allocation12 + $0x3e8] sm:$0xff]
        %v8147 = vld [vmem:[#allocation12 + $0x3f0] sm:$0xff]
        %v8148 = vld [vmem:[#allocation12 + $0x3f8] sm:$0xff]
        %v8149 = vld [vmem:[#allocation12 + $0x400] sm:$0xff]
        %v8150 = vld [vmem:[#allocation12 + $0x408] sm:$0xff]
        %v8151 = vld [vmem:[#allocation12 + $0x410] sm:$0xff]
        %v8152 = vld [vmem:[#allocation12 + $0x418] sm:$0xff]
        %v8153 = vld [vmem:[#allocation12 + $0x420] sm:$0xff]
        %v8154 = vld [vmem:[#allocation12 + $0x428] sm:$0xff]
        %v8155 = vld [vmem:[#allocation12 + $0x430] sm:$0xff]
        %v8156 = vld [vmem:[#allocation12 + $0x438] sm:$0xff]
        %v8157 = vld [vmem:[#allocation12 + $0x440] sm:$0xff]
        %v8158 = vld [vmem:[#allocation12 + $0x448] sm:$0xff]
        %v8159 = vld [vmem:[#allocation12 + $0x450] sm:$0xff]
        %v8160 = vld [vmem:[#allocation12 + $0x458] sm:$0xff]
        %v8161 = vld [vmem:[#allocation12 + $0x460] sm:$0xff]
        %v8162 = vld [vmem:[#allocation12 + $0x468] sm:$0xff]
        %v8163 = vld [vmem:[#allocation12 + $0x470] sm:$0xff]
        %v8164 = vld [vmem:[#allocation12 + $0x478] sm:$0xff]
        %v8165 = vld [vmem:[#allocation12 + $0x480] sm:$0xff]
        %v8166 = vld [vmem:[#allocation12 + $0x488] sm:$0xff]
        %v8167 = vld [vmem:[#allocation12 + $0x490] sm:$0xff]
        %v8168 = vld [vmem:[#allocation12 + $0x498] sm:$0xff]
        %v8169 = vld [vmem:[#allocation12 + $0x4a0] sm:$0xff]
        %v8170 = vld [vmem:[#allocation12 + $0x4a8] sm:$0xff]
        %v8171 = vld [vmem:[#allocation12 + $0x4b0] sm:$0xff]
        %v8172 = vld [vmem:[#allocation12 + $0x4b8] sm:$0xff]
        %v8173 = vld [vmem:[#allocation12 + $0x4c0] sm:$0xff]
        %v8174 = vld [vmem:[#allocation12 + $0x4c8] sm:$0xff]
        %v8175 = vld [vmem:[#allocation12 + $0x4d0] sm:$0xff]
        %v8176 = vld [vmem:[#allocation12 + $0x4d8] sm:$0xff]
        %v8177 = vld [vmem:[#allocation12 + $0x4e0] sm:$0xff]
        %v8178 = vld [vmem:[#allocation12 + $0x4e8] sm:$0xff]
        %v8179 = vld [vmem:[#allocation12 + $0x4f0] sm:$0xff]
        %v8180 = vld [vmem:[#allocation12 + $0x4f8] sm:$0xff]
        %v8181 = vld [vmem:[#allocation12 + $0x500] sm:$0xff]
        %v8182 = vld [vmem:[#allocation12 + $0x508] sm:$0xff]
        %v8183 = vld [vmem:[#allocation12 + $0x510] sm:$0xff]
        %v8184 = vld [vmem:[#allocation12 + $0x518] sm:$0xff]
        %v8185 = vld [vmem:[#allocation12 + $0x520] sm:$0xff]
        %v8186 = vld [vmem:[#allocation12 + $0x528] sm:$0xff]
        %v8187 = vld [vmem:[#allocation12 + $0x530] sm:$0xff]
        %v8188 = vld [vmem:[#allocation12 + $0x538] sm:$0xff]
        %v8189 = vld [vmem:[#allocation12 + $0x540] sm:$0xff]
        %v8190 = vld [vmem:[#allocation12 + $0x548] sm:$0xff]
        %v8191 = vld [vmem:[#allocation12 + $0x550] sm:$0xff]
        %v8192 = vld [vmem:[#allocation12 + $0x558] sm:$0xff]
        %v8193 = vld [vmem:[#allocation12 + $0x560] sm:$0xff]
        %v8194 = vld [vmem:[#allocation12 + $0x568] sm:$0xff]
        %v8195 = vld [vmem:[#allocation12 + $0x570] sm:$0xff]
        %v8196 = vld [vmem:[#allocation12 + $0x578] sm:$0xff]
        %v8197 = vld [vmem:[#allocation12 + $0x580] sm:$0xff]
        %v8198 = vld [vmem:[#allocation12 + $0x588] sm:$0xff]
        %v8199 = vld [vmem:[#allocation12 + $0x590] sm:$0xff]
        %v8200 = vld [vmem:[#allocation12 + $0x598] sm:$0xff]
        %v8201 = vld [vmem:[#allocation12 + $0x5a0] sm:$0xff]
        %v8202 = vld [vmem:[#allocation12 + $0x5a8] sm:$0xff]
        %v8203 = vld [vmem:[#allocation12 + $0x5b0] sm:$0xff]
        %v8204 = vld [vmem:[#allocation12 + $0x5b8] sm:$0xff]
        %v8205 = vld [vmem:[#allocation12 + $0x5c0] sm:$0xff]
        %v8206 = vld [vmem:[#allocation12 + $0x5c8] sm:$0xff]
        %v8207 = vld [vmem:[#allocation12 + $0x5d0] sm:$0xff]
        %v8208 = vld [vmem:[#allocation12 + $0x5d8] sm:$0xff]
        %v8209 = vld [vmem:[#allocation12 + $0x5e0] sm:$0xff]
        %v8210 = vld [vmem:[#allocation12 + $0x5e8] sm:$0xff]
        %v8211 = vld [vmem:[#allocation12 + $0x5f0] sm:$0xff]
        %v8212 = vld [vmem:[#allocation12 + $0x5f8] sm:$0xff]
        %v8213 = vld [vmem:[#allocation12 + $0x600] sm:$0xff]
        %v8214 = vld [vmem:[#allocation12 + $0x608] sm:$0xff]
        %v8215 = vld [vmem:[#allocation12 + $0x610] sm:$0xff]
        %v8216 = vld [vmem:[#allocation12 + $0x618] sm:$0xff]
        %v8217 = vld [vmem:[#allocation12 + $0x620] sm:$0xff]
        %v8218 = vld [vmem:[#allocation12 + $0x628] sm:$0xff]
        %v8219 = vld [vmem:[#allocation12 + $0x630] sm:$0xff]
        %v8220 = vld [vmem:[#allocation12 + $0x638] sm:$0xff]
        %v8221 = vld [vmem:[#allocation12 + $0x640] sm:$0xff]
        %v8222 = vld [vmem:[#allocation12 + $0x648] sm:$0xff]
        %v8223 = vld [vmem:[#allocation12 + $0x650] sm:$0xff]
        %v8224 = vld [vmem:[#allocation12 + $0x658] sm:$0xff]
        %v8225 = vld [vmem:[#allocation12 + $0x660] sm:$0xff]
        %v8226 = vld [vmem:[#allocation12 + $0x668] sm:$0xff]
        %v8227 = vld [vmem:[#allocation12 + $0x670] sm:$0xff]
        %v8228 = vld [vmem:[#allocation12 + $0x678] sm:$0xff]
        %v8229 = vld [vmem:[#allocation12 + $0x680] sm:$0xff]
        %v8230 = vld [vmem:[#allocation12 + $0x688] sm:$0xff]
        %v8231 = vld [vmem:[#allocation12 + $0x690] sm:$0xff]
        %v8232 = vld [vmem:[#allocation12 + $0x698] sm:$0xff]
        %v8233 = vld [vmem:[#allocation12 + $0x6a0] sm:$0xff]
        %v8234 = vld [vmem:[#allocation12 + $0x6a8] sm:$0xff]
        %v8235 = vld [vmem:[#allocation12 + $0x6b0] sm:$0xff]
        %v8236 = vld [vmem:[#allocation12 + $0x6b8] sm:$0xff]
        %v8237 = vld [vmem:[#allocation12 + $0x6c0] sm:$0xff]
        %v8238 = vld [vmem:[#allocation12 + $0x6c8] sm:$0xff]
        %v8239 = vld [vmem:[#allocation12 + $0x6d0] sm:$0xff]
        %v8240 = vld [vmem:[#allocation12 + $0x6d8] sm:$0xff]
        %v8241 = vld [vmem:[#allocation12 + $0x6e0] sm:$0xff]
        %v8242 = vld [vmem:[#allocation12 + $0x6e8] sm:$0xff]
        %v8243 = vld [vmem:[#allocation12 + $0x6f0] sm:$0xff]
        %v8244 = vld [vmem:[#allocation12 + $0x6f8] sm:$0xff]
        %v8245 = vld [vmem:[#allocation12 + $0x700] sm:$0xff]
        %v8246 = vld [vmem:[#allocation12 + $0x708] sm:$0xff]
        %v8247 = vld [vmem:[#allocation12 + $0x710] sm:$0xff]
        %v8248 = vld [vmem:[#allocation12 + $0x718] sm:$0xff]
        %v8249 = vld [vmem:[#allocation12 + $0x720] sm:$0xff]
        %v8250 = vld [vmem:[#allocation12 + $0x728] sm:$0xff]
        %v8251 = vld [vmem:[#allocation12 + $0x730] sm:$0xff]
        %v8252 = vld [vmem:[#allocation12 + $0x738] sm:$0xff]
        %v8253 = vld [vmem:[#allocation12 + $0x740] sm:$0xff]
        %v8254 = vld [vmem:[#allocation12 + $0x748] sm:$0xff]
        %v8255 = vld [vmem:[#allocation12 + $0x750] sm:$0xff]
        %v8256 = vld [vmem:[#allocation12 + $0x758] sm:$0xff]
        %v8257 = vld [vmem:[#allocation12 + $0x760] sm:$0xff]
        %v8258 = vld [vmem:[#allocation12 + $0x768] sm:$0xff]
        %v8259 = vld [vmem:[#allocation12 + $0x770] sm:$0xff]
        %v8260 = vld [vmem:[#allocation12 + $0x778] sm:$0xff]
        %v8261 = vld [vmem:[#allocation12 + $0x780] sm:$0xff]
        %v8262 = vld [vmem:[#allocation12 + $0x788] sm:$0xff]
        %v8263 = vld [vmem:[#allocation12 + $0x790] sm:$0xff]
        %v8264 = vld [vmem:[#allocation12 + $0x798] sm:$0xff]
        %v8265 = vld [vmem:[#allocation12 + $0x7a0] sm:$0xff]
        %v8266 = vld [vmem:[#allocation12 + $0x7a8] sm:$0xff]
        %v8267 = vld [vmem:[#allocation12 + $0x7b0] sm:$0xff]
        %v8268 = vld [vmem:[#allocation12 + $0x7b8] sm:$0xff]
        %v8269 = vld [vmem:[#allocation12 + $0x7c0] sm:$0xff]
        %v8270 = vld [vmem:[#allocation12 + $0x7c8] sm:$0xff]
        %v8271 = vld [vmem:[#allocation12 + $0x7d0] sm:$0xff]
        %v8272 = vld [vmem:[#allocation12 + $0x7d8] sm:$0xff]
        %v8273 = vld [vmem:[#allocation12 + $0x7e0] sm:$0xff]
        %v8274 = vld [vmem:[#allocation12 + $0x7e8] sm:$0xff]
        %v8275 = vld [vmem:[#allocation12 + $0x7f0] sm:$0xff]
        %v8276 = vld [vmem:[#allocation12 + $0x7f8] sm:$0xff]
        %v8277 = vld [vmem:[#allocation12 + $0x800] sm:$0xff]
        %v8278 = vld [vmem:[#allocation12 + $0x808] sm:$0xff]
        %v8279 = vld [vmem:[#allocation12 + $0x810] sm:$0xff]
        %v8280 = vld [vmem:[#allocation12 + $0x818] sm:$0xff]
        %v8281 = vld [vmem:[#allocation12 + $0x820] sm:$0xff]
        %v8282 = vld [vmem:[#allocation12 + $0x828] sm:$0xff]
        %v8283 = vld [vmem:[#allocation12 + $0x830] sm:$0xff]
        %v8284 = vld [vmem:[#allocation12 + $0x838] sm:$0xff]
        %v8285 = vld [vmem:[#allocation12 + $0x840] sm:$0xff]
        %v8286 = vld [vmem:[#allocation12 + $0x848] sm:$0xff]
        %v8287 = vld [vmem:[#allocation12 + $0x850] sm:$0xff]
        %v8288 = vld [vmem:[#allocation12 + $0x858] sm:$0xff]
        %v8289 = vld [vmem:[#allocation12 + $0x860] sm:$0xff]
        %v8290 = vld [vmem:[#allocation12 + $0x868] sm:$0xff]
        %v8291 = vld [vmem:[#allocation12 + $0x870] sm:$0xff]
        %v8292 = vld [vmem:[#allocation12 + $0x878] sm:$0xff]
        %v8293 = vld [vmem:[#allocation12 + $0x880] sm:$0xff]
        %v8294 = vld [vmem:[#allocation12 + $0x888] sm:$0xff]
        %v8295 = vld [vmem:[#allocation12 + $0x890] sm:$0xff]
        %v8296 = vld [vmem:[#allocation12 + $0x898] sm:$0xff]
        %v8297 = vld [vmem:[#allocation12 + $0x8a0] sm:$0xff]
        %v8298 = vld [vmem:[#allocation12 + $0x8a8] sm:$0xff]
        %v8299 = vld [vmem:[#allocation12 + $0x8b0] sm:$0xff]
        %v8300 = vld [vmem:[#allocation12 + $0x8b8] sm:$0xff]
        %v8301 = vld [vmem:[#allocation12 + $0x8c0] sm:$0xff]
        %v8302 = vld [vmem:[#allocation12 + $0x8c8] sm:$0xff]
        %v8303 = vld [vmem:[#allocation12 + $0x8d0] sm:$0xff]
        %v8304 = vld [vmem:[#allocation12 + $0x8d8] sm:$0xff]
        %v8305 = vld [vmem:[#allocation12 + $0x8e0] sm:$0xff]
        %v8306 = vld [vmem:[#allocation12 + $0x8e8] sm:$0xff]
        %v8307 = vld [vmem:[#allocation12 + $0x8f0] sm:$0xff]
        %v8308 = vld [vmem:[#allocation12 + $0x8f8] sm:$0xff]
        %v8309 = vld [vmem:[#allocation14] sm:$0x3f]
        %v8311 = vperm.slane %v8309, 0
        %v8312 = vperm.slane %v8309, 1
        %v8313 = vperm.slane %v8309, 2
        %v8314 = vperm.slane %v8309, 3
        %v8315 = vperm.slane %v8309, 4
        %v8316 = vperm.slane %v8309, 5
        %v8611 = vunpack.c.l.b16 %v8021
        %v8612 = vunpack.c.h.b16 %v8021
        %v8613 = vunpack.c.l.b16 %v8022
        %v8614 = vunpack.c.h.b16 %v8022
        %v8615 = vunpack.c.l.b16 %v8023
        %v8616 = vunpack.c.h.b16 %v8023
        %v8617 = vunpack.c.l.b16 %v8024
        %v8618 = vunpack.c.h.b16 %v8024
        %v8619 = vunpack.c.l.b16 %v8025
        %v8620 = vunpack.c.h.b16 %v8025
        %v8621 = vunpack.c.l.b16 %v8026
        %v8622 = vunpack.c.h.b16 %v8026
        %v8623 = vunpack.c.l.b16 %v8027
        %v8624 = vunpack.c.h.b16 %v8027
        %v8625 = vunpack.c.l.b16 %v8028
        %v8626 = vunpack.c.h.b16 %v8028
        %v8627 = vunpack.c.l.b16 %v8029
        %v8628 = vunpack.c.h.b16 %v8029
        %v8629 = vunpack.c.l.b16 %v8030
        %v8630 = vunpack.c.h.b16 %v8030
        %v8631 = vunpack.c.l.b16 %v8031
        %v8632 = vunpack.c.h.b16 %v8031
        %v8633 = vunpack.c.l.b16 %v8032
        %v8634 = vunpack.c.h.b16 %v8032
        %v8635 = vunpack.c.l.b16 %v8033
        %v8636 = vunpack.c.h.b16 %v8033
        %v8637 = vunpack.c.l.b16 %v8034
        %v8638 = vunpack.c.h.b16 %v8034
        %v8639 = vunpack.c.l.b16 %v8035
        %v8640 = vunpack.c.h.b16 %v8035
        %v8641 = vunpack.c.l.b16 %v8036
        %v8642 = vunpack.c.h.b16 %v8036
        %v8643 = vunpack.c.l.b16 %v8037
        %v8644 = vunpack.c.h.b16 %v8037
        %v8645 = vunpack.c.l.b16 %v8038
        %v8646 = vunpack.c.h.b16 %v8038
        %v8647 = vunpack.c.l.b16 %v8039
        %v8648 = vunpack.c.h.b16 %v8039
        %v8649 = vunpack.c.l.b16 %v8040
        %v8650 = vunpack.c.h.b16 %v8040
        %v8651 = vunpack.c.l.b16 %v8041
        %v8652 = vunpack.c.h.b16 %v8041
        %v8653 = vunpack.c.l.b16 %v8042
        %v8654 = vunpack.c.h.b16 %v8042
        %v8655 = vunpack.c.l.b16 %v8043
        %v8656 = vunpack.c.h.b16 %v8043
        %v8657 = vunpack.c.l.b16 %v8044
        %v8658 = vunpack.c.h.b16 %v8044
        %v8659 = vunpack.c.l.b16 %v8045
        %v8660 = vunpack.c.h.b16 %v8045
        %v8661 = vunpack.c.l.b16 %v8046
        %v8662 = vunpack.c.h.b16 %v8046
        %v8663 = vunpack.c.l.b16 %v8047
        %v8664 = vunpack.c.h.b16 %v8047
        %v8665 = vunpack.c.l.b16 %v8048
        %v8666 = vunpack.c.h.b16 %v8048
        %v8667 = vunpack.c.l.b16 %v8049
        %v8668 = vunpack.c.h.b16 %v8049
        %v8669 = vunpack.c.l.b16 %v8050
        %v8670 = vunpack.c.h.b16 %v8050
        %v8671 = vunpack.c.l.b16 %v8051
        %v8672 = vunpack.c.h.b16 %v8051
        %v8673 = vunpack.c.l.b16 %v8052
        %v8674 = vunpack.c.h.b16 %v8052
        %v8675 = vunpack.c.l.b16 %v8053
        %v8676 = vunpack.c.h.b16 %v8053
        %v8677 = vunpack.c.l.b16 %v8054
        %v8678 = vunpack.c.h.b16 %v8054
        %v8679 = vunpack.c.l.b16 %v8055
        %v8680 = vunpack.c.h.b16 %v8055
        %v8681 = vunpack.c.l.b16 %v8056
        %v8682 = vunpack.c.h.b16 %v8056
        %v8683 = vunpack.c.l.b16 %v8057
        %v8684 = vunpack.c.h.b16 %v8057
        %v8685 = vunpack.c.l.b16 %v8058
        %v8686 = vunpack.c.h.b16 %v8058
        %v8687 = vunpack.c.l.b16 %v8059
        %v8688 = vunpack.c.h.b16 %v8059
        %v8689 = vunpack.c.l.b16 %v8060
        %v8690 = vunpack.c.h.b16 %v8060
        %v8691 = vunpack.c.l.b16 %v8061
        %v8692 = vunpack.c.h.b16 %v8061
        %v8693 = vunpack.c.l.b16 %v8062
        %v8694 = vunpack.c.h.b16 %v8062
        %v8695 = vunpack.c.l.b16 %v8063
        %v8696 = vunpack.c.h.b16 %v8063
        %v8697 = vunpack.c.l.b16 %v8064
        %v8698 = vunpack.c.h.b16 %v8064
        %v8699 = vunpack.c.l.b16 %v8065
        %v8700 = vunpack.c.h.b16 %v8065
        %v8701 = vunpack.c.l.b16 %v8066
        %v8702 = vunpack.c.h.b16 %v8066
        %v8703 = vunpack.c.l.b16 %v8067
        %v8704 = vunpack.c.h.b16 %v8067
        %v8705 = vunpack.c.l.b16 %v8068
        %v8706 = vunpack.c.h.b16 %v8068
        %v8707 = vunpack.c.l.b16 %v8069
        %v8708 = vunpack.c.h.b16 %v8069
        %v8709 = vunpack.c.l.b16 %v8070
        %v8710 = vunpack.c.h.b16 %v8070
        %v8711 = vunpack.c.l.b16 %v8071
        %v8712 = vunpack.c.h.b16 %v8071
        %v8713 = vunpack.c.l.b16 %v8072
        %v8714 = vunpack.c.h.b16 %v8072
        %v8715 = vunpack.c.l.b16 %v8073
        %v8716 = vunpack.c.h.b16 %v8073
        %v8717 = vunpack.c.l.b16 %v8074
        %v8718 = vunpack.c.h.b16 %v8074
        %v8719 = vunpack.c.l.b16 %v8075
        %v8720 = vunpack.c.h.b16 %v8075
        %v8721 = vunpack.c.l.b16 %v8076
        %v8722 = vunpack.c.h.b16 %v8076
        %v8723 = vunpack.c.l.b16 %v8077
        %v8724 = vunpack.c.h.b16 %v8077
        %v8725 = vunpack.c.l.b16 %v8078
        %v8726 = vunpack.c.h.b16 %v8078
        %v8727 = vunpack.c.l.b16 %v8079
        %v8728 = vunpack.c.h.b16 %v8079
        %v8729 = vunpack.c.l.b16 %v8080
        %v8730 = vunpack.c.h.b16 %v8080
        %v8731 = vunpack.c.l.b16 %v8081
        %v8732 = vunpack.c.h.b16 %v8081
        %v8733 = vunpack.c.l.b16 %v8082
        %v8734 = vunpack.c.h.b16 %v8082
        %v8735 = vunpack.c.l.b16 %v8083
        %v8736 = vunpack.c.h.b16 %v8083
        %v8737 = vunpack.c.l.b16 %v8084
        %v8738 = vunpack.c.h.b16 %v8084
        %v8739 = vunpack.c.l.b16 %v8085
        %v8740 = vunpack.c.h.b16 %v8085
        %v8741 = vunpack.c.l.b16 %v8086
        %v8742 = vunpack.c.h.b16 %v8086
        %v8743 = vunpack.c.l.b16 %v8087
        %v8744 = vunpack.c.h.b16 %v8087
        %v8745 = vunpack.c.l.b16 %v8088
        %v8746 = vunpack.c.h.b16 %v8088
        %v8747 = vunpack.c.l.b16 %v8089
        %v8748 = vunpack.c.h.b16 %v8089
        %v8749 = vunpack.c.l.b16 %v8090
        %v8750 = vunpack.c.h.b16 %v8090
        %v8751 = vunpack.c.l.b16 %v8091
        %v8752 = vunpack.c.h.b16 %v8091
        %v8753 = vunpack.c.l.b16 %v8092
        %v8754 = vunpack.c.h.b16 %v8092
        %v8755 = vunpack.c.l.b16 %v8093
        %v8756 = vunpack.c.h.b16 %v8093
        %v8757 = vunpack.c.l.b16 %v8094
        %v8758 = vunpack.c.h.b16 %v8094
        %v8759 = vunpack.c.l.b16 %v8095
        %v8760 = vunpack.c.h.b16 %v8095
        %v8761 = vunpack.c.l.b16 %v8096
        %v8762 = vunpack.c.h.b16 %v8096
        %v8763 = vunpack.c.l.b16 %v8097
        %v8764 = vunpack.c.h.b16 %v8097
        %v8765 = vunpack.c.l.b16 %v8098
        %v8766 = vunpack.c.h.b16 %v8098
        %v8767 = vunpack.c.l.b16 %v8099
        %v8768 = vunpack.c.h.b16 %v8099
        %v8769 = vunpack.c.l.b16 %v8100
        %v8770 = vunpack.c.h.b16 %v8100
        %v8771 = vunpack.c.l.b16 %v8101
        %v8772 = vunpack.c.h.b16 %v8101
        %v8773 = vunpack.c.l.b16 %v8102
        %v8774 = vunpack.c.h.b16 %v8102
        %v8775 = vunpack.c.l.b16 %v8103
        %v8776 = vunpack.c.h.b16 %v8103
        %v8777 = vunpack.c.l.b16 %v8104
        %v8778 = vunpack.c.h.b16 %v8104
        %v8779 = vunpack.c.l.b16 %v8105
        %v8780 = vunpack.c.h.b16 %v8105
        %v8781 = vunpack.c.l.b16 %v8106
        %v8782 = vunpack.c.h.b16 %v8106
        %v8783 = vunpack.c.l.b16 %v8107
        %v8784 = vunpack.c.h.b16 %v8107
        %v8785 = vunpack.c.l.b16 %v8108
        %v8786 = vunpack.c.h.b16 %v8108
        %v8787 = vunpack.c.l.b16 %v8109
        %v8788 = vunpack.c.h.b16 %v8109
        %v8789 = vunpack.c.l.b16 %v8110
        %v8790 = vunpack.c.h.b16 %v8110
        %v8791 = vunpack.c.l.b16 %v8111
        %v8792 = vunpack.c.h.b16 %v8111
        %v8793 = vunpack.c.l.b16 %v8112
        %v8794 = vunpack.c.h.b16 %v8112
        %v8795 = vunpack.c.l.b16 %v8113
        %v8796 = vunpack.c.h.b16 %v8113
        %v8797 = vunpack.c.l.b16 %v8114
        %v8798 = vunpack.c.h.b16 %v8114
        %v8799 = vunpack.c.l.b16 %v8115
        %v8800 = vunpack.c.h.b16 %v8115
        %v8801 = vunpack.c.l.b16 %v8116
        %v8802 = vunpack.c.h.b16 %v8116
        %v8803 = vunpack.c.l.b16 %v8117
        %v8804 = vunpack.c.h.b16 %v8117
        %v8805 = vunpack.c.l.b16 %v8118
        %v8806 = vunpack.c.h.b16 %v8118
        %v8807 = vunpack.c.l.b16 %v8119
        %v8808 = vunpack.c.h.b16 %v8119
        %v8809 = vunpack.c.l.b16 %v8120
        %v8810 = vunpack.c.h.b16 %v8120
        %v8811 = vunpack.c.l.b16 %v8121
        %v8812 = vunpack.c.h.b16 %v8121
        %v8813 = vunpack.c.l.b16 %v8122
        %v8814 = vunpack.c.h.b16 %v8122
        %v8815 = vunpack.c.l.b16 %v8123
        %v8816 = vunpack.c.h.b16 %v8123
        %v8817 = vunpack.c.l.b16 %v8124
        %v8818 = vunpack.c.h.b16 %v8124
        %v8819 = vunpack.c.l.b16 %v8125
        %v8820 = vunpack.c.h.b16 %v8125
        %v8821 = vunpack.c.l.b16 %v8126
        %v8822 = vunpack.c.h.b16 %v8126
        %v8823 = vunpack.c.l.b16 %v8127
        %v8824 = vunpack.c.h.b16 %v8127
        %v8825 = vunpack.c.l.b16 %v8128
        %v8826 = vunpack.c.h.b16 %v8128
        %v8827 = vunpack.c.l.b16 %v8129
        %v8828 = vunpack.c.h.b16 %v8129
        %v8829 = vunpack.c.l.b16 %v8130
        %v8830 = vunpack.c.h.b16 %v8130
        %v8831 = vunpack.c.l.b16 %v8131
        %v8832 = vunpack.c.h.b16 %v8131
        %v8833 = vunpack.c.l.b16 %v8132
        %v8834 = vunpack.c.h.b16 %v8132
        %v8835 = vunpack.c.l.b16 %v8133
        %v8836 = vunpack.c.h.b16 %v8133
        %v8837 = vunpack.c.l.b16 %v8134
        %v8838 = vunpack.c.h.b16 %v8134
        %v8839 = vunpack.c.l.b16 %v8135
        %v8840 = vunpack.c.h.b16 %v8135
        %v8841 = vunpack.c.l.b16 %v8136
        %v8842 = vunpack.c.h.b16 %v8136
        %v8843 = vunpack.c.l.b16 %v8137
        %v8844 = vunpack.c.h.b16 %v8137
        %v8845 = vunpack.c.l.b16 %v8138
        %v8846 = vunpack.c.h.b16 %v8138
        %v8847 = vunpack.c.l.b16 %v8139
        %v8848 = vunpack.c.h.b16 %v8139
        %v8849 = vunpack.c.l.b16 %v8140
        %v8850 = vunpack.c.h.b16 %v8140
        %v8851 = vunpack.c.l.b16 %v8141
        %v8852 = vunpack.c.h.b16 %v8141
        %v8853 = vunpack.c.l.b16 %v8142
        %v8854 = vunpack.c.h.b16 %v8142
        %v8855 = vunpack.c.l.b16 %v8143
        %v8856 = vunpack.c.h.b16 %v8143
        %v8857 = vunpack.c.l.b16 %v8144
        %v8858 = vunpack.c.h.b16 %v8144
        %v8859 = vunpack.c.l.b16 %v8145
        %v8860 = vunpack.c.h.b16 %v8145
        %v8861 = vunpack.c.l.b16 %v8146
        %v8862 = vunpack.c.h.b16 %v8146
        %v8863 = vunpack.c.l.b16 %v8147
        %v8864 = vunpack.c.h.b16 %v8147
        %v8865 = vunpack.c.l.b16 %v8148
        %v8866 = vunpack.c.h.b16 %v8148
        %v8867 = vunpack.c.l.b16 %v8149
        %v8868 = vunpack.c.h.b16 %v8149
        %v8869 = vunpack.c.l.b16 %v8150
        %v8870 = vunpack.c.h.b16 %v8150
        %v8871 = vunpack.c.l.b16 %v8151
        %v8872 = vunpack.c.h.b16 %v8151
        %v8873 = vunpack.c.l.b16 %v8152
        %v8874 = vunpack.c.h.b16 %v8152
        %v8875 = vunpack.c.l.b16 %v8153
        %v8876 = vunpack.c.h.b16 %v8153
        %v8877 = vunpack.c.l.b16 %v8154
        %v8878 = vunpack.c.h.b16 %v8154
        %v8879 = vunpack.c.l.b16 %v8155
        %v8880 = vunpack.c.h.b16 %v8155
        %v8881 = vunpack.c.l.b16 %v8156
        %v8882 = vunpack.c.h.b16 %v8156
        %v8883 = vunpack.c.l.b16 %v8157
        %v8884 = vunpack.c.h.b16 %v8157
        %v8885 = vunpack.c.l.b16 %v8158
        %v8886 = vunpack.c.h.b16 %v8158
        %v8887 = vunpack.c.l.b16 %v8159
        %v8888 = vunpack.c.h.b16 %v8159
        %v8889 = vunpack.c.l.b16 %v8160
        %v8890 = vunpack.c.h.b16 %v8160
        %v8891 = vunpack.c.l.b16 %v8161
        %v8892 = vunpack.c.h.b16 %v8161
        %v8893 = vunpack.c.l.b16 %v8162
        %v8894 = vunpack.c.h.b16 %v8162
        %v8895 = vunpack.c.l.b16 %v8163
        %v8896 = vunpack.c.h.b16 %v8163
        %v8897 = vunpack.c.l.b16 %v8164
        %v8898 = vunpack.c.h.b16 %v8164
        %v8899 = vunpack.c.l.b16 %v8165
        %v8900 = vunpack.c.h.b16 %v8165
        %v8901 = vunpack.c.l.b16 %v8166
        %v8902 = vunpack.c.h.b16 %v8166
        %v8903 = vunpack.c.l.b16 %v8167
        %v8904 = vunpack.c.h.b16 %v8167
        %v8905 = vunpack.c.l.b16 %v8168
        %v8906 = vunpack.c.h.b16 %v8168
        %v8907 = vunpack.c.l.b16 %v8169
        %v8908 = vunpack.c.h.b16 %v8169
        %v8909 = vunpack.c.l.b16 %v8170
        %v8910 = vunpack.c.h.b16 %v8170
        %v8911 = vunpack.c.l.b16 %v8171
        %v8912 = vunpack.c.h.b16 %v8171
        %v8913 = vunpack.c.l.b16 %v8172
        %v8914 = vunpack.c.h.b16 %v8172
        %v8915 = vunpack.c.l.b16 %v8173
        %v8916 = vunpack.c.h.b16 %v8173
        %v8917 = vunpack.c.l.b16 %v8174
        %v8918 = vunpack.c.h.b16 %v8174
        %v8919 = vunpack.c.l.b16 %v8175
        %v8920 = vunpack.c.h.b16 %v8175
        %v8921 = vunpack.c.l.b16 %v8176
        %v8922 = vunpack.c.h.b16 %v8176
        %v8923 = vunpack.c.l.b16 %v8177
        %v8924 = vunpack.c.h.b16 %v8177
        %v8925 = vunpack.c.l.b16 %v8178
        %v8926 = vunpack.c.h.b16 %v8178
        %v8927 = vunpack.c.l.b16 %v8179
        %v8928 = vunpack.c.h.b16 %v8179
        %v8929 = vunpack.c.l.b16 %v8180
        %v8930 = vunpack.c.h.b16 %v8180
        %v8931 = vunpack.c.l.b16 %v8181
        %v8932 = vunpack.c.h.b16 %v8181
        %v8933 = vunpack.c.l.b16 %v8182
        %v8934 = vunpack.c.h.b16 %v8182
        %v8935 = vunpack.c.l.b16 %v8183
        %v8936 = vunpack.c.h.b16 %v8183
        %v8937 = vunpack.c.l.b16 %v8184
        %v8938 = vunpack.c.h.b16 %v8184
        %v8939 = vunpack.c.l.b16 %v8185
        %v8940 = vunpack.c.h.b16 %v8185
        %v8941 = vunpack.c.l.b16 %v8186
        %v8942 = vunpack.c.h.b16 %v8186
        %v8943 = vunpack.c.l.b16 %v8187
        %v8944 = vunpack.c.h.b16 %v8187
        %v8945 = vunpack.c.l.b16 %v8188
        %v8946 = vunpack.c.h.b16 %v8188
        %v8947 = vunpack.c.l.b16 %v8189
        %v8948 = vunpack.c.h.b16 %v8189
        %v8949 = vunpack.c.l.b16 %v8190
        %v8950 = vunpack.c.h.b16 %v8190
        %v8951 = vunpack.c.l.b16 %v8191
        %v8952 = vunpack.c.h.b16 %v8191
        %v8953 = vunpack.c.l.b16 %v8192
        %v8954 = vunpack.c.h.b16 %v8192
        %v8955 = vunpack.c.l.b16 %v8193
        %v8956 = vunpack.c.h.b16 %v8193
        %v8957 = vunpack.c.l.b16 %v8194
        %v8958 = vunpack.c.h.b16 %v8194
        %v8959 = vunpack.c.l.b16 %v8195
        %v8960 = vunpack.c.h.b16 %v8195
        %v8961 = vunpack.c.l.b16 %v8196
        %v8962 = vunpack.c.h.b16 %v8196
        %v8963 = vunpack.c.l.b16 %v8197
        %v8964 = vunpack.c.h.b16 %v8197
        %v8965 = vunpack.c.l.b16 %v8198
        %v8966 = vunpack.c.h.b16 %v8198
        %v8967 = vunpack.c.l.b16 %v8199
        %v8968 = vunpack.c.h.b16 %v8199
        %v8969 = vunpack.c.l.b16 %v8200
        %v8970 = vunpack.c.h.b16 %v8200
        %v8971 = vunpack.c.l.b16 %v8201
        %v8972 = vunpack.c.h.b16 %v8201
        %v8973 = vunpack.c.l.b16 %v8202
        %v8974 = vunpack.c.h.b16 %v8202
        %v8975 = vunpack.c.l.b16 %v8203
        %v8976 = vunpack.c.h.b16 %v8203
        %v8977 = vunpack.c.l.b16 %v8204
        %v8978 = vunpack.c.h.b16 %v8204
        %v8979 = vunpack.c.l.b16 %v8205
        %v8980 = vunpack.c.h.b16 %v8205
        %v8981 = vunpack.c.l.b16 %v8206
        %v8982 = vunpack.c.h.b16 %v8206
        %v8983 = vunpack.c.l.b16 %v8207
        %v8984 = vunpack.c.h.b16 %v8207
        %v8985 = vunpack.c.l.b16 %v8208
        %v8986 = vunpack.c.h.b16 %v8208
        %v8987 = vunpack.c.l.b16 %v8209
        %v8988 = vunpack.c.h.b16 %v8209
        %v8989 = vunpack.c.l.b16 %v8210
        %v8990 = vunpack.c.h.b16 %v8210
        %v8991 = vunpack.c.l.b16 %v8211
        %v8992 = vunpack.c.h.b16 %v8211
        %v8993 = vunpack.c.l.b16 %v8212
        %v8994 = vunpack.c.h.b16 %v8212
        %v8995 = vunpack.c.l.b16 %v8213
        %v8996 = vunpack.c.h.b16 %v8213
        %v8997 = vunpack.c.l.b16 %v8214
        %v8998 = vunpack.c.h.b16 %v8214
        %v8999 = vunpack.c.l.b16 %v8215
        %v9000 = vunpack.c.h.b16 %v8215
        %v9001 = vunpack.c.l.b16 %v8216
        %v9002 = vunpack.c.h.b16 %v8216
        %v9003 = vunpack.c.l.b16 %v8217
        %v9004 = vunpack.c.h.b16 %v8217
        %v9005 = vunpack.c.l.b16 %v8218
        %v9006 = vunpack.c.h.b16 %v8218
        %v9007 = vunpack.c.l.b16 %v8219
        %v9008 = vunpack.c.h.b16 %v8219
        %v9009 = vunpack.c.l.b16 %v8220
        %v9010 = vunpack.c.h.b16 %v8220
        %v9011 = vunpack.c.l.b16 %v8221
        %v9012 = vunpack.c.h.b16 %v8221
        %v9013 = vunpack.c.l.b16 %v8222
        %v9014 = vunpack.c.h.b16 %v8222
        %v9015 = vunpack.c.l.b16 %v8223
        %v9016 = vunpack.c.h.b16 %v8223
        %v9017 = vunpack.c.l.b16 %v8224
        %v9018 = vunpack.c.h.b16 %v8224
        %v9019 = vunpack.c.l.b16 %v8225
        %v9020 = vunpack.c.h.b16 %v8225
        %v9021 = vunpack.c.l.b16 %v8226
        %v9022 = vunpack.c.h.b16 %v8226
        %v9023 = vunpack.c.l.b16 %v8227
        %v9024 = vunpack.c.h.b16 %v8227
        %v9025 = vunpack.c.l.b16 %v8228
        %v9026 = vunpack.c.h.b16 %v8228
        %v9027 = vunpack.c.l.b16 %v8229
        %v9028 = vunpack.c.h.b16 %v8229
        %v9029 = vunpack.c.l.b16 %v8230
        %v9030 = vunpack.c.h.b16 %v8230
        %v9031 = vunpack.c.l.b16 %v8231
        %v9032 = vunpack.c.h.b16 %v8231
        %v9033 = vunpack.c.l.b16 %v8232
        %v9034 = vunpack.c.h.b16 %v8232
        %v9035 = vunpack.c.l.b16 %v8233
        %v9036 = vunpack.c.h.b16 %v8233
        %v9037 = vunpack.c.l.b16 %v8234
        %v9038 = vunpack.c.h.b16 %v8234
        %v9039 = vunpack.c.l.b16 %v8235
        %v9040 = vunpack.c.h.b16 %v8235
        %v9041 = vunpack.c.l.b16 %v8236
        %v9042 = vunpack.c.h.b16 %v8236
        %v9043 = vunpack.c.l.b16 %v8237
        %v9044 = vunpack.c.h.b16 %v8237
        %v9045 = vunpack.c.l.b16 %v8238
        %v9046 = vunpack.c.h.b16 %v8238
        %v9047 = vunpack.c.l.b16 %v8239
        %v9048 = vunpack.c.h.b16 %v8239
        %v9049 = vunpack.c.l.b16 %v8240
        %v9050 = vunpack.c.h.b16 %v8240
        %v9051 = vunpack.c.l.b16 %v8241
        %v9052 = vunpack.c.h.b16 %v8241
        %v9053 = vunpack.c.l.b16 %v8242
        %v9054 = vunpack.c.h.b16 %v8242
        %v9055 = vunpack.c.l.b16 %v8243
        %v9056 = vunpack.c.h.b16 %v8243
        %v9057 = vunpack.c.l.b16 %v8244
        %v9058 = vunpack.c.h.b16 %v8244
        %v9059 = vunpack.c.l.b16 %v8245
        %v9060 = vunpack.c.h.b16 %v8245
        %v9061 = vunpack.c.l.b16 %v8246
        %v9062 = vunpack.c.h.b16 %v8246
        %v9063 = vunpack.c.l.b16 %v8247
        %v9064 = vunpack.c.h.b16 %v8247
        %v9065 = vunpack.c.l.b16 %v8248
        %v9066 = vunpack.c.h.b16 %v8248
        %v9067 = vunpack.c.l.b16 %v8249
        %v9068 = vunpack.c.h.b16 %v8249
        %v9069 = vunpack.c.l.b16 %v8250
        %v9070 = vunpack.c.h.b16 %v8250
        %v9071 = vunpack.c.l.b16 %v8251
        %v9072 = vunpack.c.h.b16 %v8251
        %v9073 = vunpack.c.l.b16 %v8252
        %v9074 = vunpack.c.h.b16 %v8252
        %v9075 = vunpack.c.l.b16 %v8253
        %v9076 = vunpack.c.h.b16 %v8253
        %v9077 = vunpack.c.l.b16 %v8254
        %v9078 = vunpack.c.h.b16 %v8254
        %v9079 = vunpack.c.l.b16 %v8255
        %v9080 = vunpack.c.h.b16 %v8255
        %v9081 = vunpack.c.l.b16 %v8256
        %v9082 = vunpack.c.h.b16 %v8256
        %v9083 = vunpack.c.l.b16 %v8257
        %v9084 = vunpack.c.h.b16 %v8257
        %v9085 = vunpack.c.l.b16 %v8258
        %v9086 = vunpack.c.h.b16 %v8258
        %v9087 = vunpack.c.l.b16 %v8259
        %v9088 = vunpack.c.h.b16 %v8259
        %v9089 = vunpack.c.l.b16 %v8260
        %v9090 = vunpack.c.h.b16 %v8260
        %v9091 = vunpack.c.l.b16 %v8261
        %v9092 = vunpack.c.h.b16 %v8261
        %v9093 = vunpack.c.l.b16 %v8262
        %v9094 = vunpack.c.h.b16 %v8262
        %v9095 = vunpack.c.l.b16 %v8263
        %v9096 = vunpack.c.h.b16 %v8263
        %v9097 = vunpack.c.l.b16 %v8264
        %v9098 = vunpack.c.h.b16 %v8264
        %v9099 = vunpack.c.l.b16 %v8265
        %v9100 = vunpack.c.h.b16 %v8265
        %v9101 = vunpack.c.l.b16 %v8266
        %v9102 = vunpack.c.h.b16 %v8266
        %v9103 = vunpack.c.l.b16 %v8267
        %v9104 = vunpack.c.h.b16 %v8267
        %v9105 = vunpack.c.l.b16 %v8268
        %v9106 = vunpack.c.h.b16 %v8268
        %v9107 = vunpack.c.l.b16 %v8269
        %v9108 = vunpack.c.h.b16 %v8269
        %v9109 = vunpack.c.l.b16 %v8270
        %v9110 = vunpack.c.h.b16 %v8270
        %v9111 = vunpack.c.l.b16 %v8271
        %v9112 = vunpack.c.h.b16 %v8271
        %v9113 = vunpack.c.l.b16 %v8272
        %v9114 = vunpack.c.h.b16 %v8272
        %v9115 = vunpack.c.l.b16 %v8273
        %v9116 = vunpack.c.h.b16 %v8273
        %v9117 = vunpack.c.l.b16 %v8274
        %v9118 = vunpack.c.h.b16 %v8274
        %v9119 = vunpack.c.l.b16 %v8275
        %v9120 = vunpack.c.h.b16 %v8275
        %v9121 = vunpack.c.l.b16 %v8276
        %v9122 = vunpack.c.h.b16 %v8276
        %v9123 = vunpack.c.l.b16 %v8277
        %v9124 = vunpack.c.h.b16 %v8277
        %v9125 = vunpack.c.l.b16 %v8278
        %v9126 = vunpack.c.h.b16 %v8278
        %v9127 = vunpack.c.l.b16 %v8279
        %v9128 = vunpack.c.h.b16 %v8279
        %v9129 = vunpack.c.l.b16 %v8280
        %v9130 = vunpack.c.h.b16 %v8280
        %v9131 = vunpack.c.l.b16 %v8281
        %v9132 = vunpack.c.h.b16 %v8281
        %v9133 = vunpack.c.l.b16 %v8282
        %v9134 = vunpack.c.h.b16 %v8282
        %v9135 = vunpack.c.l.b16 %v8283
        %v9136 = vunpack.c.h.b16 %v8283
        %v9137 = vunpack.c.l.b16 %v8284
        %v9138 = vunpack.c.h.b16 %v8284
        %v9139 = vunpack.c.l.b16 %v8285
        %v9140 = vunpack.c.h.b16 %v8285
        %v9141 = vunpack.c.l.b16 %v8286
        %v9142 = vunpack.c.h.b16 %v8286
        %v9143 = vunpack.c.l.b16 %v8287
        %v9144 = vunpack.c.h.b16 %v8287
        %v9145 = vunpack.c.l.b16 %v8288
        %v9146 = vunpack.c.h.b16 %v8288
        %v9147 = vunpack.c.l.b16 %v8289
        %v9148 = vunpack.c.h.b16 %v8289
        %v9149 = vunpack.c.l.b16 %v8290
        %v9150 = vunpack.c.h.b16 %v8290
        %v9151 = vunpack.c.l.b16 %v8291
        %v9152 = vunpack.c.h.b16 %v8291
        %v9153 = vunpack.c.l.b16 %v8292
        %v9154 = vunpack.c.h.b16 %v8292
        %v9155 = vunpack.c.l.b16 %v8293
        %v9156 = vunpack.c.h.b16 %v8293
        %v9157 = vunpack.c.l.b16 %v8294
        %v9158 = vunpack.c.h.b16 %v8294
        %v9159 = vunpack.c.l.b16 %v8295
        %v9160 = vunpack.c.h.b16 %v8295
        %v9161 = vunpack.c.l.b16 %v8296
        %v9162 = vunpack.c.h.b16 %v8296
        %v9163 = vunpack.c.l.b16 %v8297
        %v9164 = vunpack.c.h.b16 %v8297
        %v9165 = vunpack.c.l.b16 %v8298
        %v9166 = vunpack.c.h.b16 %v8298
        %v9167 = vunpack.c.l.b16 %v8299
        %v9168 = vunpack.c.h.b16 %v8299
        %v9169 = vunpack.c.l.b16 %v8300
        %v9170 = vunpack.c.h.b16 %v8300
        %v9171 = vunpack.c.l.b16 %v8301
        %v9172 = vunpack.c.h.b16 %v8301
        %v9173 = vunpack.c.l.b16 %v8302
        %v9174 = vunpack.c.h.b16 %v8302
        %v9175 = vunpack.c.l.b16 %v8303
        %v9176 = vunpack.c.h.b16 %v8303
        %v9177 = vunpack.c.l.b16 %v8304
        %v9178 = vunpack.c.h.b16 %v8304
        %v9179 = vunpack.c.l.b16 %v8305
        %v9180 = vunpack.c.h.b16 %v8305
        %v9181 = vunpack.c.l.b16 %v8306
        %v9182 = vunpack.c.h.b16 %v8306
        %v9183 = vunpack.c.l.b16 %v8307
        %v9184 = vunpack.c.h.b16 %v8307
        %v9185 = vunpack.c.l.b16 %v8308
        %v9186 = vunpack.c.h.b16 %v8308
        %v9187 = vpack.c.b16 %v8617, %v8611
        %v9188 = vpack.c.b16 %v8618, %v8612
        %v9189 = vpack.c.b16 %v8619, %v8613
        %v9190 = vpack.c.b16 %v8620, %v8614
        %v9191 = vpack.c.b16 %v8621, %v8615
        %v9192 = vpack.c.b16 %v8622, %v8616
        %v9193 = vpack.c.b16 %v8629, %v8623
        %v9194 = vpack.c.b16 %v8630, %v8624
        %v9195 = vpack.c.b16 %v8631, %v8625
        %v9196 = vpack.c.b16 %v8632, %v8626
        %v9197 = vpack.c.b16 %v8633, %v8627
        %v9198 = vpack.c.b16 %v8634, %v8628
        %v9199 = vpack.c.b16 %v8641, %v8635
        %v9200 = vpack.c.b16 %v8642, %v8636
        %v9201 = vpack.c.b16 %v8643, %v8637
        %v9202 = vpack.c.b16 %v8644, %v8638
        %v9203 = vpack.c.b16 %v8645, %v8639
        %v9204 = vpack.c.b16 %v8646, %v8640
        %v9205 = vpack.c.b16 %v8653, %v8647
        %v9206 = vpack.c.b16 %v8654, %v8648
        %v9207 = vpack.c.b16 %v8655, %v8649
        %v9208 = vpack.c.b16 %v8656, %v8650
        %v9209 = vpack.c.b16 %v8657, %v8651
        %v9210 = vpack.c.b16 %v8658, %v8652
        %v9211 = vpack.c.b16 %v8665, %v8659
        %v9212 = vpack.c.b16 %v8666, %v8660
        %v9213 = vpack.c.b16 %v8667, %v8661
        %v9214 = vpack.c.b16 %v8668, %v8662
        %v9215 = vpack.c.b16 %v8669, %v8663
        %v9216 = vpack.c.b16 %v8670, %v8664
        %v9217 = vpack.c.b16 %v8677, %v8671
        %v9218 = vpack.c.b16 %v8678, %v8672
        %v9219 = vpack.c.b16 %v8679, %v8673
        %v9220 = vpack.c.b16 %v8680, %v8674
        %v9221 = vpack.c.b16 %v8681, %v8675
        %v9222 = vpack.c.b16 %v8682, %v8676
        %v9223 = vpack.c.b16 %v8689, %v8683
        %v9224 = vpack.c.b16 %v8690, %v8684
        %v9225 = vpack.c.b16 %v8691, %v8685
        %v9226 = vpack.c.b16 %v8692, %v8686
        %v9227 = vpack.c.b16 %v8693, %v8687
        %v9228 = vpack.c.b16 %v8694, %v8688
        %v9229 = vpack.c.b16 %v8701, %v8695
        %v9230 = vpack.c.b16 %v8702, %v8696
        %v9231 = vpack.c.b16 %v8703, %v8697
        %v9232 = vpack.c.b16 %v8704, %v8698
        %v9233 = vpack.c.b16 %v8705, %v8699
        %v9234 = vpack.c.b16 %v8706, %v8700
        %v9235 = vpack.c.b16 %v8713, %v8707
        %v9236 = vpack.c.b16 %v8714, %v8708
        %v9237 = vpack.c.b16 %v8715, %v8709
        %v9238 = vpack.c.b16 %v8716, %v8710
        %v9239 = vpack.c.b16 %v8717, %v8711
        %v9240 = vpack.c.b16 %v8718, %v8712
        %v9241 = vpack.c.b16 %v8725, %v8719
        %v9242 = vpack.c.b16 %v8726, %v8720
        %v9243 = vpack.c.b16 %v8727, %v8721
        %v9244 = vpack.c.b16 %v8728, %v8722
        %v9245 = vpack.c.b16 %v8729, %v8723
        %v9246 = vpack.c.b16 %v8730, %v8724
        %v9247 = vpack.c.b16 %v8737, %v8731
        %v9248 = vpack.c.b16 %v8738, %v8732
        %v9249 = vpack.c.b16 %v8739, %v8733
        %v9250 = vpack.c.b16 %v8740, %v8734
        %v9251 = vpack.c.b16 %v8741, %v8735
        %v9252 = vpack.c.b16 %v8742, %v8736
        %v9253 = vpack.c.b16 %v8749, %v8743
        %v9254 = vpack.c.b16 %v8750, %v8744
        %v9255 = vpack.c.b16 %v8751, %v8745
        %v9256 = vpack.c.b16 %v8752, %v8746
        %v9257 = vpack.c.b16 %v8753, %v8747
        %v9258 = vpack.c.b16 %v8754, %v8748
        %v9259 = vpack.c.b16 %v8761, %v8755
        %v9260 = vpack.c.b16 %v8762, %v8756
        %v9261 = vpack.c.b16 %v8763, %v8757
        %v9262 = vpack.c.b16 %v8764, %v8758
        %v9263 = vpack.c.b16 %v8765, %v8759
        %v9264 = vpack.c.b16 %v8766, %v8760
        %v9265 = vpack.c.b16 %v8773, %v8767
        %v9266 = vpack.c.b16 %v8774, %v8768
        %v9267 = vpack.c.b16 %v8775, %v8769
        %v9268 = vpack.c.b16 %v8776, %v8770
        %v9269 = vpack.c.b16 %v8777, %v8771
        %v9270 = vpack.c.b16 %v8778, %v8772
        %v9271 = vpack.c.b16 %v8785, %v8779
        %v9272 = vpack.c.b16 %v8786, %v8780
        %v9273 = vpack.c.b16 %v8787, %v8781
        %v9274 = vpack.c.b16 %v8788, %v8782
        %v9275 = vpack.c.b16 %v8789, %v8783
        %v9276 = vpack.c.b16 %v8790, %v8784
        %v9277 = vpack.c.b16 %v8797, %v8791
        %v9278 = vpack.c.b16 %v8798, %v8792
        %v9279 = vpack.c.b16 %v8799, %v8793
        %v9280 = vpack.c.b16 %v8800, %v8794
        %v9281 = vpack.c.b16 %v8801, %v8795
        %v9282 = vpack.c.b16 %v8802, %v8796
        %v9283 = vpack.c.b16 %v8809, %v8803
        %v9284 = vpack.c.b16 %v8810, %v8804
        %v9285 = vpack.c.b16 %v8811, %v8805
        %v9286 = vpack.c.b16 %v8812, %v8806
        %v9287 = vpack.c.b16 %v8813, %v8807
        %v9288 = vpack.c.b16 %v8814, %v8808
        %v9289 = vpack.c.b16 %v8821, %v8815
        %v9290 = vpack.c.b16 %v8822, %v8816
        %v9291 = vpack.c.b16 %v8823, %v8817
        %v9292 = vpack.c.b16 %v8824, %v8818
        %v9293 = vpack.c.b16 %v8825, %v8819
        %v9294 = vpack.c.b16 %v8826, %v8820
        %v9295 = vpack.c.b16 %v8833, %v8827
        %v9296 = vpack.c.b16 %v8834, %v8828
        %v9297 = vpack.c.b16 %v8835, %v8829
        %v9298 = vpack.c.b16 %v8836, %v8830
        %v9299 = vpack.c.b16 %v8837, %v8831
        %v9300 = vpack.c.b16 %v8838, %v8832
        %v9301 = vpack.c.b16 %v8845, %v8839
        %v9302 = vpack.c.b16 %v8846, %v8840
        %v9303 = vpack.c.b16 %v8847, %v8841
        %v9304 = vpack.c.b16 %v8848, %v8842
        %v9305 = vpack.c.b16 %v8849, %v8843
        %v9306 = vpack.c.b16 %v8850, %v8844
        %v9307 = vpack.c.b16 %v8857, %v8851
        %v9308 = vpack.c.b16 %v8858, %v8852
        %v9309 = vpack.c.b16 %v8859, %v8853
        %v9310 = vpack.c.b16 %v8860, %v8854
        %v9311 = vpack.c.b16 %v8861, %v8855
        %v9312 = vpack.c.b16 %v8862, %v8856
        %v9313 = vpack.c.b16 %v8869, %v8863
        %v9314 = vpack.c.b16 %v8870, %v8864
        %v9315 = vpack.c.b16 %v8871, %v8865
        %v9316 = vpack.c.b16 %v8872, %v8866
        %v9317 = vpack.c.b16 %v8873, %v8867
        %v9318 = vpack.c.b16 %v8874, %v8868
        %v9319 = vpack.c.b16 %v8881, %v8875
        %v9320 = vpack.c.b16 %v8882, %v8876
        %v9321 = vpack.c.b16 %v8883, %v8877
        %v9322 = vpack.c.b16 %v8884, %v8878
        %v9323 = vpack.c.b16 %v8885, %v8879
        %v9324 = vpack.c.b16 %v8886, %v8880
        %v9325 = vpack.c.b16 %v8893, %v8887
        %v9326 = vpack.c.b16 %v8894, %v8888
        %v9327 = vpack.c.b16 %v8895, %v8889
        %v9328 = vpack.c.b16 %v8896, %v8890
        %v9329 = vpack.c.b16 %v8897, %v8891
        %v9330 = vpack.c.b16 %v8898, %v8892
        %v9331 = vpack.c.b16 %v8905, %v8899
        %v9332 = vpack.c.b16 %v8906, %v8900
        %v9333 = vpack.c.b16 %v8907, %v8901
        %v9334 = vpack.c.b16 %v8908, %v8902
        %v9335 = vpack.c.b16 %v8909, %v8903
        %v9336 = vpack.c.b16 %v8910, %v8904
        %v9337 = vpack.c.b16 %v8917, %v8911
        %v9338 = vpack.c.b16 %v8918, %v8912
        %v9339 = vpack.c.b16 %v8919, %v8913
        %v9340 = vpack.c.b16 %v8920, %v8914
        %v9341 = vpack.c.b16 %v8921, %v8915
        %v9342 = vpack.c.b16 %v8922, %v8916
        %v9343 = vpack.c.b16 %v8929, %v8923
        %v9344 = vpack.c.b16 %v8930, %v8924
        %v9345 = vpack.c.b16 %v8931, %v8925
        %v9346 = vpack.c.b16 %v8932, %v8926
        %v9347 = vpack.c.b16 %v8933, %v8927
        %v9348 = vpack.c.b16 %v8934, %v8928
        %v9349 = vpack.c.b16 %v8941, %v8935
        %v9350 = vpack.c.b16 %v8942, %v8936
        %v9351 = vpack.c.b16 %v8943, %v8937
        %v9352 = vpack.c.b16 %v8944, %v8938
        %v9353 = vpack.c.b16 %v8945, %v8939
        %v9354 = vpack.c.b16 %v8946, %v8940
        %v9355 = vpack.c.b16 %v8953, %v8947
        %v9356 = vpack.c.b16 %v8954, %v8948
        %v9357 = vpack.c.b16 %v8955, %v8949
        %v9358 = vpack.c.b16 %v8956, %v8950
        %v9359 = vpack.c.b16 %v8957, %v8951
        %v9360 = vpack.c.b16 %v8958, %v8952
        %v9361 = vpack.c.b16 %v8965, %v8959
        %v9362 = vpack.c.b16 %v8966, %v8960
        %v9363 = vpack.c.b16 %v8967, %v8961
        %v9364 = vpack.c.b16 %v8968, %v8962
        %v9365 = vpack.c.b16 %v8969, %v8963
        %v9366 = vpack.c.b16 %v8970, %v8964
        %v9367 = vpack.c.b16 %v8977, %v8971
        %v9368 = vpack.c.b16 %v8978, %v8972
        %v9369 = vpack.c.b16 %v8979, %v8973
        %v9370 = vpack.c.b16 %v8980, %v8974
        %v9371 = vpack.c.b16 %v8981, %v8975
        %v9372 = vpack.c.b16 %v8982, %v8976
        %v9373 = vpack.c.b16 %v8989, %v8983
        %v9374 = vpack.c.b16 %v8990, %v8984
        %v9375 = vpack.c.b16 %v8991, %v8985
        %v9376 = vpack.c.b16 %v8992, %v8986
        %v9377 = vpack.c.b16 %v8993, %v8987
        %v9378 = vpack.c.b16 %v8994, %v8988
        %v9379 = vpack.c.b16 %v9001, %v8995
        %v9380 = vpack.c.b16 %v9002, %v8996
        %v9381 = vpack.c.b16 %v9003, %v8997
        %v9382 = vpack.c.b16 %v9004, %v8998
        %v9383 = vpack.c.b16 %v9005, %v8999
        %v9384 = vpack.c.b16 %v9006, %v9000
        %v9385 = vpack.c.b16 %v9013, %v9007
        %v9386 = vpack.c.b16 %v9014, %v9008
        %v9387 = vpack.c.b16 %v9015, %v9009
        %v9388 = vpack.c.b16 %v9016, %v9010
        %v9389 = vpack.c.b16 %v9017, %v9011
        %v9390 = vpack.c.b16 %v9018, %v9012
        %v9391 = vpack.c.b16 %v9025, %v9019
        %v9392 = vpack.c.b16 %v9026, %v9020
        %v9393 = vpack.c.b16 %v9027, %v9021
        %v9394 = vpack.c.b16 %v9028, %v9022
        %v9395 = vpack.c.b16 %v9029, %v9023
        %v9396 = vpack.c.b16 %v9030, %v9024
        %v9397 = vpack.c.b16 %v9037, %v9031
        %v9398 = vpack.c.b16 %v9038, %v9032
        %v9399 = vpack.c.b16 %v9039, %v9033
        %v9400 = vpack.c.b16 %v9040, %v9034
        %v9401 = vpack.c.b16 %v9041, %v9035
        %v9402 = vpack.c.b16 %v9042, %v9036
        %v9403 = vpack.c.b16 %v9049, %v9043
        %v9404 = vpack.c.b16 %v9050, %v9044
        %v9405 = vpack.c.b16 %v9051, %v9045
        %v9406 = vpack.c.b16 %v9052, %v9046
        %v9407 = vpack.c.b16 %v9053, %v9047
        %v9408 = vpack.c.b16 %v9054, %v9048
        %v9409 = vpack.c.b16 %v9061, %v9055
        %v9410 = vpack.c.b16 %v9062, %v9056
        %v9411 = vpack.c.b16 %v9063, %v9057
        %v9412 = vpack.c.b16 %v9064, %v9058
        %v9413 = vpack.c.b16 %v9065, %v9059
        %v9414 = vpack.c.b16 %v9066, %v9060
        %v9415 = vpack.c.b16 %v9073, %v9067
        %v9416 = vpack.c.b16 %v9074, %v9068
        %v9417 = vpack.c.b16 %v9075, %v9069
        %v9418 = vpack.c.b16 %v9076, %v9070
        %v9419 = vpack.c.b16 %v9077, %v9071
        %v9420 = vpack.c.b16 %v9078, %v9072
        %v9421 = vpack.c.b16 %v9085, %v9079
        %v9422 = vpack.c.b16 %v9086, %v9080
        %v9423 = vpack.c.b16 %v9087, %v9081
        %v9424 = vpack.c.b16 %v9088, %v9082
        %v9425 = vpack.c.b16 %v9089, %v9083
        %v9426 = vpack.c.b16 %v9090, %v9084
        %v9427 = vpack.c.b16 %v9097, %v9091
        %v9428 = vpack.c.b16 %v9098, %v9092
        %v9429 = vpack.c.b16 %v9099, %v9093
        %v9430 = vpack.c.b16 %v9100, %v9094
        %v9431 = vpack.c.b16 %v9101, %v9095
        %v9432 = vpack.c.b16 %v9102, %v9096
        %v9433 = vpack.c.b16 %v9109, %v9103
        %v9434 = vpack.c.b16 %v9110, %v9104
        %v9435 = vpack.c.b16 %v9111, %v9105
        %v9436 = vpack.c.b16 %v9112, %v9106
        %v9437 = vpack.c.b16 %v9113, %v9107
        %v9438 = vpack.c.b16 %v9114, %v9108
        %v9439 = vpack.c.b16 %v9121, %v9115
        %v9440 = vpack.c.b16 %v9122, %v9116
        %v9441 = vpack.c.b16 %v9123, %v9117
        %v9442 = vpack.c.b16 %v9124, %v9118
        %v9443 = vpack.c.b16 %v9125, %v9119
        %v9444 = vpack.c.b16 %v9126, %v9120
        %v9445 = vpack.c.b16 %v9133, %v9127
        %v9446 = vpack.c.b16 %v9134, %v9128
        %v9447 = vpack.c.b16 %v9135, %v9129
        %v9448 = vpack.c.b16 %v9136, %v9130
        %v9449 = vpack.c.b16 %v9137, %v9131
        %v9450 = vpack.c.b16 %v9138, %v9132
        %v9451 = vpack.c.b16 %v9145, %v9139
        %v9452 = vpack.c.b16 %v9146, %v9140
        %v9453 = vpack.c.b16 %v9147, %v9141
        %v9454 = vpack.c.b16 %v9148, %v9142
        %v9455 = vpack.c.b16 %v9149, %v9143
        %v9456 = vpack.c.b16 %v9150, %v9144
        %v9457 = vpack.c.b16 %v9157, %v9151
        %v9458 = vpack.c.b16 %v9158, %v9152
        %v9459 = vpack.c.b16 %v9159, %v9153
        %v9460 = vpack.c.b16 %v9160, %v9154
        %v9461 = vpack.c.b16 %v9161, %v9155
        %v9462 = vpack.c.b16 %v9162, %v9156
        %v9463 = vpack.c.b16 %v9169, %v9163
        %v9464 = vpack.c.b16 %v9170, %v9164
        %v9465 = vpack.c.b16 %v9171, %v9165
        %v9466 = vpack.c.b16 %v9172, %v9166
        %v9467 = vpack.c.b16 %v9173, %v9167
        %v9468 = vpack.c.b16 %v9174, %v9168
        %v9469 = vpack.c.b16 %v9181, %v9175
        %v9470 = vpack.c.b16 %v9182, %v9176
        %v9471 = vpack.c.b16 %v9183, %v9177
        %v9472 = vpack.c.b16 %v9184, %v9178
        %v9473 = vpack.c.b16 %v9185, %v9179
        %v9474 = vpack.c.b16 %v9186, %v9180
        %9763 = vmatpush.bf16.msra.mxu0 %v9229
        %9764 = vmatpush.bf16.msra.mxu0 %v9223
        %9765 = vmatpush.bf16.msra.mxu0 %v9217
        %9766 = vmatpush.bf16.msra.mxu0 %v9211
        %9767 = vmatpush.bf16.msra.mxu0 %v9205
        %9768 = vmatpush.bf16.msra.mxu0 %v9199
        %9769 = vmatpush.bf16.msra.mxu0 %v9193
        %9770 = vmatpush.bf16.msra.mxu0 %v9187
        %9771 = vmatmul.bf16.gmra.mxu0 %v8015
        %v9772 = vpop.f32.mrf.mxu0
        %v9773 = vadd.f32 %v8311, %v9772
        %v9774 = vpop.f32.mrf.mxu0
        %9775 = vdwg.mxu0
        %9776 = vmatpush.bf16.msra.mxu0 %v9277
        %9777 = vmatpush.bf16.msra.mxu0 %v9271
        %9778 = vmatpush.bf16.msra.mxu0 %v9265
        %9779 = vmatpush.bf16.msra.mxu0 %v9259
        %9780 = vmatpush.bf16.msra.mxu0 %v9253
        %9781 = vmatpush.bf16.msra.mxu0 %v9247
        %9782 = vmatpush.bf16.msra.mxu0 %v9241
        %9783 = vmatpush.bf16.msra.mxu0 %v9235
        %9784 = vmatmul.bf16.gmra.mxu0 %v8016
        %v9785 = vpop.f32.mrf.mxu0
        %v9786 = vadd.f32 %v9773, %v9785
        %v9787 = vpop.f32.mrf.mxu0
        %9788 = vdwg.mxu0
        %9789 = vmatpush.bf16.msra.mxu0 %v9325
        %9790 = vmatpush.bf16.msra.mxu0 %v9319
        %9791 = vmatpush.bf16.msra.mxu0 %v9313
        %9792 = vmatpush.bf16.msra.mxu0 %v9307
        %9793 = vmatpush.bf16.msra.mxu0 %v9301
        %9794 = vmatpush.bf16.msra.mxu0 %v9295
        %9795 = vmatpush.bf16.msra.mxu0 %v9289
        %9796 = vmatpush.bf16.msra.mxu0 %v9283
        %9797 = vmatmul.bf16.gmra.mxu0 %v8017
        %v9798 = vpop.f32.mrf.mxu0
        %v9799 = vadd.f32 %v9786, %v9798
        %v9800 = vpop.f32.mrf.mxu0
        %9801 = vdwg.mxu0
        %9802 = vmatpush.bf16.msra.mxu0 %v9373
        %9803 = vmatpush.bf16.msra.mxu0 %v9367
        %9804 = vmatpush.bf16.msra.mxu0 %v9361
        %9805 = vmatpush.bf16.msra.mxu0 %v9355
        %9806 = vmatpush.bf16.msra.mxu0 %v9349
        %9807 = vmatpush.bf16.msra.mxu0 %v9343
        %9808 = vmatpush.bf16.msra.mxu0 %v9337
        %9809 = vmatpush.bf16.msra.mxu0 %v9331
        %9810 = vmatmul.bf16.gmra.mxu0 %v8018
        %v9811 = vpop.f32.mrf.mxu0
        %v9812 = vadd.f32 %v9799, %v9811
        %v9813 = vpop.f32.mrf.mxu0
        %9814 = vdwg.mxu0
        %9815 = vmatpush.bf16.msra.mxu0 %v9421
        %9816 = vmatpush.bf16.msra.mxu0 %v9415
        %9817 = vmatpush.bf16.msra.mxu0 %v9409
        %9818 = vmatpush.bf16.msra.mxu0 %v9403
        %9819 = vmatpush.bf16.msra.mxu0 %v9397
        %9820 = vmatpush.bf16.msra.mxu0 %v9391
        %9821 = vmatpush.bf16.msra.mxu0 %v9385
        %9822 = vmatpush.bf16.msra.mxu0 %v9379
        %9823 = vmatmul.bf16.gmra.mxu0 %v8019
        %v9824 = vpop.f32.mrf.mxu0
        %v9825 = vadd.f32 %v9812, %v9824
        %v9826 = vpop.f32.mrf.mxu0
        %9827 = vdwg.mxu0
        %9828 = vmatpush.bf16.msra.mxu0 %v9469
        %9829 = vmatpush.bf16.msra.mxu0 %v9463
        %9830 = vmatpush.bf16.msra.mxu0 %v9457
        %9831 = vmatpush.bf16.msra.mxu0 %v9451
        %9832 = vmatpush.bf16.msra.mxu0 %v9445
        %9833 = vmatpush.bf16.msra.mxu0 %v9439
        %9834 = vmatpush.bf16.msra.mxu0 %v9433
        %9835 = vmatpush.bf16.msra.mxu0 %v9427
        %9836 = vmatmul.bf16.gmra.mxu0 %v8020
        %v9837 = vpop.f32.mrf.mxu0
        %v9838 = vadd.f32 %v9825, %v9837
        %v9839 = vpop.f32.mrf.mxu0
        %9840 = vdwg.mxu0
        %9841 = vmatpush.bf16.msra.mxu0 %v9230
        %9842 = vmatpush.bf16.msra.mxu0 %v9224
        %9843 = vmatpush.bf16.msra.mxu0 %v9218
        %9844 = vmatpush.bf16.msra.mxu0 %v9212
        %9845 = vmatpush.bf16.msra.mxu0 %v9206
        %9846 = vmatpush.bf16.msra.mxu0 %v9200
        %9847 = vmatpush.bf16.msra.mxu0 %v9194
        %9848 = vmatpush.bf16.msra.mxu0 %v9188
        %9849 = vmatmul.bf16.gmra.mxu0 %v8015
        %v9850 = vpop.f32.mrf.mxu0
        %v9851 = vadd.f32 %v8312, %v9850
        %v9852 = vpop.f32.mrf.mxu0
        %9853 = vdwg.mxu0
        %9854 = vmatpush.bf16.msra.mxu0 %v9278
        %9855 = vmatpush.bf16.msra.mxu0 %v9272
        %9856 = vmatpush.bf16.msra.mxu0 %v9266
        %9857 = vmatpush.bf16.msra.mxu0 %v9260
        %9858 = vmatpush.bf16.msra.mxu0 %v9254
        %9859 = vmatpush.bf16.msra.mxu0 %v9248
        %9860 = vmatpush.bf16.msra.mxu0 %v9242
        %9861 = vmatpush.bf16.msra.mxu0 %v9236
        %9862 = vmatmul.bf16.gmra.mxu0 %v8016
        %v9863 = vpop.f32.mrf.mxu0
        %v9864 = vadd.f32 %v9851, %v9863
        %v9865 = vpop.f32.mrf.mxu0
        %9866 = vdwg.mxu0
        %9867 = vmatpush.bf16.msra.mxu0 %v9326
        %9868 = vmatpush.bf16.msra.mxu0 %v9320
        %9869 = vmatpush.bf16.msra.mxu0 %v9314
        %9870 = vmatpush.bf16.msra.mxu0 %v9308
        %9871 = vmatpush.bf16.msra.mxu0 %v9302
        %9872 = vmatpush.bf16.msra.mxu0 %v9296
        %9873 = vmatpush.bf16.msra.mxu0 %v9290
        %9874 = vmatpush.bf16.msra.mxu0 %v9284
        %9875 = vmatmul.bf16.gmra.mxu0 %v8017
        %v9876 = vpop.f32.mrf.mxu0
        %v9877 = vadd.f32 %v9864, %v9876
        %v9878 = vpop.f32.mrf.mxu0
        %9879 = vdwg.mxu0
        %9880 = vmatpush.bf16.msra.mxu0 %v9374
        %9881 = vmatpush.bf16.msra.mxu0 %v9368
        %9882 = vmatpush.bf16.msra.mxu0 %v9362
        %9883 = vmatpush.bf16.msra.mxu0 %v9356
        %9884 = vmatpush.bf16.msra.mxu0 %v9350
        %9885 = vmatpush.bf16.msra.mxu0 %v9344
        %9886 = vmatpush.bf16.msra.mxu0 %v9338
        %9887 = vmatpush.bf16.msra.mxu0 %v9332
        %9888 = vmatmul.bf16.gmra.mxu0 %v8018
        %v9889 = vpop.f32.mrf.mxu0
        %v9890 = vadd.f32 %v9877, %v9889
        %v9891 = vpop.f32.mrf.mxu0
        %9892 = vdwg.mxu0
        %9893 = vmatpush.bf16.msra.mxu0 %v9422
        %9894 = vmatpush.bf16.msra.mxu0 %v9416
        %9895 = vmatpush.bf16.msra.mxu0 %v9410
        %9896 = vmatpush.bf16.msra.mxu0 %v9404
        %9897 = vmatpush.bf16.msra.mxu0 %v9398
        %9898 = vmatpush.bf16.msra.mxu0 %v9392
        %9899 = vmatpush.bf16.msra.mxu0 %v9386
        %9900 = vmatpush.bf16.msra.mxu0 %v9380
        %9901 = vmatmul.bf16.gmra.mxu0 %v8019
        %v9902 = vpop.f32.mrf.mxu0
        %v9903 = vadd.f32 %v9890, %v9902
        %v9904 = vpop.f32.mrf.mxu0
        %9905 = vdwg.mxu0
        %9906 = vmatpush.bf16.msra.mxu0 %v9470
        %9907 = vmatpush.bf16.msra.mxu0 %v9464
        %9908 = vmatpush.bf16.msra.mxu0 %v9458
        %9909 = vmatpush.bf16.msra.mxu0 %v9452
        %9910 = vmatpush.bf16.msra.mxu0 %v9446
        %9911 = vmatpush.bf16.msra.mxu0 %v9440
        %9912 = vmatpush.bf16.msra.mxu0 %v9434
        %9913 = vmatpush.bf16.msra.mxu0 %v9428
        %9914 = vmatmul.bf16.gmra.mxu0 %v8020
        %v9915 = vpop.f32.mrf.mxu0
        %v9916 = vadd.f32 %v9903, %v9915
        %v9917 = vpop.f32.mrf.mxu0
        %9918 = vdwg.mxu0
        %9919 = vmatpush.bf16.msra.mxu0 %v9231
        %9920 = vmatpush.bf16.msra.mxu0 %v9225
        %9921 = vmatpush.bf16.msra.mxu0 %v9219
        %9922 = vmatpush.bf16.msra.mxu0 %v9213
        %9923 = vmatpush.bf16.msra.mxu0 %v9207
        %9924 = vmatpush.bf16.msra.mxu0 %v9201
        %9925 = vmatpush.bf16.msra.mxu0 %v9195
        %9926 = vmatpush.bf16.msra.mxu0 %v9189
        %9927 = vmatmul.bf16.gmra.mxu0 %v8015
        %v9928 = vpop.f32.mrf.mxu0
        %v9929 = vadd.f32 %v8313, %v9928
        %v9930 = vpop.f32.mrf.mxu0
        %9931 = vdwg.mxu0
        %9932 = vmatpush.bf16.msra.mxu0 %v9279
        %9933 = vmatpush.bf16.msra.mxu0 %v9273
        %9934 = vmatpush.bf16.msra.mxu0 %v9267
        %9935 = vmatpush.bf16.msra.mxu0 %v9261
        %9936 = vmatpush.bf16.msra.mxu0 %v9255
        %9937 = vmatpush.bf16.msra.mxu0 %v9249
        %9938 = vmatpush.bf16.msra.mxu0 %v9243
        %9939 = vmatpush.bf16.msra.mxu0 %v9237
        %9940 = vmatmul.bf16.gmra.mxu0 %v8016
        %v9941 = vpop.f32.mrf.mxu0
        %v9942 = vadd.f32 %v9929, %v9941
        %v9943 = vpop.f32.mrf.mxu0
        %9944 = vdwg.mxu0
        %9945 = vmatpush.bf16.msra.mxu0 %v9327
        %9946 = vmatpush.bf16.msra.mxu0 %v9321
        %9947 = vmatpush.bf16.msra.mxu0 %v9315
        %9948 = vmatpush.bf16.msra.mxu0 %v9309
        %9949 = vmatpush.bf16.msra.mxu0 %v9303
        %9950 = vmatpush.bf16.msra.mxu0 %v9297
        %9951 = vmatpush.bf16.msra.mxu0 %v9291
        %9952 = vmatpush.bf16.msra.mxu0 %v9285
        %9953 = vmatmul.bf16.gmra.mxu0 %v8017
        %v9954 = vpop.f32.mrf.mxu0
        %v9955 = vadd.f32 %v9942, %v9954
        %v9956 = vpop.f32.mrf.mxu0
        %9957 = vdwg.mxu0
        %9958 = vmatpush.bf16.msra.mxu0 %v9375
        %9959 = vmatpush.bf16.msra.mxu0 %v9369
        %9960 = vmatpush.bf16.msra.mxu0 %v9363
        %9961 = vmatpush.bf16.msra.mxu0 %v9357
        %9962 = vmatpush.bf16.msra.mxu0 %v9351
        %9963 = vmatpush.bf16.msra.mxu0 %v9345
        %9964 = vmatpush.bf16.msra.mxu0 %v9339
        %9965 = vmatpush.bf16.msra.mxu0 %v9333
        %9966 = vmatmul.bf16.gmra.mxu0 %v8018
        %v9967 = vpop.f32.mrf.mxu0
        %v9968 = vadd.f32 %v9955, %v9967
        %v9969 = vpop.f32.mrf.mxu0
        %9970 = vdwg.mxu0
        %9971 = vmatpush.bf16.msra.mxu0 %v9423
        %9972 = vmatpush.bf16.msra.mxu0 %v9417
        %9973 = vmatpush.bf16.msra.mxu0 %v9411
        %9974 = vmatpush.bf16.msra.mxu0 %v9405
        %9975 = vmatpush.bf16.msra.mxu0 %v9399
        %9976 = vmatpush.bf16.msra.mxu0 %v9393
        %9977 = vmatpush.bf16.msra.mxu0 %v9387
        %9978 = vmatpush.bf16.msra.mxu0 %v9381
        %9979 = vmatmul.bf16.gmra.mxu0 %v8019
        %v9980 = vpop.f32.mrf.mxu0
        %v9981 = vadd.f32 %v9968, %v9980
        %v9982 = vpop.f32.mrf.mxu0
        %9983 = vdwg.mxu0
        %9984 = vmatpush.bf16.msra.mxu0 %v9471
        %9985 = vmatpush.bf16.msra.mxu0 %v9465
        %9986 = vmatpush.bf16.msra.mxu0 %v9459
        %9987 = vmatpush.bf16.msra.mxu0 %v9453
        %9988 = vmatpush.bf16.msra.mxu0 %v9447
        %9989 = vmatpush.bf16.msra.mxu0 %v9441
        %9990 = vmatpush.bf16.msra.mxu0 %v9435
        %9991 = vmatpush.bf16.msra.mxu0 %v9429
        %9992 = vmatmul.bf16.gmra.mxu0 %v8020
        %v9993 = vpop.f32.mrf.mxu0
        %v9994 = vadd.f32 %v9981, %v9993
        %v9995 = vpop.f32.mrf.mxu0
        %9996 = vdwg.mxu0
        %9997 = vmatpush.bf16.msra.mxu0 %v9232
        %9998 = vmatpush.bf16.msra.mxu0 %v9226
        %9999 = vmatpush.bf16.msra.mxu0 %v9220
        %10000 = vmatpush.bf16.msra.mxu0 %v9214
        %10001 = vmatpush.bf16.msra.mxu0 %v9208
        %10002 = vmatpush.bf16.msra.mxu0 %v9202
        %10003 = vmatpush.bf16.msra.mxu0 %v9196
        %10004 = vmatpush.bf16.msra.mxu0 %v9190
        %10005 = vmatmul.bf16.gmra.mxu0 %v8015
        %v10006 = vpop.f32.mrf.mxu0
        %v10007 = vadd.f32 %v8314, %v10006
        %v10008 = vpop.f32.mrf.mxu0
        %10009 = vdwg.mxu0
        %10010 = vmatpush.bf16.msra.mxu0 %v9280
        %10011 = vmatpush.bf16.msra.mxu0 %v9274
        %10012 = vmatpush.bf16.msra.mxu0 %v9268
        %10013 = vmatpush.bf16.msra.mxu0 %v9262
        %10014 = vmatpush.bf16.msra.mxu0 %v9256
        %10015 = vmatpush.bf16.msra.mxu0 %v9250
        %10016 = vmatpush.bf16.msra.mxu0 %v9244
        %10017 = vmatpush.bf16.msra.mxu0 %v9238
        %10018 = vmatmul.bf16.gmra.mxu0 %v8016
        %v10019 = vpop.f32.mrf.mxu0
        %v10020 = vadd.f32 %v10007, %v10019
        %v10021 = vpop.f32.mrf.mxu0
        %10022 = vdwg.mxu0
        %10023 = vmatpush.bf16.msra.mxu0 %v9328
        %10024 = vmatpush.bf16.msra.mxu0 %v9322
        %10025 = vmatpush.bf16.msra.mxu0 %v9316
        %10026 = vmatpush.bf16.msra.mxu0 %v9310
        %10027 = vmatpush.bf16.msra.mxu0 %v9304
        %10028 = vmatpush.bf16.msra.mxu0 %v9298
        %10029 = vmatpush.bf16.msra.mxu0 %v9292
        %10030 = vmatpush.bf16.msra.mxu0 %v9286
        %10031 = vmatmul.bf16.gmra.mxu0 %v8017
        %v10032 = vpop.f32.mrf.mxu0
        %v10033 = vadd.f32 %v10020, %v10032
        %v10034 = vpop.f32.mrf.mxu0
        %10035 = vdwg.mxu0
        %10036 = vmatpush.bf16.msra.mxu0 %v9376
        %10037 = vmatpush.bf16.msra.mxu0 %v9370
        %10038 = vmatpush.bf16.msra.mxu0 %v9364
        %10039 = vmatpush.bf16.msra.mxu0 %v9358
        %10040 = vmatpush.bf16.msra.mxu0 %v9352
        %10041 = vmatpush.bf16.msra.mxu0 %v9346
        %10042 = vmatpush.bf16.msra.mxu0 %v9340
        %10043 = vmatpush.bf16.msra.mxu0 %v9334
        %10044 = vmatmul.bf16.gmra.mxu0 %v8018
        %v10045 = vpop.f32.mrf.mxu0
        %v10046 = vadd.f32 %v10033, %v10045
        %v10047 = vpop.f32.mrf.mxu0
        %10048 = vdwg.mxu0
        %10049 = vmatpush.bf16.msra.mxu0 %v9424
        %10050 = vmatpush.bf16.msra.mxu0 %v9418
        %10051 = vmatpush.bf16.msra.mxu0 %v9412
        %10052 = vmatpush.bf16.msra.mxu0 %v9406
        %10053 = vmatpush.bf16.msra.mxu0 %v9400
        %10054 = vmatpush.bf16.msra.mxu0 %v9394
        %10055 = vmatpush.bf16.msra.mxu0 %v9388
        %10056 = vmatpush.bf16.msra.mxu0 %v9382
        %10057 = vmatmul.bf16.gmra.mxu0 %v8019
        %v10058 = vpop.f32.mrf.mxu0
        %v10059 = vadd.f32 %v10046, %v10058
        %v10060 = vpop.f32.mrf.mxu0
        %10061 = vdwg.mxu0
        %10062 = vmatpush.bf16.msra.mxu0 %v9472
        %10063 = vmatpush.bf16.msra.mxu0 %v9466
        %10064 = vmatpush.bf16.msra.mxu0 %v9460
        %10065 = vmatpush.bf16.msra.mxu0 %v9454
        %10066 = vmatpush.bf16.msra.mxu0 %v9448
        %10067 = vmatpush.bf16.msra.mxu0 %v9442
        %10068 = vmatpush.bf16.msra.mxu0 %v9436
        %10069 = vmatpush.bf16.msra.mxu0 %v9430
        %10070 = vmatmul.bf16.gmra.mxu0 %v8020
        %v10071 = vpop.f32.mrf.mxu0
        %v10072 = vadd.f32 %v10059, %v10071
        %v10073 = vpop.f32.mrf.mxu0
        %10074 = vdwg.mxu0
        %10075 = vmatpush.bf16.msra.mxu0 %v9233
        %10076 = vmatpush.bf16.msra.mxu0 %v9227
        %10077 = vmatpush.bf16.msra.mxu0 %v9221
        %10078 = vmatpush.bf16.msra.mxu0 %v9215
        %10079 = vmatpush.bf16.msra.mxu0 %v9209
        %10080 = vmatpush.bf16.msra.mxu0 %v9203
        %10081 = vmatpush.bf16.msra.mxu0 %v9197
        %10082 = vmatpush.bf16.msra.mxu0 %v9191
        %10083 = vmatmul.bf16.gmra.mxu0 %v8015
        %v10084 = vpop.f32.mrf.mxu0
        %v10085 = vadd.f32 %v8315, %v10084
        %v10086 = vpop.f32.mrf.mxu0
        %10087 = vdwg.mxu0
        %10088 = vmatpush.bf16.msra.mxu0 %v9281
        %10089 = vmatpush.bf16.msra.mxu0 %v9275
        %10090 = vmatpush.bf16.msra.mxu0 %v9269
        %10091 = vmatpush.bf16.msra.mxu0 %v9263
        %10092 = vmatpush.bf16.msra.mxu0 %v9257
        %10093 = vmatpush.bf16.msra.mxu0 %v9251
        %10094 = vmatpush.bf16.msra.mxu0 %v9245
        %10095 = vmatpush.bf16.msra.mxu0 %v9239
        %10096 = vmatmul.bf16.gmra.mxu0 %v8016
        %v10097 = vpop.f32.mrf.mxu0
        %v10098 = vadd.f32 %v10085, %v10097
        %v10099 = vpop.f32.mrf.mxu0
        %10100 = vdwg.mxu0
        %10101 = vmatpush.bf16.msra.mxu0 %v9329
        %10102 = vmatpush.bf16.msra.mxu0 %v9323
        %10103 = vmatpush.bf16.msra.mxu0 %v9317
        %10104 = vmatpush.bf16.msra.mxu0 %v9311
        %10105 = vmatpush.bf16.msra.mxu0 %v9305
        %10106 = vmatpush.bf16.msra.mxu0 %v9299
        %10107 = vmatpush.bf16.msra.mxu0 %v9293
        %10108 = vmatpush.bf16.msra.mxu0 %v9287
        %10109 = vmatmul.bf16.gmra.mxu0 %v8017
        %v10110 = vpop.f32.mrf.mxu0
        %v10111 = vadd.f32 %v10098, %v10110
        %v10112 = vpop.f32.mrf.mxu0
        %10113 = vdwg.mxu0
        %10114 = vmatpush.bf16.msra.mxu0 %v9377
        %10115 = vmatpush.bf16.msra.mxu0 %v9371
        %10116 = vmatpush.bf16.msra.mxu0 %v9365
        %10117 = vmatpush.bf16.msra.mxu0 %v9359
        %10118 = vmatpush.bf16.msra.mxu0 %v9353
        %10119 = vmatpush.bf16.msra.mxu0 %v9347
        %10120 = vmatpush.bf16.msra.mxu0 %v9341
        %10121 = vmatpush.bf16.msra.mxu0 %v9335
        %10122 = vmatmul.bf16.gmra.mxu0 %v8018
        %v10123 = vpop.f32.mrf.mxu0
        %v10124 = vadd.f32 %v10111, %v10123
        %v10125 = vpop.f32.mrf.mxu0
        %10126 = vdwg.mxu0
        %10127 = vmatpush.bf16.msra.mxu0 %v9425
        %10128 = vmatpush.bf16.msra.mxu0 %v9419
        %10129 = vmatpush.bf16.msra.mxu0 %v9413
        %10130 = vmatpush.bf16.msra.mxu0 %v9407
        %10131 = vmatpush.bf16.msra.mxu0 %v9401
        %10132 = vmatpush.bf16.msra.mxu0 %v9395
        %10133 = vmatpush.bf16.msra.mxu0 %v9389
        %10134 = vmatpush.bf16.msra.mxu0 %v9383
        %10135 = vmatmul.bf16.gmra.mxu0 %v8019
        %v10136 = vpop.f32.mrf.mxu0
        %v10137 = vadd.f32 %v10124, %v10136
        %v10138 = vpop.f32.mrf.mxu0
        %10139 = vdwg.mxu0
        %10140 = vmatpush.bf16.msra.mxu0 %v9473
        %10141 = vmatpush.bf16.msra.mxu0 %v9467
        %10142 = vmatpush.bf16.msra.mxu0 %v9461
        %10143 = vmatpush.bf16.msra.mxu0 %v9455
        %10144 = vmatpush.bf16.msra.mxu0 %v9449
        %10145 = vmatpush.bf16.msra.mxu0 %v9443
        %10146 = vmatpush.bf16.msra.mxu0 %v9437
        %10147 = vmatpush.bf16.msra.mxu0 %v9431
        %10148 = vmatmul.bf16.gmra.mxu0 %v8020
        %v10149 = vpop.f32.mrf.mxu0
        %v10150 = vadd.f32 %v10137, %v10149
        %v10151 = vpop.f32.mrf.mxu0
        %10152 = vdwg.mxu0
        %10153 = vmatpush.bf16.msra.mxu0 %v9234
        %10154 = vmatpush.bf16.msra.mxu0 %v9228
        %10155 = vmatpush.bf16.msra.mxu0 %v9222
        %10156 = vmatpush.bf16.msra.mxu0 %v9216
        %10157 = vmatpush.bf16.msra.mxu0 %v9210
        %10158 = vmatpush.bf16.msra.mxu0 %v9204
        %10159 = vmatpush.bf16.msra.mxu0 %v9198
        %10160 = vmatpush.bf16.msra.mxu0 %v9192
        %10161 = vmatmul.bf16.gmra.mxu0 %v8015
        %v10162 = vpop.f32.mrf.mxu0
        %v10163 = vadd.f32 %v8316, %v10162
        %v10164 = vpop.f32.mrf.mxu0
        %10165 = vdwg.mxu0
        %10166 = vmatpush.bf16.msra.mxu0 %v9282
        %10167 = vmatpush.bf16.msra.mxu0 %v9276
        %10168 = vmatpush.bf16.msra.mxu0 %v9270
        %10169 = vmatpush.bf16.msra.mxu0 %v9264
        %10170 = vmatpush.bf16.msra.mxu0 %v9258
        %10171 = vmatpush.bf16.msra.mxu0 %v9252
        %10172 = vmatpush.bf16.msra.mxu0 %v9246
        %10173 = vmatpush.bf16.msra.mxu0 %v9240
        %10174 = vmatmul.bf16.gmra.mxu0 %v8016
        %v10175 = vpop.f32.mrf.mxu0
        %v10176 = vadd.f32 %v10163, %v10175
        %v10177 = vpop.f32.mrf.mxu0
        %10178 = vdwg.mxu0
        %10179 = vmatpush.bf16.msra.mxu0 %v9330
        %10180 = vmatpush.bf16.msra.mxu0 %v9324
        %10181 = vmatpush.bf16.msra.mxu0 %v9318
        %10182 = vmatpush.bf16.msra.mxu0 %v9312
        %10183 = vmatpush.bf16.msra.mxu0 %v9306
        %10184 = vmatpush.bf16.msra.mxu0 %v9300
        %10185 = vmatpush.bf16.msra.mxu0 %v9294
        %10186 = vmatpush.bf16.msra.mxu0 %v9288
        %10187 = vmatmul.bf16.gmra.mxu0 %v8017
        %v10188 = vpop.f32.mrf.mxu0
        %v10189 = vadd.f32 %v10176, %v10188
        %v10190 = vpop.f32.mrf.mxu0
        %10191 = vdwg.mxu0
        %10192 = vmatpush.bf16.msra.mxu0 %v9378
        %10193 = vmatpush.bf16.msra.mxu0 %v9372
        %10194 = vmatpush.bf16.msra.mxu0 %v9366
        %10195 = vmatpush.bf16.msra.mxu0 %v9360
        %10196 = vmatpush.bf16.msra.mxu0 %v9354
        %10197 = vmatpush.bf16.msra.mxu0 %v9348
        %10198 = vmatpush.bf16.msra.mxu0 %v9342
        %10199 = vmatpush.bf16.msra.mxu0 %v9336
        %10200 = vmatmul.bf16.gmra.mxu0 %v8018
        %v10201 = vpop.f32.mrf.mxu0
        %v10202 = vadd.f32 %v10189, %v10201
        %v10203 = vpop.f32.mrf.mxu0
        %10204 = vdwg.mxu0
        %10205 = vmatpush.bf16.msra.mxu0 %v9426
        %10206 = vmatpush.bf16.msra.mxu0 %v9420
        %10207 = vmatpush.bf16.msra.mxu0 %v9414
        %10208 = vmatpush.bf16.msra.mxu0 %v9408
        %10209 = vmatpush.bf16.msra.mxu0 %v9402
        %10210 = vmatpush.bf16.msra.mxu0 %v9396
        %10211 = vmatpush.bf16.msra.mxu0 %v9390
        %10212 = vmatpush.bf16.msra.mxu0 %v9384
        %10213 = vmatmul.bf16.gmra.mxu0 %v8019
        %v10214 = vpop.f32.mrf.mxu0
        %v10215 = vadd.f32 %v10202, %v10214
        %v10216 = vpop.f32.mrf.mxu0
        %10217 = vdwg.mxu0
        %10218 = vmatpush.bf16.msra.mxu0 %v9474
        %10219 = vmatpush.bf16.msra.mxu0 %v9468
        %10220 = vmatpush.bf16.msra.mxu0 %v9462
        %10221 = vmatpush.bf16.msra.mxu0 %v9456
        %10222 = vmatpush.bf16.msra.mxu0 %v9450
        %10223 = vmatpush.bf16.msra.mxu0 %v9444
        %10224 = vmatpush.bf16.msra.mxu0 %v9438
        %10225 = vmatpush.bf16.msra.mxu0 %v9432
        %10226 = vmatmul.bf16.gmra.mxu0 %v8020
        %v10227 = vpop.f32.mrf.mxu0
        %v10228 = vadd.f32 %v10215, %v10227
        %v10229 = vpop.f32.mrf.mxu0
        %10230 = vdwg.mxu0
        %v10231 = vadd.f32 %v9838, %v389
        %v10232 = vadd.f32 %v9916, %v390
        %v10233 = vadd.f32 %v9994, %v391
        %v10234 = vadd.f32 %v10072, %v392
        %v10235 = vadd.f32 %v10150, %v393
        %v10236 = vadd.f32 %v10228, %v394
        %10237 = vst [vmem:[%s387] sm:$0xff] %v10231
        %10238 = vst [vmem:[%s387 + $0x8] sm:$0xff] %v10232
        %10239 = vst [vmem:[%s387 + $0x10] sm:$0xff] %v10233
        %10240 = vst [vmem:[%s387 + $0x18] sm:$0xff] %v10234
        %10241 = vst [vmem:[%s387 + $0x20] sm:$0xff] %v10235
        %10242 = vst [vmem:[%s387 + $0x28] sm:$0xff] %v10236
        %s10243 = sand.u32 %s187, 1
        %s10244 = scalar_lea.sflag [#allocation5], %s10243
        %s10245 = sand.u32 %s187, 1
        %s10246 = smul.addr %s10245, 48
        %s10247 = scalar_lea.vmem [#allocation15], %s10246
        // Predicated region
        $region77: #{tpu_custom_call.1} parent=47 // pred_check
          %p10248 = pneg %p197
        $region78: #{tpu_custom_call.1} parent=47 // pred_check_branch
          %10250 = sbr.rel (%p10248) target = $region80
        $region79: #{tpu_custom_call.1} parent=47 // pred_region
          %10252 = vsyncadd %s10244, 0
          %s10253 = smul.addr %s27, 6
          %s10254 = smul.addr %s10253, 8
          %s10255 = scalar_lea.hbm %s7, %s10254
          %s10257 = sshll.u32 %s10247, 4
          %s10258 = int_to_ptr.vmem [resolvable:$true] %s10257
          %s10259 = sshll.u32 %s10255, 4
          %s10260 = int_to_ptr.hbm [resolvable:$true] %s10259
          %10262 = dma.vmem_to_hbm [thread:$0]  %s10258, 768, %s10260, %s10244
        $region80: #{tpu_custom_call.1} parent=47 // pred_fallthru
          _
      $region48: #{tpu_custom_call.1} parent=5 // pred_fallthru
        _
      %p10263 = scmp.le.s32.totalorder 2, %s22
      // Predicated region
      $region81: #{tpu_custom_call.1} parent=5 // pred_check
        %p10264 = pneg %p10263
      $region82: #{tpu_custom_call.1} parent=5 // pred_check_branch
        %10266 = sbr.rel (%p10264) target = $region84
      $region83: #{tpu_custom_call.1} parent=5 // pred_region
        %s10267 = ssub.s32 %s22, 2
        // Predicated region
        $region85: #{tpu_custom_call.1} parent=83 // pred_check
          %p10268 = pneg %p203
        $region86: #{tpu_custom_call.1} parent=83 // pred_check_branch
          %10270 = sbr.rel (%p10268) target = $region88
        $region87: #{tpu_custom_call.1} parent=83 // pred_region
          %s10271 = sand.u32 %s188, 1
          %s10272 = scalar_lea.sflag [#allocation5], %s10271
          %s10273 = sand.u32 %s188, 1
          %s10274 = smul.addr %s10273, 48
          %s10275 = scalar_lea.vmem [#allocation15], %s10274
          %10277 = dma.done %s10272, 768
        $region88: #{tpu_custom_call.1} parent=83 // pred_fallthru
          _
      $region84: #{tpu_custom_call.1} parent=5 // pred_fallthru
        _
    $region6: #{tpu_custom_call.1} parent=1 // loop_footer
      %s26 = sadd.s32 1, %s22
    $region7: #{tpu_custom_call.1} parent=1 // loop_footer_branch
      %21 = sbr.rel target = $region3
    $region8: #{tpu_custom_call.1} parent=1 // loop_exit
      _
    %10278 = vsyncpa [#allocation4], 1
    %s10279 = scalar_lea.sflag [#allocation4], 1
    %10280 = vsyncpa %s10279, 1
    %10281 = vsyncpa [#allocation7], 1
    %10282 = vsyncpa [#allocation10], 1
    %10283 = vsyncpa [#allocation13], 1
    %10284 = vsyncpa [#allocation5], 1
    %s10285 = scalar_lea.sflag [#allocation5], 1
    %10286 = vsyncpa %s10285, 1

</llo_original>
